<compile_context>
chip_gen: v5e
topology: v5e:2x2
jax: 0.10.0
libtpu: 0.0.40
codegen_flags: <defaults>
</compile_context>

<pallas_src>
import functools
import math

import jax
import jax.numpy as jnp
from jax.experimental import pallas as pl
from jax.experimental.pallas import tpu as pltpu

VMEM = pl.BlockSpec(memory_space=pltpu.MemorySpace.VMEM)
_EPS = 1e-5   # PyTorch nn.Transformer default layer_norm_eps


# ----------------------------------------------------------- in-kernel helpers ----
def _ln(x, g, b, eps):
    """LayerNorm over last dim (biased variance, matching PyTorch)."""
    mu = jnp.mean(x, axis=-1, keepdims=True)
    d = x - mu
    var = jnp.mean(d * d, axis=-1, keepdims=True)
    return d * jax.lax.rsqrt(var + eps) * g + b


def _dense(x_f32, w_ref, b_ref):
    """bf16 MXU matmul with f32 accumulation + f32 bias."""
    return jnp.dot(x_f32.astype(jnp.bfloat16), w_ref[...],
                   preferred_element_type=jnp.float32) + b_ref[...]


def _mha_heads(q2d, k2d, v2d, B, Sq, Sk, H, Dh):
    """Multi-head scaled-dot attention, heads split in-kernel.

    q2d: (B*Sq, H*Dh) f32, k2d/v2d: (B*Sk, H*Dh) f32 -> (B*Sq, H*Dh) f32.
    Static unroll over heads keeps each dot a documented single-batch-dim einsum.
    """
    scale = 1.0 / math.sqrt(Dh)
    ctx = []
    for h in range(H):
        qh = q2d[:, h * Dh:(h + 1) * Dh].reshape(B, Sq, Dh).astype(jnp.bfloat16)
        kh = k2d[:, h * Dh:(h + 1) * Dh].reshape(B, Sk, Dh).astype(jnp.bfloat16)
        vh = v2d[:, h * Dh:(h + 1) * Dh].reshape(B, Sk, Dh).astype(jnp.bfloat16)
        s = jnp.einsum("bqd,bkd->bqk", qh, kh,
                       preferred_element_type=jnp.float32) * scale
        m = jnp.max(s, axis=-1, keepdims=True)
        p = jnp.exp(s - m)
        p = p * pl.reciprocal(jnp.sum(p, axis=-1, keepdims=True), approx=True)
        ch = jnp.einsum("bqk,bkd->bqd", p.astype(jnp.bfloat16), vh,
                        preferred_element_type=jnp.float32)
        ctx.append(ch.reshape(B * Sq, Dh))
    return jnp.concatenate(ctx, axis=-1)


# ------------------------------------------------------------------- kernels ----
def _enc_layer_kernel(x_ref,
                      wqkv_ref, bqkv_ref, wo_ref, bo_ref,
                      ln1_g_ref, ln1_b_ref,
                      w1_ref, b1_ref, w2_ref, b2_ref,
                      ln2_g_ref, ln2_b_ref,
                      o_ref, *, B, S, H, eps):
    E = x_ref.shape[-1]
    Dh = E // H
    x = x_ref[...]                                                  # (B*S, E)

    # fused QKV projection + self-attention + output projection
    qkv = _dense(x, wqkv_ref, bqkv_ref)                             # (B*S, 3E)
    ctx = _mha_heads(qkv[:, :E], qkv[:, E:2 * E], qkv[:, 2 * E:], B, S, S, H, Dh)
    attn = _dense(ctx, wo_ref, bo_ref)
    x2 = _ln(x + attn, ln1_g_ref[...], ln1_b_ref[...], eps)

    # feed-forward: intermediate (N, dff) never leaves VMEM
    h = jnp.maximum(_dense(x2, w1_ref, b1_ref), 0.0)
    ff = _dense(h, w2_ref, b2_ref)
    o_ref[...] = _ln(x2 + ff, ln2_g_ref[...], ln2_b_ref[...], eps)


def _dec_layer_kernel(y_ref, mem_ref,
                      s_wqkv_ref, s_bqkv_ref, s_wo_ref, s_bo_ref,
                      ln1_g_ref, ln1_b_ref,
                      c_wq_ref, c_bq_ref, c_wkv_ref, c_bkv_ref, c_wo_ref, c_bo_ref,
                      ln2_g_ref, ln2_b_ref,
                      w1_ref, b1_ref, w2_ref, b2_ref,
                      ln3_g_ref, ln3_b_ref,
                      o_ref, *, B, St, Ss, H, eps):
    E = y_ref.shape[-1]
    Dh = E // H
    y = y_ref[...]                                                  # (B*St, E)
    mem = mem_ref[...]                                              # (B*Ss, E)

    # self-attention
    qkv = _dense(y, s_wqkv_ref, s_bqkv_ref)
    ctx = _mha_heads(qkv[:, :E], qkv[:, E:2 * E], qkv[:, 2 * E:], B, St, St, H, Dh)
    attn = _dense(ctx, s_wo_ref, s_bo_ref)
    y2 = _ln(y + attn, ln1_g_ref[...], ln1_b_ref[...], eps)

    # cross-attention (q from decoder stream, packed k/v from encoder memory)
    q = _dense(y2, c_wq_ref, c_bq_ref)
    kv = _dense(mem, c_wkv_ref, c_bkv_ref)
    cctx = _mha_heads(q, kv[:, :E], kv[:, E:], B, St, Ss, H, Dh)
    cattn = _dense(cctx, c_wo_ref, c_bo_ref)
    y3 = _ln(y2 + cattn, ln2_g_ref[...], ln2_b_ref[...], eps)

    # feed-forward
    h = jnp.maximum(_dense(y3, w1_ref, b1_ref), 0.0)
    ff = _dense(h, w2_ref, b2_ref)
    o_ref[...] = _ln(y3 + ff, ln3_g_ref[...], ln3_b_ref[...], eps)


def _ln_kernel(x_ref, g_ref, b_ref, o_ref, *, eps):
    o_ref[...] = _ln(x_ref[...], g_ref[...], b_ref[...], eps)


def _final_head_kernel(y_ref, g_ref, b_ref, w_ref, fb_ref, o_ref, *, eps):
    # fused decoder final-LayerNorm + vocab projection (lane-dense 128-wide tiles)
    y = _ln(y_ref[...], g_ref[...], b_ref[...], eps)
    o_ref[...] = jnp.dot(y.astype(jnp.bfloat16), w_ref[...],
                         preferred_element_type=jnp.float32) + fb_ref[...]


# ------------------------------------------------------------------ wrappers ----
def encoder_layer(x, p, nhead, B, S):
    E = x.shape[-1]
    return pl.pallas_call(
        functools.partial(_enc_layer_kernel, B=B, S=S, H=nhead, eps=_EPS),
        out_shape=jax.ShapeDtypeStruct((B * S, E), jnp.float32),
        in_specs=[VMEM] * 13,
        out_specs=VMEM,
    )(x, p["wqkv"], p["bqkv"], p["wo"], p["bo"],
      p["ln1_g"], p["ln1_b"],
      p["w1"], p["b1"], p["w2"], p["b2"],
      p["ln2_g"], p["ln2_b"])


def decoder_layer(y, mem, p, nhead, B, St, Ss):
    E = y.shape[-1]
    return pl.pallas_call(
        functools.partial(_dec_layer_kernel, B=B, St=St, Ss=Ss, H=nhead, eps=_EPS),
        out_shape=jax.ShapeDtypeStruct((B * St, E), jnp.float32),
        in_specs=[VMEM] * 22,
        out_specs=VMEM,
    )(y, mem,
      p["s_wqkv"], p["s_bqkv"], p["s_wo"], p["s_bo"],
      p["ln1_g"], p["ln1_b"],
      p["c_wq"], p["c_bq"], p["c_wkv"], p["c_bkv"], p["c_wo"], p["c_bo"],
      p["ln2_g"], p["ln2_b"],
      p["w1"], p["b1"], p["w2"], p["b2"],
      p["ln3_g"], p["ln3_b"])


def layernorm(x, gamma, beta):
    return pl.pallas_call(
        functools.partial(_ln_kernel, eps=_EPS),
        out_shape=jax.ShapeDtypeStruct(x.shape, jnp.float32),
        in_specs=[VMEM] * 3,
        out_specs=VMEM,
    )(x, gamma, beta)


def final_head(y, g, b, w, bias, vocab):
    """Fused decoder-final-LN + fc projection; gridded over 128-wide vocab tiles."""
    N, E = y.shape
    Vp = w.shape[1]
    TN = 128
    out = pl.pallas_call(
        functools.partial(_final_head_kernel, eps=_EPS),
        out_shape=jax.ShapeDtypeStruct((N, Vp), jnp.float32),
        grid=(Vp // TN,),
        in_specs=[
            pl.BlockSpec((N, E), lambda j: (0, 0)),
            pl.BlockSpec((1, E), lambda j: (0, 0)),
            pl.BlockSpec((1, E), lambda j: (0, 0)),
            pl.BlockSpec((E, TN), lambda j: (0, j)),
            pl.BlockSpec((1, TN), lambda j: (0, j)),
        ],
        out_specs=pl.BlockSpec((N, TN), lambda j: (0, j)),
        compiler_params=pltpu.CompilerParams(dimension_semantics=("parallel",)),
    )(y, g, b, w, bias)
    return out[:, :vocab]


def model_forward(params, src, tgt, nhead):
    B, Ss = src.shape
    _, St = tgt.shape
    E = params["emb"].shape[1]
    vocab = params["emb"].shape[0]

    # TODO(synk): embedding gather is data-dependent and stays in plain JAX glue.
    src_e = params["emb"][src].reshape(B * Ss, E)
    tgt_e = params["emb"][tgt].reshape(B * St, E)

    # encoder (one fused pallas_call per layer) + final encoder norm
    x = src_e
    for lp in params["enc_layers"]:
        x = encoder_layer(x, lp, nhead, B, Ss)
    mem = layernorm(x, params["enc_norm_g"], params["enc_norm_b"])

    # decoder (one fused pallas_call per layer)
    y = tgt_e
    for lp in params["dec_layers"]:
        y = decoder_layer(y, mem, lp, nhead, B, St, Ss)

    # fused decoder final norm + vocab projection
    logits = final_head(y, params["dec_norm_g"], params["dec_norm_b"],
                        params["fc_w"], params["fc_b"], vocab)
    return logits.reshape(B, St, vocab)


# --------------------------------------------------------------------- init -----
def _init_dense(key, din, dout):
    w = (0.02 * jax.random.normal(key, (din, dout), jnp.float32)).astype(jnp.bfloat16)
    b = jnp.zeros((1, dout), jnp.float32)
    return w, b


def _ln_params(d):
    return jnp.ones((1, d), jnp.float32), jnp.zeros((1, d), jnp.float32)


def _init_enc_layer(key, d, dff):
    ks = jax.random.split(key, 4)
    wqkv, bqkv = _init_dense(ks[0], d, 3 * d)
    wo, bo = _init_dense(ks[1], d, d)
    w1, b1 = _init_dense(ks[2], d, dff)
    w2, b2 = _init_dense(ks[3], dff, d)
    ln1_g, ln1_b = _ln_params(d)
    ln2_g, ln2_b = _ln_params(d)
    return dict(wqkv=wqkv, bqkv=bqkv, wo=wo, bo=bo,
                ln1_g=ln1_g, ln1_b=ln1_b,
                w1=w1, b1=b1, w2=w2, b2=b2,
                ln2_g=ln2_g, ln2_b=ln2_b)


def _init_dec_layer(key, d, dff):
    ks = jax.random.split(key, 7)
    s_wqkv, s_bqkv = _init_dense(ks[0], d, 3 * d)
    s_wo, s_bo = _init_dense(ks[1], d, d)
    c_wq, c_bq = _init_dense(ks[2], d, d)
    c_wkv, c_bkv = _init_dense(ks[3], d, 2 * d)
    c_wo, c_bo = _init_dense(ks[4], d, d)
    w1, b1 = _init_dense(ks[5], d, dff)
    w2, b2 = _init_dense(ks[6], dff, d)
    ln1_g, ln1_b = _ln_params(d)
    ln2_g, ln2_b = _ln_params(d)
    ln3_g, ln3_b = _ln_params(d)
    return dict(s_wqkv=s_wqkv, s_bqkv=s_bqkv, s_wo=s_wo, s_bo=s_bo,
                ln1_g=ln1_g, ln1_b=ln1_b,
                c_wq=c_wq, c_bq=c_bq, c_wkv=c_wkv, c_bkv=c_bkv, c_wo=c_wo, c_bo=c_bo,
                ln2_g=ln2_g, ln2_b=ln2_b,
                w1=w1, b1=b1, w2=w2, b2=b2,
                ln3_g=ln3_g, ln3_b=ln3_b)


def init_params(key, vocab_size, d_model, dff, n_enc, n_dec):
    keys = jax.random.split(key, 2 + n_enc + n_dec)
    emb = 0.02 * jax.random.normal(keys[0], (vocab_size, d_model), jnp.float32)

    # final projection: pad vocab to a multiple of 128 so kernel stores are lane-dense
    vpad = ((vocab_size + 127) // 128) * 128
    fc_w_core = 0.02 * jax.random.normal(keys[1], (d_model, vocab_size), jnp.float32)
    fc_w = jnp.zeros((d_model, vpad), jnp.float32).at[:, :vocab_size].set(fc_w_core)
    fc_w = fc_w.astype(jnp.bfloat16)
    fc_b = jnp.zeros((1, vpad), jnp.float32)

    enc_norm_g, enc_norm_b = _ln_params(d_model)
    dec_norm_g, dec_norm_b = _ln_params(d_model)
    enc_layers = [_init_enc_layer(keys[2 + i], d_model, dff) for i in range(n_enc)]
    dec_layers = [_init_dec_layer(keys[2 + n_enc + i], d_model, dff) for i in range(n_dec)]
    return dict(emb=emb, fc_w=fc_w, fc_b=fc_b,
                enc_layers=enc_layers, dec_layers=dec_layers,
                enc_norm_g=enc_norm_g, enc_norm_b=enc_norm_b,
                dec_norm_g=dec_norm_g, dec_norm_b=dec_norm_b)


# --------------------------------------------------------------------- main -----
if __name__ == "__main__":
    # small but structurally faithful configuration (lane-friendly d_model)
    vocab_size = 100
    d_model = 128
    nhead = 4
    num_encoder_layers = 2
    num_decoder_layers = 2
    dim_feedforward = 256
    batch, src_len, tgt_len = 2, 8, 8

    key = jax.random.PRNGKey(0)
    kp, ks, kt = jax.random.split(key, 3)
    params = init_params(kp, vocab_size, d_model, dim_feedforward,
                         num_encoder_layers, num_decoder_layers)

    src = jax.random.randint(ks, (batch, src_len), 0, vocab_size, dtype=jnp.int32)
    tgt = jax.random.randint(kt, (batch, tgt_len), 0, vocab_size, dtype=jnp.int32)

    fwd = jax.jit(functools.partial(model_forward, nhead=nhead))
    out = jax.block_until_ready(fwd(params, src, tgt))
    assert out.shape == (batch, tgt_len, vocab_size)
    assert bool(jnp.all(jnp.isfinite(out)))
    print("KERNEL_OK")
</pallas_src>

<mosaic_0001>
module attributes {stable_mosaic.version = 11 : i64} {
  func.func @_ln_kernel(%arg0: memref<16x128xf32, #tpu.memory_space<vmem>>, %arg1: memref<1x128xf32, #tpu.memory_space<vmem>>, %arg2: memref<1x128xf32, #tpu.memory_space<vmem>>, %arg3: memref<16x128xf32, #tpu.memory_space<vmem>>) attributes {dimension_semantics = [], scalar_prefetch = 0 : i64, scratch_operands = 0 : i64, tpu.core_type = #tpu.core_type<tc>} {
    %c0 = arith.constant 0 : index
    %c0_0 = arith.constant 0 : index
    %0 = vector.load %arg0[%c0, %c0_0] : memref<16x128xf32, #tpu.memory_space<vmem>>, vector<16x128xf32>
    %c0_1 = arith.constant 0 : index
    %c0_2 = arith.constant 0 : index
    %1 = vector.load %arg1[%c0_1, %c0_2] : memref<1x128xf32, #tpu.memory_space<vmem>>, vector<1x128xf32>
    %c0_3 = arith.constant 0 : index
    %c0_4 = arith.constant 0 : index
    %2 = vector.load %arg2[%c0_3, %c0_4] : memref<1x128xf32, #tpu.memory_space<vmem>>, vector<1x128xf32>
    %cst = arith.constant dense<0.000000e+00> : vector<16xf32>
    %3 = vector.multi_reduction <add>, %0, %cst [1] : vector<16x128xf32> to vector<16xf32>
    %4 = vector.shape_cast %3 : vector<16xf32> to vector<16x1xf32>
    %cst_5 = arith.constant 1.280000e+02 : f32
    %5 = vector.broadcast %cst_5 : f32 to vector<16x1xf32>
    %6 = arith.divf %4, %5 : vector<16x1xf32>
    %7 = vector.broadcast %6 : vector<16x1xf32> to vector<16x128xf32>
    %8 = arith.subf %0, %7 : vector<16x128xf32>
    %9 = arith.mulf %8, %8 : vector<16x128xf32>
    %cst_6 = arith.constant dense<0.000000e+00> : vector<16xf32>
    %10 = vector.multi_reduction <add>, %9, %cst_6 [1] : vector<16x128xf32> to vector<16xf32>
    %11 = vector.shape_cast %10 : vector<16xf32> to vector<16x1xf32>
    %cst_7 = arith.constant 1.280000e+02 : f32
    %12 = vector.broadcast %cst_7 : f32 to vector<16x1xf32>
    %13 = arith.divf %11, %12 : vector<16x1xf32>
    %cst_8 = arith.constant 9.99999974E-6 : f32
    %14 = vector.broadcast %cst_8 : f32 to vector<16x1xf32>
    %15 = arith.addf %13, %14 : vector<16x1xf32>
    %16 = math.rsqrt %15 : vector<16x1xf32>
    %17 = vector.broadcast %16 : vector<16x1xf32> to vector<16x128xf32>
    %18 = arith.mulf %8, %17 : vector<16x128xf32>
    %19 = vector.broadcast %1 : vector<1x128xf32> to vector<16x128xf32>
    %20 = arith.mulf %18, %19 : vector<16x128xf32>
    %21 = vector.broadcast %2 : vector<1x128xf32> to vector<16x128xf32>
    %22 = arith.addf %20, %21 : vector<16x128xf32>
    %c0_9 = arith.constant 0 : index
    %c0_10 = arith.constant 0 : index
    %23 = vector.load %arg3[%c0_9, %c0_10] : memref<16x128xf32, #tpu.memory_space<vmem>>, vector<16x128xf32>
    tpu.vector_store %arg3[%c0_9, %c0_10], %22 {strides = array<i32>} : memref<16x128xf32, #tpu.memory_space<vmem>>, vector<16x128xf32>,
    return
  }
}

module attributes {stable_mosaic.version = 11 : i64} {
  func.func @_enc_layer_kernel(%arg0: memref<16x128xf32, #tpu.memory_space<vmem>>, %arg1: memref<128x384xbf16, #tpu.memory_space<vmem>>, %arg2: memref<1x384xf32, #tpu.memory_space<vmem>>, %arg3: memref<128x128xbf16, #tpu.memory_space<vmem>>, %arg4: memref<1x128xf32, #tpu.memory_space<vmem>>, %arg5: memref<1x128xf32, #tpu.memory_space<vmem>>, %arg6: memref<1x128xf32, #tpu.memory_space<vmem>>, %arg7: memref<128x256xbf16, #tpu.memory_space<vmem>>, %arg8: memref<1x256xf32, #tpu.memory_space<vmem>>, %arg9: memref<256x128xbf16, #tpu.memory_space<vmem>>, %arg10: memref<1x128xf32, #tpu.memory_space<vmem>>, %arg11: memref<1x128xf32, #tpu.memory_space<vmem>>, %arg12: memref<1x128xf32, #tpu.memory_space<vmem>>, %arg13: memref<16x128xf32, #tpu.memory_space<vmem>>) attributes {dimension_semantics = [], scalar_prefetch = 0 : i64, scratch_operands = 0 : i64, tpu.core_type = #tpu.core_type<tc>} {
    %c0 = arith.constant 0 : index
    %c0_0 = arith.constant 0 : index
    %0 = vector.load %arg0[%c0, %c0_0] : memref<16x128xf32, #tpu.memory_space<vmem>>, vector<16x128xf32>
    %1 = arith.truncf %0 : vector<16x128xf32> to vector<16x128xbf16>
    %c0_1 = arith.constant 0 : index
    %c0_2 = arith.constant 0 : index
    %2 = vector.load %arg1[%c0_1, %c0_2] : memref<128x384xbf16, #tpu.memory_space<vmem>>, vector<128x384xbf16>
    %cst = arith.constant dense<0.000000e+00> : vector<16x384xf32>
    %3 = tpu.matmul %1, %2, %cst {dimension_numbers = #tpu.dot_dimension_numbers<[1], [0], [0], [1], [0, 0, 1, 1], [], []>} : vector<16x128xbf16>, vector<128x384xbf16>, vector<16x384xf32> -> vector<16x384xf32>
    %c0_3 = arith.constant 0 : index
    %c0_4 = arith.constant 0 : index
    %4 = vector.load %arg2[%c0_3, %c0_4] : memref<1x384xf32, #tpu.memory_space<vmem>>, vector<1x384xf32>
    %5 = vector.broadcast %4 : vector<1x384xf32> to vector<16x384xf32>
    %6 = arith.addf %3, %5 : vector<16x384xf32>
    %7 = vector.extract_strided_slice %6 {offsets = [0, 0], sizes = [16, 128], strides = [1, 1]} : vector<16x384xf32> to vector<16x128xf32>
    %8 = vector.extract_strided_slice %6 {offsets = [0, 128], sizes = [16, 128], strides = [1, 1]} : vector<16x384xf32> to vector<16x128xf32>
    %9 = vector.extract_strided_slice %6 {offsets = [0, 256], sizes = [16, 128], strides = [1, 1]} : vector<16x384xf32> to vector<16x128xf32>
    %10 = vector.extract_strided_slice %7 {offsets = [0, 0], sizes = [16, 32], strides = [1, 1]} : vector<16x128xf32> to vector<16x32xf32>
    %11 = vector.shape_cast %10 : vector<16x32xf32> to vector<2x8x32xf32>
    %12 = arith.truncf %11 : vector<2x8x32xf32> to vector<2x8x32xbf16>
    %13 = vector.extract_strided_slice %8 {offsets = [0, 0], sizes = [16, 32], strides = [1, 1]} : vector<16x128xf32> to vector<16x32xf32>
    %14 = vector.shape_cast %13 : vector<16x32xf32> to vector<2x8x32xf32>
    %15 = arith.truncf %14 : vector<2x8x32xf32> to vector<2x8x32xbf16>
    %16 = vector.extract_strided_slice %9 {offsets = [0, 0], sizes = [16, 32], strides = [1, 1]} : vector<16x128xf32> to vector<16x32xf32>
    %17 = vector.shape_cast %16 : vector<16x32xf32> to vector<2x8x32xf32>
    %18 = arith.truncf %17 : vector<2x8x32xf32> to vector<2x8x32xbf16>
    "tpu.trace_start"() <{level = 10 : i32, message = "bqd,bkd->bqk"}> : () -> ()
    %cst_5 = arith.constant dense<0.000000e+00> : vector<2x8x8xf32>
    %19 = tpu.matmul %12, %15, %cst_5 {dimension_numbers = #tpu.dot_dimension_numbers<[2], [2], [1], [1], [0, 0, 0, 1, 1, 1], [0], [0]>} : vector<2x8x32xbf16>, vector<2x8x32xbf16>, vector<2x8x8xf32> -> vector<2x8x8xf32>
    "tpu.trace_stop"() : () -> ()
    %cst_6 = arith.constant 0.176776692 : f32
    %20 = vector.broadcast %cst_6 : f32 to vector<2x8x8xf32>
    %21 = arith.mulf %19, %20 : vector<2x8x8xf32>
    %cst_7 = arith.constant dense<0xFF800000> : vector<2x8xf32>
    %22 = vector.multi_reduction <maximumf>, %21, %cst_7 [2] : vector<2x8x8xf32> to vector<2x8xf32>
    %23 = vector.shape_cast %22 : vector<2x8xf32> to vector<2x8x1xf32>
    %24 = vector.broadcast %23 : vector<2x8x1xf32> to vector<2x8x8xf32>
    %25 = arith.subf %21, %24 : vector<2x8x8xf32>
    %26 = math.exp %25 : vector<2x8x8xf32>
    %cst_8 = arith.constant dense<0.000000e+00> : vector<2x8xf32>
    %27 = vector.multi_reduction <add>, %26, %cst_8 [2] : vector<2x8x8xf32> to vector<2x8xf32>
    %28 = vector.shape_cast %27 : vector<2x8xf32> to vector<2x8x1xf32>
    %29 = tpu.reciprocal %28 {approx = true} : vector<2x8x1xf32> -> vector<2x8x1xf32>
    %30 = vector.broadcast %29 : vector<2x8x1xf32> to vector<2x8x8xf32>
    %31 = arith.mulf %26, %30 : vector<2x8x8xf32>
    %32 = arith.truncf %31 : vector<2x8x8xf32> to vector<2x8x8xbf16>
    "tpu.trace_start"() <{level = 10 : i32, message = "bqk,bkd->bqd"}> : () -> ()
    %cst_9 = arith.constant dense<0.000000e+00> : vector<2x8x32xf32>
    %33 = tpu.matmul %32, %18, %cst_9 {dimension_numbers = #tpu.dot_dimension_numbers<[2], [1], [1], [2], [0, 0, 0, 1, 1, 2], [0], [0]>} : vector<2x8x8xbf16>, vector<2x8x32xbf16>, vector<2x8x32xf32> -> vector<2x8x32xf32>
    "tpu.trace_stop"() : () -> ()
    %34 = vector.shape_cast %33 : vector<2x8x32xf32> to vector<16x32xf32>
    %35 = vector.extract_strided_slice %7 {offsets = [0, 32], sizes = [16, 32], strides = [1, 1]} : vector<16x128xf32> to vector<16x32xf32>
    %36 = vector.shape_cast %35 : vector<16x32xf32> to vector<2x8x32xf32>
    %37 = arith.truncf %36 : vector<2x8x32xf32> to vector<2x8x32xbf16>
    %38 = vector.extract_strided_slice %8 {offsets = [0, 32], sizes = [16, 32], strides = [1, 1]} : vector<16x128xf32> to vector<16x32xf32>
    %39 = vector.shape_cast %38 : vector<16x32xf32> to vector<2x8x32xf32>
    %40 = arith.truncf %39 : vector<2x8x32xf32> to vector<2x8x32xbf16>
    %41 = vector.extract_strided_slice %9 {offsets = [0, 32], sizes = [16, 32], strides = [1, 1]} : vector<16x128xf32> to vector<16x32xf32>
    %42 = vector.shape_cast %41 : vector<16x32xf32> to vector<2x8x32xf32>
    %43 = arith.truncf %42 : vector<2x8x32xf32> to vector<2x8x32xbf16>
    "tpu.trace_start"() <{level = 10 : i32, message = "bqd,bkd->bqk"}> : () -> ()
    %cst_10 = arith.constant dense<0.000000e+00> : vector<2x8x8xf32>
    %44 = tpu.matmul %37, %40, %cst_10 {dimension_numbers = #tpu.dot_dimension_numbers<[2], [2], [1], [1], [0, 0, 0, 1, 1, 1], [0], [0]>} : vector<2x8x32xbf16>, vector<2x8x32xbf16>, vector<2x8x8xf32> -> vector<2x8x8xf32>
    "tpu.trace_stop"() : () -> ()
    %cst_11 = arith.constant 0.176776692 : f32
    %45 = vector.broadcast %cst_11 : f32 to vector<2x8x8xf32>
    %46 = arith.mulf %44, %45 : vector<2x8x8xf32>
    %cst_12 = arith.constant dense<0xFF800000> : vector<2x8xf32>
    %47 = vector.multi_reduction <maximumf>, %46, %cst_12 [2] : vector<2x8x8xf32> to vector<2x8xf32>
    %48 = vector.shape_cast %47 : vector<2x8xf32> to vector<2x8x1xf32>
    %49 = vector.broadcast %48 : vector<2x8x1xf32> to vector<2x8x8xf32>
    %50 = arith.subf %46, %49 : vector<2x8x8xf32>
    %51 = math.exp %50 : vector<2x8x8xf32>
    %cst_13 = arith.constant dense<0.000000e+00> : vector<2x8xf32>
    %52 = vector.multi_reduction <add>, %51, %cst_13 [2] : vector<2x8x8xf32> to vector<2x8xf32>
    %53 = vector.shape_cast %52 : vector<2x8xf32> to vector<2x8x1xf32>
    %54 = tpu.reciprocal %53 {approx = true} : vector<2x8x1xf32> -> vector<2x8x1xf32>
    %55 = vector.broadcast %54 : vector<2x8x1xf32> to vector<2x8x8xf32>
    %56 = arith.mulf %51, %55 : vector<2x8x8xf32>
    %57 = arith.truncf %56 : vector<2x8x8xf32> to vector<2x8x8xbf16>
    "tpu.trace_start"() <{level = 10 : i32, message = "bqk,bkd->bqd"}> : () -> ()
    %cst_14 = arith.constant dense<0.000000e+00> : vector<2x8x32xf32>
    %58 = tpu.matmul %57, %43, %cst_14 {dimension_numbers = #tpu.dot_dimension_numbers<[2], [1], [1], [2], [0, 0, 0, 1, 1, 2], [0], [0]>} : vector<2x8x8xbf16>, vector<2x8x32xbf16>, vector<2x8x32xf32> -> vector<2x8x32xf32>
    "tpu.trace_stop"() : () -> ()
    %59 = vector.shape_cast %58 : vector<2x8x32xf32> to vector<16x32xf32>
    %60 = vector.extract_strided_slice %7 {offsets = [0, 64], sizes = [16, 32], strides = [1, 1]} : vector<16x128xf32> to vector<16x32xf32>
    %61 = vector.shape_cast %60 : vector<16x32xf32> to vector<2x8x32xf32>
    %62 = arith.truncf %61 : vector<2x8x32xf32> to vector<2x8x32xbf16>
    %63 = vector.extract_strided_slice %8 {offsets = [0, 64], sizes = [16, 32], strides = [1, 1]} : vector<16x128xf32> to vector<16x32xf32>
    %64 = vector.shape_cast %63 : vector<16x32xf32> to vector<2x8x32xf32>
    %65 = arith.truncf %64 : vector<2x8x32xf32> to vector<2x8x32xbf16>
    %66 = vector.extract_strided_slice %9 {offsets = [0, 64], sizes = [16, 32], strides = [1, 1]} : vector<16x128xf32> to vector<16x32xf32>
    %67 = vector.shape_cast %66 : vector<16x32xf32> to vector<2x8x32xf32>
    %68 = arith.truncf %67 : vector<2x8x32xf32> to vector<2x8x32xbf16>
    "tpu.trace_start"() <{level = 10 : i32, message = "bqd,bkd->bqk"}> : () -> ()
    %cst_15 = arith.constant dense<0.000000e+00> : vector<2x8x8xf32>
    %69 = tpu.matmul %62, %65, %cst_15 {dimension_numbers = #tpu.dot_dimension_numbers<[2], [2], [1], [1], [0, 0, 0, 1, 1, 1], [0], [0]>} : vector<2x8x32xbf16>, vector<2x8x32xbf16>, vector<2x8x8xf32> -> vector<2x8x8xf32>
    "tpu.trace_stop"() : () -> ()
    %cst_16 = arith.constant 0.176776692 : f32
    %70 = vector.broadcast %cst_16 : f32 to vector<2x8x8xf32>
    %71 = arith.mulf %69, %70 : vector<2x8x8xf32>
    %cst_17 = arith.constant dense<0xFF800000> : vector<2x8xf32>
    %72 = vector.multi_reduction <maximumf>, %71, %cst_17 [2] : vector<2x8x8xf32> to vector<2x8xf32>
    %73 = vector.shape_cast %72 : vector<2x8xf32> to vector<2x8x1xf32>
    %74 = vector.broadcast %73 : vector<2x8x1xf32> to vector<2x8x8xf32>
    %75 = arith.subf %71, %74 : vector<2x8x8xf32>
    %76 = math.exp %75 : vector<2x8x8xf32>
    %cst_18 = arith.constant dense<0.000000e+00> : vector<2x8xf32>
    %77 = vector.multi_reduction <add>, %76, %cst_18 [2] : vector<2x8x8xf32> to vector<2x8xf32>
    %78 = vector.shape_cast %77 : vector<2x8xf32> to vector<2x8x1xf32>
    %79 = tpu.reciprocal %78 {approx = true} : vector<2x8x1xf32> -> vector<2x8x1xf32>
    %80 = vector.broadcast %79 : vector<2x8x1xf32> to vector<2x8x8xf32>
    %81 = arith.mulf %76, %80 : vector<2x8x8xf32>
    %82 = arith.truncf %81 : vector<2x8x8xf32> to vector<2x8x8xbf16>
    "tpu.trace_start"() <{level = 10 : i32, message = "bqk,bkd->bqd"}> : () -> ()
    %cst_19 = arith.constant dense<0.000000e+00> : vector<2x8x32xf32>
    %83 = tpu.matmul %82, %68, %cst_19 {dimension_numbers = #tpu.dot_dimension_numbers<[2], [1], [1], [2], [0, 0, 0, 1, 1, 2], [0], [0]>} : vector<2x8x8xbf16>, vector<2x8x32xbf16>, vector<2x8x32xf32> -> vector<2x8x32xf32>
    "tpu.trace_stop"() : () -> ()
    %84 = vector.shape_cast %83 : vector<2x8x32xf32> to vector<16x32xf32>
    %85 = vector.extract_strided_slice %7 {offsets = [0, 96], sizes = [16, 32], strides = [1, 1]} : vector<16x128xf32> to vector<16x32xf32>
    %86 = vector.shape_cast %85 : vector<16x32xf32> to vector<2x8x32xf32>
    %87 = arith.truncf %86 : vector<2x8x32xf32> to vector<2x8x32xbf16>
    %88 = vector.extract_strided_slice %8 {offsets = [0, 96], sizes = [16, 32], strides = [1, 1]} : vector<16x128xf32> to vector<16x32xf32>
    %89 = vector.shape_cast %88 : vector<16x32xf32> to vector<2x8x32xf32>
    %90 = arith.truncf %89 : vector<2x8x32xf32> to vector<2x8x32xbf16>
    %91 = vector.extract_strided_slice %9 {offsets = [0, 96], sizes = [16, 32], strides = [1, 1]} : vector<16x128xf32> to vector<16x32xf32>
    %92 = vector.shape_cast %91 : vector<16x32xf32> to vector<2x8x32xf32>
    %93 = arith.truncf %92 : vector<2x8x32xf32> to vector<2x8x32xbf16>
    "tpu.trace_start"() <{level = 10 : i32, message = "bqd,bkd->bqk"}> : () -> ()
    %cst_20 = arith.constant dense<0.000000e+00> : vector<2x8x8xf32>
    %94 = tpu.matmul %87, %90, %cst_20 {dimension_numbers = #tpu.dot_dimension_numbers<[2], [2], [1], [1], [0, 0, 0, 1, 1, 1], [0], [0]>} : vector<2x8x32xbf16>, vector<2x8x32xbf16>, vector<2x8x8xf32> -> vector<2x8x8xf32>
    "tpu.trace_stop"() : () -> ()
    %cst_21 = arith.constant 0.176776692 : f32
    %95 = vector.broadcast %cst_21 : f32 to vector<2x8x8xf32>
    %96 = arith.mulf %94, %95 : vector<2x8x8xf32>
    %cst_22 = arith.constant dense<0xFF800000> : vector<2x8xf32>
    %97 = vector.multi_reduction <maximumf>, %96, %cst_22 [2] : vector<2x8x8xf32> to vector<2x8xf32>
    %98 = vector.shape_cast %97 : vector<2x8xf32> to vector<2x8x1xf32>
    %99 = vector.broadcast %98 : vector<2x8x1xf32> to vector<2x8x8xf32>
    %100 = arith.subf %96, %99 : vector<2x8x8xf32>
    %101 = math.exp %100 : vector<2x8x8xf32>
    %cst_23 = arith.constant dense<0.000000e+00> : vector<2x8xf32>
    %102 = vector.multi_reduction <add>, %101, %cst_23 [2] : vector<2x8x8xf32> to vector<2x8xf32>
    %103 = vector.shape_cast %102 : vector<2x8xf32> to vector<2x8x1xf32>
    %104 = tpu.reciprocal %103 {approx = true} : vector<2x8x1xf32> -> vector<2x8x1xf32>
    %105 = vector.broadcast %104 : vector<2x8x1xf32> to vector<2x8x8xf32>
    %106 = arith.mulf %101, %105 : vector<2x8x8xf32>
    %107 = arith.truncf %106 : vector<2x8x8xf32> to vector<2x8x8xbf16>
    "tpu.trace_start"() <{level = 10 : i32, message = "bqk,bkd->bqd"}> : () -> ()
    %cst_24 = arith.constant dense<0.000000e+00> : vector<2x8x32xf32>
    %108 = tpu.matmul %107, %93, %cst_24 {dimension_numbers = #tpu.dot_dimension_numbers<[2], [1], [1], [2], [0, 0, 0, 1, 1, 2], [0], [0]>} : vector<2x8x8xbf16>, vector<2x8x32xbf16>, vector<2x8x32xf32> -> vector<2x8x32xf32>
    "tpu.trace_stop"() : () -> ()
    %109 = vector.shape_cast %108 : vector<2x8x32xf32> to vector<16x32xf32>
    %110 = tpu.concatenate %34, %59, %84, %109 in 1 : vector<16x32xf32>, vector<16x32xf32>, vector<16x32xf32>, vector<16x32xf32> -> vector<16x128xf32>
    %111 = arith.truncf %110 : vector<16x128xf32> to vector<16x128xbf16>
    %c0_25 = arith.constant 0 : index
    %c0_26 = arith.constant 0 : index
    %112 = vector.load %arg3[%c0_25, %c0_26] : memref<128x128xbf16, #tpu.memory_space<vmem>>, vector<128x128xbf16>
    %cst_27 = arith.constant dense<0.000000e+00> : vector<16x128xf32>
    %113 = tpu.matmul %111, %112, %cst_27 {dimension_numbers = #tpu.dot_dimension_numbers<[1], [0], [0], [1], [0, 0, 1, 1], [], []>} : vector<16x128xbf16>, vector<128x128xbf16>, vector<16x128xf32> -> vector<16x128xf32>
    %c0_28 = arith.constant 0 : index
    %c0_29 = arith.constant 0 : index
    %114 = vector.load %arg4[%c0_28, %c0_29] : memref<1x128xf32, #tpu.memory_space<vmem>>, vector<1x128xf32>
    %115 = vector.broadcast %114 : vector<1x128xf32> to vector<16x128xf32>
    %116 = arith.addf %113, %115 : vector<16x128xf32>
    %117 = arith.addf %0, %116 : vector<16x128xf32>
    %c0_30 = arith.constant 0 : index
    %c0_31 = arith.constant 0 : index
    %118 = vector.load %arg5[%c0_30, %c0_31] : memref<1x128xf32, #tpu.memory_space<vmem>>, vector<1x128xf32>
    %c0_32 = arith.constant 0 : index
    %c0_33 = arith.constant 0 : index
    %119 = vector.load %arg6[%c0_32, %c0_33] : memref<1x128xf32, #tpu.memory_space<vmem>>, vector<1x128xf32>
    %cst_34 = arith.constant dense<0.000000e+00> : vector<16xf32>
    %120 = vector.multi_reduction <add>, %117, %cst_34 [1] : vector<16x128xf32> to vector<16xf32>
    %121 = vector.shape_cast %120 : vector<16xf32> to vector<16x1xf32>
    %cst_35 = arith.constant 1.280000e+02 : f32
    %122 = vector.broadcast %cst_35 : f32 to vector<16x1xf32>
    %123 = arith.divf %121, %122 : vector<16x1xf32>
    %124 = vector.broadcast %123 : vector<16x1xf32> to vector<16x128xf32>
    %125 = arith.subf %117, %124 : vector<16x128xf32>
    %126 = arith.mulf %125, %125 : vector<16x128xf32>
    %cst_36 = arith.constant dense<0.000000e+00> : vector<16xf32>
    %127 = vector.multi_reduction <add>, %126, %cst_36 [1] : vector<16x128xf32> to vector<16xf32>
    %128 = vector.shape_cast %127 : vector<16xf32> to vector<16x1xf32>
    %cst_37 = arith.constant 1.280000e+02 : f32
    %129 = vector.broadcast %cst_37 : f32 to vector<16x1xf32>
    %130 = arith.divf %128, %129 : vector<16x1xf32>
    %cst_38 = arith.constant 9.99999974E-6 : f32
    %131 = vector.broadcast %cst_38 : f32 to vector<16x1xf32>
    %132 = arith.addf %130, %131 : vector<16x1xf32>
    %133 = math.rsqrt %132 : vector<16x1xf32>
    %134 = vector.broadcast %133 : vector<16x1xf32> to vector<16x128xf32>
    %135 = arith.mulf %125, %134 : vector<16x128xf32>
    %136 = vector.broadcast %118 : vector<1x128xf32> to vector<16x128xf32>
    %137 = arith.mulf %135, %136 : vector<16x128xf32>
    %138 = vector.broadcast %119 : vector<1x128xf32> to vector<16x128xf32>
    %139 = arith.addf %137, %138 : vector<16x128xf32>
    %140 = arith.truncf %139 : vector<16x128xf32> to vector<16x128xbf16>
    %c0_39 = arith.constant 0 : index
    %c0_40 = arith.constant 0 : index
    %141 = vector.load %arg7[%c0_39, %c0_40] : memref<128x256xbf16, #tpu.memory_space<vmem>>, vector<128x256xbf16>
    %cst_41 = arith.constant dense<0.000000e+00> : vector<16x256xf32>
    %142 = tpu.matmul %140, %141, %cst_41 {dimension_numbers = #tpu.dot_dimension_numbers<[1], [0], [0], [1], [0, 0, 1, 1], [], []>} : vector<16x128xbf16>, vector<128x256xbf16>, vector<16x256xf32> -> vector<16x256xf32>
    %c0_42 = arith.constant 0 : index
    %c0_43 = arith.constant 0 : index
    %143 = vector.load %arg8[%c0_42, %c0_43] : memref<1x256xf32, #tpu.memory_space<vmem>>, vector<1x256xf32>
    %144 = vector.broadcast %143 : vector<1x256xf32> to vector<16x256xf32>
    %145 = arith.addf %142, %144 : vector<16x256xf32>
    %cst_44 = arith.constant 0.000000e+00 : f32
    %146 = vector.broadcast %cst_44 : f32 to vector<16x256xf32>
    %147 = arith.maximumf %145, %146 : vector<16x256xf32>
    %148 = arith.truncf %147 : vector<16x256xf32> to vector<16x256xbf16>
    %c0_45 = arith.constant 0 : index
    %c0_46 = arith.constant 0 : index
    %149 = vector.load %arg9[%c0_45, %c0_46] : memref<256x128xbf16, #tpu.memory_space<vmem>>, vector<256x128xbf16>
    %cst_47 = arith.constant dense<0.000000e+00> : vector<16x128xf32>
    %150 = tpu.matmul %148, %149, %cst_47 {dimension_numbers = #tpu.dot_dimension_numbers<[1], [0], [0], [1], [0, 0, 1, 1], [], []>} : vector<16x256xbf16>, vector<256x128xbf16>, vector<16x128xf32> -> vector<16x128xf32>
    %c0_48 = arith.constant 0 : index
    %c0_49 = arith.constant 0 : index
    %151 = vector.load %arg10[%c0_48, %c0_49] : memref<1x128xf32, #tpu.memory_space<vmem>>, vector<1x128xf32>
    %152 = vector.broadcast %151 : vector<1x128xf32> to vector<16x128xf32>
    %153 = arith.addf %150, %152 : vector<16x128xf32>
    %154 = arith.addf %139, %153 : vector<16x128xf32>
    %c0_50 = arith.constant 0 : index
    %c0_51 = arith.constant 0 : index
    %155 = vector.load %arg11[%c0_50, %c0_51] : memref<1x128xf32, #tpu.memory_space<vmem>>, vector<1x128xf32>
    %c0_52 = arith.constant 0 : index
    %c0_53 = arith.constant 0 : index
    %156 = vector.load %arg12[%c0_52, %c0_53] : memref<1x128xf32, #tpu.memory_space<vmem>>, vector<1x128xf32>
    %cst_54 = arith.constant dense<0.000000e+00> : vector<16xf32>
    %157 = vector.multi_reduction <add>, %154, %cst_54 [1] : vector<16x128xf32> to vector<16xf32>
    %158 = vector.shape_cast %157 : vector<16xf32> to vector<16x1xf32>
    %cst_55 = arith.constant 1.280000e+02 : f32
    %159 = vector.broadcast %cst_55 : f32 to vector<16x1xf32>
    %160 = arith.divf %158, %159 : vector<16x1xf32>
    %161 = vector.broadcast %160 : vector<16x1xf32> to vector<16x128xf32>
    %162 = arith.subf %154, %161 : vector<16x128xf32>
    %163 = arith.mulf %162, %162 : vector<16x128xf32>
    %cst_56 = arith.constant dense<0.000000e+00> : vector<16xf32>
    %164 = vector.multi_reduction <add>, %163, %cst_56 [1] : vector<16x128xf32> to vector<16xf32>
    %165 = vector.shape_cast %164 : vector<16xf32> to vector<16x1xf32>
    %cst_57 = arith.constant 1.280000e+02 : f32
    %166 = vector.broadcast %cst_57 : f32 to vector<16x1xf32>
    %167 = arith.divf %165, %166 : vector<16x1xf32>
    %cst_58 = arith.constant 9.99999974E-6 : f32
    %168 = vector.broadcast %cst_58 : f32 to vector<16x1xf32>
    %169 = arith.addf %167, %168 : vector<16x1xf32>
    %170 = math.rsqrt %169 : vector<16x1xf32>
    %171 = vector.broadcast %170 : vector<16x1xf32> to vector<16x128xf32>
    %172 = arith.mulf %162, %171 : vector<16x128xf32>
    %173 = vector.broadcast %155 : vector<1x128xf32> to vector<16x128xf32>
    %174 = arith.mulf %172, %173 : vector<16x128xf32>
    %175 = vector.broadcast %156 : vector<1x128xf32> to vector<16x128xf32>
    %176 = arith.addf %174, %175 : vector<16x128xf32>
    %c0_59 = arith.constant 0 : index
    %c0_60 = arith.constant 0 : index
    %177 = vector.load %arg13[%c0_59, %c0_60] : memref<16x128xf32, #tpu.memory_space<vmem>>, vector<16x128xf32>
    tpu.vector_store %arg13[%c0_59, %c0_60], %176 {strides = array<i32>} : memref<16x128xf32, #tpu.memory_space<vmem>>, vector<16x128xf32>,
    return
  }
}

module attributes {stable_mosaic.version = 11 : i64} {
  func.func @_dec_layer_kernel(%arg0: memref<16x128xf32, #tpu.memory_space<vmem>>, %arg1: memref<16x128xf32, #tpu.memory_space<vmem>>, %arg2: memref<128x384xbf16, #tpu.memory_space<vmem>>, %arg3: memref<1x384xf32, #tpu.memory_space<vmem>>, %arg4: memref<128x128xbf16, #tpu.memory_space<vmem>>, %arg5: memref<1x128xf32, #tpu.memory_space<vmem>>, %arg6: memref<1x128xf32, #tpu.memory_space<vmem>>, %arg7: memref<1x128xf32, #tpu.memory_space<vmem>>, %arg8: memref<128x128xbf16, #tpu.memory_space<vmem>>, %arg9: memref<1x128xf32, #tpu.memory_space<vmem>>, %arg10: memref<128x256xbf16, #tpu.memory_space<vmem>>, %arg11: memref<1x256xf32, #tpu.memory_space<vmem>>, %arg12: memref<128x128xbf16, #tpu.memory_space<vmem>>, %arg13: memref<1x128xf32, #tpu.memory_space<vmem>>, %arg14: memref<1x128xf32, #tpu.memory_space<vmem>>, %arg15: memref<1x128xf32, #tpu.memory_space<vmem>>, %arg16: memref<128x256xbf16, #tpu.memory_space<vmem>>, %arg17: memref<1x256xf32, #tpu.memory_space<vmem>>, %arg18: memref<256x128xbf16, #tpu.memory_space<vmem>>, %arg19: memref<1x128xf32, #tpu.memory_space<vmem>>, %arg20: memref<1x128xf32, #tpu.memory_space<vmem>>, %arg21: memref<1x128xf32, #tpu.memory_space<vmem>>, %arg22: memref<16x128xf32, #tpu.memory_space<vmem>>) attributes {dimension_semantics = [], scalar_prefetch = 0 : i64, scratch_operands = 0 : i64, tpu.core_type = #tpu.core_type<tc>} {
    %c0 = arith.constant 0 : index
    %c0_0 = arith.constant 0 : index
    %0 = vector.load %arg0[%c0, %c0_0] : memref<16x128xf32, #tpu.memory_space<vmem>>, vector<16x128xf32>
    %c0_1 = arith.constant 0 : index
    %c0_2 = arith.constant 0 : index
    %1 = vector.load %arg1[%c0_1, %c0_2] : memref<16x128xf32, #tpu.memory_space<vmem>>, vector<16x128xf32>
    %2 = arith.truncf %0 : vector<16x128xf32> to vector<16x128xbf16>
    %c0_3 = arith.constant 0 : index
    %c0_4 = arith.constant 0 : index
    %3 = vector.load %arg2[%c0_3, %c0_4] : memref<128x384xbf16, #tpu.memory_space<vmem>>, vector<128x384xbf16>
    %cst = arith.constant dense<0.000000e+00> : vector<16x384xf32>
    %4 = tpu.matmul %2, %3, %cst {dimension_numbers = #tpu.dot_dimension_numbers<[1], [0], [0], [1], [0, 0, 1, 1], [], []>} : vector<16x128xbf16>, vector<128x384xbf16>, vector<16x384xf32> -> vector<16x384xf32>
    %c0_5 = arith.constant 0 : index
    %c0_6 = arith.constant 0 : index
    %5 = vector.load %arg3[%c0_5, %c0_6] : memref<1x384xf32, #tpu.memory_space<vmem>>, vector<1x384xf32>
    %6 = vector.broadcast %5 : vector<1x384xf32> to vector<16x384xf32>
    %7 = arith.addf %4, %6 : vector<16x384xf32>
    %8 = vector.extract_strided_slice %7 {offsets = [0, 0], sizes = [16, 128], strides = [1, 1]} : vector<16x384xf32> to vector<16x128xf32>
    %9 = vector.extract_strided_slice %7 {offsets = [0, 128], sizes = [16, 128], strides = [1, 1]} : vector<16x384xf32> to vector<16x128xf32>
    %10 = vector.extract_strided_slice %7 {offsets = [0, 256], sizes = [16, 128], strides = [1, 1]} : vector<16x384xf32> to vector<16x128xf32>
    %11 = vector.extract_strided_slice %8 {offsets = [0, 0], sizes = [16, 32], strides = [1, 1]} : vector<16x128xf32> to vector<16x32xf32>
    %12 = vector.shape_cast %11 : vector<16x32xf32> to vector<2x8x32xf32>
    %13 = arith.truncf %12 : vector<2x8x32xf32> to vector<2x8x32xbf16>
    %14 = vector.extract_strided_slice %9 {offsets = [0, 0], sizes = [16, 32], strides = [1, 1]} : vector<16x128xf32> to vector<16x32xf32>
    %15 = vector.shape_cast %14 : vector<16x32xf32> to vector<2x8x32xf32>
    %16 = arith.truncf %15 : vector<2x8x32xf32> to vector<2x8x32xbf16>
    %17 = vector.extract_strided_slice %10 {offsets = [0, 0], sizes = [16, 32], strides = [1, 1]} : vector<16x128xf32> to vector<16x32xf32>
    %18 = vector.shape_cast %17 : vector<16x32xf32> to vector<2x8x32xf32>
    %19 = arith.truncf %18 : vector<2x8x32xf32> to vector<2x8x32xbf16>
    "tpu.trace_start"() <{level = 10 : i32, message = "bqd,bkd->bqk"}> : () -> ()
    %cst_7 = arith.constant dense<0.000000e+00> : vector<2x8x8xf32>
    %20 = tpu.matmul %13, %16, %cst_7 {dimension_numbers = #tpu.dot_dimension_numbers<[2], [2], [1], [1], [0, 0, 0, 1, 1, 1], [0], [0]>} : vector<2x8x32xbf16>, vector<2x8x32xbf16>, vector<2x8x8xf32> -> vector<2x8x8xf32>
    "tpu.trace_stop"() : () -> ()
    %cst_8 = arith.constant 0.176776692 : f32
    %21 = vector.broadcast %cst_8 : f32 to vector<2x8x8xf32>
    %22 = arith.mulf %20, %21 : vector<2x8x8xf32>
    %cst_9 = arith.constant dense<0xFF800000> : vector<2x8xf32>
    %23 = vector.multi_reduction <maximumf>, %22, %cst_9 [2] : vector<2x8x8xf32> to vector<2x8xf32>
    %24 = vector.shape_cast %23 : vector<2x8xf32> to vector<2x8x1xf32>
    %25 = vector.broadcast %24 : vector<2x8x1xf32> to vector<2x8x8xf32>
    %26 = arith.subf %22, %25 : vector<2x8x8xf32>
    %27 = math.exp %26 : vector<2x8x8xf32>
    %cst_10 = arith.constant dense<0.000000e+00> : vector<2x8xf32>
    %28 = vector.multi_reduction <add>, %27, %cst_10 [2] : vector<2x8x8xf32> to vector<2x8xf32>
    %29 = vector.shape_cast %28 : vector<2x8xf32> to vector<2x8x1xf32>
    %30 = tpu.reciprocal %29 {approx = true} : vector<2x8x1xf32> -> vector<2x8x1xf32>
    %31 = vector.broadcast %30 : vector<2x8x1xf32> to vector<2x8x8xf32>
    %32 = arith.mulf %27, %31 : vector<2x8x8xf32>
    %33 = arith.truncf %32 : vector<2x8x8xf32> to vector<2x8x8xbf16>
    "tpu.trace_start"() <{level = 10 : i32, message = "bqk,bkd->bqd"}> : () -> ()
    %cst_11 = arith.constant dense<0.000000e+00> : vector<2x8x32xf32>
    %34 = tpu.matmul %33, %19, %cst_11 {dimension_numbers = #tpu.dot_dimension_numbers<[2], [1], [1], [2], [0, 0, 0, 1, 1, 2], [0], [0]>} : vector<2x8x8xbf16>, vector<2x8x32xbf16>, vector<2x8x32xf32> -> vector<2x8x32xf32>
    "tpu.trace_stop"() : () -> ()
    %35 = vector.shape_cast %34 : vector<2x8x32xf32> to vector<16x32xf32>
    %36 = vector.extract_strided_slice %8 {offsets = [0, 32], sizes = [16, 32], strides = [1, 1]} : vector<16x128xf32> to vector<16x32xf32>
    %37 = vector.shape_cast %36 : vector<16x32xf32> to vector<2x8x32xf32>
    %38 = arith.truncf %37 : vector<2x8x32xf32> to vector<2x8x32xbf16>
    %39 = vector.extract_strided_slice %9 {offsets = [0, 32], sizes = [16, 32], strides = [1, 1]} : vector<16x128xf32> to vector<16x32xf32>
    %40 = vector.shape_cast %39 : vector<16x32xf32> to vector<2x8x32xf32>
    %41 = arith.truncf %40 : vector<2x8x32xf32> to vector<2x8x32xbf16>
    %42 = vector.extract_strided_slice %10 {offsets = [0, 32], sizes = [16, 32], strides = [1, 1]} : vector<16x128xf32> to vector<16x32xf32>
    %43 = vector.shape_cast %42 : vector<16x32xf32> to vector<2x8x32xf32>
    %44 = arith.truncf %43 : vector<2x8x32xf32> to vector<2x8x32xbf16>
    "tpu.trace_start"() <{level = 10 : i32, message = "bqd,bkd->bqk"}> : () -> ()
    %cst_12 = arith.constant dense<0.000000e+00> : vector<2x8x8xf32>
    %45 = tpu.matmul %38, %41, %cst_12 {dimension_numbers = #tpu.dot_dimension_numbers<[2], [2], [1], [1], [0, 0, 0, 1, 1, 1], [0], [0]>} : vector<2x8x32xbf16>, vector<2x8x32xbf16>, vector<2x8x8xf32> -> vector<2x8x8xf32>
    "tpu.trace_stop"() : () -> ()
    %cst_13 = arith.constant 0.176776692 : f32
    %46 = vector.broadcast %cst_13 : f32 to vector<2x8x8xf32>
    %47 = arith.mulf %45, %46 : vector<2x8x8xf32>
    %cst_14 = arith.constant dense<0xFF800000> : vector<2x8xf32>
    %48 = vector.multi_reduction <maximumf>, %47, %cst_14 [2] : vector<2x8x8xf32> to vector<2x8xf32>
    %49 = vector.shape_cast %48 : vector<2x8xf32> to vector<2x8x1xf32>
    %50 = vector.broadcast %49 : vector<2x8x1xf32> to vector<2x8x8xf32>
    %51 = arith.subf %47, %50 : vector<2x8x8xf32>
    %52 = math.exp %51 : vector<2x8x8xf32>
    %cst_15 = arith.constant dense<0.000000e+00> : vector<2x8xf32>
    %53 = vector.multi_reduction <add>, %52, %cst_15 [2] : vector<2x8x8xf32> to vector<2x8xf32>
    %54 = vector.shape_cast %53 : vector<2x8xf32> to vector<2x8x1xf32>
    %55 = tpu.reciprocal %54 {approx = true} : vector<2x8x1xf32> -> vector<2x8x1xf32>
    %56 = vector.broadcast %55 : vector<2x8x1xf32> to vector<2x8x8xf32>
    %57 = arith.mulf %52, %56 : vector<2x8x8xf32>
    %58 = arith.truncf %57 : vector<2x8x8xf32> to vector<2x8x8xbf16>
    "tpu.trace_start"() <{level = 10 : i32, message = "bqk,bkd->bqd"}> : () -> ()
    %cst_16 = arith.constant dense<0.000000e+00> : vector<2x8x32xf32>
    %59 = tpu.matmul %58, %44, %cst_16 {dimension_numbers = #tpu.dot_dimension_numbers<[2], [1], [1], [2], [0, 0, 0, 1, 1, 2], [0], [0]>} : vector<2x8x8xbf16>, vector<2x8x32xbf16>, vector<2x8x32xf32> -> vector<2x8x32xf32>
    "tpu.trace_stop"() : () -> ()
    %60 = vector.shape_cast %59 : vector<2x8x32xf32> to vector<16x32xf32>
    %61 = vector.extract_strided_slice %8 {offsets = [0, 64], sizes = [16, 32], strides = [1, 1]} : vector<16x128xf32> to vector<16x32xf32>
    %62 = vector.shape_cast %61 : vector<16x32xf32> to vector<2x8x32xf32>
    %63 = arith.truncf %62 : vector<2x8x32xf32> to vector<2x8x32xbf16>
    %64 = vector.extract_strided_slice %9 {offsets = [0, 64], sizes = [16, 32], strides = [1, 1]} : vector<16x128xf32> to vector<16x32xf32>
    %65 = vector.shape_cast %64 : vector<16x32xf32> to vector<2x8x32xf32>
    %66 = arith.truncf %65 : vector<2x8x32xf32> to vector<2x8x32xbf16>
    %67 = vector.extract_strided_slice %10 {offsets = [0, 64], sizes = [16, 32], strides = [1, 1]} : vector<16x128xf32> to vector<16x32xf32>
    %68 = vector.shape_cast %67 : vector<16x32xf32> to vector<2x8x32xf32>
    %69 = arith.truncf %68 : vector<2x8x32xf32> to vector<2x8x32xbf16>
    "tpu.trace_start"() <{level = 10 : i32, message = "bqd,bkd->bqk"}> : () -> ()
    %cst_17 = arith.constant dense<0.000000e+00> : vector<2x8x8xf32>
    %70 = tpu.matmul %63, %66, %cst_17 {dimension_numbers = #tpu.dot_dimension_numbers<[2], [2], [1], [1], [0, 0, 0, 1, 1, 1], [0], [0]>} : vector<2x8x32xbf16>, vector<2x8x32xbf16>, vector<2x8x8xf32> -> vector<2x8x8xf32>
    "tpu.trace_stop"() : () -> ()
    %cst_18 = arith.constant 0.176776692 : f32
    %71 = vector.broadcast %cst_18 : f32 to vector<2x8x8xf32>
    %72 = arith.mulf %70, %71 : vector<2x8x8xf32>
    %cst_19 = arith.constant dense<0xFF800000> : vector<2x8xf32>
    %73 = vector.multi_reduction <maximumf>, %72, %cst_19 [2] : vector<2x8x8xf32> to vector<2x8xf32>
    %74 = vector.shape_cast %73 : vector<2x8xf32> to vector<2x8x1xf32>
    %75 = vector.broadcast %74 : vector<2x8x1xf32> to vector<2x8x8xf32>
    %76 = arith.subf %72, %75 : vector<2x8x8xf32>
    %77 = math.exp %76 : vector<2x8x8xf32>
    %cst_20 = arith.constant dense<0.000000e+00> : vector<2x8xf32>
    %78 = vector.multi_reduction <add>, %77, %cst_20 [2] : vector<2x8x8xf32> to vector<2x8xf32>
    %79 = vector.shape_cast %78 : vector<2x8xf32> to vector<2x8x1xf32>
    %80 = tpu.reciprocal %79 {approx = true} : vector<2x8x1xf32> -> vector<2x8x1xf32>
    %81 = vector.broadcast %80 : vector<2x8x1xf32> to vector<2x8x8xf32>
    %82 = arith.mulf %77, %81 : vector<2x8x8xf32>
    %83 = arith.truncf %82 : vector<2x8x8xf32> to vector<2x8x8xbf16>
    "tpu.trace_start"() <{level = 10 : i32, message = "bqk,bkd->bqd"}> : () -> ()
    %cst_21 = arith.constant dense<0.000000e+00> : vector<2x8x32xf32>
    %84 = tpu.matmul %83, %69, %cst_21 {dimension_numbers = #tpu.dot_dimension_numbers<[2], [1], [1], [2], [0, 0, 0, 1, 1, 2], [0], [0]>} : vector<2x8x8xbf16>, vector<2x8x32xbf16>, vector<2x8x32xf32> -> vector<2x8x32xf32>
    "tpu.trace_stop"() : () -> ()
    %85 = vector.shape_cast %84 : vector<2x8x32xf32> to vector<16x32xf32>
    %86 = vector.extract_strided_slice %8 {offsets = [0, 96], sizes = [16, 32], strides = [1, 1]} : vector<16x128xf32> to vector<16x32xf32>
    %87 = vector.shape_cast %86 : vector<16x32xf32> to vector<2x8x32xf32>
    %88 = arith.truncf %87 : vector<2x8x32xf32> to vector<2x8x32xbf16>
    %89 = vector.extract_strided_slice %9 {offsets = [0, 96], sizes = [16, 32], strides = [1, 1]} : vector<16x128xf32> to vector<16x32xf32>
    %90 = vector.shape_cast %89 : vector<16x32xf32> to vector<2x8x32xf32>
    %91 = arith.truncf %90 : vector<2x8x32xf32> to vector<2x8x32xbf16>
    %92 = vector.extract_strided_slice %10 {offsets = [0, 96], sizes = [16, 32], strides = [1, 1]} : vector<16x128xf32> to vector<16x32xf32>
    %93 = vector.shape_cast %92 : vector<16x32xf32> to vector<2x8x32xf32>
    %94 = arith.truncf %93 : vector<2x8x32xf32> to vector<2x8x32xbf16>
    "tpu.trace_start"() <{level = 10 : i32, message = "bqd,bkd->bqk"}> : () -> ()
    %cst_22 = arith.constant dense<0.000000e+00> : vector<2x8x8xf32>
    %95 = tpu.matmul %88, %91, %cst_22 {dimension_numbers = #tpu.dot_dimension_numbers<[2], [2], [1], [1], [0, 0, 0, 1, 1, 1], [0], [0]>} : vector<2x8x32xbf16>, vector<2x8x32xbf16>, vector<2x8x8xf32> -> vector<2x8x8xf32>
    "tpu.trace_stop"() : () -> ()
    %cst_23 = arith.constant 0.176776692 : f32
    %96 = vector.broadcast %cst_23 : f32 to vector<2x8x8xf32>
    %97 = arith.mulf %95, %96 : vector<2x8x8xf32>
    %cst_24 = arith.constant dense<0xFF800000> : vector<2x8xf32>
    %98 = vector.multi_reduction <maximumf>, %97, %cst_24 [2] : vector<2x8x8xf32> to vector<2x8xf32>
    %99 = vector.shape_cast %98 : vector<2x8xf32> to vector<2x8x1xf32>
    %100 = vector.broadcast %99 : vector<2x8x1xf32> to vector<2x8x8xf32>
    %101 = arith.subf %97, %100 : vector<2x8x8xf32>
    %102 = math.exp %101 : vector<2x8x8xf32>
    %cst_25 = arith.constant dense<0.000000e+00> : vector<2x8xf32>
    %103 = vector.multi_reduction <add>, %102, %cst_25 [2] : vector<2x8x8xf32> to vector<2x8xf32>
    %104 = vector.shape_cast %103 : vector<2x8xf32> to vector<2x8x1xf32>
    %105 = tpu.reciprocal %104 {approx = true} : vector<2x8x1xf32> -> vector<2x8x1xf32>
    %106 = vector.broadcast %105 : vector<2x8x1xf32> to vector<2x8x8xf32>
    %107 = arith.mulf %102, %106 : vector<2x8x8xf32>
    %108 = arith.truncf %107 : vector<2x8x8xf32> to vector<2x8x8xbf16>
    "tpu.trace_start"() <{level = 10 : i32, message = "bqk,bkd->bqd"}> : () -> ()
    %cst_26 = arith.constant dense<0.000000e+00> : vector<2x8x32xf32>
    %109 = tpu.matmul %108, %94, %cst_26 {dimension_numbers = #tpu.dot_dimension_numbers<[2], [1], [1], [2], [0, 0, 0, 1, 1, 2], [0], [0]>} : vector<2x8x8xbf16>, vector<2x8x32xbf16>, vector<2x8x32xf32> -> vector<2x8x32xf32>
    "tpu.trace_stop"() : () -> ()
    %110 = vector.shape_cast %109 : vector<2x8x32xf32> to vector<16x32xf32>
    %111 = tpu.concatenate %35, %60, %85, %110 in 1 : vector<16x32xf32>, vector<16x32xf32>, vector<16x32xf32>, vector<16x32xf32> -> vector<16x128xf32>
    %112 = arith.truncf %111 : vector<16x128xf32> to vector<16x128xbf16>
    %c0_27 = arith.constant 0 : index
    %c0_28 = arith.constant 0 : index
    %113 = vector.load %arg4[%c0_27, %c0_28] : memref<128x128xbf16, #tpu.memory_space<vmem>>, vector<128x128xbf16>
    %cst_29 = arith.constant dense<0.000000e+00> : vector<16x128xf32>
    %114 = tpu.matmul %112, %113, %cst_29 {dimension_numbers = #tpu.dot_dimension_numbers<[1], [0], [0], [1], [0, 0, 1, 1], [], []>} : vector<16x128xbf16>, vector<128x128xbf16>, vector<16x128xf32> -> vector<16x128xf32>
    %c0_30 = arith.constant 0 : index
    %c0_31 = arith.constant 0 : index
    %115 = vector.load %arg5[%c0_30, %c0_31] : memref<1x128xf32, #tpu.memory_space<vmem>>, vector<1x128xf32>
    %116 = vector.broadcast %115 : vector<1x128xf32> to vector<16x128xf32>
    %117 = arith.addf %114, %116 : vector<16x128xf32>
    %118 = arith.addf %0, %117 : vector<16x128xf32>
    %c0_32 = arith.constant 0 : index
    %c0_33 = arith.constant 0 : index
    %119 = vector.load %arg6[%c0_32, %c0_33] : memref<1x128xf32, #tpu.memory_space<vmem>>, vector<1x128xf32>
    %c0_34 = arith.constant 0 : index
    %c0_35 = arith.constant 0 : index
    %120 = vector.load %arg7[%c0_34, %c0_35] : memref<1x128xf32, #tpu.memory_space<vmem>>, vector<1x128xf32>
    %cst_36 = arith.constant dense<0.000000e+00> : vector<16xf32>
    %121 = vector.multi_reduction <add>, %118, %cst_36 [1] : vector<16x128xf32> to vector<16xf32>
    %122 = vector.shape_cast %121 : vector<16xf32> to vector<16x1xf32>
    %cst_37 = arith.constant 1.280000e+02 : f32
    %123 = vector.broadcast %cst_37 : f32 to vector<16x1xf32>
    %124 = arith.divf %122, %123 : vector<16x1xf32>
    %125 = vector.broadcast %124 : vector<16x1xf32> to vector<16x128xf32>
    %126 = arith.subf %118, %125 : vector<16x128xf32>
    %127 = arith.mulf %126, %126 : vector<16x128xf32>
    %cst_38 = arith.constant dense<0.000000e+00> : vector<16xf32>
    %128 = vector.multi_reduction <add>, %127, %cst_38 [1] : vector<16x128xf32> to vector<16xf32>
    %129 = vector.shape_cast %128 : vector<16xf32> to vector<16x1xf32>
    %cst_39 = arith.constant 1.280000e+02 : f32
    %130 = vector.broadcast %cst_39 : f32 to vector<16x1xf32>
    %131 = arith.divf %129, %130 : vector<16x1xf32>
    %cst_40 = arith.constant 9.99999974E-6 : f32
    %132 = vector.broadcast %cst_40 : f32 to vector<16x1xf32>
    %133 = arith.addf %131, %132 : vector<16x1xf32>
    %134 = math.rsqrt %133 : vector<16x1xf32>
    %135 = vector.broadcast %134 : vector<16x1xf32> to vector<16x128xf32>
    %136 = arith.mulf %126, %135 : vector<16x128xf32>
    %137 = vector.broadcast %119 : vector<1x128xf32> to vector<16x128xf32>
    %138 = arith.mulf %136, %137 : vector<16x128xf32>
    %139 = vector.broadcast %120 : vector<1x128xf32> to vector<16x128xf32>
    %140 = arith.addf %138, %139 : vector<16x128xf32>
    %141 = arith.truncf %140 : vector<16x128xf32> to vector<16x128xbf16>
    %c0_41 = arith.constant 0 : index
    %c0_42 = arith.constant 0 : index
    %142 = vector.load %arg8[%c0_41, %c0_42] : memref<128x128xbf16, #tpu.memory_space<vmem>>, vector<128x128xbf16>
    %cst_43 = arith.constant dense<0.000000e+00> : vector<16x128xf32>
    %143 = tpu.matmul %141, %142, %cst_43 {dimension_numbers = #tpu.dot_dimension_numbers<[1], [0], [0], [1], [0, 0, 1, 1], [], []>} : vector<16x128xbf16>, vector<128x128xbf16>, vector<16x128xf32> -> vector<16x128xf32>
    %c0_44 = arith.constant 0 : index
    %c0_45 = arith.constant 0 : index
    %144 = vector.load %arg9[%c0_44, %c0_45] : memref<1x128xf32, #tpu.memory_space<vmem>>, vector<1x128xf32>
    %145 = vector.broadcast %144 : vector<1x128xf32> to vector<16x128xf32>
    %146 = arith.addf %143, %145 : vector<16x128xf32>
    %147 = arith.truncf %1 : vector<16x128xf32> to vector<16x128xbf16>
    %c0_46 = arith.constant 0 : index
    %c0_47 = arith.constant 0 : index
    %148 = vector.load %arg10[%c0_46, %c0_47] : memref<128x256xbf16, #tpu.memory_space<vmem>>, vector<128x256xbf16>
    %cst_48 = arith.constant dense<0.000000e+00> : vector<16x256xf32>
    %149 = tpu.matmul %147, %148, %cst_48 {dimension_numbers = #tpu.dot_dimension_numbers<[1], [0], [0], [1], [0, 0, 1, 1], [], []>} : vector<16x128xbf16>, vector<128x256xbf16>, vector<16x256xf32> -> vector<16x256xf32>
    %c0_49 = arith.constant 0 : index
    %c0_50 = arith.constant 0 : index
    %150 = vector.load %arg11[%c0_49, %c0_50] : memref<1x256xf32, #tpu.memory_space<vmem>>, vector<1x256xf32>
    %151 = vector.broadcast %150 : vector<1x256xf32> to vector<16x256xf32>
    %152 = arith.addf %149, %151 : vector<16x256xf32>
    %153 = vector.extract_strided_slice %152 {offsets = [0, 0], sizes = [16, 128], strides = [1, 1]} : vector<16x256xf32> to vector<16x128xf32>
    %154 = vector.extract_strided_slice %152 {offsets = [0, 128], sizes = [16, 128], strides = [1, 1]} : vector<16x256xf32> to vector<16x128xf32>
    %155 = vector.extract_strided_slice %146 {offsets = [0, 0], sizes = [16, 32], strides = [1, 1]} : vector<16x128xf32> to vector<16x32xf32>
    %156 = vector.shape_cast %155 : vector<16x32xf32> to vector<2x8x32xf32>
    %157 = arith.truncf %156 : vector<2x8x32xf32> to vector<2x8x32xbf16>
    %158 = vector.extract_strided_slice %153 {offsets = [0, 0], sizes = [16, 32], strides = [1, 1]} : vector<16x128xf32> to vector<16x32xf32>
    %159 = vector.shape_cast %158 : vector<16x32xf32> to vector<2x8x32xf32>
    %160 = arith.truncf %159 : vector<2x8x32xf32> to vector<2x8x32xbf16>
    %161 = vector.extract_strided_slice %154 {offsets = [0, 0], sizes = [16, 32], strides = [1, 1]} : vector<16x128xf32> to vector<16x32xf32>
    %162 = vector.shape_cast %161 : vector<16x32xf32> to vector<2x8x32xf32>
    %163 = arith.truncf %162 : vector<2x8x32xf32> to vector<2x8x32xbf16>
    "tpu.trace_start"() <{level = 10 : i32, message = "bqd,bkd->bqk"}> : () -> ()
    %cst_51 = arith.constant dense<0.000000e+00> : vector<2x8x8xf32>
    %164 = tpu.matmul %157, %160, %cst_51 {dimension_numbers = #tpu.dot_dimension_numbers<[2], [2], [1], [1], [0, 0, 0, 1, 1, 1], [0], [0]>} : vector<2x8x32xbf16>, vector<2x8x32xbf16>, vector<2x8x8xf32> -> vector<2x8x8xf32>
    "tpu.trace_stop"() : () -> ()
    %cst_52 = arith.constant 0.176776692 : f32
    %165 = vector.broadcast %cst_52 : f32 to vector<2x8x8xf32>
    %166 = arith.mulf %164, %165 : vector<2x8x8xf32>
    %cst_53 = arith.constant dense<0xFF800000> : vector<2x8xf32>
    %167 = vector.multi_reduction <maximumf>, %166, %cst_53 [2] : vector<2x8x8xf32> to vector<2x8xf32>
    %168 = vector.shape_cast %167 : vector<2x8xf32> to vector<2x8x1xf32>
    %169 = vector.broadcast %168 : vector<2x8x1xf32> to vector<2x8x8xf32>
    %170 = arith.subf %166, %169 : vector<2x8x8xf32>
    %171 = math.exp %170 : vector<2x8x8xf32>
    %cst_54 = arith.constant dense<0.000000e+00> : vector<2x8xf32>
    %172 = vector.multi_reduction <add>, %171, %cst_54 [2] : vector<2x8x8xf32> to vector<2x8xf32>
    %173 = vector.shape_cast %172 : vector<2x8xf32> to vector<2x8x1xf32>
    %174 = tpu.reciprocal %173 {approx = true} : vector<2x8x1xf32> -> vector<2x8x1xf32>
    %175 = vector.broadcast %174 : vector<2x8x1xf32> to vector<2x8x8xf32>
    %176 = arith.mulf %171, %175 : vector<2x8x8xf32>
    %177 = arith.truncf %176 : vector<2x8x8xf32> to vector<2x8x8xbf16>
    "tpu.trace_start"() <{level = 10 : i32, message = "bqk,bkd->bqd"}> : () -> ()
    %cst_55 = arith.constant dense<0.000000e+00> : vector<2x8x32xf32>
    %178 = tpu.matmul %177, %163, %cst_55 {dimension_numbers = #tpu.dot_dimension_numbers<[2], [1], [1], [2], [0, 0, 0, 1, 1, 2], [0], [0]>} : vector<2x8x8xbf16>, vector<2x8x32xbf16>, vector<2x8x32xf32> -> vector<2x8x32xf32>
    "tpu.trace_stop"() : () -> ()
    %179 = vector.shape_cast %178 : vector<2x8x32xf32> to vector<16x32xf32>
    %180 = vector.extract_strided_slice %146 {offsets = [0, 32], sizes = [16, 32], strides = [1, 1]} : vector<16x128xf32> to vector<16x32xf32>
    %181 = vector.shape_cast %180 : vector<16x32xf32> to vector<2x8x32xf32>
    %182 = arith.truncf %181 : vector<2x8x32xf32> to vector<2x8x32xbf16>
    %183 = vector.extract_strided_slice %153 {offsets = [0, 32], sizes = [16, 32], strides = [1, 1]} : vector<16x128xf32> to vector<16x32xf32>
    %184 = vector.shape_cast %183 : vector<16x32xf32> to vector<2x8x32xf32>
    %185 = arith.truncf %184 : vector<2x8x32xf32> to vector<2x8x32xbf16>
    %186 = vector.extract_strided_slice %154 {offsets = [0, 32], sizes = [16, 32], strides = [1, 1]} : vector<16x128xf32> to vector<16x32xf32>
    %187 = vector.shape_cast %186 : vector<16x32xf32> to vector<2x8x32xf32>
    %188 = arith.truncf %187 : vector<2x8x32xf32> to vector<2x8x32xbf16>
    "tpu.trace_start"() <{level = 10 : i32, message = "bqd,bkd->bqk"}> : () -> ()
    %cst_56 = arith.constant dense<0.000000e+00> : vector<2x8x8xf32>
    %189 = tpu.matmul %182, %185, %cst_56 {dimension_numbers = #tpu.dot_dimension_numbers<[2], [2], [1], [1], [0, 0, 0, 1, 1, 1], [0], [0]>} : vector<2x8x32xbf16>, vector<2x8x32xbf16>, vector<2x8x8xf32> -> vector<2x8x8xf32>
    "tpu.trace_stop"() : () -> ()
    %cst_57 = arith.constant 0.176776692 : f32
    %190 = vector.broadcast %cst_57 : f32 to vector<2x8x8xf32>
    %191 = arith.mulf %189, %190 : vector<2x8x8xf32>
    %cst_58 = arith.constant dense<0xFF800000> : vector<2x8xf32>
    %192 = vector.multi_reduction <maximumf>, %191, %cst_58 [2] : vector<2x8x8xf32> to vector<2x8xf32>
    %193 = vector.shape_cast %192 : vector<2x8xf32> to vector<2x8x1xf32>
    %194 = vector.broadcast %193 : vector<2x8x1xf32> to vector<2x8x8xf32>
    %195 = arith.subf %191, %194 : vector<2x8x8xf32>
    %196 = math.exp %195 : vector<2x8x8xf32>
    %cst_59 = arith.constant dense<0.000000e+00> : vector<2x8xf32>
    %197 = vector.multi_reduction <add>, %196, %cst_59 [2] : vector<2x8x8xf32> to vector<2x8xf32>
    %198 = vector.shape_cast %197 : vector<2x8xf32> to vector<2x8x1xf32>
    %199 = tpu.reciprocal %198 {approx = true} : vector<2x8x1xf32> -> vector<2x8x1xf32>
    %200 = vector.broadcast %199 : vector<2x8x1xf32> to vector<2x8x8xf32>
    %201 = arith.mulf %196, %200 : vector<2x8x8xf32>
    %202 = arith.truncf %201 : vector<2x8x8xf32> to vector<2x8x8xbf16>
    "tpu.trace_start"() <{level = 10 : i32, message = "bqk,bkd->bqd"}> : () -> ()
    %cst_60 = arith.constant dense<0.000000e+00> : vector<2x8x32xf32>
    %203 = tpu.matmul %202, %188, %cst_60 {dimension_numbers = #tpu.dot_dimension_numbers<[2], [1], [1], [2], [0, 0, 0, 1, 1, 2], [0], [0]>} : vector<2x8x8xbf16>, vector<2x8x32xbf16>, vector<2x8x32xf32> -> vector<2x8x32xf32>
    "tpu.trace_stop"() : () -> ()
    %204 = vector.shape_cast %203 : vector<2x8x32xf32> to vector<16x32xf32>
    %205 = vector.extract_strided_slice %146 {offsets = [0, 64], sizes = [16, 32], strides = [1, 1]} : vector<16x128xf32> to vector<16x32xf32>
    %206 = vector.shape_cast %205 : vector<16x32xf32> to vector<2x8x32xf32>
    %207 = arith.truncf %206 : vector<2x8x32xf32> to vector<2x8x32xbf16>
    %208 = vector.extract_strided_slice %153 {offsets = [0, 64], sizes = [16, 32], strides = [1, 1]} : vector<16x128xf32> to vector<16x32xf32>
    %209 = vector.shape_cast %208 : vector<16x32xf32> to vector<2x8x32xf32>
    %210 = arith.truncf %209 : vector<2x8x32xf32> to vector<2x8x32xbf16>
    %211 = vector.extract_strided_slice %154 {offsets = [0, 64], sizes = [16, 32], strides = [1, 1]} : vector<16x128xf32> to vector<16x32xf32>
    %212 = vector.shape_cast %211 : vector<16x32xf32> to vector<2x8x32xf32>
    %213 = arith.truncf %212 : vector<2x8x32xf32> to vector<2x8x32xbf16>
    "tpu.trace_start"() <{level = 10 : i32, message = "bqd,bkd->bqk"}> : () -> ()
    %cst_61 = arith.constant dense<0.000000e+00> : vector<2x8x8xf32>
    %214 = tpu.matmul %207, %210, %cst_61 {dimension_numbers = #tpu.dot_dimension_numbers<[2], [2], [1], [1], [0, 0, 0, 1, 1, 1], [0], [0]>} : vector<2x8x32xbf16>, vector<2x8x32xbf16>, vector<2x8x8xf32> -> vector<2x8x8xf32>
    "tpu.trace_stop"() : () -> ()
    %cst_62 = arith.constant 0.176776692 : f32
    %215 = vector.broadcast %cst_62 : f32 to vector<2x8x8xf32>
    %216 = arith.mulf %214, %215 : vector<2x8x8xf32>
    %cst_63 = arith.constant dense<0xFF800000> : vector<2x8xf32>
    %217 = vector.multi_reduction <maximumf>, %216, %cst_63 [2] : vector<2x8x8xf32> to vector<2x8xf32>
    %218 = vector.shape_cast %217 : vector<2x8xf32> to vector<2x8x1xf32>
    %219 = vector.broadcast %218 : vector<2x8x1xf32> to vector<2x8x8xf32>
    %220 = arith.subf %216, %219 : vector<2x8x8xf32>
    %221 = math.exp %220 : vector<2x8x8xf32>
    %cst_64 = arith.constant dense<0.000000e+00> : vector<2x8xf32>
    %222 = vector.multi_reduction <add>, %221, %cst_64 [2] : vector<2x8x8xf32> to vector<2x8xf32>
    %223 = vector.shape_cast %222 : vector<2x8xf32> to vector<2x8x1xf32>
    %224 = tpu.reciprocal %223 {approx = true} : vector<2x8x1xf32> -> vector<2x8x1xf32>
    %225 = vector.broadcast %224 : vector<2x8x1xf32> to vector<2x8x8xf32>
    %226 = arith.mulf %221, %225 : vector<2x8x8xf32>
    %227 = arith.truncf %226 : vector<2x8x8xf32> to vector<2x8x8xbf16>
    "tpu.trace_start"() <{level = 10 : i32, message = "bqk,bkd->bqd"}> : () -> ()
    %cst_65 = arith.constant dense<0.000000e+00> : vector<2x8x32xf32>
    %228 = tpu.matmul %227, %213, %cst_65 {dimension_numbers = #tpu.dot_dimension_numbers<[2], [1], [1], [2], [0, 0, 0, 1, 1, 2], [0], [0]>} : vector<2x8x8xbf16>, vector<2x8x32xbf16>, vector<2x8x32xf32> -> vector<2x8x32xf32>
    "tpu.trace_stop"() : () -> ()
    %229 = vector.shape_cast %228 : vector<2x8x32xf32> to vector<16x32xf32>
    %230 = vector.extract_strided_slice %146 {offsets = [0, 96], sizes = [16, 32], strides = [1, 1]} : vector<16x128xf32> to vector<16x32xf32>
    %231 = vector.shape_cast %230 : vector<16x32xf32> to vector<2x8x32xf32>
    %232 = arith.truncf %231 : vector<2x8x32xf32> to vector<2x8x32xbf16>
    %233 = vector.extract_strided_slice %153 {offsets = [0, 96], sizes = [16, 32], strides = [1, 1]} : vector<16x128xf32> to vector<16x32xf32>
    %234 = vector.shape_cast %233 : vector<16x32xf32> to vector<2x8x32xf32>
    %235 = arith.truncf %234 : vector<2x8x32xf32> to vector<2x8x32xbf16>
    %236 = vector.extract_strided_slice %154 {offsets = [0, 96], sizes = [16, 32], strides = [1, 1]} : vector<16x128xf32> to vector<16x32xf32>
    %237 = vector.shape_cast %236 : vector<16x32xf32> to vector<2x8x32xf32>
    %238 = arith.truncf %237 : vector<2x8x32xf32> to vector<2x8x32xbf16>
    "tpu.trace_start"() <{level = 10 : i32, message = "bqd,bkd->bqk"}> : () -> ()
    %cst_66 = arith.constant dense<0.000000e+00> : vector<2x8x8xf32>
    %239 = tpu.matmul %232, %235, %cst_66 {dimension_numbers = #tpu.dot_dimension_numbers<[2], [2], [1], [1], [0, 0, 0, 1, 1, 1], [0], [0]>} : vector<2x8x32xbf16>, vector<2x8x32xbf16>, vector<2x8x8xf32> -> vector<2x8x8xf32>
    "tpu.trace_stop"() : () -> ()
    %cst_67 = arith.constant 0.176776692 : f32
    %240 = vector.broadcast %cst_67 : f32 to vector<2x8x8xf32>
    %241 = arith.mulf %239, %240 : vector<2x8x8xf32>
    %cst_68 = arith.constant dense<0xFF800000> : vector<2x8xf32>
    %242 = vector.multi_reduction <maximumf>, %241, %cst_68 [2] : vector<2x8x8xf32> to vector<2x8xf32>
    %243 = vector.shape_cast %242 : vector<2x8xf32> to vector<2x8x1xf32>
    %244 = vector.broadcast %243 : vector<2x8x1xf32> to vector<2x8x8xf32>
    %245 = arith.subf %241, %244 : vector<2x8x8xf32>
    %246 = math.exp %245 : vector<2x8x8xf32>
    %cst_69 = arith.constant dense<0.000000e+00> : vector<2x8xf32>
    %247 = vector.multi_reduction <add>, %246, %cst_69 [2] : vector<2x8x8xf32> to vector<2x8xf32>
    %248 = vector.shape_cast %247 : vector<2x8xf32> to vector<2x8x1xf32>
    %249 = tpu.reciprocal %248 {approx = true} : vector<2x8x1xf32> -> vector<2x8x1xf32>
    %250 = vector.broadcast %249 : vector<2x8x1xf32> to vector<2x8x8xf32>
    %251 = arith.mulf %246, %250 : vector<2x8x8xf32>
    %252 = arith.truncf %251 : vector<2x8x8xf32> to vector<2x8x8xbf16>
    "tpu.trace_start"() <{level = 10 : i32, message = "bqk,bkd->bqd"}> : () -> ()
    %cst_70 = arith.constant dense<0.000000e+00> : vector<2x8x32xf32>
    %253 = tpu.matmul %252, %238, %cst_70 {dimension_numbers = #tpu.dot_dimension_numbers<[2], [1], [1], [2], [0, 0, 0, 1, 1, 2], [0], [0]>} : vector<2x8x8xbf16>, vector<2x8x32xbf16>, vector<2x8x32xf32> -> vector<2x8x32xf32>
    "tpu.trace_stop"() : () -> ()
    %254 = vector.shape_cast %253 : vector<2x8x32xf32> to vector<16x32xf32>
    %255 = tpu.concatenate %179, %204, %229, %254 in 1 : vector<16x32xf32>, vector<16x32xf32>, vector<16x32xf32>, vector<16x32xf32> -> vector<16x128xf32>
    %256 = arith.truncf %255 : vector<16x128xf32> to vector<16x128xbf16>
    %c0_71 = arith.constant 0 : index
    %c0_72 = arith.constant 0 : index
    %257 = vector.load %arg12[%c0_71, %c0_72] : memref<128x128xbf16, #tpu.memory_space<vmem>>, vector<128x128xbf16>
    %cst_73 = arith.constant dense<0.000000e+00> : vector<16x128xf32>
    %258 = tpu.matmul %256, %257, %cst_73 {dimension_numbers = #tpu.dot_dimension_numbers<[1], [0], [0], [1], [0, 0, 1, 1], [], []>} : vector<16x128xbf16>, vector<128x128xbf16>, vector<16x128xf32> -> vector<16x128xf32>
    %c0_74 = arith.constant 0 : index
    %c0_75 = arith.constant 0 : index
    %259 = vector.load %arg13[%c0_74, %c0_75] : memref<1x128xf32, #tpu.memory_space<vmem>>, vector<1x128xf32>
    %260 = vector.broadcast %259 : vector<1x128xf32> to vector<16x128xf32>
    %261 = arith.addf %258, %260 : vector<16x128xf32>
    %262 = arith.addf %140, %261 : vector<16x128xf32>
    %c0_76 = arith.constant 0 : index
    %c0_77 = arith.constant 0 : index
    %263 = vector.load %arg14[%c0_76, %c0_77] : memref<1x128xf32, #tpu.memory_space<vmem>>, vector<1x128xf32>
    %c0_78 = arith.constant 0 : index
    %c0_79 = arith.constant 0 : index
    %264 = vector.load %arg15[%c0_78, %c0_79] : memref<1x128xf32, #tpu.memory_space<vmem>>, vector<1x128xf32>
    %cst_80 = arith.constant dense<0.000000e+00> : vector<16xf32>
    %265 = vector.multi_reduction <add>, %262, %cst_80 [1] : vector<16x128xf32> to vector<16xf32>
    %266 = vector.shape_cast %265 : vector<16xf32> to vector<16x1xf32>
    %cst_81 = arith.constant 1.280000e+02 : f32
    %267 = vector.broadcast %cst_81 : f32 to vector<16x1xf32>
    %268 = arith.divf %266, %267 : vector<16x1xf32>
    %269 = vector.broadcast %268 : vector<16x1xf32> to vector<16x128xf32>
    %270 = arith.subf %262, %269 : vector<16x128xf32>
    %271 = arith.mulf %270, %270 : vector<16x128xf32>
    %cst_82 = arith.constant dense<0.000000e+00> : vector<16xf32>
    %272 = vector.multi_reduction <add>, %271, %cst_82 [1] : vector<16x128xf32> to vector<16xf32>
    %273 = vector.shape_cast %272 : vector<16xf32> to vector<16x1xf32>
    %cst_83 = arith.constant 1.280000e+02 : f32
    %274 = vector.broadcast %cst_83 : f32 to vector<16x1xf32>
    %275 = arith.divf %273, %274 : vector<16x1xf32>
    %cst_84 = arith.constant 9.99999974E-6 : f32
    %276 = vector.broadcast %cst_84 : f32 to vector<16x1xf32>
    %277 = arith.addf %275, %276 : vector<16x1xf32>
    %278 = math.rsqrt %277 : vector<16x1xf32>
    %279 = vector.broadcast %278 : vector<16x1xf32> to vector<16x128xf32>
    %280 = arith.mulf %270, %279 : vector<16x128xf32>
    %281 = vector.broadcast %263 : vector<1x128xf32> to vector<16x128xf32>
    %282 = arith.mulf %280, %281 : vector<16x128xf32>
    %283 = vector.broadcast %264 : vector<1x128xf32> to vector<16x128xf32>
    %284 = arith.addf %282, %283 : vector<16x128xf32>
    %285 = arith.truncf %284 : vector<16x128xf32> to vector<16x128xbf16>
    %c0_85 = arith.constant 0 : index
    %c0_86 = arith.constant 0 : index
    %286 = vector.load %arg16[%c0_85, %c0_86] : memref<128x256xbf16, #tpu.memory_space<vmem>>, vector<128x256xbf16>
    %cst_87 = arith.constant dense<0.000000e+00> : vector<16x256xf32>
    %287 = tpu.matmul %285, %286, %cst_87 {dimension_numbers = #tpu.dot_dimension_numbers<[1], [0], [0], [1], [0, 0, 1, 1], [], []>} : vector<16x128xbf16>, vector<128x256xbf16>, vector<16x256xf32> -> vector<16x256xf32>
    %c0_88 = arith.constant 0 : index
    %c0_89 = arith.constant 0 : index
    %288 = vector.load %arg17[%c0_88, %c0_89] : memref<1x256xf32, #tpu.memory_space<vmem>>, vector<1x256xf32>
    %289 = vector.broadcast %288 : vector<1x256xf32> to vector<16x256xf32>
    %290 = arith.addf %287, %289 : vector<16x256xf32>
    %cst_90 = arith.constant 0.000000e+00 : f32
    %291 = vector.broadcast %cst_90 : f32 to vector<16x256xf32>
    %292 = arith.maximumf %290, %291 : vector<16x256xf32>
    %293 = arith.truncf %292 : vector<16x256xf32> to vector<16x256xbf16>
    %c0_91 = arith.constant 0 : index
    %c0_92 = arith.constant 0 : index
    %294 = vector.load %arg18[%c0_91, %c0_92] : memref<256x128xbf16, #tpu.memory_space<vmem>>, vector<256x128xbf16>
    %cst_93 = arith.constant dense<0.000000e+00> : vector<16x128xf32>
    %295 = tpu.matmul %293, %294, %cst_93 {dimension_numbers = #tpu.dot_dimension_numbers<[1], [0], [0], [1], [0, 0, 1, 1], [], []>} : vector<16x256xbf16>, vector<256x128xbf16>, vector<16x128xf32> -> vector<16x128xf32>
    %c0_94 = arith.constant 0 : index
    %c0_95 = arith.constant 0 : index
    %296 = vector.load %arg19[%c0_94, %c0_95] : memref<1x128xf32, #tpu.memory_space<vmem>>, vector<1x128xf32>
    %297 = vector.broadcast %296 : vector<1x128xf32> to vector<16x128xf32>
    %298 = arith.addf %295, %297 : vector<16x128xf32>
    %299 = arith.addf %284, %298 : vector<16x128xf32>
    %c0_96 = arith.constant 0 : index
    %c0_97 = arith.constant 0 : index
    %300 = vector.load %arg20[%c0_96, %c0_97] : memref<1x128xf32, #tpu.memory_space<vmem>>, vector<1x128xf32>
    %c0_98 = arith.constant 0 : index
    %c0_99 = arith.constant 0 : index
    %301 = vector.load %arg21[%c0_98, %c0_99] : memref<1x128xf32, #tpu.memory_space<vmem>>, vector<1x128xf32>
    %cst_100 = arith.constant dense<0.000000e+00> : vector<16xf32>
    %302 = vector.multi_reduction <add>, %299, %cst_100 [1] : vector<16x128xf32> to vector<16xf32>
    %303 = vector.shape_cast %302 : vector<16xf32> to vector<16x1xf32>
    %cst_101 = arith.constant 1.280000e+02 : f32
    %304 = vector.broadcast %cst_101 : f32 to vector<16x1xf32>
    %305 = arith.divf %303, %304 : vector<16x1xf32>
    %306 = vector.broadcast %305 : vector<16x1xf32> to vector<16x128xf32>
    %307 = arith.subf %299, %306 : vector<16x128xf32>
    %308 = arith.mulf %307, %307 : vector<16x128xf32>
    %cst_102 = arith.constant dense<0.000000e+00> : vector<16xf32>
    %309 = vector.multi_reduction <add>, %308, %cst_102 [1] : vector<16x128xf32> to vector<16xf32>
    %310 = vector.shape_cast %309 : vector<16xf32> to vector<16x1xf32>
    %cst_103 = arith.constant 1.280000e+02 : f32
    %311 = vector.broadcast %cst_103 : f32 to vector<16x1xf32>
    %312 = arith.divf %310, %311 : vector<16x1xf32>
    %cst_104 = arith.constant 9.99999974E-6 : f32
    %313 = vector.broadcast %cst_104 : f32 to vector<16x1xf32>
    %314 = arith.addf %312, %313 : vector<16x1xf32>
    %315 = math.rsqrt %314 : vector<16x1xf32>
    %316 = vector.broadcast %315 : vector<16x1xf32> to vector<16x128xf32>
    %317 = arith.mulf %307, %316 : vector<16x128xf32>
    %318 = vector.broadcast %300 : vector<1x128xf32> to vector<16x128xf32>
    %319 = arith.mulf %317, %318 : vector<16x128xf32>
    %320 = vector.broadcast %301 : vector<1x128xf32> to vector<16x128xf32>
    %321 = arith.addf %319, %320 : vector<16x128xf32>
    %c0_105 = arith.constant 0 : index
    %c0_106 = arith.constant 0 : index
    %322 = vector.load %arg22[%c0_105, %c0_106] : memref<16x128xf32, #tpu.memory_space<vmem>>, vector<16x128xf32>
    tpu.vector_store %arg22[%c0_105, %c0_106], %321 {strides = array<i32>} : memref<16x128xf32, #tpu.memory_space<vmem>>, vector<16x128xf32>,
    return
  }
}

module attributes {stable_mosaic.version = 11 : i64} {
  func.func @_dec_layer_kernel(%arg0: memref<16x128xf32, #tpu.memory_space<vmem>>, %arg1: memref<16x128xf32, #tpu.memory_space<vmem>>, %arg2: memref<128x384xbf16, #tpu.memory_space<vmem>>, %arg3: memref<1x384xf32, #tpu.memory_space<vmem>>, %arg4: memref<128x128xbf16, #tpu.memory_space<vmem>>, %arg5: memref<1x128xf32, #tpu.memory_space<vmem>>, %arg6: memref<1x128xf32, #tpu.memory_space<vmem>>, %arg7: memref<1x128xf32, #tpu.memory_space<vmem>>, %arg8: memref<128x128xbf16, #tpu.memory_space<vmem>>, %arg9: memref<1x128xf32, #tpu.memory_space<vmem>>, %arg10: memref<128x256xbf16, #tpu.memory_space<vmem>>, %arg11: memref<1x256xf32, #tpu.memory_space<vmem>>, %arg12: memref<128x128xbf16, #tpu.memory_space<vmem>>, %arg13: memref<1x128xf32, #tpu.memory_space<vmem>>, %arg14: memref<1x128xf32, #tpu.memory_space<vmem>>, %arg15: memref<1x128xf32, #tpu.memory_space<vmem>>, %arg16: memref<128x256xbf16, #tpu.memory_space<vmem>>, %arg17: memref<1x256xf32, #tpu.memory_space<vmem>>, %arg18: memref<256x128xbf16, #tpu.memory_space<vmem>>, %arg19: memref<1x128xf32, #tpu.memory_space<vmem>>, %arg20: memref<1x128xf32, #tpu.memory_space<vmem>>, %arg21: memref<1x128xf32, #tpu.memory_space<vmem>>, %arg22: memref<16x128xf32, #tpu.memory_space<vmem>>) attributes {dimension_semantics = [], scalar_prefetch = 0 : i64, scratch_operands = 0 : i64, tpu.core_type = #tpu.core_type<tc>} {
    %c0 = arith.constant 0 : index
    %c0_0 = arith.constant 0 : index
    %0 = vector.load %arg0[%c0, %c0_0] : memref<16x128xf32, #tpu.memory_space<vmem>>, vector<16x128xf32>
    %c0_1 = arith.constant 0 : index
    %c0_2 = arith.constant 0 : index
    %1 = vector.load %arg1[%c0_1, %c0_2] : memref<16x128xf32, #tpu.memory_space<vmem>>, vector<16x128xf32>
    %2 = arith.truncf %0 : vector<16x128xf32> to vector<16x128xbf16>
    %c0_3 = arith.constant 0 : index
    %c0_4 = arith.constant 0 : index
    %3 = vector.load %arg2[%c0_3, %c0_4] : memref<128x384xbf16, #tpu.memory_space<vmem>>, vector<128x384xbf16>
    %cst = arith.constant dense<0.000000e+00> : vector<16x384xf32>
    %4 = tpu.matmul %2, %3, %cst {dimension_numbers = #tpu.dot_dimension_numbers<[1], [0], [0], [1], [0, 0, 1, 1], [], []>} : vector<16x128xbf16>, vector<128x384xbf16>, vector<16x384xf32> -> vector<16x384xf32>
    %c0_5 = arith.constant 0 : index
    %c0_6 = arith.constant 0 : index
    %5 = vector.load %arg3[%c0_5, %c0_6] : memref<1x384xf32, #tpu.memory_space<vmem>>, vector<1x384xf32>
    %6 = vector.broadcast %5 : vector<1x384xf32> to vector<16x384xf32>
    %7 = arith.addf %4, %6 : vector<16x384xf32>
    %8 = vector.extract_strided_slice %7 {offsets = [0, 0], sizes = [16, 128], strides = [1, 1]} : vector<16x384xf32> to vector<16x128xf32>
    %9 = vector.extract_strided_slice %7 {offsets = [0, 128], sizes = [16, 128], strides = [1, 1]} : vector<16x384xf32> to vector<16x128xf32>
    %10 = vector.extract_strided_slice %7 {offsets = [0, 256], sizes = [16, 128], strides = [1, 1]} : vector<16x384xf32> to vector<16x128xf32>
    %11 = vector.extract_strided_slice %8 {offsets = [0, 0], sizes = [16, 32], strides = [1, 1]} : vector<16x128xf32> to vector<16x32xf32>
    %12 = vector.shape_cast %11 : vector<16x32xf32> to vector<2x8x32xf32>
    %13 = arith.truncf %12 : vector<2x8x32xf32> to vector<2x8x32xbf16>
    %14 = vector.extract_strided_slice %9 {offsets = [0, 0], sizes = [16, 32], strides = [1, 1]} : vector<16x128xf32> to vector<16x32xf32>
    %15 = vector.shape_cast %14 : vector<16x32xf32> to vector<2x8x32xf32>
    %16 = arith.truncf %15 : vector<2x8x32xf32> to vector<2x8x32xbf16>
    %17 = vector.extract_strided_slice %10 {offsets = [0, 0], sizes = [16, 32], strides = [1, 1]} : vector<16x128xf32> to vector<16x32xf32>
    %18 = vector.shape_cast %17 : vector<16x32xf32> to vector<2x8x32xf32>
    %19 = arith.truncf %18 : vector<2x8x32xf32> to vector<2x8x32xbf16>
    "tpu.trace_start"() <{level = 10 : i32, message = "bqd,bkd->bqk"}> : () -> ()
    %cst_7 = arith.constant dense<0.000000e+00> : vector<2x8x8xf32>
    %20 = tpu.matmul %13, %16, %cst_7 {dimension_numbers = #tpu.dot_dimension_numbers<[2], [2], [1], [1], [0, 0, 0, 1, 1, 1], [0], [0]>} : vector<2x8x32xbf16>, vector<2x8x32xbf16>, vector<2x8x8xf32> -> vector<2x8x8xf32>
    "tpu.trace_stop"() : () -> ()
    %cst_8 = arith.constant 0.176776692 : f32
    %21 = vector.broadcast %cst_8 : f32 to vector<2x8x8xf32>
    %22 = arith.mulf %20, %21 : vector<2x8x8xf32>
    %cst_9 = arith.constant dense<0xFF800000> : vector<2x8xf32>
    %23 = vector.multi_reduction <maximumf>, %22, %cst_9 [2] : vector<2x8x8xf32> to vector<2x8xf32>
    %24 = vector.shape_cast %23 : vector<2x8xf32> to vector<2x8x1xf32>
    %25 = vector.broadcast %24 : vector<2x8x1xf32> to vector<2x8x8xf32>
    %26 = arith.subf %22, %25 : vector<2x8x8xf32>
    %27 = math.exp %26 : vector<2x8x8xf32>
    %cst_10 = arith.constant dense<0.000000e+00> : vector<2x8xf32>
    %28 = vector.multi_reduction <add>, %27, %cst_10 [2] : vector<2x8x8xf32> to vector<2x8xf32>
    %29 = vector.shape_cast %28 : vector<2x8xf32> to vector<2x8x1xf32>
    %30 = tpu.reciprocal %29 {approx = true} : vector<2x8x1xf32> -> vector<2x8x1xf32>
    %31 = vector.broadcast %30 : vector<2x8x1xf32> to vector<2x8x8xf32>
    %32 = arith.mulf %27, %31 : vector<2x8x8xf32>
    %33 = arith.truncf %32 : vector<2x8x8xf32> to vector<2x8x8xbf16>
    "tpu.trace_start"() <{level = 10 : i32, message = "bqk,bkd->bqd"}> : () -> ()
    %cst_11 = arith.constant dense<0.000000e+00> : vector<2x8x32xf32>
    %34 = tpu.matmul %33, %19, %cst_11 {dimension_numbers = #tpu.dot_dimension_numbers<[2], [1], [1], [2], [0, 0, 0, 1, 1, 2], [0], [0]>} : vector<2x8x8xbf16>, vector<2x8x32xbf16>, vector<2x8x32xf32> -> vector<2x8x32xf32>
    "tpu.trace_stop"() : () -> ()
    %35 = vector.shape_cast %34 : vector<2x8x32xf32> to vector<16x32xf32>
    %36 = vector.extract_strided_slice %8 {offsets = [0, 32], sizes = [16, 32], strides = [1, 1]} : vector<16x128xf32> to vector<16x32xf32>
    %37 = vector.shape_cast %36 : vector<16x32xf32> to vector<2x8x32xf32>
    %38 = arith.truncf %37 : vector<2x8x32xf32> to vector<2x8x32xbf16>
    %39 = vector.extract_strided_slice %9 {offsets = [0, 32], sizes = [16, 32], strides = [1, 1]} : vector<16x128xf32> to vector<16x32xf32>
    %40 = vector.shape_cast %39 : vector<16x32xf32> to vector<2x8x32xf32>
    %41 = arith.truncf %40 : vector<2x8x32xf32> to vector<2x8x32xbf16>
    %42 = vector.extract_strided_slice %10 {offsets = [0, 32], sizes = [16, 32], strides = [1, 1]} : vector<16x128xf32> to vector<16x32xf32>
    %43 = vector.shape_cast %42 : vector<16x32xf32> to vector<2x8x32xf32>
    %44 = arith.truncf %43 : vector<2x8x32xf32> to vector<2x8x32xbf16>
    "tpu.trace_start"() <{level = 10 : i32, message = "bqd,bkd->bqk"}> : () -> ()
    %cst_12 = arith.constant dense<0.000000e+00> : vector<2x8x8xf32>
    %45 = tpu.matmul %38, %41, %cst_12 {dimension_numbers = #tpu.dot_dimension_numbers<[2], [2], [1], [1], [0, 0, 0, 1, 1, 1], [0], [0]>} : vector<2x8x32xbf16>, vector<2x8x32xbf16>, vector<2x8x8xf32> -> vector<2x8x8xf32>
    "tpu.trace_stop"() : () -> ()
    %cst_13 = arith.constant 0.176776692 : f32
    %46 = vector.broadcast %cst_13 : f32 to vector<2x8x8xf32>
    %47 = arith.mulf %45, %46 : vector<2x8x8xf32>
    %cst_14 = arith.constant dense<0xFF800000> : vector<2x8xf32>
    %48 = vector.multi_reduction <maximumf>, %47, %cst_14 [2] : vector<2x8x8xf32> to vector<2x8xf32>
    %49 = vector.shape_cast %48 : vector<2x8xf32> to vector<2x8x1xf32>
    %50 = vector.broadcast %49 : vector<2x8x1xf32> to vector<2x8x8xf32>
    %51 = arith.subf %47, %50 : vector<2x8x8xf32>
    %52 = math.exp %51 : vector<2x8x8xf32>
    %cst_15 = arith.constant dense<0.000000e+00> : vector<2x8xf32>
    %53 = vector.multi_reduction <add>, %52, %cst_15 [2] : vector<2x8x8xf32> to vector<2x8xf32>
    %54 = vector.shape_cast %53 : vector<2x8xf32> to vector<2x8x1xf32>
    %55 = tpu.reciprocal %54 {approx = true} : vector<2x8x1xf32> -> vector<2x8x1xf32>
    %56 = vector.broadcast %55 : vector<2x8x1xf32> to vector<2x8x8xf32>
    %57 = arith.mulf %52, %56 : vector<2x8x8xf32>
    %58 = arith.truncf %57 : vector<2x8x8xf32> to vector<2x8x8xbf16>
    "tpu.trace_start"() <{level = 10 : i32, message = "bqk,bkd->bqd"}> : () -> ()
    %cst_16 = arith.constant dense<0.000000e+00> : vector<2x8x32xf32>
    %59 = tpu.matmul %58, %44, %cst_16 {dimension_numbers = #tpu.dot_dimension_numbers<[2], [1], [1], [2], [0, 0, 0, 1, 1, 2], [0], [0]>} : vector<2x8x8xbf16>, vector<2x8x32xbf16>, vector<2x8x32xf32> -> vector<2x8x32xf32>
    "tpu.trace_stop"() : () -> ()
    %60 = vector.shape_cast %59 : vector<2x8x32xf32> to vector<16x32xf32>
    %61 = vector.extract_strided_slice %8 {offsets = [0, 64], sizes = [16, 32], strides = [1, 1]} : vector<16x128xf32> to vector<16x32xf32>
    %62 = vector.shape_cast %61 : vector<16x32xf32> to vector<2x8x32xf32>
    %63 = arith.truncf %62 : vector<2x8x32xf32> to vector<2x8x32xbf16>
    %64 = vector.extract_strided_slice %9 {offsets = [0, 64], sizes = [16, 32], strides = [1, 1]} : vector<16x128xf32> to vector<16x32xf32>
    %65 = vector.shape_cast %64 : vector<16x32xf32> to vector<2x8x32xf32>
    %66 = arith.truncf %65 : vector<2x8x32xf32> to vector<2x8x32xbf16>
    %67 = vector.extract_strided_slice %10 {offsets = [0, 64], sizes = [16, 32], strides = [1, 1]} : vector<16x128xf32> to vector<16x32xf32>
    %68 = vector.shape_cast %67 : vector<16x32xf32> to vector<2x8x32xf32>
    %69 = arith.truncf %68 : vector<2x8x32xf32> to vector<2x8x32xbf16>
    "tpu.trace_start"() <{level = 10 : i32, message = "bqd,bkd->bqk"}> : () -> ()
    %cst_17 = arith.constant dense<0.000000e+00> : vector<2x8x8xf32>
    %70 = tpu.matmul %63, %66, %cst_17 {dimension_numbers = #tpu.dot_dimension_numbers<[2], [2], [1], [1], [0, 0, 0, 1, 1, 1], [0], [0]>} : vector<2x8x32xbf16>, vector<2x8x32xbf16>, vector<2x8x8xf32> -> vector<2x8x8xf32>
    "tpu.trace_stop"() : () -> ()
    %cst_18 = arith.constant 0.176776692 : f32
    %71 = vector.broadcast %cst_18 : f32 to vector<2x8x8xf32>
    %72 = arith.mulf %70, %71 : vector<2x8x8xf32>
    %cst_19 = arith.constant dense<0xFF800000> : vector<2x8xf32>
    %73 = vector.multi_reduction <maximumf>, %72, %cst_19 [2] : vector<2x8x8xf32> to vector<2x8xf32>
    %74 = vector.shape_cast %73 : vector<2x8xf32> to vector<2x8x1xf32>
    %75 = vector.broadcast %74 : vector<2x8x1xf32> to vector<2x8x8xf32>
    %76 = arith.subf %72, %75 : vector<2x8x8xf32>
    %77 = math.exp %76 : vector<2x8x8xf32>
    %cst_20 = arith.constant dense<0.000000e+00> : vector<2x8xf32>
    %78 = vector.multi_reduction <add>, %77, %cst_20 [2] : vector<2x8x8xf32> to vector<2x8xf32>
    %79 = vector.shape_cast %78 : vector<2x8xf32> to vector<2x8x1xf32>
    %80 = tpu.reciprocal %79 {approx = true} : vector<2x8x1xf32> -> vector<2x8x1xf32>
    %81 = vector.broadcast %80 : vector<2x8x1xf32> to vector<2x8x8xf32>
    %82 = arith.mulf %77, %81 : vector<2x8x8xf32>
    %83 = arith.truncf %82 : vector<2x8x8xf32> to vector<2x8x8xbf16>
    "tpu.trace_start"() <{level = 10 : i32, message = "bqk,bkd->bqd"}> : () -> ()
    %cst_21 = arith.constant dense<0.000000e+00> : vector<2x8x32xf32>
    %84 = tpu.matmul %83, %69, %cst_21 {dimension_numbers = #tpu.dot_dimension_numbers<[2], [1], [1], [2], [0, 0, 0, 1, 1, 2], [0], [0]>} : vector<2x8x8xbf16>, vector<2x8x32xbf16>, vector<2x8x32xf32> -> vector<2x8x32xf32>
    "tpu.trace_stop"() : () -> ()
    %85 = vector.shape_cast %84 : vector<2x8x32xf32> to vector<16x32xf32>
    %86 = vector.extract_strided_slice %8 {offsets = [0, 96], sizes = [16, 32], strides = [1, 1]} : vector<16x128xf32> to vector<16x32xf32>
    %87 = vector.shape_cast %86 : vector<16x32xf32> to vector<2x8x32xf32>
    %88 = arith.truncf %87 : vector<2x8x32xf32> to vector<2x8x32xbf16>
    %89 = vector.extract_strided_slice %9 {offsets = [0, 96], sizes = [16, 32], strides = [1, 1]} : vector<16x128xf32> to vector<16x32xf32>
    %90 = vector.shape_cast %89 : vector<16x32xf32> to vector<2x8x32xf32>
    %91 = arith.truncf %90 : vector<2x8x32xf32> to vector<2x8x32xbf16>
    %92 = vector.extract_strided_slice %10 {offsets = [0, 96], sizes = [16, 32], strides = [1, 1]} : vector<16x128xf32> to vector<16x32xf32>
    %93 = vector.shape_cast %92 : vector<16x32xf32> to vector<2x8x32xf32>
    %94 = arith.truncf %93 : vector<2x8x32xf32> to vector<2x8x32xbf16>
    "tpu.trace_start"() <{level = 10 : i32, message = "bqd,bkd->bqk"}> : () -> ()
    %cst_22 = arith.constant dense<0.000000e+00> : vector<2x8x8xf32>
    %95 = tpu.matmul %88, %91, %cst_22 {dimension_numbers = #tpu.dot_dimension_numbers<[2], [2], [1], [1], [0, 0, 0, 1, 1, 1], [0], [0]>} : vector<2x8x32xbf16>, vector<2x8x32xbf16>, vector<2x8x8xf32> -> vector<2x8x8xf32>
    "tpu.trace_stop"() : () -> ()
    %cst_23 = arith.constant 0.176776692 : f32
    %96 = vector.broadcast %cst_23 : f32 to vector<2x8x8xf32>
    %97 = arith.mulf %95, %96 : vector<2x8x8xf32>
    %cst_24 = arith.constant dense<0xFF800000> : vector<2x8xf32>
    %98 = vector.multi_reduction <maximumf>, %97, %cst_24 [2] : vector<2x8x8xf32> to vector<2x8xf32>
    %99 = vector.shape_cast %98 : vector<2x8xf32> to vector<2x8x1xf32>
    %100 = vector.broadcast %99 : vector<2x8x1xf32> to vector<2x8x8xf32>
    %101 = arith.subf %97, %100 : vector<2x8x8xf32>
    %102 = math.exp %101 : vector<2x8x8xf32>
    %cst_25 = arith.constant dense<0.000000e+00> : vector<2x8xf32>
    %103 = vector.multi_reduction <add>, %102, %cst_25 [2] : vector<2x8x8xf32> to vector<2x8xf32>
    %104 = vector.shape_cast %103 : vector<2x8xf32> to vector<2x8x1xf32>
    %105 = tpu.reciprocal %104 {approx = true} : vector<2x8x1xf32> -> vector<2x8x1xf32>
    %106 = vector.broadcast %105 : vector<2x8x1xf32> to vector<2x8x8xf32>
    %107 = arith.mulf %102, %106 : vector<2x8x8xf32>
    %108 = arith.truncf %107 : vector<2x8x8xf32> to vector<2x8x8xbf16>
    "tpu.trace_start"() <{level = 10 : i32, message = "bqk,bkd->bqd"}> : () -> ()
    %cst_26 = arith.constant dense<0.000000e+00> : vector<2x8x32xf32>
    %109 = tpu.matmul %108, %94, %cst_26 {dimension_numbers = #tpu.dot_dimension_numbers<[2], [1], [1], [2], [0, 0, 0, 1, 1, 2], [0], [0]>} : vector<2x8x8xbf16>, vector<2x8x32xbf16>, vector<2x8x32xf32> -> vector<2x8x32xf32>
    "tpu.trace_stop"() : () -> ()
    %110 = vector.shape_cast %109 : vector<2x8x32xf32> to vector<16x32xf32>
    %111 = tpu.concatenate %35, %60, %85, %110 in 1 : vector<16x32xf32>, vector<16x32xf32>, vector<16x32xf32>, vector<16x32xf32> -> vector<16x128xf32>
    %112 = arith.truncf %111 : vector<16x128xf32> to vector<16x128xbf16>
    %c0_27 = arith.constant 0 : index
    %c0_28 = arith.constant 0 : index
    %113 = vector.load %arg4[%c0_27, %c0_28] : memref<128x128xbf16, #tpu.memory_space<vmem>>, vector<128x128xbf16>
    %cst_29 = arith.constant dense<0.000000e+00> : vector<16x128xf32>
    %114 = tpu.matmul %112, %113, %cst_29 {dimension_numbers = #tpu.dot_dimension_numbers<[1], [0], [0], [1], [0, 0, 1, 1], [], []>} : vector<16x128xbf16>, vector<128x128xbf16>, vector<16x128xf32> -> vector<16x128xf32>
    %c0_30 = arith.constant 0 : index
    %c0_31 = arith.constant 0 : index
    %115 = vector.load %arg5[%c0_30, %c0_31] : memref<1x128xf32, #tpu.memory_space<vmem>>, vector<1x128xf32>
    %116 = vector.broadcast %115 : vector<1x128xf32> to vector<16x128xf32>
    %117 = arith.addf %114, %116 : vector<16x128xf32>
    %118 = arith.addf %0, %117 : vector<16x128xf32>
    %c0_32 = arith.constant 0 : index
    %c0_33 = arith.constant 0 : index
    %119 = vector.load %arg6[%c0_32, %c0_33] : memref<1x128xf32, #tpu.memory_space<vmem>>, vector<1x128xf32>
    %c0_34 = arith.constant 0 : index
    %c0_35 = arith.constant 0 : index
    %120 = vector.load %arg7[%c0_34, %c0_35] : memref<1x128xf32, #tpu.memory_space<vmem>>, vector<1x128xf32>
    %cst_36 = arith.constant dense<0.000000e+00> : vector<16xf32>
    %121 = vector.multi_reduction <add>, %118, %cst_36 [1] : vector<16x128xf32> to vector<16xf32>
    %122 = vector.shape_cast %121 : vector<16xf32> to vector<16x1xf32>
    %cst_37 = arith.constant 1.280000e+02 : f32
    %123 = vector.broadcast %cst_37 : f32 to vector<16x1xf32>
    %124 = arith.divf %122, %123 : vector<16x1xf32>
    %125 = vector.broadcast %124 : vector<16x1xf32> to vector<16x128xf32>
    %126 = arith.subf %118, %125 : vector<16x128xf32>
    %127 = arith.mulf %126, %126 : vector<16x128xf32>
    %cst_38 = arith.constant dense<0.000000e+00> : vector<16xf32>
    %128 = vector.multi_reduction <add>, %127, %cst_38 [1] : vector<16x128xf32> to vector<16xf32>
    %129 = vector.shape_cast %128 : vector<16xf32> to vector<16x1xf32>
    %cst_39 = arith.constant 1.280000e+02 : f32
    %130 = vector.broadcast %cst_39 : f32 to vector<16x1xf32>
    %131 = arith.divf %129, %130 : vector<16x1xf32>
    %cst_40 = arith.constant 9.99999974E-6 : f32
    %132 = vector.broadcast %cst_40 : f32 to vector<16x1xf32>
    %133 = arith.addf %131, %132 : vector<16x1xf32>
    %134 = math.rsqrt %133 : vector<16x1xf32>
    %135 = vector.broadcast %134 : vector<16x1xf32> to vector<16x128xf32>
    %136 = arith.mulf %126, %135 : vector<16x128xf32>
    %137 = vector.broadcast %119 : vector<1x128xf32> to vector<16x128xf32>
    %138 = arith.mulf %136, %137 : vector<16x128xf32>
    %139 = vector.broadcast %120 : vector<1x128xf32> to vector<16x128xf32>
    %140 = arith.addf %138, %139 : vector<16x128xf32>
    %141 = arith.truncf %140 : vector<16x128xf32> to vector<16x128xbf16>
    %c0_41 = arith.constant 0 : index
    %c0_42 = arith.constant 0 : index
    %142 = vector.load %arg8[%c0_41, %c0_42] : memref<128x128xbf16, #tpu.memory_space<vmem>>, vector<128x128xbf16>
    %cst_43 = arith.constant dense<0.000000e+00> : vector<16x128xf32>
    %143 = tpu.matmul %141, %142, %cst_43 {dimension_numbers = #tpu.dot_dimension_numbers<[1], [0], [0], [1], [0, 0, 1, 1], [], []>} : vector<16x128xbf16>, vector<128x128xbf16>, vector<16x128xf32> -> vector<16x128xf32>
    %c0_44 = arith.constant 0 : index
    %c0_45 = arith.constant 0 : index
    %144 = vector.load %arg9[%c0_44, %c0_45] : memref<1x128xf32, #tpu.memory_space<vmem>>, vector<1x128xf32>
    %145 = vector.broadcast %144 : vector<1x128xf32> to vector<16x128xf32>
    %146 = arith.addf %143, %145 : vector<16x128xf32>
    %147 = arith.truncf %1 : vector<16x128xf32> to vector<16x128xbf16>
    %c0_46 = arith.constant 0 : index
    %c0_47 = arith.constant 0 : index
    %148 = vector.load %arg10[%c0_46, %c0_47] : memref<128x256xbf16, #tpu.memory_space<vmem>>, vector<128x256xbf16>
    %cst_48 = arith.constant dense<0.000000e+00> : vector<16x256xf32>
    %149 = tpu.matmul %147, %148, %cst_48 {dimension_numbers = #tpu.dot_dimension_numbers<[1], [0], [0], [1], [0, 0, 1, 1], [], []>} : vector<16x128xbf16>, vector<128x256xbf16>, vector<16x256xf32> -> vector<16x256xf32>
    %c0_49 = arith.constant 0 : index
    %c0_50 = arith.constant 0 : index
    %150 = vector.load %arg11[%c0_49, %c0_50] : memref<1x256xf32, #tpu.memory_space<vmem>>, vector<1x256xf32>
    %151 = vector.broadcast %150 : vector<1x256xf32> to vector<16x256xf32>
    %152 = arith.addf %149, %151 : vector<16x256xf32>
    %153 = vector.extract_strided_slice %152 {offsets = [0, 0], sizes = [16, 128], strides = [1, 1]} : vector<16x256xf32> to vector<16x128xf32>
    %154 = vector.extract_strided_slice %152 {offsets = [0, 128], sizes = [16, 128], strides = [1, 1]} : vector<16x256xf32> to vector<16x128xf32>
    %155 = vector.extract_strided_slice %146 {offsets = [0, 0], sizes = [16, 32], strides = [1, 1]} : vector<16x128xf32> to vector<16x32xf32>
    %156 = vector.shape_cast %155 : vector<16x32xf32> to vector<2x8x32xf32>
    %157 = arith.truncf %156 : vector<2x8x32xf32> to vector<2x8x32xbf16>
    %158 = vector.extract_strided_slice %153 {offsets = [0, 0], sizes = [16, 32], strides = [1, 1]} : vector<16x128xf32> to vector<16x32xf32>
    %159 = vector.shape_cast %158 : vector<16x32xf32> to vector<2x8x32xf32>
    %160 = arith.truncf %159 : vector<2x8x32xf32> to vector<2x8x32xbf16>
    %161 = vector.extract_strided_slice %154 {offsets = [0, 0], sizes = [16, 32], strides = [1, 1]} : vector<16x128xf32> to vector<16x32xf32>
    %162 = vector.shape_cast %161 : vector<16x32xf32> to vector<2x8x32xf32>
    %163 = arith.truncf %162 : vector<2x8x32xf32> to vector<2x8x32xbf16>
    "tpu.trace_start"() <{level = 10 : i32, message = "bqd,bkd->bqk"}> : () -> ()
    %cst_51 = arith.constant dense<0.000000e+00> : vector<2x8x8xf32>
    %164 = tpu.matmul %157, %160, %cst_51 {dimension_numbers = #tpu.dot_dimension_numbers<[2], [2], [1], [1], [0, 0, 0, 1, 1, 1], [0], [0]>} : vector<2x8x32xbf16>, vector<2x8x32xbf16>, vector<2x8x8xf32> -> vector<2x8x8xf32>
    "tpu.trace_stop"() : () -> ()
    %cst_52 = arith.constant 0.176776692 : f32
    %165 = vector.broadcast %cst_52 : f32 to vector<2x8x8xf32>
    %166 = arith.mulf %164, %165 : vector<2x8x8xf32>
    %cst_53 = arith.constant dense<0xFF800000> : vector<2x8xf32>
    %167 = vector.multi_reduction <maximumf>, %166, %cst_53 [2] : vector<2x8x8xf32> to vector<2x8xf32>
    %168 = vector.shape_cast %167 : vector<2x8xf32> to vector<2x8x1xf32>
    %169 = vector.broadcast %168 : vector<2x8x1xf32> to vector<2x8x8xf32>
    %170 = arith.subf %166, %169 : vector<2x8x8xf32>
    %171 = math.exp %170 : vector<2x8x8xf32>
    %cst_54 = arith.constant dense<0.000000e+00> : vector<2x8xf32>
    %172 = vector.multi_reduction <add>, %171, %cst_54 [2] : vector<2x8x8xf32> to vector<2x8xf32>
    %173 = vector.shape_cast %172 : vector<2x8xf32> to vector<2x8x1xf32>
    %174 = tpu.reciprocal %173 {approx = true} : vector<2x8x1xf32> -> vector<2x8x1xf32>
    %175 = vector.broadcast %174 : vector<2x8x1xf32> to vector<2x8x8xf32>
    %176 = arith.mulf %171, %175 : vector<2x8x8xf32>
    %177 = arith.truncf %176 : vector<2x8x8xf32> to vector<2x8x8xbf16>
    "tpu.trace_start"() <{level = 10 : i32, message = "bqk,bkd->bqd"}> : () -> ()
    %cst_55 = arith.constant dense<0.000000e+00> : vector<2x8x32xf32>
    %178 = tpu.matmul %177, %163, %cst_55 {dimension_numbers = #tpu.dot_dimension_numbers<[2], [1], [1], [2], [0, 0, 0, 1, 1, 2], [0], [0]>} : vector<2x8x8xbf16>, vector<2x8x32xbf16>, vector<2x8x32xf32> -> vector<2x8x32xf32>
    "tpu.trace_stop"() : () -> ()
    %179 = vector.shape_cast %178 : vector<2x8x32xf32> to vector<16x32xf32>
    %180 = vector.extract_strided_slice %146 {offsets = [0, 32], sizes = [16, 32], strides = [1, 1]} : vector<16x128xf32> to vector<16x32xf32>
    %181 = vector.shape_cast %180 : vector<16x32xf32> to vector<2x8x32xf32>
    %182 = arith.truncf %181 : vector<2x8x32xf32> to vector<2x8x32xbf16>
    %183 = vector.extract_strided_slice %153 {offsets = [0, 32], sizes = [16, 32], strides = [1, 1]} : vector<16x128xf32> to vector<16x32xf32>
    %184 = vector.shape_cast %183 : vector<16x32xf32> to vector<2x8x32xf32>
    %185 = arith.truncf %184 : vector<2x8x32xf32> to vector<2x8x32xbf16>
    %186 = vector.extract_strided_slice %154 {offsets = [0, 32], sizes = [16, 32], strides = [1, 1]} : vector<16x128xf32> to vector<16x32xf32>
    %187 = vector.shape_cast %186 : vector<16x32xf32> to vector<2x8x32xf32>
    %188 = arith.truncf %187 : vector<2x8x32xf32> to vector<2x8x32xbf16>
    "tpu.trace_start"() <{level = 10 : i32, message = "bqd,bkd->bqk"}> : () -> ()
    %cst_56 = arith.constant dense<0.000000e+00> : vector<2x8x8xf32>
    %189 = tpu.matmul %182, %185, %cst_56 {dimension_numbers = #tpu.dot_dimension_numbers<[2], [2], [1], [1], [0, 0, 0, 1, 1, 1], [0], [0]>} : vector<2x8x32xbf16>, vector<2x8x32xbf16>, vector<2x8x8xf32> -> vector<2x8x8xf32>
    "tpu.trace_stop"() : () -> ()
    %cst_57 = arith.constant 0.176776692 : f32
    %190 = vector.broadcast %cst_57 : f32 to vector<2x8x8xf32>
    %191 = arith.mulf %189, %190 : vector<2x8x8xf32>
    %cst_58 = arith.constant dense<0xFF800000> : vector<2x8xf32>
    %192 = vector.multi_reduction <maximumf>, %191, %cst_58 [2] : vector<2x8x8xf32> to vector<2x8xf32>
    %193 = vector.shape_cast %192 : vector<2x8xf32> to vector<2x8x1xf32>
    %194 = vector.broadcast %193 : vector<2x8x1xf32> to vector<2x8x8xf32>
    %195 = arith.subf %191, %194 : vector<2x8x8xf32>
    %196 = math.exp %195 : vector<2x8x8xf32>
    %cst_59 = arith.constant dense<0.000000e+00> : vector<2x8xf32>
    %197 = vector.multi_reduction <add>, %196, %cst_59 [2] : vector<2x8x8xf32> to vector<2x8xf32>
    %198 = vector.shape_cast %197 : vector<2x8xf32> to vector<2x8x1xf32>
    %199 = tpu.reciprocal %198 {approx = true} : vector<2x8x1xf32> -> vector<2x8x1xf32>
    %200 = vector.broadcast %199 : vector<2x8x1xf32> to vector<2x8x8xf32>
    %201 = arith.mulf %196, %200 : vector<2x8x8xf32>
    %202 = arith.truncf %201 : vector<2x8x8xf32> to vector<2x8x8xbf16>
    "tpu.trace_start"() <{level = 10 : i32, message = "bqk,bkd->bqd"}> : () -> ()
    %cst_60 = arith.constant dense<0.000000e+00> : vector<2x8x32xf32>
    %203 = tpu.matmul %202, %188, %cst_60 {dimension_numbers = #tpu.dot_dimension_numbers<[2], [1], [1], [2], [0, 0, 0, 1, 1, 2], [0], [0]>} : vector<2x8x8xbf16>, vector<2x8x32xbf16>, vector<2x8x32xf32> -> vector<2x8x32xf32>
    "tpu.trace_stop"() : () -> ()
    %204 = vector.shape_cast %203 : vector<2x8x32xf32> to vector<16x32xf32>
    %205 = vector.extract_strided_slice %146 {offsets = [0, 64], sizes = [16, 32], strides = [1, 1]} : vector<16x128xf32> to vector<16x32xf32>
    %206 = vector.shape_cast %205 : vector<16x32xf32> to vector<2x8x32xf32>
    %207 = arith.truncf %206 : vector<2x8x32xf32> to vector<2x8x32xbf16>
    %208 = vector.extract_strided_slice %153 {offsets = [0, 64], sizes = [16, 32], strides = [1, 1]} : vector<16x128xf32> to vector<16x32xf32>
    %209 = vector.shape_cast %208 : vector<16x32xf32> to vector<2x8x32xf32>
    %210 = arith.truncf %209 : vector<2x8x32xf32> to vector<2x8x32xbf16>
    %211 = vector.extract_strided_slice %154 {offsets = [0, 64], sizes = [16, 32], strides = [1, 1]} : vector<16x128xf32> to vector<16x32xf32>
    %212 = vector.shape_cast %211 : vector<16x32xf32> to vector<2x8x32xf32>
    %213 = arith.truncf %212 : vector<2x8x32xf32> to vector<2x8x32xbf16>
    "tpu.trace_start"() <{level = 10 : i32, message = "bqd,bkd->bqk"}> : () -> ()
    %cst_61 = arith.constant dense<0.000000e+00> : vector<2x8x8xf32>
    %214 = tpu.matmul %207, %210, %cst_61 {dimension_numbers = #tpu.dot_dimension_numbers<[2], [2], [1], [1], [0, 0, 0, 1, 1, 1], [0], [0]>} : vector<2x8x32xbf16>, vector<2x8x32xbf16>, vector<2x8x8xf32> -> vector<2x8x8xf32>
    "tpu.trace_stop"() : () -> ()
    %cst_62 = arith.constant 0.176776692 : f32
    %215 = vector.broadcast %cst_62 : f32 to vector<2x8x8xf32>
    %216 = arith.mulf %214, %215 : vector<2x8x8xf32>
    %cst_63 = arith.constant dense<0xFF800000> : vector<2x8xf32>
    %217 = vector.multi_reduction <maximumf>, %216, %cst_63 [2] : vector<2x8x8xf32> to vector<2x8xf32>
    %218 = vector.shape_cast %217 : vector<2x8xf32> to vector<2x8x1xf32>
    %219 = vector.broadcast %218 : vector<2x8x1xf32> to vector<2x8x8xf32>
    %220 = arith.subf %216, %219 : vector<2x8x8xf32>
    %221 = math.exp %220 : vector<2x8x8xf32>
    %cst_64 = arith.constant dense<0.000000e+00> : vector<2x8xf32>
    %222 = vector.multi_reduction <add>, %221, %cst_64 [2] : vector<2x8x8xf32> to vector<2x8xf32>
    %223 = vector.shape_cast %222 : vector<2x8xf32> to vector<2x8x1xf32>
    %224 = tpu.reciprocal %223 {approx = true} : vector<2x8x1xf32> -> vector<2x8x1xf32>
    %225 = vector.broadcast %224 : vector<2x8x1xf32> to vector<2x8x8xf32>
    %226 = arith.mulf %221, %225 : vector<2x8x8xf32>
    %227 = arith.truncf %226 : vector<2x8x8xf32> to vector<2x8x8xbf16>
    "tpu.trace_start"() <{level = 10 : i32, message = "bqk,bkd->bqd"}> : () -> ()
    %cst_65 = arith.constant dense<0.000000e+00> : vector<2x8x32xf32>
    %228 = tpu.matmul %227, %213, %cst_65 {dimension_numbers = #tpu.dot_dimension_numbers<[2], [1], [1], [2], [0, 0, 0, 1, 1, 2], [0], [0]>} : vector<2x8x8xbf16>, vector<2x8x32xbf16>, vector<2x8x32xf32> -> vector<2x8x32xf32>
    "tpu.trace_stop"() : () -> ()
    %229 = vector.shape_cast %228 : vector<2x8x32xf32> to vector<16x32xf32>
    %230 = vector.extract_strided_slice %146 {offsets = [0, 96], sizes = [16, 32], strides = [1, 1]} : vector<16x128xf32> to vector<16x32xf32>
    %231 = vector.shape_cast %230 : vector<16x32xf32> to vector<2x8x32xf32>
    %232 = arith.truncf %231 : vector<2x8x32xf32> to vector<2x8x32xbf16>
    %233 = vector.extract_strided_slice %153 {offsets = [0, 96], sizes = [16, 32], strides = [1, 1]} : vector<16x128xf32> to vector<16x32xf32>
    %234 = vector.shape_cast %233 : vector<16x32xf32> to vector<2x8x32xf32>
    %235 = arith.truncf %234 : vector<2x8x32xf32> to vector<2x8x32xbf16>
    %236 = vector.extract_strided_slice %154 {offsets = [0, 96], sizes = [16, 32], strides = [1, 1]} : vector<16x128xf32> to vector<16x32xf32>
    %237 = vector.shape_cast %236 : vector<16x32xf32> to vector<2x8x32xf32>
    %238 = arith.truncf %237 : vector<2x8x32xf32> to vector<2x8x32xbf16>
    "tpu.trace_start"() <{level = 10 : i32, message = "bqd,bkd->bqk"}> : () -> ()
    %cst_66 = arith.constant dense<0.000000e+00> : vector<2x8x8xf32>
    %239 = tpu.matmul %232, %235, %cst_66 {dimension_numbers = #tpu.dot_dimension_numbers<[2], [2], [1], [1], [0, 0, 0, 1, 1, 1], [0], [0]>} : vector<2x8x32xbf16>, vector<2x8x32xbf16>, vector<2x8x8xf32> -> vector<2x8x8xf32>
    "tpu.trace_stop"() : () -> ()
    %cst_67 = arith.constant 0.176776692 : f32
    %240 = vector.broadcast %cst_67 : f32 to vector<2x8x8xf32>
    %241 = arith.mulf %239, %240 : vector<2x8x8xf32>
    %cst_68 = arith.constant dense<0xFF800000> : vector<2x8xf32>
    %242 = vector.multi_reduction <maximumf>, %241, %cst_68 [2] : vector<2x8x8xf32> to vector<2x8xf32>
    %243 = vector.shape_cast %242 : vector<2x8xf32> to vector<2x8x1xf32>
    %244 = vector.broadcast %243 : vector<2x8x1xf32> to vector<2x8x8xf32>
    %245 = arith.subf %241, %244 : vector<2x8x8xf32>
    %246 = math.exp %245 : vector<2x8x8xf32>
    %cst_69 = arith.constant dense<0.000000e+00> : vector<2x8xf32>
    %247 = vector.multi_reduction <add>, %246, %cst_69 [2] : vector<2x8x8xf32> to vector<2x8xf32>
    %248 = vector.shape_cast %247 : vector<2x8xf32> to vector<2x8x1xf32>
    %249 = tpu.reciprocal %248 {approx = true} : vector<2x8x1xf32> -> vector<2x8x1xf32>
    %250 = vector.broadcast %249 : vector<2x8x1xf32> to vector<2x8x8xf32>
    %251 = arith.mulf %246, %250 : vector<2x8x8xf32>
    %252 = arith.truncf %251 : vector<2x8x8xf32> to vector<2x8x8xbf16>
    "tpu.trace_start"() <{level = 10 : i32, message = "bqk,bkd->bqd"}> : () -> ()
    %cst_70 = arith.constant dense<0.000000e+00> : vector<2x8x32xf32>
    %253 = tpu.matmul %252, %238, %cst_70 {dimension_numbers = #tpu.dot_dimension_numbers<[2], [1], [1], [2], [0, 0, 0, 1, 1, 2], [0], [0]>} : vector<2x8x8xbf16>, vector<2x8x32xbf16>, vector<2x8x32xf32> -> vector<2x8x32xf32>
    "tpu.trace_stop"() : () -> ()
    %254 = vector.shape_cast %253 : vector<2x8x32xf32> to vector<16x32xf32>
    %255 = tpu.concatenate %179, %204, %229, %254 in 1 : vector<16x32xf32>, vector<16x32xf32>, vector<16x32xf32>, vector<16x32xf32> -> vector<16x128xf32>
    %256 = arith.truncf %255 : vector<16x128xf32> to vector<16x128xbf16>
    %c0_71 = arith.constant 0 : index
    %c0_72 = arith.constant 0 : index
    %257 = vector.load %arg12[%c0_71, %c0_72] : memref<128x128xbf16, #tpu.memory_space<vmem>>, vector<128x128xbf16>
    %cst_73 = arith.constant dense<0.000000e+00> : vector<16x128xf32>
    %258 = tpu.matmul %256, %257, %cst_73 {dimension_numbers = #tpu.dot_dimension_numbers<[1], [0], [0], [1], [0, 0, 1, 1], [], []>} : vector<16x128xbf16>, vector<128x128xbf16>, vector<16x128xf32> -> vector<16x128xf32>
    %c0_74 = arith.constant 0 : index
    %c0_75 = arith.constant 0 : index
    %259 = vector.load %arg13[%c0_74, %c0_75] : memref<1x128xf32, #tpu.memory_space<vmem>>, vector<1x128xf32>
    %260 = vector.broadcast %259 : vector<1x128xf32> to vector<16x128xf32>
    %261 = arith.addf %258, %260 : vector<16x128xf32>
    %262 = arith.addf %140, %261 : vector<16x128xf32>
    %c0_76 = arith.constant 0 : index
    %c0_77 = arith.constant 0 : index
    %263 = vector.load %arg14[%c0_76, %c0_77] : memref<1x128xf32, #tpu.memory_space<vmem>>, vector<1x128xf32>
    %c0_78 = arith.constant 0 : index
    %c0_79 = arith.constant 0 : index
    %264 = vector.load %arg15[%c0_78, %c0_79] : memref<1x128xf32, #tpu.memory_space<vmem>>, vector<1x128xf32>
    %cst_80 = arith.constant dense<0.000000e+00> : vector<16xf32>
    %265 = vector.multi_reduction <add>, %262, %cst_80 [1] : vector<16x128xf32> to vector<16xf32>
    %266 = vector.shape_cast %265 : vector<16xf32> to vector<16x1xf32>
    %cst_81 = arith.constant 1.280000e+02 : f32
    %267 = vector.broadcast %cst_81 : f32 to vector<16x1xf32>
    %268 = arith.divf %266, %267 : vector<16x1xf32>
    %269 = vector.broadcast %268 : vector<16x1xf32> to vector<16x128xf32>
    %270 = arith.subf %262, %269 : vector<16x128xf32>
    %271 = arith.mulf %270, %270 : vector<16x128xf32>
    %cst_82 = arith.constant dense<0.000000e+00> : vector<16xf32>
    %272 = vector.multi_reduction <add>, %271, %cst_82 [1] : vector<16x128xf32> to vector<16xf32>
    %273 = vector.shape_cast %272 : vector<16xf32> to vector<16x1xf32>
    %cst_83 = arith.constant 1.280000e+02 : f32
    %274 = vector.broadcast %cst_83 : f32 to vector<16x1xf32>
    %275 = arith.divf %273, %274 : vector<16x1xf32>
    %cst_84 = arith.constant 9.99999974E-6 : f32
    %276 = vector.broadcast %cst_84 : f32 to vector<16x1xf32>
    %277 = arith.addf %275, %276 : vector<16x1xf32>
    %278 = math.rsqrt %277 : vector<16x1xf32>
    %279 = vector.broadcast %278 : vector<16x1xf32> to vector<16x128xf32>
    %280 = arith.mulf %270, %279 : vector<16x128xf32>
    %281 = vector.broadcast %263 : vector<1x128xf32> to vector<16x128xf32>
    %282 = arith.mulf %280, %281 : vector<16x128xf32>
    %283 = vector.broadcast %264 : vector<1x128xf32> to vector<16x128xf32>
    %284 = arith.addf %282, %283 : vector<16x128xf32>
    %285 = arith.truncf %284 : vector<16x128xf32> to vector<16x128xbf16>
    %c0_85 = arith.constant 0 : index
    %c0_86 = arith.constant 0 : index
    %286 = vector.load %arg16[%c0_85, %c0_86] : memref<128x256xbf16, #tpu.memory_space<vmem>>, vector<128x256xbf16>
    %cst_87 = arith.constant dense<0.000000e+00> : vector<16x256xf32>
    %287 = tpu.matmul %285, %286, %cst_87 {dimension_numbers = #tpu.dot_dimension_numbers<[1], [0], [0], [1], [0, 0, 1, 1], [], []>} : vector<16x128xbf16>, vector<128x256xbf16>, vector<16x256xf32> -> vector<16x256xf32>
    %c0_88 = arith.constant 0 : index
    %c0_89 = arith.constant 0 : index
    %288 = vector.load %arg17[%c0_88, %c0_89] : memref<1x256xf32, #tpu.memory_space<vmem>>, vector<1x256xf32>
    %289 = vector.broadcast %288 : vector<1x256xf32> to vector<16x256xf32>
    %290 = arith.addf %287, %289 : vector<16x256xf32>
    %cst_90 = arith.constant 0.000000e+00 : f32
    %291 = vector.broadcast %cst_90 : f32 to vector<16x256xf32>
    %292 = arith.maximumf %290, %291 : vector<16x256xf32>
    %293 = arith.truncf %292 : vector<16x256xf32> to vector<16x256xbf16>
    %c0_91 = arith.constant 0 : index
    %c0_92 = arith.constant 0 : index
    %294 = vector.load %arg18[%c0_91, %c0_92] : memref<256x128xbf16, #tpu.memory_space<vmem>>, vector<256x128xbf16>
    %cst_93 = arith.constant dense<0.000000e+00> : vector<16x128xf32>
    %295 = tpu.matmul %293, %294, %cst_93 {dimension_numbers = #tpu.dot_dimension_numbers<[1], [0], [0], [1], [0, 0, 1, 1], [], []>} : vector<16x256xbf16>, vector<256x128xbf16>, vector<16x128xf32> -> vector<16x128xf32>
    %c0_94 = arith.constant 0 : index
    %c0_95 = arith.constant 0 : index
    %296 = vector.load %arg19[%c0_94, %c0_95] : memref<1x128xf32, #tpu.memory_space<vmem>>, vector<1x128xf32>
    %297 = vector.broadcast %296 : vector<1x128xf32> to vector<16x128xf32>
    %298 = arith.addf %295, %297 : vector<16x128xf32>
    %299 = arith.addf %284, %298 : vector<16x128xf32>
    %c0_96 = arith.constant 0 : index
    %c0_97 = arith.constant 0 : index
    %300 = vector.load %arg20[%c0_96, %c0_97] : memref<1x128xf32, #tpu.memory_space<vmem>>, vector<1x128xf32>
    %c0_98 = arith.constant 0 : index
    %c0_99 = arith.constant 0 : index
    %301 = vector.load %arg21[%c0_98, %c0_99] : memref<1x128xf32, #tpu.memory_space<vmem>>, vector<1x128xf32>
    %cst_100 = arith.constant dense<0.000000e+00> : vector<16xf32>
    %302 = vector.multi_reduction <add>, %299, %cst_100 [1] : vector<16x128xf32> to vector<16xf32>
    %303 = vector.shape_cast %302 : vector<16xf32> to vector<16x1xf32>
    %cst_101 = arith.constant 1.280000e+02 : f32
    %304 = vector.broadcast %cst_101 : f32 to vector<16x1xf32>
    %305 = arith.divf %303, %304 : vector<16x1xf32>
    %306 = vector.broadcast %305 : vector<16x1xf32> to vector<16x128xf32>
    %307 = arith.subf %299, %306 : vector<16x128xf32>
    %308 = arith.mulf %307, %307 : vector<16x128xf32>
    %cst_102 = arith.constant dense<0.000000e+00> : vector<16xf32>
    %309 = vector.multi_reduction <add>, %308, %cst_102 [1] : vector<16x128xf32> to vector<16xf32>
    %310 = vector.shape_cast %309 : vector<16xf32> to vector<16x1xf32>
    %cst_103 = arith.constant 1.280000e+02 : f32
    %311 = vector.broadcast %cst_103 : f32 to vector<16x1xf32>
    %312 = arith.divf %310, %311 : vector<16x1xf32>
    %cst_104 = arith.constant 9.99999974E-6 : f32
    %313 = vector.broadcast %cst_104 : f32 to vector<16x1xf32>
    %314 = arith.addf %312, %313 : vector<16x1xf32>
    %315 = math.rsqrt %314 : vector<16x1xf32>
    %316 = vector.broadcast %315 : vector<16x1xf32> to vector<16x128xf32>
    %317 = arith.mulf %307, %316 : vector<16x128xf32>
    %318 = vector.broadcast %300 : vector<1x128xf32> to vector<16x128xf32>
    %319 = arith.mulf %317, %318 : vector<16x128xf32>
    %320 = vector.broadcast %301 : vector<1x128xf32> to vector<16x128xf32>
    %321 = arith.addf %319, %320 : vector<16x128xf32>
    %c0_105 = arith.constant 0 : index
    %c0_106 = arith.constant 0 : index
    %322 = vector.load %arg22[%c0_105, %c0_106] : memref<16x128xf32, #tpu.memory_space<vmem>>, vector<16x128xf32>
    tpu.vector_store %arg22[%c0_105, %c0_106], %321 {strides = array<i32>} : memref<16x128xf32, #tpu.memory_space<vmem>>, vector<16x128xf32>,
    return
  }
}

module attributes {stable_mosaic.version = 11 : i64} {
  func.func @_final_head_kernel(%arg0: i32, %arg1: memref<16x128xf32, #tpu.memory_space<vmem>>, %arg2: memref<1x128xf32, #tpu.memory_space<vmem>>, %arg3: memref<1x128xf32, #tpu.memory_space<vmem>>, %arg4: memref<128x128xbf16, #tpu.memory_space<vmem>>, %arg5: memref<1x128xf32, #tpu.memory_space<vmem>>, %arg6: memref<16x128xf32, #tpu.memory_space<vmem>>) attributes {dimension_semantics = [#tpu.dimension_semantics<parallel>], iteration_bounds = array<i64: 1>, scalar_prefetch = 0 : i64, scratch_operands = 0 : i64, tpu.core_type = #tpu.core_type<tc>, window_params = [{pipeline_mode = #tpu.pipeline_mode<synchronous>, transform_indices = @transform_0, window_bounds = array<i64: 16, 128>}, {pipeline_mode = #tpu.pipeline_mode<synchronous>, transform_indices = @transform_1, window_bounds = array<i64: 1, 128>}, {pipeline_mode = #tpu.pipeline_mode<synchronous>, transform_indices = @transform_2, window_bounds = array<i64: 1, 128>}, {transform_indices = @transform_3, window_bounds = array<i64: 128, 128>}, {transform_indices = @transform_4, window_bounds = array<i64: 1, 128>}, {transform_indices = @transform_5, window_bounds = array<i64: 16, 128>}]} {
    %c0 = arith.constant 0 : index
    %c0_0 = arith.constant 0 : index
    %0 = vector.load %arg1[%c0, %c0_0] : memref<16x128xf32, #tpu.memory_space<vmem>>, vector<16x128xf32>
    %c0_1 = arith.constant 0 : index
    %c0_2 = arith.constant 0 : index
    %1 = vector.load %arg2[%c0_1, %c0_2] : memref<1x128xf32, #tpu.memory_space<vmem>>, vector<1x128xf32>
    %c0_3 = arith.constant 0 : index
    %c0_4 = arith.constant 0 : index
    %2 = vector.load %arg3[%c0_3, %c0_4] : memref<1x128xf32, #tpu.memory_space<vmem>>, vector<1x128xf32>
    %cst = arith.constant dense<0.000000e+00> : vector<16xf32>
    %3 = vector.multi_reduction <add>, %0, %cst [1] : vector<16x128xf32> to vector<16xf32>
    %4 = vector.shape_cast %3 : vector<16xf32> to vector<16x1xf32>
    %cst_5 = arith.constant 1.280000e+02 : f32
    %5 = vector.broadcast %cst_5 : f32 to vector<16x1xf32>
    %6 = arith.divf %4, %5 : vector<16x1xf32>
    %7 = vector.broadcast %6 : vector<16x1xf32> to vector<16x128xf32>
    %8 = arith.subf %0, %7 : vector<16x128xf32>
    %9 = arith.mulf %8, %8 : vector<16x128xf32>
    %cst_6 = arith.constant dense<0.000000e+00> : vector<16xf32>
    %10 = vector.multi_reduction <add>, %9, %cst_6 [1] : vector<16x128xf32> to vector<16xf32>
    %11 = vector.shape_cast %10 : vector<16xf32> to vector<16x1xf32>
    %cst_7 = arith.constant 1.280000e+02 : f32
    %12 = vector.broadcast %cst_7 : f32 to vector<16x1xf32>
    %13 = arith.divf %11, %12 : vector<16x1xf32>
    %cst_8 = arith.constant 9.99999974E-6 : f32
    %14 = vector.broadcast %cst_8 : f32 to vector<16x1xf32>
    %15 = arith.addf %13, %14 : vector<16x1xf32>
    %16 = math.rsqrt %15 : vector<16x1xf32>
    %17 = vector.broadcast %16 : vector<16x1xf32> to vector<16x128xf32>
    %18 = arith.mulf %8, %17 : vector<16x128xf32>
    %19 = vector.broadcast %1 : vector<1x128xf32> to vector<16x128xf32>
    %20 = arith.mulf %18, %19 : vector<16x128xf32>
    %21 = vector.broadcast %2 : vector<1x128xf32> to vector<16x128xf32>
    %22 = arith.addf %20, %21 : vector<16x128xf32>
    %23 = arith.truncf %22 : vector<16x128xf32> to vector<16x128xbf16>
    %c0_9 = arith.constant 0 : index
    %c0_10 = arith.constant 0 : index
    %24 = vector.load %arg4[%c0_9, %c0_10] : memref<128x128xbf16, #tpu.memory_space<vmem>>, vector<128x128xbf16>
    %cst_11 = arith.constant dense<0.000000e+00> : vector<16x128xf32>
    %25 = tpu.matmul %23, %24, %cst_11 {dimension_numbers = #tpu.dot_dimension_numbers<[1], [0], [0], [1], [0, 0, 1, 1], [], []>} : vector<16x128xbf16>, vector<128x128xbf16>, vector<16x128xf32> -> vector<16x128xf32>
    %c0_12 = arith.constant 0 : index
    %c0_13 = arith.constant 0 : index
    %26 = vector.load %arg5[%c0_12, %c0_13] : memref<1x128xf32, #tpu.memory_space<vmem>>, vector<1x128xf32>
    %27 = vector.broadcast %26 : vector<1x128xf32> to vector<16x128xf32>
    %28 = arith.addf %25, %27 : vector<16x128xf32>
    %c0_14 = arith.constant 0 : index
    %c0_15 = arith.constant 0 : index
    %29 = vector.load %arg6[%c0_14, %c0_15] : memref<16x128xf32, #tpu.memory_space<vmem>>, vector<16x128xf32>
    tpu.vector_store %arg6[%c0_14, %c0_15], %28 {strides = array<i32>} : memref<16x128xf32, #tpu.memory_space<vmem>>, vector<16x128xf32>,
    return
  }
  func.func @transform_0(%arg0: i32) -> (i32, i32) {
    %c0_i32 = arith.constant 0 : i32
    %c0_i32_0 = arith.constant 0 : i32
    %c0_i32_1 = arith.constant 0 : i32
    return %c0_i32, %c0_i32_0 : i32, i32
  }
  func.func @transform_1(%arg0: i32) -> (i32, i32) {
    %c0_i32 = arith.constant 0 : i32
    %c0_i32_0 = arith.constant 0 : i32
    %c0_i32_1 = arith.constant 0 : i32
    return %c0_i32, %c0_i32_0 : i32, i32
  }
  func.func @transform_2(%arg0: i32) -> (i32, i32) {
    %c0_i32 = arith.constant 0 : i32
    %c0_i32_0 = arith.constant 0 : i32
    %c0_i32_1 = arith.constant 0 : i32
    return %c0_i32, %c0_i32_0 : i32, i32
  }
  func.func @transform_3(%arg0: i32) -> (i32, i32) {
    %c0_i32 = arith.constant 0 : i32
    %c0_i32_0 = arith.constant 0 : i32
    return %c0_i32, %arg0 : i32, i32
  }
  func.func @transform_4(%arg0: i32) -> (i32, i32) {
    %c0_i32 = arith.constant 0 : i32
    %c0_i32_0 = arith.constant 0 : i32
    return %c0_i32, %arg0 : i32, i32
  }
  func.func @transform_5(%arg0: i32) -> (i32, i32) {
    %c0_i32 = arith.constant 0 : i32
    %c0_i32_0 = arith.constant 0 : i32
    return %c0_i32, %arg0 : i32, i32
  }
}

</mosaic_0001>

<llo_original>
// kernel: model_forward.8
$region0: #{model_forward.8}
  #allocation0 [shape = 'u32[]', space=smem, size = 0x4, offset = 0x4, fixed_abs, tag = 'smem constant byte address 0x4 - core index']
  #allocation1 [shape = 'u32[72,128]{1,0:T(1,128)}', space=vmem, size = 0x9000, scoped, tag = 'internal scratch']
  %s0 = inlined_call_operand.vmem [shape: f32[16,128], index: 0, kind: input, shape index: {}]
  %s1 = inlined_call_operand.vmem [shape: f32[1,128], index: 1, kind: input, shape index: {}]
  %s2 = inlined_call_operand.vmem [shape: f32[1,128], index: 2, kind: input, shape index: {}]
  %s3 = inlined_call_operand.vmem [shape: f32[16,128], index: 3, kind: output, shape index: {}]
  %s4 = sld [smem:[#allocation0]]
  $region22: #{model_forward.8} parent=0
    _
  %s6 = ssub.s32 1, %s4
  %s7 = scalar_select 0, %s6, %s4
  // Predicated region
  $region2: #{model_forward.8} parent=0 // pred_check
    _
  $region3: #{model_forward.8} parent=0 // pred_check_branch
    %9 = sbr.rel (0) target = $region5
  $region4: #{model_forward.8} parent=0 // pred_region
    _
  $region5: #{model_forward.8} parent=0 // pred_fallthru
    _
  // Predicated region
  $region6: #{model_forward.8} parent=0 // pred_check
    _
  $region7: #{model_forward.8} parent=0 // pred_check_branch
    %11 = sbr.rel (0) target = $region9
  $region8: #{model_forward.8} parent=0 // pred_region
    _
  $region9: #{model_forward.8} parent=0 // pred_fallthru
    _
  // Predicated region
  $region10: #{model_forward.8} parent=0 // pred_check
    _
  $region11: #{model_forward.8} parent=0 // pred_check_branch
    %13 = sbr.rel (0) target = $region13
  $region12: #{model_forward.8} parent=0 // pred_region
    _
  $region13: #{model_forward.8} parent=0 // pred_fallthru
    _
  %v14 = vld [vmem:[%s0] sm:$0xff]
  %v15 = vld [vmem:[%s0 + $0x8] sm:$0xff]
  %v16 = vld [vmem:[%s1] sm:$0x1]
  %v17 = vld [vmem:[%s2] sm:$0x1]
  %18 = vadd.xlane.f32.xlu0 %v14
  %v19 = vpop.xlane.xlu0 %18
  %20 = vadd.xlane.f32.xlu0 %v15
  %v21 = vpop.xlane.xlu0 %20
  %v22 = vrcp.pop 128.0
  %v23 = vmul.f32 128.0, %v22
  %v24 = vsub.f32 1.0, %v23
  %v25 = vmul.f32 %v22, %v24
  %v26 = vadd.f32 %v22, %v25
  %vm27 = vweird.f32 %v22
  %v28 = vsel %vm27, %v22, %v26
  %v29 = vmul.f32 %v19, %v28
  %v30 = vmul.f32 %v21, %v28
  %v31 = vsub.f32 %v14, %v29
  %v32 = vsub.f32 %v15, %v30
  %v33 = vmul.f32 %v31, %v31
  %v34 = vmul.f32 %v32, %v32
  %35 = vadd.xlane.f32.xlu0 %v33
  %v36 = vpop.xlane.xlu0 %35
  %37 = vadd.xlane.f32.xlu0 %v34
  %v38 = vpop.xlane.xlu0 %37
  %v39 = vmul.f32 %v36, %v28
  %v40 = vmul.f32 %v38, %v28
  %v41 = vadd.f32 %v39, 1e-05
  %v42 = vadd.f32 %v40, 1e-05
  %v43 = vrsqrt.pop %v41
  %v44 = vmul.f32 %v43, %v41
  %v45 = vmul.f32 %v44, %v43
  %v46 = vmul.f32 0.5, %v45
  %v47 = vsub.f32 1.5, %v46
  %v48 = vmul.f32 %v43, %v47
  %vm49 = vweird.f32 %v41
  %vm50 = vweird.f32 %v43
  %vm51 = vmor %vm49, %vm50
  %v52 = vsel %vm51, %v43, %v48
  %v53 = vrsqrt.pop %v42
  %v54 = vmul.f32 %v53, %v42
  %v55 = vmul.f32 %v54, %v53
  %v56 = vmul.f32 0.5, %v55
  %v57 = vsub.f32 1.5, %v56
  %v58 = vmul.f32 %v53, %v57
  %vm59 = vweird.f32 %v42
  %vm60 = vweird.f32 %v53
  %vm61 = vmor %vm59, %vm60
  %v62 = vsel %vm61, %v53, %v58
  %v63 = vmul.f32 %v31, %v52
  %v64 = vmul.f32 %v32, %v62
  %v66 = vperm.slane %v16, 0
  %v68 = vmul.f32 %v63, %v66
  %v69 = vmul.f32 %v64, %v66
  %v71 = vperm.slane %v17, 0
  %v73 = vadd.f32 %v68, %v71
  %v74 = vadd.f32 %v69, %v71
  %75 = vst [vmem:[%s3] sm:$0xff] %v73
  %76 = vst [vmem:[%s3 + $0x8] sm:$0xff] %v74
  // Predicated region
  $region14: #{model_forward.8} parent=0 // pred_check
    _
  $region15: #{model_forward.8} parent=0 // pred_check_branch
    %78 = sbr.rel (0) target = $region17
  $region16: #{model_forward.8} parent=0 // pred_region
    _
  $region17: #{model_forward.8} parent=0 // pred_fallthru
    _
  // Predicated region
  $region18: #{model_forward.8} parent=0 // pred_check
    _
  $region19: #{model_forward.8} parent=0 // pred_check_branch
    %80 = sbr.rel (0) target = $region21
  $region20: #{model_forward.8} parent=0 // pred_region
    _
  $region21: #{model_forward.8} parent=0 // pred_fallthru
    _

// kernel: model_forward.11
$region0: #{model_forward.11}
  #allocation0 [shape = 'u32[]', space=smem, size = 0x4, offset = 0x4, fixed_abs, tag = 'smem constant byte address 0x4 - core index']
  #allocation1 [shape = 'u32[72,128]{1,0:T(1,128)}', space=vmem, size = 0x9000, scoped, tag = 'internal scratch']
  %s0 = inlined_call_operand.vmem [shape: f32[16,128], index: 0, kind: input, shape index: {}]
  %s1 = inlined_call_operand.vmem [shape: f32[1,128], index: 1, kind: input, shape index: {}]
  %s2 = inlined_call_operand.vmem [shape: f32[1,128], index: 2, kind: input, shape index: {}]
  %s3 = inlined_call_operand.hbm [shape: bf16[128,128], index: 3, kind: input, shape index: {}]
  %s4 = inlined_call_operand.vmem [shape: f32[1,128], index: 4, kind: input, shape index: {}]
  %s5 = inlined_call_operand.vmem [shape: f32[16,128], index: 5, kind: output, shape index: {}]
  %s6 = sld [smem:[#allocation0]]
  $region34: #{model_forward.11} parent=0
    _
  %s8 = ssub.s32 1, %s6
  %s9 = scalar_select 0, %s8, %s6
  $region1: #{model_forward.11} parent=0
    #allocation2 [shape = 'u8[32768]{0}', space=vmem, size = 0x8000, scoped, tag = 'input window, operand 3, single buffered']
    #allocation3 [shape = 's32[1]{0}', space=sflag, size = 0x4, scoped, tag = 'scoped memory for model_forward.11']
    %10 = vsyncpa [#allocation3], 0
    // Predicated region
    $region2: #{model_forward.11} parent=1 // pred_check
      _
    $region3: #{model_forward.11} parent=1 // pred_check_branch
      %12 = sbr.rel (0) target = $region5
    $region4: #{model_forward.11} parent=1 // pred_region
      _
    $region5: #{model_forward.11} parent=1 // pred_fallthru
      _
    // Predicated region
    $region6: #{model_forward.11} parent=1 // pred_check
      _
    $region7: #{model_forward.11} parent=1 // pred_check_branch
      %14 = sbr.rel (0) target = $region9
    $region8: #{model_forward.11} parent=1 // pred_region
      _
    $region9: #{model_forward.11} parent=1 // pred_fallthru
      _
    // Predicated region
    $region10: #{model_forward.11} parent=1 // pred_check
      _
    $region11: #{model_forward.11} parent=1 // pred_check_branch
      %16 = sbr.rel (0) target = $region13
    $region12: #{model_forward.11} parent=1 // pred_region
      _
    $region13: #{model_forward.11} parent=1 // pred_fallthru
      _
    // Predicated region
    $region14: #{model_forward.11} parent=1 // pred_check
      _
    $region15: #{model_forward.11} parent=1 // pred_check_branch
      %18 = sbr.rel (0) target = $region17
    $region16: #{model_forward.11} parent=1 // pred_region
      %20 = vsyncadd [#allocation3], 0
      %s21 = sshll.u32 %s3, 4
      %s22 = int_to_ptr.hbm [resolvable:$true] %s21
      %s23 = sshll.u32 [#allocation2], 4
      %s24 = int_to_ptr.vmem [resolvable:$true] %s23
      %29 = dma.hbm_to_vmem [thread:$0]  %s22, 1024, %s24, [#allocation3], 64, 64, 4
    $region17: #{model_forward.11} parent=1 // pred_fallthru
      _
    // Predicated region
    $region18: #{model_forward.11} parent=1 // pred_check
      _
    $region19: #{model_forward.11} parent=1 // pred_check_branch
      %31 = sbr.rel (0) target = $region21
    $region20: #{model_forward.11} parent=1 // pred_region
      _
    $region21: #{model_forward.11} parent=1 // pred_fallthru
      _
    // Predicated region
    $region22: #{model_forward.11} parent=1 // pred_check
      _
    $region23: #{model_forward.11} parent=1 // pred_check_branch
      %33 = sbr.rel (0) target = $region25
    $region24: #{model_forward.11} parent=1 // pred_region
      %35 = dma.done [#allocation3], 1024
    $region25: #{model_forward.11} parent=1 // pred_fallthru
      _
    %v36 = vld [vmem:[%s0] sm:$0xff]
    %v37 = vld [vmem:[%s0 + $0x8] sm:$0xff]
    %v38 = vld [vmem:[%s1] sm:$0x1]
    %v39 = vld [vmem:[%s2] sm:$0x1]
    %40 = vadd.xlane.f32.xlu0 %v36
    %v41 = vpop.xlane.xlu0 %40
    %42 = vadd.xlane.f32.xlu0 %v37
    %v43 = vpop.xlane.xlu0 %42
    %v44 = vrcp.pop 128.0
    %v45 = vmul.f32 128.0, %v44
    %v46 = vsub.f32 1.0, %v45
    %v47 = vmul.f32 %v44, %v46
    %v48 = vadd.f32 %v44, %v47
    %vm49 = vweird.f32 %v44
    %v50 = vsel %vm49, %v44, %v48
    %v51 = vmul.f32 %v41, %v50
    %v52 = vmul.f32 %v43, %v50
    %v53 = vsub.f32 %v36, %v51
    %v54 = vsub.f32 %v37, %v52
    %v55 = vmul.f32 %v53, %v53
    %v56 = vmul.f32 %v54, %v54
    %57 = vadd.xlane.f32.xlu0 %v55
    %v58 = vpop.xlane.xlu0 %57
    %59 = vadd.xlane.f32.xlu0 %v56
    %v60 = vpop.xlane.xlu0 %59
    %v61 = vmul.f32 %v58, %v50
    %v62 = vmul.f32 %v60, %v50
    %v63 = vadd.f32 %v61, 1e-05
    %v64 = vadd.f32 %v62, 1e-05
    %v65 = vrsqrt.pop %v63
    %v66 = vmul.f32 %v65, %v63
    %v67 = vmul.f32 %v66, %v65
    %v68 = vmul.f32 0.5, %v67
    %v69 = vsub.f32 1.5, %v68
    %v70 = vmul.f32 %v65, %v69
    %vm71 = vweird.f32 %v63
    %vm72 = vweird.f32 %v65
    %vm73 = vmor %vm71, %vm72
    %v74 = vsel %vm73, %v65, %v70
    %v75 = vrsqrt.pop %v64
    %v76 = vmul.f32 %v75, %v64
    %v77 = vmul.f32 %v76, %v75
    %v78 = vmul.f32 0.5, %v77
    %v79 = vsub.f32 1.5, %v78
    %v80 = vmul.f32 %v75, %v79
    %vm81 = vweird.f32 %v64
    %vm82 = vweird.f32 %v75
    %vm83 = vmor %vm81, %vm82
    %v84 = vsel %vm83, %v75, %v80
    %v85 = vmul.f32 %v53, %v74
    %v86 = vmul.f32 %v54, %v84
    %v88 = vperm.slane %v38, 0
    %v90 = vmul.f32 %v85, %v88
    %v91 = vmul.f32 %v86, %v88
    %v93 = vperm.slane %v39, 0
    %v95 = vadd.f32 %v90, %v93
    %v96 = vadd.f32 %v91, %v93
    %v97 = vpack.c.bf16 %v96, %v95
    %v98 = vld [vmem:[#allocation2] sm:$0xf]
    %v99 = vld [vmem:[#allocation2 + $0x4] sm:$0xf]
    %v100 = vld [vmem:[#allocation2 + $0x8] sm:$0xf]
    %v101 = vld [vmem:[#allocation2 + $0xc] sm:$0xf]
    %v102 = vld [vmem:[#allocation2 + $0x10] sm:$0xf]
    %v103 = vld [vmem:[#allocation2 + $0x14] sm:$0xf]
    %v104 = vld [vmem:[#allocation2 + $0x18] sm:$0xf]
    %v105 = vld [vmem:[#allocation2 + $0x1c] sm:$0xf]
    %v106 = vld [vmem:[#allocation2 + $0x20] sm:$0xf]
    %v107 = vld [vmem:[#allocation2 + $0x24] sm:$0xf]
    %v108 = vld [vmem:[#allocation2 + $0x28] sm:$0xf]
    %v109 = vld [vmem:[#allocation2 + $0x2c] sm:$0xf]
    %v110 = vld [vmem:[#allocation2 + $0x30] sm:$0xf]
    %v111 = vld [vmem:[#allocation2 + $0x34] sm:$0xf]
    %v112 = vld [vmem:[#allocation2 + $0x38] sm:$0xf]
    %v113 = vld [vmem:[#allocation2 + $0x3c] sm:$0xf]
    %v114 = vld [vmem:[%s4] sm:$0x1]
    %v116 = vperm.slane %v114, 0
    %v134 = vunpack.c.l.b16 %v98
    %v135 = vunpack.c.l.b16 %v99
    %v136 = vunpack.c.l.b16 %v100
    %v137 = vunpack.c.l.b16 %v101
    %v138 = vunpack.c.l.b16 %v102
    %v139 = vunpack.c.l.b16 %v103
    %v140 = vunpack.c.l.b16 %v104
    %v141 = vunpack.c.l.b16 %v105
    %v142 = vunpack.c.l.b16 %v106
    %v143 = vunpack.c.l.b16 %v107
    %v144 = vunpack.c.l.b16 %v108
    %v145 = vunpack.c.l.b16 %v109
    %v146 = vunpack.c.l.b16 %v110
    %v147 = vunpack.c.l.b16 %v111
    %v148 = vunpack.c.l.b16 %v112
    %v149 = vunpack.c.l.b16 %v113
    %v150 = vpack.c.b16 %v135, %v134
    %v151 = vpack.c.b16 %v137, %v136
    %v152 = vpack.c.b16 %v139, %v138
    %v153 = vpack.c.b16 %v141, %v140
    %v154 = vpack.c.b16 %v143, %v142
    %v155 = vpack.c.b16 %v145, %v144
    %v156 = vpack.c.b16 %v147, %v146
    %v157 = vpack.c.b16 %v149, %v148
    %166 = vmatpush.bf16.msra.mxu0 %v157
    %167 = vmatpush.bf16.msra.mxu0 %v156
    %168 = vmatpush.bf16.msra.mxu0 %v155
    %169 = vmatpush.bf16.msra.mxu0 %v154
    %170 = vmatpush.bf16.msra.mxu0 %v153
    %171 = vmatpush.bf16.msra.mxu0 %v152
    %172 = vmatpush.bf16.msra.mxu0 %v151
    %173 = vmatpush.bf16.msra.mxu0 %v150
    %174 = vmatmul.bf16.gmra.mxu0 %v97
    %v175 = vpop.f32.mrf.mxu0
    %v176 = vadd.f32 %v116, %v175
    %v177 = vpop.f32.mrf.mxu0
    %v178 = vadd.f32 %v116, %v177
    %179 = vdwg.mxu0
    %180 = vst [vmem:[%s5] sm:$0xff] %v176
    %181 = vst [vmem:[%s5 + $0x8] sm:$0xff] %v178
    // Predicated region
    $region26: #{model_forward.11} parent=1 // pred_check
      _
    $region27: #{model_forward.11} parent=1 // pred_check_branch
      %183 = sbr.rel (0) target = $region29
    $region28: #{model_forward.11} parent=1 // pred_region
      _
    $region29: #{model_forward.11} parent=1 // pred_fallthru
      _
    // Predicated region
    $region30: #{model_forward.11} parent=1 // pred_check
      _
    $region31: #{model_forward.11} parent=1 // pred_check_branch
      %185 = sbr.rel (0) target = $region33
    $region32: #{model_forward.11} parent=1 // pred_region
      _
    $region33: #{model_forward.11} parent=1 // pred_fallthru
      _
    %186 = vsyncpa [#allocation3], 1

// kernel: model_forward.6
$region0: #{model_forward.6}
  #allocation0 [shape = 'u32[]', space=smem, size = 0x4, offset = 0x4, fixed_abs, tag = 'smem constant byte address 0x4 - core index']
  #allocation1 [shape = 'u32[72,128]{1,0:T(1,128)}', space=vmem, size = 0x9000, scoped, tag = 'internal scratch']
  %s0 = inlined_call_operand.vmem [shape: f32[16,128], index: 0, kind: input, shape index: {}]
  %s1 = inlined_call_operand.hbm [shape: bf16[128,384], index: 1, kind: input, shape index: {}]
  %s2 = inlined_call_operand.vmem [shape: f32[1,384], index: 2, kind: input, shape index: {}]
  %s3 = inlined_call_operand.hbm [shape: bf16[128,128], index: 3, kind: input, shape index: {}]
  %s4 = inlined_call_operand.vmem [shape: f32[1,128], index: 4, kind: input, shape index: {}]
  %s5 = inlined_call_operand.vmem [shape: f32[1,128], index: 5, kind: input, shape index: {}]
  %s6 = inlined_call_operand.vmem [shape: f32[1,128], index: 6, kind: input, shape index: {}]
  %s7 = inlined_call_operand.hbm [shape: bf16[128,256], index: 7, kind: input, shape index: {}]
  %s8 = inlined_call_operand.vmem [shape: f32[1,256], index: 8, kind: input, shape index: {}]
  %s9 = inlined_call_operand.hbm [shape: bf16[256,128], index: 9, kind: input, shape index: {}]
  %s10 = inlined_call_operand.vmem [shape: f32[1,128], index: 10, kind: input, shape index: {}]
  %s11 = inlined_call_operand.vmem [shape: f32[1,128], index: 11, kind: input, shape index: {}]
  %s12 = inlined_call_operand.vmem [shape: f32[1,128], index: 12, kind: input, shape index: {}]
  %s13 = inlined_call_operand.vmem [shape: f32[16,128], index: 13, kind: output, shape index: {}]
  %s14 = sld [smem:[#allocation0]]
  $region78: #{model_forward.6} parent=0
    _
  %s16 = ssub.s32 1, %s14
  %s17 = scalar_select 0, %s16, %s14
  $region1: #{model_forward.6} parent=0
    #allocation2 [shape = 'u8[98304]{0}', space=vmem, size = 0x18000, scoped, tag = 'input window, operand 1, single buffered']
    #allocation3 [shape = 's32[1]{0}', space=sflag, size = 0x4, scoped, tag = 'scoped memory for model_forward.6']
    #allocation4 [shape = 'u8[32768]{0}', space=vmem, size = 0x8000, scoped, tag = 'input window, operand 3, single buffered']
    #allocation5 [shape = 's32[1]{0}', space=sflag, size = 0x4, scoped, tag = 'scoped memory for model_forward.6']
    #allocation6 [shape = 'u8[65536]{0}', space=vmem, size = 0x10000, scoped, tag = 'input window, operand 7, single buffered']
    #allocation7 [shape = 'u8[65536]{0}', space=vmem, size = 0x10000, scoped, tag = 'input window, operand 9, single buffered']
    #allocation8 [shape = 's32[1]{0}', space=sflag, size = 0x4, scoped, tag = 'scoped memory for model_forward.6']
    %18 = vsyncpa [#allocation3], 0
    %19 = vsyncpa [#allocation5], 0
    %20 = vsyncpa [#allocation8], 0
    // Predicated region
    $region2: #{model_forward.6} parent=1 // pred_check
      _
    $region3: #{model_forward.6} parent=1 // pred_check_branch
      %22 = sbr.rel (0) target = $region5
    $region4: #{model_forward.6} parent=1 // pred_region
      _
    $region5: #{model_forward.6} parent=1 // pred_fallthru
      _
    // Predicated region
    $region6: #{model_forward.6} parent=1 // pred_check
      _
    $region7: #{model_forward.6} parent=1 // pred_check_branch
      %24 = sbr.rel (0) target = $region9
    $region8: #{model_forward.6} parent=1 // pred_region
      %26 = vsyncadd [#allocation3], 0
      %s27 = sshll.u32 %s1, 4
      %s28 = int_to_ptr.hbm [resolvable:$true] %s27
      %s29 = sshll.u32 [#allocation2], 4
      %s30 = int_to_ptr.vmem [resolvable:$true] %s29
      %35 = dma.hbm_to_vmem [thread:$0]  %s28, 3072, %s30, [#allocation3], 192, 192, 12
    $region9: #{model_forward.6} parent=1 // pred_fallthru
      _
    // Predicated region
    $region10: #{model_forward.6} parent=1 // pred_check
      _
    $region11: #{model_forward.6} parent=1 // pred_check_branch
      %37 = sbr.rel (0) target = $region13
    $region12: #{model_forward.6} parent=1 // pred_region
      _
    $region13: #{model_forward.6} parent=1 // pred_fallthru
      _
    // Predicated region
    $region14: #{model_forward.6} parent=1 // pred_check
      _
    $region15: #{model_forward.6} parent=1 // pred_check_branch
      %39 = sbr.rel (0) target = $region17
    $region16: #{model_forward.6} parent=1 // pred_region
      %41 = vsyncadd [#allocation5], 0
      %s42 = sshll.u32 %s3, 4
      %s43 = int_to_ptr.hbm [resolvable:$true] %s42
      %s44 = sshll.u32 [#allocation4], 4
      %s45 = int_to_ptr.vmem [resolvable:$true] %s44
      %50 = dma.hbm_to_vmem [thread:$0]  %s43, 1024, %s45, [#allocation5], 64, 64, 4
    $region17: #{model_forward.6} parent=1 // pred_fallthru
      _
    // Predicated region
    $region18: #{model_forward.6} parent=1 // pred_check
      _
    $region19: #{model_forward.6} parent=1 // pred_check_branch
      %52 = sbr.rel (0) target = $region21
    $region20: #{model_forward.6} parent=1 // pred_region
      _
    $region21: #{model_forward.6} parent=1 // pred_fallthru
      _
    // Predicated region
    $region22: #{model_forward.6} parent=1 // pred_check
      _
    $region23: #{model_forward.6} parent=1 // pred_check_branch
      %54 = sbr.rel (0) target = $region25
    $region24: #{model_forward.6} parent=1 // pred_region
      _
    $region25: #{model_forward.6} parent=1 // pred_fallthru
      _
    // Predicated region
    $region26: #{model_forward.6} parent=1 // pred_check
      _
    $region27: #{model_forward.6} parent=1 // pred_check_branch
      %56 = sbr.rel (0) target = $region29
    $region28: #{model_forward.6} parent=1 // pred_region
      _
    $region29: #{model_forward.6} parent=1 // pred_fallthru
      _
    // Predicated region
    $region30: #{model_forward.6} parent=1 // pred_check
      _
    $region31: #{model_forward.6} parent=1 // pred_check_branch
      %58 = sbr.rel (0) target = $region33
    $region32: #{model_forward.6} parent=1 // pred_region
      %60 = vsyncadd [#allocation5], 0
      %s61 = sshll.u32 %s7, 4
      %s62 = int_to_ptr.hbm [resolvable:$true] %s61
      %s63 = sshll.u32 [#allocation6], 4
      %s64 = int_to_ptr.vmem [resolvable:$true] %s63
      %69 = dma.hbm_to_vmem [thread:$0]  %s62, 2048, %s64, [#allocation5], 128, 128, 8
    $region33: #{model_forward.6} parent=1 // pred_fallthru
      _
    // Predicated region
    $region34: #{model_forward.6} parent=1 // pred_check
      _
    $region35: #{model_forward.6} parent=1 // pred_check_branch
      %71 = sbr.rel (0) target = $region37
    $region36: #{model_forward.6} parent=1 // pred_region
      _
    $region37: #{model_forward.6} parent=1 // pred_fallthru
      _
    // Predicated region
    $region38: #{model_forward.6} parent=1 // pred_check
      _
    $region39: #{model_forward.6} parent=1 // pred_check_branch
      %73 = sbr.rel (0) target = $region41
    $region40: #{model_forward.6} parent=1 // pred_region
      %75 = vsyncadd [#allocation8], 0
      %s76 = sshll.u32 %s9, 4
      %s77 = int_to_ptr.hbm [resolvable:$true] %s76
      %s78 = sshll.u32 [#allocation7], 4
      %s79 = int_to_ptr.vmem [resolvable:$true] %s78
      %84 = dma.hbm_to_vmem [thread:$0]  %s77, 2048, %s79, [#allocation8], 64, 64, 4
    $region41: #{model_forward.6} parent=1 // pred_fallthru
      _
    // Predicated region
    $region42: #{model_forward.6} parent=1 // pred_check
      _
    $region43: #{model_forward.6} parent=1 // pred_check_branch
      %86 = sbr.rel (0) target = $region45
    $region44: #{model_forward.6} parent=1 // pred_region
      _
    $region45: #{model_forward.6} parent=1 // pred_fallthru
      _
    // Predicated region
    $region46: #{model_forward.6} parent=1 // pred_check
      _
    $region47: #{model_forward.6} parent=1 // pred_check_branch
      %88 = sbr.rel (0) target = $region49
    $region48: #{model_forward.6} parent=1 // pred_region
      _
    $region49: #{model_forward.6} parent=1 // pred_fallthru
      _
    // Predicated region
    $region50: #{model_forward.6} parent=1 // pred_check
      _
    $region51: #{model_forward.6} parent=1 // pred_check_branch
      %90 = sbr.rel (0) target = $region53
    $region52: #{model_forward.6} parent=1 // pred_region
      _
    $region53: #{model_forward.6} parent=1 // pred_fallthru
      _
    // Predicated region
    $region54: #{model_forward.6} parent=1 // pred_check
      _
    $region55: #{model_forward.6} parent=1 // pred_check_branch
      %92 = sbr.rel (0) target = $region57
    $region56: #{model_forward.6} parent=1 // pred_region
      %94 = dma.done [#allocation3], 3072
    $region57: #{model_forward.6} parent=1 // pred_fallthru
      _
    // Predicated region
    $region58: #{model_forward.6} parent=1 // pred_check
      _
    $region59: #{model_forward.6} parent=1 // pred_check_branch
      %96 = sbr.rel (0) target = $region61
    $region60: #{model_forward.6} parent=1 // pred_region
      %98 = dma.done [#allocation5], 1024
    $region61: #{model_forward.6} parent=1 // pred_fallthru
      _
    // Predicated region
    $region62: #{model_forward.6} parent=1 // pred_check
      _
    $region63: #{model_forward.6} parent=1 // pred_check_branch
      %100 = sbr.rel (0) target = $region65
    $region64: #{model_forward.6} parent=1 // pred_region
      %102 = dma.done [#allocation5], 2048
    $region65: #{model_forward.6} parent=1 // pred_fallthru
      _
    // Predicated region
    $region66: #{model_forward.6} parent=1 // pred_check
      _
    $region67: #{model_forward.6} parent=1 // pred_check_branch
      %104 = sbr.rel (0) target = $region69
    $region68: #{model_forward.6} parent=1 // pred_region
      %106 = dma.done [#allocation8], 2048
    $region69: #{model_forward.6} parent=1 // pred_fallthru
      _
    %v108 = vld [vmem:[%s0] sm:$0xff]
    %v109 = vld [vmem:[%s0 + $0x8] sm:$0xff]
    %v110 = vpack.c.bf16 %v109, %v108
    %v111 = vld [vmem:[#allocation2] sm:$0xff]
    %v112 = vld [vmem:[#allocation2 + $0x8] sm:$0xf]
    %v113 = vld [vmem:[#allocation2 + $0xc] sm:$0xff]
    %v114 = vld [vmem:[#allocation2 + $0x14] sm:$0xf]
    %v115 = vld [vmem:[#allocation2 + $0x18] sm:$0xff]
    %v116 = vld [vmem:[#allocation2 + $0x20] sm:$0xf]
    %v117 = vld [vmem:[#allocation2 + $0x24] sm:$0xff]
    %v118 = vld [vmem:[#allocation2 + $0x2c] sm:$0xf]
    %v119 = vld [vmem:[#allocation2 + $0x30] sm:$0xff]
    %v120 = vld [vmem:[#allocation2 + $0x38] sm:$0xf]
    %v121 = vld [vmem:[#allocation2 + $0x3c] sm:$0xff]
    %v122 = vld [vmem:[#allocation2 + $0x44] sm:$0xf]
    %v123 = vld [vmem:[#allocation2 + $0x48] sm:$0xff]
    %v124 = vld [vmem:[#allocation2 + $0x50] sm:$0xf]
    %v125 = vld [vmem:[#allocation2 + $0x54] sm:$0xff]
    %v126 = vld [vmem:[#allocation2 + $0x5c] sm:$0xf]
    %v127 = vld [vmem:[#allocation2 + $0x60] sm:$0xff]
    %v128 = vld [vmem:[#allocation2 + $0x68] sm:$0xf]
    %v129 = vld [vmem:[#allocation2 + $0x6c] sm:$0xff]
    %v130 = vld [vmem:[#allocation2 + $0x74] sm:$0xf]
    %v131 = vld [vmem:[#allocation2 + $0x78] sm:$0xff]
    %v132 = vld [vmem:[#allocation2 + $0x80] sm:$0xf]
    %v133 = vld [vmem:[#allocation2 + $0x84] sm:$0xff]
    %v134 = vld [vmem:[#allocation2 + $0x8c] sm:$0xf]
    %v135 = vld [vmem:[#allocation2 + $0x90] sm:$0xff]
    %v136 = vld [vmem:[#allocation2 + $0x98] sm:$0xf]
    %v137 = vld [vmem:[#allocation2 + $0x9c] sm:$0xff]
    %v138 = vld [vmem:[#allocation2 + $0xa4] sm:$0xf]
    %v139 = vld [vmem:[#allocation2 + $0xa8] sm:$0xff]
    %v140 = vld [vmem:[#allocation2 + $0xb0] sm:$0xf]
    %v141 = vld [vmem:[#allocation2 + $0xb4] sm:$0xff]
    %v142 = vld [vmem:[#allocation2 + $0xbc] sm:$0xf]
    %v143 = vld [vmem:[%s2] sm:$0x7]
    %v145 = vperm.slane %v143, 0
    %v146 = vperm.slane %v143, 1
    %v147 = vperm.slane %v143, 2
    %v183 = vunpack.c.l.b16 %v111
    %v184 = vunpack.c.h.b16 %v111
    %v185 = vunpack.c.l.b16 %v112
    %v186 = vunpack.c.l.b16 %v113
    %v187 = vunpack.c.h.b16 %v113
    %v188 = vunpack.c.l.b16 %v114
    %v189 = vunpack.c.l.b16 %v115
    %v190 = vunpack.c.h.b16 %v115
    %v191 = vunpack.c.l.b16 %v116
    %v192 = vunpack.c.l.b16 %v117
    %v193 = vunpack.c.h.b16 %v117
    %v194 = vunpack.c.l.b16 %v118
    %v195 = vunpack.c.l.b16 %v119
    %v196 = vunpack.c.h.b16 %v119
    %v197 = vunpack.c.l.b16 %v120
    %v198 = vunpack.c.l.b16 %v121
    %v199 = vunpack.c.h.b16 %v121
    %v200 = vunpack.c.l.b16 %v122
    %v201 = vunpack.c.l.b16 %v123
    %v202 = vunpack.c.h.b16 %v123
    %v203 = vunpack.c.l.b16 %v124
    %v204 = vunpack.c.l.b16 %v125
    %v205 = vunpack.c.h.b16 %v125
    %v206 = vunpack.c.l.b16 %v126
    %v207 = vunpack.c.l.b16 %v127
    %v208 = vunpack.c.h.b16 %v127
    %v209 = vunpack.c.l.b16 %v128
    %v210 = vunpack.c.l.b16 %v129
    %v211 = vunpack.c.h.b16 %v129
    %v212 = vunpack.c.l.b16 %v130
    %v213 = vunpack.c.l.b16 %v131
    %v214 = vunpack.c.h.b16 %v131
    %v215 = vunpack.c.l.b16 %v132
    %v216 = vunpack.c.l.b16 %v133
    %v217 = vunpack.c.h.b16 %v133
    %v218 = vunpack.c.l.b16 %v134
    %v219 = vunpack.c.l.b16 %v135
    %v220 = vunpack.c.h.b16 %v135
    %v221 = vunpack.c.l.b16 %v136
    %v222 = vunpack.c.l.b16 %v137
    %v223 = vunpack.c.h.b16 %v137
    %v224 = vunpack.c.l.b16 %v138
    %v225 = vunpack.c.l.b16 %v139
    %v226 = vunpack.c.h.b16 %v139
    %v227 = vunpack.c.l.b16 %v140
    %v228 = vunpack.c.l.b16 %v141
    %v229 = vunpack.c.h.b16 %v141
    %v230 = vunpack.c.l.b16 %v142
    %v231 = vpack.c.b16 %v186, %v183
    %v232 = vpack.c.b16 %v187, %v184
    %v233 = vpack.c.b16 %v188, %v185
    %v234 = vpack.c.b16 %v192, %v189
    %v235 = vpack.c.b16 %v193, %v190
    %v236 = vpack.c.b16 %v194, %v191
    %v237 = vpack.c.b16 %v198, %v195
    %v238 = vpack.c.b16 %v199, %v196
    %v239 = vpack.c.b16 %v200, %v197
    %v240 = vpack.c.b16 %v204, %v201
    %v241 = vpack.c.b16 %v205, %v202
    %v242 = vpack.c.b16 %v206, %v203
    %v243 = vpack.c.b16 %v210, %v207
    %v244 = vpack.c.b16 %v211, %v208
    %v245 = vpack.c.b16 %v212, %v209
    %v246 = vpack.c.b16 %v216, %v213
    %v247 = vpack.c.b16 %v217, %v214
    %v248 = vpack.c.b16 %v218, %v215
    %v249 = vpack.c.b16 %v222, %v219
    %v250 = vpack.c.b16 %v223, %v220
    %v251 = vpack.c.b16 %v224, %v221
    %v252 = vpack.c.b16 %v228, %v225
    %v253 = vpack.c.b16 %v229, %v226
    %v254 = vpack.c.b16 %v230, %v227
    %279 = vmatpush.bf16.msra.mxu0 %v252
    %280 = vmatpush.bf16.msra.mxu0 %v249
    %281 = vmatpush.bf16.msra.mxu0 %v246
    %282 = vmatpush.bf16.msra.mxu0 %v243
    %283 = vmatpush.bf16.msra.mxu0 %v240
    %284 = vmatpush.bf16.msra.mxu0 %v237
    %285 = vmatpush.bf16.msra.mxu0 %v234
    %286 = vmatpush.bf16.msra.mxu0 %v231
    %287 = vmatmul.bf16.gmra.mxu0 %v110
    %v288 = vpop.f32.mrf.mxu0
    %v289 = vadd.f32 %v145, %v288
    %v290 = vpop.f32.mrf.mxu0
    %v291 = vadd.f32 %v145, %v290
    %292 = vdwg.mxu0
    %293 = vmatpush.bf16.msra.mxu0 %v253
    %294 = vmatpush.bf16.msra.mxu0 %v250
    %295 = vmatpush.bf16.msra.mxu0 %v247
    %296 = vmatpush.bf16.msra.mxu0 %v244
    %297 = vmatpush.bf16.msra.mxu0 %v241
    %298 = vmatpush.bf16.msra.mxu0 %v238
    %299 = vmatpush.bf16.msra.mxu0 %v235
    %300 = vmatpush.bf16.msra.mxu0 %v232
    %301 = vmatmul.bf16.gmra.mxu0 %v110
    %v302 = vpop.f32.mrf.mxu0
    %v303 = vadd.f32 %v146, %v302
    %v304 = vpop.f32.mrf.mxu0
    %v305 = vadd.f32 %v146, %v304
    %306 = vdwg.mxu0
    %307 = vmatpush.bf16.msra.mxu0 %v254
    %308 = vmatpush.bf16.msra.mxu0 %v251
    %309 = vmatpush.bf16.msra.mxu0 %v248
    %310 = vmatpush.bf16.msra.mxu0 %v245
    %311 = vmatpush.bf16.msra.mxu0 %v242
    %312 = vmatpush.bf16.msra.mxu0 %v239
    %313 = vmatpush.bf16.msra.mxu0 %v236
    %314 = vmatpush.bf16.msra.mxu0 %v233
    %315 = vmatmul.bf16.gmra.mxu0 %v110
    %v316 = vpop.f32.mrf.mxu0
    %v317 = vadd.f32 %v147, %v316
    %v318 = vpop.f32.mrf.mxu0
    %v319 = vadd.f32 %v147, %v318
    %320 = vdwg.mxu0
    %v321 = vpack.c.bf16 %v289, %v289
    %v322 = vpack.c.bf16 %v291, %v291
    %v323 = vpack.c.bf16 %v303, %v303
    %v324 = vpack.c.bf16 %v305, %v305
    %v325 = vpack.c.bf16 %v317, %v317
    %v326 = vpack.c.bf16 %v319, %v319
    %vm327 = vcmask 261120
    %v329 = vsel %vm327, %v321, 0
    %v332 = vsel %vm327, %v323, 0
    %334 = vmatpush.bf16.xpose.msra.mxu0 0
    %335 = vmatpush.bf16.xpose.msra.mxu0 0
    %336 = vmatpush.bf16.xpose.msra.mxu0 0
    %337 = vmatpush.bf16.xpose.msra.mxu0 0
    %338 = vmatpush.bf16.xpose.msra.mxu0 0
    %339 = vmatpush.bf16.xpose.msra.mxu0 0
    %340 = vmatpush.bf16.xpose.msra.mxu0 0
    %341 = vmatpush.bf16.xpose.msra.mxu0 %v332
    %342 = vmatmul.bf16.gmra.mxu0 %v329
    %v343 = vpop.f32.mrf.mxu0
    %v344 = vadd.f32 0.0, %v343
    %v345 = vpop.f32.mrf.mxu0
    %346 = vdwg.mxu0
    %v348 = vsel %vm327, %v322, 0
    %v351 = vsel %vm327, %v324, 0
    %353 = vmatpush.bf16.xpose.msra.mxu0 0
    %354 = vmatpush.bf16.xpose.msra.mxu0 0
    %355 = vmatpush.bf16.xpose.msra.mxu0 0
    %356 = vmatpush.bf16.xpose.msra.mxu0 0
    %357 = vmatpush.bf16.xpose.msra.mxu0 0
    %358 = vmatpush.bf16.xpose.msra.mxu0 0
    %359 = vmatpush.bf16.xpose.msra.mxu0 0
    %360 = vmatpush.bf16.xpose.msra.mxu0 %v351
    %361 = vmatmul.bf16.gmra.mxu0 %v348
    %v362 = vpop.f32.mrf.mxu0
    %v363 = vadd.f32 0.0, %v362
    %v364 = vpop.f32.mrf.mxu0
    %365 = vdwg.mxu0
    %v366 = vmul.f32 %v344, 0.17677669
    %v367 = vmul.f32 %v363, 0.17677669
    %vm368 = vcmask 64512
    %v369 = vsel %vm368, %v366, -inf
    %370 = vmax.xlane.f32.xlu0 %v369
    %v371 = vpop.xlane.xlu0 %370
    %v372 = vsel %vm368, %v367, -inf
    %373 = vmax.xlane.f32.xlu0 %v372
    %v374 = vpop.xlane.xlu0 %373
    %v375 = vsub.f32 %v366, %v371
    %v376 = vsub.f32 %v367, %v374
    %v377 = vmul.f32 %v375, 1.442695
    %v378 = vpow.pop %v377
    %v379 = vmul.f32 %v376, 1.442695
    %v380 = vpow.pop %v379
    %v381 = vsel %vm368, %v378, 0.0
    %382 = vadd.xlane.f32.xlu0 %v381
    %v383 = vpop.xlane.xlu0 %382
    %v384 = vsel %vm368, %v380, 0.0
    %385 = vadd.xlane.f32.xlu0 %v384
    %v386 = vpop.xlane.xlu0 %385
    %v387 = vrcp.pop %v383
    %v388 = vrcp.pop %v386
    %v389 = vmul.f32 %v378, %v387
    %v390 = vmul.f32 %v380, %v388
    %v391 = vpack.c.bf16 %v389, %v389
    %v392 = vpack.c.bf16 %v390, %v390
    %v394 = vsel %vm368, %v391, 0
    %vm396 = vcmask 1043456
    %v398 = vsel %vm396, %v325, 0
    %400 = vmatpush.bf16.msra.mxu0 0
    %401 = vmatpush.bf16.msra.mxu0 0
    %402 = vmatpush.bf16.msra.mxu0 0
    %403 = vmatpush.bf16.msra.mxu0 0
    %404 = vmatpush.bf16.msra.mxu0 0
    %405 = vmatpush.bf16.msra.mxu0 0
    %406 = vmatpush.bf16.msra.mxu0 0
    %407 = vmatpush.bf16.msra.mxu0 %v398
    %408 = vmatmul.bf16.gmra.mxu0 %v394
    %v409 = vpop.f32.mrf.mxu0
    %v410 = vadd.f32 0.0, %v409
    %v411 = vpop.f32.mrf.mxu0
    %412 = vdwg.mxu0
    %v414 = vsel %vm368, %v392, 0
    %v417 = vsel %vm396, %v326, 0
    %419 = vmatpush.bf16.msra.mxu0 0
    %420 = vmatpush.bf16.msra.mxu0 0
    %421 = vmatpush.bf16.msra.mxu0 0
    %422 = vmatpush.bf16.msra.mxu0 0
    %423 = vmatpush.bf16.msra.mxu0 0
    %424 = vmatpush.bf16.msra.mxu0 0
    %425 = vmatpush.bf16.msra.mxu0 0
    %426 = vmatpush.bf16.msra.mxu0 %v417
    %427 = vmatmul.bf16.gmra.mxu0 %v414
    %v428 = vpop.f32.mrf.mxu0
    %v429 = vadd.f32 0.0, %v428
    %v430 = vpop.f32.mrf.mxu0
    %431 = vdwg.mxu0
    %v433 = vunpack.c.l.b16 %v321
    %v434 = vpack.c.b16 %v433, %v433
    %435 = vrot.lane.b32.xlu0 %v434, 96
    %v436 = vpop.permute.xlu0 %435
    %v438 = vunpack.c.l.b16 %v323
    %v439 = vpack.c.b16 %v438, %v438
    %440 = vrot.lane.b32.xlu0 %v439, 96
    %v441 = vpop.permute.xlu0 %440
    %v443 = vsel %vm327, %v436, 0
    %v446 = vsel %vm327, %v441, 0
    %448 = vmatpush.bf16.xpose.msra.mxu0 0
    %449 = vmatpush.bf16.xpose.msra.mxu0 0
    %450 = vmatpush.bf16.xpose.msra.mxu0 0
    %451 = vmatpush.bf16.xpose.msra.mxu0 0
    %452 = vmatpush.bf16.xpose.msra.mxu0 0
    %453 = vmatpush.bf16.xpose.msra.mxu0 0
    %454 = vmatpush.bf16.xpose.msra.mxu0 0
    %455 = vmatpush.bf16.xpose.msra.mxu0 %v446
    %456 = vmatmul.bf16.gmra.mxu0 %v443
    %v457 = vpop.f32.mrf.mxu0
    %v458 = vadd.f32 0.0, %v457
    %v459 = vpop.f32.mrf.mxu0
    %460 = vdwg.mxu0
    %v462 = vunpack.c.l.b16 %v322
    %v463 = vpack.c.b16 %v462, %v462
    %464 = vrot.lane.b32.xlu0 %v463, 96
    %v465 = vpop.permute.xlu0 %464
    %v467 = vunpack.c.l.b16 %v324
    %v468 = vpack.c.b16 %v467, %v467
    %469 = vrot.lane.b32.xlu0 %v468, 96
    %v470 = vpop.permute.xlu0 %469
    %v472 = vsel %vm327, %v465, 0
    %v475 = vsel %vm327, %v470, 0
    %477 = vmatpush.bf16.xpose.msra.mxu0 0
    %478 = vmatpush.bf16.xpose.msra.mxu0 0
    %479 = vmatpush.bf16.xpose.msra.mxu0 0
    %480 = vmatpush.bf16.xpose.msra.mxu0 0
    %481 = vmatpush.bf16.xpose.msra.mxu0 0
    %482 = vmatpush.bf16.xpose.msra.mxu0 0
    %483 = vmatpush.bf16.xpose.msra.mxu0 0
    %484 = vmatpush.bf16.xpose.msra.mxu0 %v475
    %485 = vmatmul.bf16.gmra.mxu0 %v472
    %v486 = vpop.f32.mrf.mxu0
    %v487 = vadd.f32 0.0, %v486
    %v488 = vpop.f32.mrf.mxu0
    %489 = vdwg.mxu0
    %v490 = vmul.f32 %v458, 0.17677669
    %v491 = vmul.f32 %v487, 0.17677669
    %v492 = vsel %vm368, %v490, -inf
    %493 = vmax.xlane.f32.xlu0 %v492
    %v494 = vpop.xlane.xlu0 %493
    %v495 = vsel %vm368, %v491, -inf
    %496 = vmax.xlane.f32.xlu0 %v495
    %v497 = vpop.xlane.xlu0 %496
    %v498 = vsub.f32 %v490, %v494
    %v499 = vsub.f32 %v491, %v497
    %v500 = vmul.f32 %v498, 1.442695
    %v501 = vpow.pop %v500
    %v502 = vmul.f32 %v499, 1.442695
    %v503 = vpow.pop %v502
    %v504 = vsel %vm368, %v501, 0.0
    %505 = vadd.xlane.f32.xlu0 %v504
    %v506 = vpop.xlane.xlu0 %505
    %v507 = vsel %vm368, %v503, 0.0
    %508 = vadd.xlane.f32.xlu0 %v507
    %v509 = vpop.xlane.xlu0 %508
    %v510 = vrcp.pop %v506
    %v511 = vrcp.pop %v509
    %v512 = vmul.f32 %v501, %v510
    %v513 = vmul.f32 %v503, %v511
    %v514 = vpack.c.bf16 %v512, %v512
    %v515 = vpack.c.bf16 %v513, %v513
    %v517 = vunpack.c.l.b16 %v325
    %v518 = vpack.c.b16 %v517, %v517
    %519 = vrot.lane.b32.xlu0 %v518, 96
    %v520 = vpop.permute.xlu0 %519
    %v522 = vsel %vm368, %v514, 0
    %v525 = vsel %vm396, %v520, 0
    %527 = vmatpush.bf16.msra.mxu0 0
    %528 = vmatpush.bf16.msra.mxu0 0
    %529 = vmatpush.bf16.msra.mxu0 0
    %530 = vmatpush.bf16.msra.mxu0 0
    %531 = vmatpush.bf16.msra.mxu0 0
    %532 = vmatpush.bf16.msra.mxu0 0
    %533 = vmatpush.bf16.msra.mxu0 0
    %534 = vmatpush.bf16.msra.mxu0 %v525
    %535 = vmatmul.bf16.gmra.mxu0 %v522
    %v536 = vpop.f32.mrf.mxu0
    %v537 = vadd.f32 0.0, %v536
    %v538 = vpop.f32.mrf.mxu0
    %539 = vdwg.mxu0
    %v541 = vunpack.c.l.b16 %v326
    %v542 = vpack.c.b16 %v541, %v541
    %543 = vrot.lane.b32.xlu0 %v542, 96
    %v544 = vpop.permute.xlu0 %543
    %v546 = vsel %vm368, %v515, 0
    %v549 = vsel %vm396, %v544, 0
    %551 = vmatpush.bf16.msra.mxu0 0
    %552 = vmatpush.bf16.msra.mxu0 0
    %553 = vmatpush.bf16.msra.mxu0 0
    %554 = vmatpush.bf16.msra.mxu0 0
    %555 = vmatpush.bf16.msra.mxu0 0
    %556 = vmatpush.bf16.msra.mxu0 0
    %557 = vmatpush.bf16.msra.mxu0 0
    %558 = vmatpush.bf16.msra.mxu0 %v549
    %559 = vmatmul.bf16.gmra.mxu0 %v546
    %v560 = vpop.f32.mrf.mxu0
    %v561 = vadd.f32 0.0, %v560
    %v562 = vpop.f32.mrf.mxu0
    %563 = vdwg.mxu0
    %564 = vrot.lane.b32.xlu0 %v434, 64
    %v565 = vpop.permute.xlu0 %564
    %566 = vrot.lane.b32.xlu0 %v439, 64
    %v567 = vpop.permute.xlu0 %566
    %v569 = vsel %vm327, %v565, 0
    %v572 = vsel %vm327, %v567, 0
    %574 = vmatpush.bf16.xpose.msra.mxu0 0
    %575 = vmatpush.bf16.xpose.msra.mxu0 0
    %576 = vmatpush.bf16.xpose.msra.mxu0 0
    %577 = vmatpush.bf16.xpose.msra.mxu0 0
    %578 = vmatpush.bf16.xpose.msra.mxu0 0
    %579 = vmatpush.bf16.xpose.msra.mxu0 0
    %580 = vmatpush.bf16.xpose.msra.mxu0 0
    %581 = vmatpush.bf16.xpose.msra.mxu0 %v572
    %582 = vmatmul.bf16.gmra.mxu0 %v569
    %v583 = vpop.f32.mrf.mxu0
    %v584 = vadd.f32 0.0, %v583
    %v585 = vpop.f32.mrf.mxu0
    %586 = vdwg.mxu0
    %587 = vrot.lane.b32.xlu0 %v463, 64
    %v588 = vpop.permute.xlu0 %587
    %589 = vrot.lane.b32.xlu0 %v468, 64
    %v590 = vpop.permute.xlu0 %589
    %v592 = vsel %vm327, %v588, 0
    %v595 = vsel %vm327, %v590, 0
    %597 = vmatpush.bf16.xpose.msra.mxu0 0
    %598 = vmatpush.bf16.xpose.msra.mxu0 0
    %599 = vmatpush.bf16.xpose.msra.mxu0 0
    %600 = vmatpush.bf16.xpose.msra.mxu0 0
    %601 = vmatpush.bf16.xpose.msra.mxu0 0
    %602 = vmatpush.bf16.xpose.msra.mxu0 0
    %603 = vmatpush.bf16.xpose.msra.mxu0 0
    %604 = vmatpush.bf16.xpose.msra.mxu0 %v595
    %605 = vmatmul.bf16.gmra.mxu0 %v592
    %v606 = vpop.f32.mrf.mxu0
    %v607 = vadd.f32 0.0, %v606
    %v608 = vpop.f32.mrf.mxu0
    %609 = vdwg.mxu0
    %v610 = vmul.f32 %v584, 0.17677669
    %v611 = vmul.f32 %v607, 0.17677669
    %v612 = vsel %vm368, %v610, -inf
    %613 = vmax.xlane.f32.xlu0 %v612
    %v614 = vpop.xlane.xlu0 %613
    %v615 = vsel %vm368, %v611, -inf
    %616 = vmax.xlane.f32.xlu0 %v615
    %v617 = vpop.xlane.xlu0 %616
    %v618 = vsub.f32 %v610, %v614
    %v619 = vsub.f32 %v611, %v617
    %v620 = vmul.f32 %v618, 1.442695
    %v621 = vpow.pop %v620
    %v622 = vmul.f32 %v619, 1.442695
    %v623 = vpow.pop %v622
    %v624 = vsel %vm368, %v621, 0.0
    %625 = vadd.xlane.f32.xlu0 %v624
    %v626 = vpop.xlane.xlu0 %625
    %v627 = vsel %vm368, %v623, 0.0
    %628 = vadd.xlane.f32.xlu0 %v627
    %v629 = vpop.xlane.xlu0 %628
    %v630 = vrcp.pop %v626
    %v631 = vrcp.pop %v629
    %v632 = vmul.f32 %v621, %v630
    %v633 = vmul.f32 %v623, %v631
    %v634 = vpack.c.bf16 %v632, %v632
    %v635 = vpack.c.bf16 %v633, %v633
    %636 = vrot.lane.b32.xlu0 %v518, 64
    %v637 = vpop.permute.xlu0 %636
    %v639 = vsel %vm368, %v634, 0
    %v642 = vsel %vm396, %v637, 0
    %644 = vmatpush.bf16.msra.mxu0 0
    %645 = vmatpush.bf16.msra.mxu0 0
    %646 = vmatpush.bf16.msra.mxu0 0
    %647 = vmatpush.bf16.msra.mxu0 0
    %648 = vmatpush.bf16.msra.mxu0 0
    %649 = vmatpush.bf16.msra.mxu0 0
    %650 = vmatpush.bf16.msra.mxu0 0
    %651 = vmatpush.bf16.msra.mxu0 %v642
    %652 = vmatmul.bf16.gmra.mxu0 %v639
    %v653 = vpop.f32.mrf.mxu0
    %v654 = vadd.f32 0.0, %v653
    %v655 = vpop.f32.mrf.mxu0
    %656 = vdwg.mxu0
    %657 = vrot.lane.b32.xlu0 %v542, 64
    %v658 = vpop.permute.xlu0 %657
    %v660 = vsel %vm368, %v635, 0
    %v663 = vsel %vm396, %v658, 0
    %665 = vmatpush.bf16.msra.mxu0 0
    %666 = vmatpush.bf16.msra.mxu0 0
    %667 = vmatpush.bf16.msra.mxu0 0
    %668 = vmatpush.bf16.msra.mxu0 0
    %669 = vmatpush.bf16.msra.mxu0 0
    %670 = vmatpush.bf16.msra.mxu0 0
    %671 = vmatpush.bf16.msra.mxu0 0
    %672 = vmatpush.bf16.msra.mxu0 %v663
    %673 = vmatmul.bf16.gmra.mxu0 %v660
    %v674 = vpop.f32.mrf.mxu0
    %v675 = vadd.f32 0.0, %v674
    %v676 = vpop.f32.mrf.mxu0
    %677 = vdwg.mxu0
    %678 = vrot.lane.b32.xlu0 %v434, 32
    %v679 = vpop.permute.xlu0 %678
    %680 = vrot.lane.b32.xlu0 %v439, 32
    %v681 = vpop.permute.xlu0 %680
    %v683 = vsel %vm327, %v679, 0
    %v686 = vsel %vm327, %v681, 0
    %688 = vmatpush.bf16.xpose.msra.mxu0 0
    %689 = vmatpush.bf16.xpose.msra.mxu0 0
    %690 = vmatpush.bf16.xpose.msra.mxu0 0
    %691 = vmatpush.bf16.xpose.msra.mxu0 0
    %692 = vmatpush.bf16.xpose.msra.mxu0 0
    %693 = vmatpush.bf16.xpose.msra.mxu0 0
    %694 = vmatpush.bf16.xpose.msra.mxu0 0
    %695 = vmatpush.bf16.xpose.msra.mxu0 %v686
    %696 = vmatmul.bf16.gmra.mxu0 %v683
    %v697 = vpop.f32.mrf.mxu0
    %v698 = vadd.f32 0.0, %v697
    %v699 = vpop.f32.mrf.mxu0
    %700 = vdwg.mxu0
    %701 = vrot.lane.b32.xlu0 %v463, 32
    %v702 = vpop.permute.xlu0 %701
    %703 = vrot.lane.b32.xlu0 %v468, 32
    %v704 = vpop.permute.xlu0 %703
    %v706 = vsel %vm327, %v702, 0
    %v709 = vsel %vm327, %v704, 0
    %711 = vmatpush.bf16.xpose.msra.mxu0 0
    %712 = vmatpush.bf16.xpose.msra.mxu0 0
    %713 = vmatpush.bf16.xpose.msra.mxu0 0
    %714 = vmatpush.bf16.xpose.msra.mxu0 0
    %715 = vmatpush.bf16.xpose.msra.mxu0 0
    %716 = vmatpush.bf16.xpose.msra.mxu0 0
    %717 = vmatpush.bf16.xpose.msra.mxu0 0
    %718 = vmatpush.bf16.xpose.msra.mxu0 %v709
    %719 = vmatmul.bf16.gmra.mxu0 %v706
    %v720 = vpop.f32.mrf.mxu0
    %v721 = vadd.f32 0.0, %v720
    %v722 = vpop.f32.mrf.mxu0
    %723 = vdwg.mxu0
    %v724 = vmul.f32 %v698, 0.17677669
    %v725 = vmul.f32 %v721, 0.17677669
    %v726 = vsel %vm368, %v724, -inf
    %727 = vmax.xlane.f32.xlu0 %v726
    %v728 = vpop.xlane.xlu0 %727
    %v729 = vsel %vm368, %v725, -inf
    %730 = vmax.xlane.f32.xlu0 %v729
    %v731 = vpop.xlane.xlu0 %730
    %v732 = vsub.f32 %v724, %v728
    %v733 = vsub.f32 %v725, %v731
    %v734 = vmul.f32 %v732, 1.442695
    %v735 = vpow.pop %v734
    %v736 = vmul.f32 %v733, 1.442695
    %v737 = vpow.pop %v736
    %v738 = vsel %vm368, %v735, 0.0
    %739 = vadd.xlane.f32.xlu0 %v738
    %v740 = vpop.xlane.xlu0 %739
    %v741 = vsel %vm368, %v737, 0.0
    %742 = vadd.xlane.f32.xlu0 %v741
    %v743 = vpop.xlane.xlu0 %742
    %v744 = vrcp.pop %v740
    %v745 = vrcp.pop %v743
    %v746 = vmul.f32 %v735, %v744
    %v747 = vmul.f32 %v737, %v745
    %v748 = vpack.c.bf16 %v746, %v746
    %v749 = vpack.c.bf16 %v747, %v747
    %750 = vrot.lane.b32.xlu0 %v518, 32
    %v751 = vpop.permute.xlu0 %750
    %v753 = vsel %vm368, %v748, 0
    %v756 = vsel %vm396, %v751, 0
    %758 = vmatpush.bf16.msra.mxu0 0
    %759 = vmatpush.bf16.msra.mxu0 0
    %760 = vmatpush.bf16.msra.mxu0 0
    %761 = vmatpush.bf16.msra.mxu0 0
    %762 = vmatpush.bf16.msra.mxu0 0
    %763 = vmatpush.bf16.msra.mxu0 0
    %764 = vmatpush.bf16.msra.mxu0 0
    %765 = vmatpush.bf16.msra.mxu0 %v756
    %766 = vmatmul.bf16.gmra.mxu0 %v753
    %v767 = vpop.f32.mrf.mxu0
    %v768 = vadd.f32 0.0, %v767
    %v769 = vpop.f32.mrf.mxu0
    %770 = vdwg.mxu0
    %771 = vrot.lane.b32.xlu0 %v542, 32
    %v772 = vpop.permute.xlu0 %771
    %v774 = vsel %vm368, %v749, 0
    %v777 = vsel %vm396, %v772, 0
    %779 = vmatpush.bf16.msra.mxu0 0
    %780 = vmatpush.bf16.msra.mxu0 0
    %781 = vmatpush.bf16.msra.mxu0 0
    %782 = vmatpush.bf16.msra.mxu0 0
    %783 = vmatpush.bf16.msra.mxu0 0
    %784 = vmatpush.bf16.msra.mxu0 0
    %785 = vmatpush.bf16.msra.mxu0 0
    %786 = vmatpush.bf16.msra.mxu0 %v777
    %787 = vmatmul.bf16.gmra.mxu0 %v774
    %v788 = vpop.f32.mrf.mxu0
    %v789 = vadd.f32 0.0, %v788
    %v790 = vpop.f32.mrf.mxu0
    %791 = vdwg.mxu0
    %794 = vrot.lane.b32.xlu0 %v537, 32
    %v795 = vpop.permute.xlu0 %794
    %796 = vrot.lane.b32.xlu0 %v561, 32
    %v797 = vpop.permute.xlu0 %796
    %802 = vrot.lane.b32.xlu0 %v654, 64
    %v803 = vpop.permute.xlu0 %802
    %804 = vrot.lane.b32.xlu0 %v675, 64
    %v805 = vpop.permute.xlu0 %804
    %810 = vrot.lane.b32.xlu0 %v768, 96
    %v811 = vpop.permute.xlu0 %810
    %812 = vrot.lane.b32.xlu0 %v789, 96
    %v813 = vpop.permute.xlu0 %812
    %v816 = vsel %vm327, %v410, %v795
    %v817 = vsel %vm327, %v429, %v797
    %vm818 = vcmask 523264
    %v819 = vsel %vm818, %v816, %v803
    %v820 = vsel %vm818, %v817, %v805
    %vm821 = vcmask 785408
    %v822 = vsel %vm821, %v819, %v811
    %v823 = vsel %vm821, %v820, %v813
    %v824 = vpack.c.bf16 %v823, %v822
    %v825 = vld [vmem:[#allocation4] sm:$0xf]
    %v826 = vld [vmem:[#allocation4 + $0x4] sm:$0xf]
    %v827 = vld [vmem:[#allocation4 + $0x8] sm:$0xf]
    %v828 = vld [vmem:[#allocation4 + $0xc] sm:$0xf]
    %v829 = vld [vmem:[#allocation4 + $0x10] sm:$0xf]
    %v830 = vld [vmem:[#allocation4 + $0x14] sm:$0xf]
    %v831 = vld [vmem:[#allocation4 + $0x18] sm:$0xf]
    %v832 = vld [vmem:[#allocation4 + $0x1c] sm:$0xf]
    %v833 = vld [vmem:[#allocation4 + $0x20] sm:$0xf]
    %v834 = vld [vmem:[#allocation4 + $0x24] sm:$0xf]
    %v835 = vld [vmem:[#allocation4 + $0x28] sm:$0xf]
    %v836 = vld [vmem:[#allocation4 + $0x2c] sm:$0xf]
    %v837 = vld [vmem:[#allocation4 + $0x30] sm:$0xf]
    %v838 = vld [vmem:[#allocation4 + $0x34] sm:$0xf]
    %v839 = vld [vmem:[#allocation4 + $0x38] sm:$0xf]
    %v840 = vld [vmem:[#allocation4 + $0x3c] sm:$0xf]
    %v841 = vld [vmem:[%s4] sm:$0x1]
    %v843 = vperm.slane %v841, 0
    %v861 = vunpack.c.l.b16 %v825
    %v862 = vunpack.c.l.b16 %v826
    %v863 = vunpack.c.l.b16 %v827
    %v864 = vunpack.c.l.b16 %v828
    %v865 = vunpack.c.l.b16 %v829
    %v866 = vunpack.c.l.b16 %v830
    %v867 = vunpack.c.l.b16 %v831
    %v868 = vunpack.c.l.b16 %v832
    %v869 = vunpack.c.l.b16 %v833
    %v870 = vunpack.c.l.b16 %v834
    %v871 = vunpack.c.l.b16 %v835
    %v872 = vunpack.c.l.b16 %v836
    %v873 = vunpack.c.l.b16 %v837
    %v874 = vunpack.c.l.b16 %v838
    %v875 = vunpack.c.l.b16 %v839
    %v876 = vunpack.c.l.b16 %v840
    %v877 = vpack.c.b16 %v862, %v861
    %v878 = vpack.c.b16 %v864, %v863
    %v879 = vpack.c.b16 %v866, %v865
    %v880 = vpack.c.b16 %v868, %v867
    %v881 = vpack.c.b16 %v870, %v869
    %v882 = vpack.c.b16 %v872, %v871
    %v883 = vpack.c.b16 %v874, %v873
    %v884 = vpack.c.b16 %v876, %v875
    %893 = vmatpush.bf16.msra.mxu0 %v884
    %894 = vmatpush.bf16.msra.mxu0 %v883
    %895 = vmatpush.bf16.msra.mxu0 %v882
    %896 = vmatpush.bf16.msra.mxu0 %v881
    %897 = vmatpush.bf16.msra.mxu0 %v880
    %898 = vmatpush.bf16.msra.mxu0 %v879
    %899 = vmatpush.bf16.msra.mxu0 %v878
    %900 = vmatpush.bf16.msra.mxu0 %v877
    %901 = vmatmul.bf16.gmra.mxu0 %v824
    %v902 = vpop.f32.mrf.mxu0
    %v903 = vadd.f32 %v843, %v902
    %v904 = vpop.f32.mrf.mxu0
    %v905 = vadd.f32 %v843, %v904
    %906 = vdwg.mxu0
    %v907 = vadd.f32 %v108, %v903
    %v908 = vadd.f32 %v109, %v905
    %v909 = vld [vmem:[%s5] sm:$0x1]
    %v910 = vld [vmem:[%s6] sm:$0x1]
    %911 = vadd.xlane.f32.xlu0 %v907
    %v912 = vpop.xlane.xlu0 %911
    %913 = vadd.xlane.f32.xlu0 %v908
    %v914 = vpop.xlane.xlu0 %913
    %v915 = vrcp.pop 128.0
    %v916 = vmul.f32 128.0, %v915
    %v917 = vsub.f32 1.0, %v916
    %v918 = vmul.f32 %v915, %v917
    %v919 = vadd.f32 %v915, %v918
    %vm920 = vweird.f32 %v915
    %v921 = vsel %vm920, %v915, %v919
    %v922 = vmul.f32 %v912, %v921
    %v923 = vmul.f32 %v914, %v921
    %v924 = vsub.f32 %v907, %v922
    %v925 = vsub.f32 %v908, %v923
    %v926 = vmul.f32 %v924, %v924
    %v927 = vmul.f32 %v925, %v925
    %928 = vadd.xlane.f32.xlu0 %v926
    %v929 = vpop.xlane.xlu0 %928
    %930 = vadd.xlane.f32.xlu0 %v927
    %v931 = vpop.xlane.xlu0 %930
    %v932 = vmul.f32 %v929, %v921
    %v933 = vmul.f32 %v931, %v921
    %v934 = vadd.f32 %v932, 1e-05
    %v935 = vadd.f32 %v933, 1e-05
    %v936 = vrsqrt.pop %v934
    %v937 = vmul.f32 %v936, %v934
    %v938 = vmul.f32 %v937, %v936
    %v939 = vmul.f32 0.5, %v938
    %v940 = vsub.f32 1.5, %v939
    %v941 = vmul.f32 %v936, %v940
    %vm942 = vweird.f32 %v934
    %vm943 = vweird.f32 %v936
    %vm944 = vmor %vm942, %vm943
    %v945 = vsel %vm944, %v936, %v941
    %v946 = vrsqrt.pop %v935
    %v947 = vmul.f32 %v946, %v935
    %v948 = vmul.f32 %v947, %v946
    %v949 = vmul.f32 0.5, %v948
    %v950 = vsub.f32 1.5, %v949
    %v951 = vmul.f32 %v946, %v950
    %vm952 = vweird.f32 %v935
    %vm953 = vweird.f32 %v946
    %vm954 = vmor %vm952, %vm953
    %v955 = vsel %vm954, %v946, %v951
    %v956 = vmul.f32 %v924, %v945
    %v957 = vmul.f32 %v925, %v955
    %v959 = vperm.slane %v909, 0
    %v961 = vmul.f32 %v956, %v959
    %v962 = vmul.f32 %v957, %v959
    %v964 = vperm.slane %v910, 0
    %v966 = vadd.f32 %v961, %v964
    %v967 = vadd.f32 %v962, %v964
    %v968 = vpack.c.bf16 %v967, %v966
    %v969 = vld [vmem:[#allocation6] sm:$0xff]
    %v970 = vld [vmem:[#allocation6 + $0x8] sm:$0xff]
    %v971 = vld [vmem:[#allocation6 + $0x10] sm:$0xff]
    %v972 = vld [vmem:[#allocation6 + $0x18] sm:$0xff]
    %v973 = vld [vmem:[#allocation6 + $0x20] sm:$0xff]
    %v974 = vld [vmem:[#allocation6 + $0x28] sm:$0xff]
    %v975 = vld [vmem:[#allocation6 + $0x30] sm:$0xff]
    %v976 = vld [vmem:[#allocation6 + $0x38] sm:$0xff]
    %v977 = vld [vmem:[#allocation6 + $0x40] sm:$0xff]
    %v978 = vld [vmem:[#allocation6 + $0x48] sm:$0xff]
    %v979 = vld [vmem:[#allocation6 + $0x50] sm:$0xff]
    %v980 = vld [vmem:[#allocation6 + $0x58] sm:$0xff]
    %v981 = vld [vmem:[#allocation6 + $0x60] sm:$0xff]
    %v982 = vld [vmem:[#allocation6 + $0x68] sm:$0xff]
    %v983 = vld [vmem:[#allocation6 + $0x70] sm:$0xff]
    %v984 = vld [vmem:[#allocation6 + $0x78] sm:$0xff]
    %v985 = vld [vmem:[%s8] sm:$0x3]
    %v987 = vperm.slane %v985, 0
    %v988 = vperm.slane %v985, 1
    %v1007 = vunpack.c.l.b16 %v969
    %v1008 = vunpack.c.h.b16 %v969
    %v1009 = vunpack.c.l.b16 %v970
    %v1010 = vunpack.c.h.b16 %v970
    %v1011 = vunpack.c.l.b16 %v971
    %v1012 = vunpack.c.h.b16 %v971
    %v1013 = vunpack.c.l.b16 %v972
    %v1014 = vunpack.c.h.b16 %v972
    %v1015 = vunpack.c.l.b16 %v973
    %v1016 = vunpack.c.h.b16 %v973
    %v1017 = vunpack.c.l.b16 %v974
    %v1018 = vunpack.c.h.b16 %v974
    %v1019 = vunpack.c.l.b16 %v975
    %v1020 = vunpack.c.h.b16 %v975
    %v1021 = vunpack.c.l.b16 %v976
    %v1022 = vunpack.c.h.b16 %v976
    %v1023 = vunpack.c.l.b16 %v977
    %v1024 = vunpack.c.h.b16 %v977
    %v1025 = vunpack.c.l.b16 %v978
    %v1026 = vunpack.c.h.b16 %v978
    %v1027 = vunpack.c.l.b16 %v979
    %v1028 = vunpack.c.h.b16 %v979
    %v1029 = vunpack.c.l.b16 %v980
    %v1030 = vunpack.c.h.b16 %v980
    %v1031 = vunpack.c.l.b16 %v981
    %v1032 = vunpack.c.h.b16 %v981
    %v1033 = vunpack.c.l.b16 %v982
    %v1034 = vunpack.c.h.b16 %v982
    %v1035 = vunpack.c.l.b16 %v983
    %v1036 = vunpack.c.h.b16 %v983
    %v1037 = vunpack.c.l.b16 %v984
    %v1038 = vunpack.c.h.b16 %v984
    %v1039 = vpack.c.b16 %v1009, %v1007
    %v1040 = vpack.c.b16 %v1010, %v1008
    %v1041 = vpack.c.b16 %v1013, %v1011
    %v1042 = vpack.c.b16 %v1014, %v1012
    %v1043 = vpack.c.b16 %v1017, %v1015
    %v1044 = vpack.c.b16 %v1018, %v1016
    %v1045 = vpack.c.b16 %v1021, %v1019
    %v1046 = vpack.c.b16 %v1022, %v1020
    %v1047 = vpack.c.b16 %v1025, %v1023
    %v1048 = vpack.c.b16 %v1026, %v1024
    %v1049 = vpack.c.b16 %v1029, %v1027
    %v1050 = vpack.c.b16 %v1030, %v1028
    %v1051 = vpack.c.b16 %v1033, %v1031
    %v1052 = vpack.c.b16 %v1034, %v1032
    %v1053 = vpack.c.b16 %v1037, %v1035
    %v1054 = vpack.c.b16 %v1038, %v1036
    %1071 = vmatpush.bf16.msra.mxu0 %v1053
    %1072 = vmatpush.bf16.msra.mxu0 %v1051
    %1073 = vmatpush.bf16.msra.mxu0 %v1049
    %1074 = vmatpush.bf16.msra.mxu0 %v1047
    %1075 = vmatpush.bf16.msra.mxu0 %v1045
    %1076 = vmatpush.bf16.msra.mxu0 %v1043
    %1077 = vmatpush.bf16.msra.mxu0 %v1041
    %1078 = vmatpush.bf16.msra.mxu0 %v1039
    %1079 = vmatmul.bf16.gmra.mxu0 %v968
    %v1080 = vpop.f32.mrf.mxu0
    %v1081 = vadd.f32 %v987, %v1080
    %v1082 = vpop.f32.mrf.mxu0
    %v1083 = vadd.f32 %v987, %v1082
    %1084 = vdwg.mxu0
    %1085 = vmatpush.bf16.msra.mxu0 %v1054
    %1086 = vmatpush.bf16.msra.mxu0 %v1052
    %1087 = vmatpush.bf16.msra.mxu0 %v1050
    %1088 = vmatpush.bf16.msra.mxu0 %v1048
    %1089 = vmatpush.bf16.msra.mxu0 %v1046
    %1090 = vmatpush.bf16.msra.mxu0 %v1044
    %1091 = vmatpush.bf16.msra.mxu0 %v1042
    %1092 = vmatpush.bf16.msra.mxu0 %v1040
    %1093 = vmatmul.bf16.gmra.mxu0 %v968
    %v1094 = vpop.f32.mrf.mxu0
    %v1095 = vadd.f32 %v988, %v1094
    %v1096 = vpop.f32.mrf.mxu0
    %v1097 = vadd.f32 %v988, %v1096
    %1098 = vdwg.mxu0
    %v1099 = vmax.f32 %v1081, 0.0
    %v1100 = vmax.f32 %v1095, 0.0
    %v1101 = vmax.f32 %v1083, 0.0
    %v1102 = vmax.f32 %v1097, 0.0
    %v1103 = vpack.c.bf16 %v1101, %v1099
    %v1104 = vpack.c.bf16 %v1102, %v1100
    %v1105 = vld [vmem:[#allocation7] sm:$0xf]
    %v1106 = vld [vmem:[#allocation7 + $0x4] sm:$0xf]
    %v1107 = vld [vmem:[#allocation7 + $0x8] sm:$0xf]
    %v1108 = vld [vmem:[#allocation7 + $0xc] sm:$0xf]
    %v1109 = vld [vmem:[#allocation7 + $0x10] sm:$0xf]
    %v1110 = vld [vmem:[#allocation7 + $0x14] sm:$0xf]
    %v1111 = vld [vmem:[#allocation7 + $0x18] sm:$0xf]
    %v1112 = vld [vmem:[#allocation7 + $0x1c] sm:$0xf]
    %v1113 = vld [vmem:[#allocation7 + $0x20] sm:$0xf]
    %v1114 = vld [vmem:[#allocation7 + $0x24] sm:$0xf]
    %v1115 = vld [vmem:[#allocation7 + $0x28] sm:$0xf]
    %v1116 = vld [vmem:[#allocation7 + $0x2c] sm:$0xf]
    %v1117 = vld [vmem:[#allocation7 + $0x30] sm:$0xf]
    %v1118 = vld [vmem:[#allocation7 + $0x34] sm:$0xf]
    %v1119 = vld [vmem:[#allocation7 + $0x38] sm:$0xf]
    %v1120 = vld [vmem:[#allocation7 + $0x3c] sm:$0xf]
    %v1121 = vld [vmem:[#allocation7 + $0x40] sm:$0xf]
    %v1122 = vld [vmem:[#allocation7 + $0x44] sm:$0xf]
    %v1123 = vld [vmem:[#allocation7 + $0x48] sm:$0xf]
    %v1124 = vld [vmem:[#allocation7 + $0x4c] sm:$0xf]
    %v1125 = vld [vmem:[#allocation7 + $0x50] sm:$0xf]
    %v1126 = vld [vmem:[#allocation7 + $0x54] sm:$0xf]
    %v1127 = vld [vmem:[#allocation7 + $0x58] sm:$0xf]
    %v1128 = vld [vmem:[#allocation7 + $0x5c] sm:$0xf]
    %v1129 = vld [vmem:[#allocation7 + $0x60] sm:$0xf]
    %v1130 = vld [vmem:[#allocation7 + $0x64] sm:$0xf]
    %v1131 = vld [vmem:[#allocation7 + $0x68] sm:$0xf]
    %v1132 = vld [vmem:[#allocation7 + $0x6c] sm:$0xf]
    %v1133 = vld [vmem:[#allocation7 + $0x70] sm:$0xf]
    %v1134 = vld [vmem:[#allocation7 + $0x74] sm:$0xf]
    %v1135 = vld [vmem:[#allocation7 + $0x78] sm:$0xf]
    %v1136 = vld [vmem:[#allocation7 + $0x7c] sm:$0xf]
    %v1137 = vld [vmem:[%s10] sm:$0x1]
    %v1139 = vperm.slane %v1137, 0
    %v1173 = vunpack.c.l.b16 %v1105
    %v1174 = vunpack.c.l.b16 %v1106
    %v1175 = vunpack.c.l.b16 %v1107
    %v1176 = vunpack.c.l.b16 %v1108
    %v1177 = vunpack.c.l.b16 %v1109
    %v1178 = vunpack.c.l.b16 %v1110
    %v1179 = vunpack.c.l.b16 %v1111
    %v1180 = vunpack.c.l.b16 %v1112
    %v1181 = vunpack.c.l.b16 %v1113
    %v1182 = vunpack.c.l.b16 %v1114
    %v1183 = vunpack.c.l.b16 %v1115
    %v1184 = vunpack.c.l.b16 %v1116
    %v1185 = vunpack.c.l.b16 %v1117
    %v1186 = vunpack.c.l.b16 %v1118
    %v1187 = vunpack.c.l.b16 %v1119
    %v1188 = vunpack.c.l.b16 %v1120
    %v1189 = vunpack.c.l.b16 %v1121
    %v1190 = vunpack.c.l.b16 %v1122
    %v1191 = vunpack.c.l.b16 %v1123
    %v1192 = vunpack.c.l.b16 %v1124
    %v1193 = vunpack.c.l.b16 %v1125
    %v1194 = vunpack.c.l.b16 %v1126
    %v1195 = vunpack.c.l.b16 %v1127
    %v1196 = vunpack.c.l.b16 %v1128
    %v1197 = vunpack.c.l.b16 %v1129
    %v1198 = vunpack.c.l.b16 %v1130
    %v1199 = vunpack.c.l.b16 %v1131
    %v1200 = vunpack.c.l.b16 %v1132
    %v1201 = vunpack.c.l.b16 %v1133
    %v1202 = vunpack.c.l.b16 %v1134
    %v1203 = vunpack.c.l.b16 %v1135
    %v1204 = vunpack.c.l.b16 %v1136
    %v1205 = vpack.c.b16 %v1174, %v1173
    %v1206 = vpack.c.b16 %v1176, %v1175
    %v1207 = vpack.c.b16 %v1178, %v1177
    %v1208 = vpack.c.b16 %v1180, %v1179
    %v1209 = vpack.c.b16 %v1182, %v1181
    %v1210 = vpack.c.b16 %v1184, %v1183
    %v1211 = vpack.c.b16 %v1186, %v1185
    %v1212 = vpack.c.b16 %v1188, %v1187
    %v1213 = vpack.c.b16 %v1190, %v1189
    %v1214 = vpack.c.b16 %v1192, %v1191
    %v1215 = vpack.c.b16 %v1194, %v1193
    %v1216 = vpack.c.b16 %v1196, %v1195
    %v1217 = vpack.c.b16 %v1198, %v1197
    %v1218 = vpack.c.b16 %v1200, %v1199
    %v1219 = vpack.c.b16 %v1202, %v1201
    %v1220 = vpack.c.b16 %v1204, %v1203
    %1237 = vmatpush.bf16.msra.mxu0 %v1212
    %1238 = vmatpush.bf16.msra.mxu0 %v1211
    %1239 = vmatpush.bf16.msra.mxu0 %v1210
    %1240 = vmatpush.bf16.msra.mxu0 %v1209
    %1241 = vmatpush.bf16.msra.mxu0 %v1208
    %1242 = vmatpush.bf16.msra.mxu0 %v1207
    %1243 = vmatpush.bf16.msra.mxu0 %v1206
    %1244 = vmatpush.bf16.msra.mxu0 %v1205
    %1245 = vmatmul.bf16.gmra.mxu0 %v1103
    %v1246 = vpop.f32.mrf.mxu0
    %v1247 = vadd.f32 %v1139, %v1246
    %v1248 = vpop.f32.mrf.mxu0
    %v1249 = vadd.f32 %v1139, %v1248
    %1250 = vdwg.mxu0
    %1251 = vmatpush.bf16.msra.mxu0 %v1220
    %1252 = vmatpush.bf16.msra.mxu0 %v1219
    %1253 = vmatpush.bf16.msra.mxu0 %v1218
    %1254 = vmatpush.bf16.msra.mxu0 %v1217
    %1255 = vmatpush.bf16.msra.mxu0 %v1216
    %1256 = vmatpush.bf16.msra.mxu0 %v1215
    %1257 = vmatpush.bf16.msra.mxu0 %v1214
    %1258 = vmatpush.bf16.msra.mxu0 %v1213
    %1259 = vmatmul.bf16.gmra.mxu0 %v1104
    %v1260 = vpop.f32.mrf.mxu0
    %v1261 = vadd.f32 %v1247, %v1260
    %v1262 = vpop.f32.mrf.mxu0
    %v1263 = vadd.f32 %v1249, %v1262
    %1264 = vdwg.mxu0
    %v1265 = vadd.f32 %v966, %v1261
    %v1266 = vadd.f32 %v967, %v1263
    %v1267 = vld [vmem:[%s11] sm:$0x1]
    %v1268 = vld [vmem:[%s12] sm:$0x1]
    %1269 = vadd.xlane.f32.xlu0 %v1265
    %v1270 = vpop.xlane.xlu0 %1269
    %1271 = vadd.xlane.f32.xlu0 %v1266
    %v1272 = vpop.xlane.xlu0 %1271
    %v1273 = vmul.f32 %v1270, %v921
    %v1274 = vmul.f32 %v1272, %v921
    %v1275 = vsub.f32 %v1265, %v1273
    %v1276 = vsub.f32 %v1266, %v1274
    %v1277 = vmul.f32 %v1275, %v1275
    %v1278 = vmul.f32 %v1276, %v1276
    %1279 = vadd.xlane.f32.xlu0 %v1277
    %v1280 = vpop.xlane.xlu0 %1279
    %1281 = vadd.xlane.f32.xlu0 %v1278
    %v1282 = vpop.xlane.xlu0 %1281
    %v1283 = vmul.f32 %v1280, %v921
    %v1284 = vmul.f32 %v1282, %v921
    %v1285 = vadd.f32 %v1283, 1e-05
    %v1286 = vadd.f32 %v1284, 1e-05
    %v1287 = vrsqrt.pop %v1285
    %v1288 = vmul.f32 %v1287, %v1285
    %v1289 = vmul.f32 %v1288, %v1287
    %v1290 = vmul.f32 0.5, %v1289
    %v1291 = vsub.f32 1.5, %v1290
    %v1292 = vmul.f32 %v1287, %v1291
    %vm1293 = vweird.f32 %v1285
    %vm1294 = vweird.f32 %v1287
    %vm1295 = vmor %vm1293, %vm1294
    %v1296 = vsel %vm1295, %v1287, %v1292
    %v1297 = vrsqrt.pop %v1286
    %v1298 = vmul.f32 %v1297, %v1286
    %v1299 = vmul.f32 %v1298, %v1297
    %v1300 = vmul.f32 0.5, %v1299
    %v1301 = vsub.f32 1.5, %v1300
    %v1302 = vmul.f32 %v1297, %v1301
    %vm1303 = vweird.f32 %v1286
    %vm1304 = vweird.f32 %v1297
    %vm1305 = vmor %vm1303, %vm1304
    %v1306 = vsel %vm1305, %v1297, %v1302
    %v1307 = vmul.f32 %v1275, %v1296
    %v1308 = vmul.f32 %v1276, %v1306
    %v1310 = vperm.slane %v1267, 0
    %v1312 = vmul.f32 %v1307, %v1310
    %v1313 = vmul.f32 %v1308, %v1310
    %v1315 = vperm.slane %v1268, 0
    %v1317 = vadd.f32 %v1312, %v1315
    %v1318 = vadd.f32 %v1313, %v1315
    %1319 = vst [vmem:[%s13] sm:$0xff] %v1317
    %1320 = vst [vmem:[%s13 + $0x8] sm:$0xff] %v1318
    // Predicated region
    $region70: #{model_forward.6} parent=1 // pred_check
      _
    $region71: #{model_forward.6} parent=1 // pred_check_branch
      %1322 = sbr.rel (0) target = $region73
    $region72: #{model_forward.6} parent=1 // pred_region
      _
    $region73: #{model_forward.6} parent=1 // pred_fallthru
      _
    // Predicated region
    $region74: #{model_forward.6} parent=1 // pred_check
      _
    $region75: #{model_forward.6} parent=1 // pred_check_branch
      %1324 = sbr.rel (0) target = $region77
    $region76: #{model_forward.6} parent=1 // pred_region
      _
    $region77: #{model_forward.6} parent=1 // pred_fallthru
      _
    %1325 = vsyncpa [#allocation3], 1
    %1326 = vsyncpa [#allocation5], 1
    %1327 = vsyncpa [#allocation8], 1

// kernel: model_forward.9
$region0: #{model_forward.9}
  #allocation0 [shape = 'u32[]', space=smem, size = 0x4, offset = 0x4, fixed_abs, tag = 'smem constant byte address 0x4 - core index']
  #allocation1 [shape = 'u32[72,128]{1,0:T(1,128)}', space=vmem, size = 0x9000, scoped, tag = 'internal scratch']
  %s0 = inlined_call_operand.vmem [shape: f32[16,128], index: 0, kind: input, shape index: {}]
  %s1 = inlined_call_operand.vmem [shape: f32[16,128], index: 1, kind: input, shape index: {}]
  %s2 = inlined_call_operand.vmem [shape: bf16[128,384], index: 2, kind: input, shape index: {}]
  %s3 = inlined_call_operand.vmem [shape: f32[1,384], index: 3, kind: input, shape index: {}]
  %s4 = inlined_call_operand.hbm [shape: bf16[128,128], index: 4, kind: input, shape index: {}]
  %s5 = inlined_call_operand.hbm [shape: f32[1,128], index: 5, kind: input, shape index: {}]
  %s6 = inlined_call_operand.hbm [shape: f32[1,128], index: 6, kind: input, shape index: {}]
  %s7 = inlined_call_operand.hbm [shape: f32[1,128], index: 7, kind: input, shape index: {}]
  %s8 = inlined_call_operand.hbm [shape: bf16[128,128], index: 8, kind: input, shape index: {}]
  %s9 = inlined_call_operand.hbm [shape: f32[1,128], index: 9, kind: input, shape index: {}]
  %s10 = inlined_call_operand.vmem [shape: bf16[128,256], index: 10, kind: input, shape index: {}]
  %s11 = inlined_call_operand.hbm [shape: f32[1,256], index: 11, kind: input, shape index: {}]
  %s12 = inlined_call_operand.hbm [shape: bf16[128,128], index: 12, kind: input, shape index: {}]
  %s13 = inlined_call_operand.hbm [shape: f32[1,128], index: 13, kind: input, shape index: {}]
  %s14 = inlined_call_operand.hbm [shape: f32[1,128], index: 14, kind: input, shape index: {}]
  %s15 = inlined_call_operand.hbm [shape: f32[1,128], index: 15, kind: input, shape index: {}]
  %s16 = inlined_call_operand.hbm [shape: bf16[128,256], index: 16, kind: input, shape index: {}]
  %s17 = inlined_call_operand.hbm [shape: f32[1,256], index: 17, kind: input, shape index: {}]
  %s18 = inlined_call_operand.hbm [shape: bf16[256,128], index: 18, kind: input, shape index: {}]
  %s19 = inlined_call_operand.hbm [shape: f32[1,128], index: 19, kind: input, shape index: {}]
  %s20 = inlined_call_operand.hbm [shape: f32[1,128], index: 20, kind: input, shape index: {}]
  %s21 = inlined_call_operand.hbm [shape: f32[1,128], index: 21, kind: input, shape index: {}]
  %s22 = inlined_call_operand.vmem [shape: f32[16,128], index: 22, kind: output, shape index: {}]
  %s23 = sld [smem:[#allocation0]]
  $region166: #{model_forward.9} parent=0
    _
  %s25 = ssub.s32 1, %s23
  %s26 = scalar_select 0, %s25, %s23
  $region1: #{model_forward.9} parent=0
    #allocation2 [shape = 'u8[32768]{0}', space=vmem, size = 0x8000, scoped, tag = 'input window, operand 4, single buffered']
    #allocation3 [shape = 's32[1]{0}', space=sflag, size = 0x4, scoped, tag = 'scoped memory for model_forward.9']
    #allocation4 [shape = 'u8[512]{0}', space=vmem, size = 0x400, scoped, tag = 'input window, operand 5, single buffered']
    #allocation5 [shape = 's32[1]{0}', space=sflag, size = 0x4, scoped, tag = 'scoped memory for model_forward.9']
    #allocation6 [shape = 'u8[512]{0}', space=vmem, size = 0x400, scoped, tag = 'input window, operand 6, single buffered']
    #allocation7 [shape = 'u8[512]{0}', space=vmem, size = 0x400, scoped, tag = 'input window, operand 7, single buffered']
    #allocation8 [shape = 's32[1]{0}', space=sflag, size = 0x4, scoped, tag = 'scoped memory for model_forward.9']
    #allocation9 [shape = 'u8[32768]{0}', space=vmem, size = 0x8000, scoped, tag = 'input window, operand 8, single buffered']
    #allocation10 [shape = 'u8[512]{0}', space=vmem, size = 0x400, scoped, tag = 'input window, operand 9, single buffered']
    #allocation11 [shape = 's32[1]{0}', space=sflag, size = 0x4, scoped, tag = 'scoped memory for model_forward.9']
    #allocation12 [shape = 'u8[1024]{0}', space=vmem, size = 0x400, scoped, tag = 'input window, operand 11, single buffered']
    #allocation13 [shape = 'u8[32768]{0}', space=vmem, size = 0x8000, scoped, tag = 'input window, operand 12, single buffered']
    #allocation14 [shape = 's32[1]{0}', space=sflag, size = 0x4, scoped, tag = 'scoped memory for model_forward.9']
    #allocation15 [shape = 'u8[512]{0}', space=vmem, size = 0x400, scoped, tag = 'input window, operand 13, single buffered']
    #allocation16 [shape = 'u8[512]{0}', space=vmem, size = 0x400, scoped, tag = 'input window, operand 14, single buffered']
    #allocation17 [shape = 's32[1]{0}', space=sflag, size = 0x4, scoped, tag = 'scoped memory for model_forward.9']
    #allocation18 [shape = 'u8[512]{0}', space=vmem, size = 0x400, scoped, tag = 'input window, operand 15, single buffered']
    #allocation19 [shape = 'u8[65536]{0}', space=vmem, size = 0x10000, scoped, tag = 'input window, operand 16, single buffered']
    #allocation20 [shape = 's32[1]{0}', space=sflag, size = 0x4, scoped, tag = 'scoped memory for model_forward.9']
    #allocation21 [shape = 'u8[1024]{0}', space=vmem, size = 0x400, scoped, tag = 'input window, operand 17, single buffered']
    #allocation22 [shape = 'u8[65536]{0}', space=vmem, size = 0x10000, scoped, tag = 'input window, operand 18, single buffered']
    #allocation23 [shape = 's32[1]{0}', space=sflag, size = 0x4, scoped, tag = 'scoped memory for model_forward.9']
    #allocation24 [shape = 'u8[512]{0}', space=vmem, size = 0x400, scoped, tag = 'input window, operand 19, single buffered']
    #allocation25 [shape = 'u8[512]{0}', space=vmem, size = 0x400, scoped, tag = 'input window, operand 20, single buffered']
    #allocation26 [shape = 's32[1]{0}', space=sflag, size = 0x4, scoped, tag = 'scoped memory for model_forward.9']
    #allocation27 [shape = 'u8[512]{0}', space=vmem, size = 0x400, scoped, tag = 'input window, operand 21, single buffered']
    %27 = vsyncpa [#allocation3], 0
    %28 = vsyncpa [#allocation5], 0
    %29 = vsyncpa [#allocation8], 0
    %30 = vsyncpa [#allocation11], 0
    %31 = vsyncpa [#allocation14], 0
    %32 = vsyncpa [#allocation17], 0
    %33 = vsyncpa [#allocation20], 0
    %34 = vsyncpa [#allocation23], 0
    %35 = vsyncpa [#allocation26], 0
    // Predicated region
    $region2: #{model_forward.9} parent=1 // pred_check
      _
    $region3: #{model_forward.9} parent=1 // pred_check_branch
      %37 = sbr.rel (0) target = $region5
    $region4: #{model_forward.9} parent=1 // pred_region
      _
    $region5: #{model_forward.9} parent=1 // pred_fallthru
      _
    // Predicated region
    $region6: #{model_forward.9} parent=1 // pred_check
      _
    $region7: #{model_forward.9} parent=1 // pred_check_branch
      %39 = sbr.rel (0) target = $region9
    $region8: #{model_forward.9} parent=1 // pred_region
      _
    $region9: #{model_forward.9} parent=1 // pred_fallthru
      _
    // Predicated region
    $region10: #{model_forward.9} parent=1 // pred_check
      _
    $region11: #{model_forward.9} parent=1 // pred_check_branch
      %41 = sbr.rel (0) target = $region13
    $region12: #{model_forward.9} parent=1 // pred_region
      _
    $region13: #{model_forward.9} parent=1 // pred_fallthru
      _
    // Predicated region
    $region14: #{model_forward.9} parent=1 // pred_check
      _
    $region15: #{model_forward.9} parent=1 // pred_check_branch
      %43 = sbr.rel (0) target = $region17
    $region16: #{model_forward.9} parent=1 // pred_region
      _
    $region17: #{model_forward.9} parent=1 // pred_fallthru
      _
    // Predicated region
    $region18: #{model_forward.9} parent=1 // pred_check
      _
    $region19: #{model_forward.9} parent=1 // pred_check_branch
      %45 = sbr.rel (0) target = $region21
    $region20: #{model_forward.9} parent=1 // pred_region
      %47 = vsyncadd [#allocation3], 0
      %s48 = sshll.u32 %s4, 4
      %s49 = int_to_ptr.hbm [resolvable:$true] %s48
      %s50 = sshll.u32 [#allocation2], 4
      %s51 = int_to_ptr.vmem [resolvable:$true] %s50
      %56 = dma.hbm_to_vmem [thread:$0]  %s49, 1024, %s51, [#allocation3], 64, 64, 4
    $region21: #{model_forward.9} parent=1 // pred_fallthru
      _
    // Predicated region
    $region22: #{model_forward.9} parent=1 // pred_check
      _
    $region23: #{model_forward.9} parent=1 // pred_check_branch
      %58 = sbr.rel (0) target = $region25
    $region24: #{model_forward.9} parent=1 // pred_region
      %60 = vsyncadd [#allocation5], 0
      %s62 = sshll.u32 %s5, 4
      %s63 = int_to_ptr.hbm [resolvable:$true] %s62
      %s64 = sshll.u32 [#allocation4], 4
      %s65 = int_to_ptr.vmem [resolvable:$true] %s64
      %67 = dma.hbm_to_vmem [thread:$0]  %s63, 16, %s65, [#allocation5]
    $region25: #{model_forward.9} parent=1 // pred_fallthru
      _
    // Predicated region
    $region26: #{model_forward.9} parent=1 // pred_check
      _
    $region27: #{model_forward.9} parent=1 // pred_check_branch
      %69 = sbr.rel (0) target = $region29
    $region28: #{model_forward.9} parent=1 // pred_region
      %71 = vsyncadd [#allocation5], 0
      %s73 = sshll.u32 %s6, 4
      %s74 = int_to_ptr.hbm [resolvable:$true] %s73
      %s75 = sshll.u32 [#allocation6], 4
      %s76 = int_to_ptr.vmem [resolvable:$true] %s75
      %78 = dma.hbm_to_vmem [thread:$0]  %s74, 16, %s76, [#allocation5]
    $region29: #{model_forward.9} parent=1 // pred_fallthru
      _
    // Predicated region
    $region30: #{model_forward.9} parent=1 // pred_check
      _
    $region31: #{model_forward.9} parent=1 // pred_check_branch
      %80 = sbr.rel (0) target = $region33
    $region32: #{model_forward.9} parent=1 // pred_region
      %82 = vsyncadd [#allocation8], 0
      %s84 = sshll.u32 %s7, 4
      %s85 = int_to_ptr.hbm [resolvable:$true] %s84
      %s86 = sshll.u32 [#allocation7], 4
      %s87 = int_to_ptr.vmem [resolvable:$true] %s86
      %89 = dma.hbm_to_vmem [thread:$0]  %s85, 16, %s87, [#allocation8]
    $region33: #{model_forward.9} parent=1 // pred_fallthru
      _
    // Predicated region
    $region34: #{model_forward.9} parent=1 // pred_check
      _
    $region35: #{model_forward.9} parent=1 // pred_check_branch
      %91 = sbr.rel (0) target = $region37
    $region36: #{model_forward.9} parent=1 // pred_region
      %93 = vsyncadd [#allocation8], 0
      %s94 = sshll.u32 %s8, 4
      %s95 = int_to_ptr.hbm [resolvable:$true] %s94
      %s96 = sshll.u32 [#allocation9], 4
      %s97 = int_to_ptr.vmem [resolvable:$true] %s96
      %102 = dma.hbm_to_vmem [thread:$0]  %s95, 1024, %s97, [#allocation8], 64, 64, 4
    $region37: #{model_forward.9} parent=1 // pred_fallthru
      _
    // Predicated region
    $region38: #{model_forward.9} parent=1 // pred_check
      _
    $region39: #{model_forward.9} parent=1 // pred_check_branch
      %104 = sbr.rel (0) target = $region41
    $region40: #{model_forward.9} parent=1 // pred_region
      %106 = vsyncadd [#allocation11], 0
      %s108 = sshll.u32 %s9, 4
      %s109 = int_to_ptr.hbm [resolvable:$true] %s108
      %s110 = sshll.u32 [#allocation10], 4
      %s111 = int_to_ptr.vmem [resolvable:$true] %s110
      %113 = dma.hbm_to_vmem [thread:$0]  %s109, 16, %s111, [#allocation11]
    $region41: #{model_forward.9} parent=1 // pred_fallthru
      _
    // Predicated region
    $region42: #{model_forward.9} parent=1 // pred_check
      _
    $region43: #{model_forward.9} parent=1 // pred_check_branch
      %115 = sbr.rel (0) target = $region45
    $region44: #{model_forward.9} parent=1 // pred_region
      _
    $region45: #{model_forward.9} parent=1 // pred_fallthru
      _
    // Predicated region
    $region46: #{model_forward.9} parent=1 // pred_check
      _
    $region47: #{model_forward.9} parent=1 // pred_check_branch
      %117 = sbr.rel (0) target = $region49
    $region48: #{model_forward.9} parent=1 // pred_region
      %119 = vsyncadd [#allocation11], 0
      %s121 = sshll.u32 %s11, 4
      %s122 = int_to_ptr.hbm [resolvable:$true] %s121
      %s123 = sshll.u32 [#allocation12], 4
      %s124 = int_to_ptr.vmem [resolvable:$true] %s123
      %126 = dma.hbm_to_vmem [thread:$0]  %s122, 32, %s124, [#allocation11]
    $region49: #{model_forward.9} parent=1 // pred_fallthru
      _
    // Predicated region
    $region50: #{model_forward.9} parent=1 // pred_check
      _
    $region51: #{model_forward.9} parent=1 // pred_check_branch
      %128 = sbr.rel (0) target = $region53
    $region52: #{model_forward.9} parent=1 // pred_region
      %130 = vsyncadd [#allocation14], 0
      %s131 = sshll.u32 %s12, 4
      %s132 = int_to_ptr.hbm [resolvable:$true] %s131
      %s133 = sshll.u32 [#allocation13], 4
      %s134 = int_to_ptr.vmem [resolvable:$true] %s133
      %139 = dma.hbm_to_vmem [thread:$0]  %s132, 1024, %s134, [#allocation14], 64, 64, 4
    $region53: #{model_forward.9} parent=1 // pred_fallthru
      _
    // Predicated region
    $region54: #{model_forward.9} parent=1 // pred_check
      _
    $region55: #{model_forward.9} parent=1 // pred_check_branch
      %141 = sbr.rel (0) target = $region57
    $region56: #{model_forward.9} parent=1 // pred_region
      %143 = vsyncadd [#allocation14], 0
      %s145 = sshll.u32 %s13, 4
      %s146 = int_to_ptr.hbm [resolvable:$true] %s145
      %s147 = sshll.u32 [#allocation15], 4
      %s148 = int_to_ptr.vmem [resolvable:$true] %s147
      %150 = dma.hbm_to_vmem [thread:$0]  %s146, 16, %s148, [#allocation14]
    $region57: #{model_forward.9} parent=1 // pred_fallthru
      _
    // Predicated region
    $region58: #{model_forward.9} parent=1 // pred_check
      _
    $region59: #{model_forward.9} parent=1 // pred_check_branch
      %152 = sbr.rel (0) target = $region61
    $region60: #{model_forward.9} parent=1 // pred_region
      %154 = vsyncadd [#allocation17], 0
      %s156 = sshll.u32 %s14, 4
      %s157 = int_to_ptr.hbm [resolvable:$true] %s156
      %s158 = sshll.u32 [#allocation16], 4
      %s159 = int_to_ptr.vmem [resolvable:$true] %s158
      %161 = dma.hbm_to_vmem [thread:$0]  %s157, 16, %s159, [#allocation17]
    $region61: #{model_forward.9} parent=1 // pred_fallthru
      _
    // Predicated region
    $region62: #{model_forward.9} parent=1 // pred_check
      _
    $region63: #{model_forward.9} parent=1 // pred_check_branch
      %163 = sbr.rel (0) target = $region65
    $region64: #{model_forward.9} parent=1 // pred_region
      %165 = vsyncadd [#allocation17], 0
      %s167 = sshll.u32 %s15, 4
      %s168 = int_to_ptr.hbm [resolvable:$true] %s167
      %s169 = sshll.u32 [#allocation18], 4
      %s170 = int_to_ptr.vmem [resolvable:$true] %s169
      %172 = dma.hbm_to_vmem [thread:$0]  %s168, 16, %s170, [#allocation17]
    $region65: #{model_forward.9} parent=1 // pred_fallthru
      _
    // Predicated region
    $region66: #{model_forward.9} parent=1 // pred_check
      _
    $region67: #{model_forward.9} parent=1 // pred_check_branch
      %174 = sbr.rel (0) target = $region69
    $region68: #{model_forward.9} parent=1 // pred_region
      %176 = vsyncadd [#allocation20], 0
      %s177 = sshll.u32 %s16, 4
      %s178 = int_to_ptr.hbm [resolvable:$true] %s177
      %s179 = sshll.u32 [#allocation19], 4
      %s180 = int_to_ptr.vmem [resolvable:$true] %s179
      %185 = dma.hbm_to_vmem [thread:$0]  %s178, 2048, %s180, [#allocation20], 128, 128, 8
    $region69: #{model_forward.9} parent=1 // pred_fallthru
      _
    // Predicated region
    $region70: #{model_forward.9} parent=1 // pred_check
      _
    $region71: #{model_forward.9} parent=1 // pred_check_branch
      %187 = sbr.rel (0) target = $region73
    $region72: #{model_forward.9} parent=1 // pred_region
      %189 = vsyncadd [#allocation20], 0
      %s191 = sshll.u32 %s17, 4
      %s192 = int_to_ptr.hbm [resolvable:$true] %s191
      %s193 = sshll.u32 [#allocation21], 4
      %s194 = int_to_ptr.vmem [resolvable:$true] %s193
      %196 = dma.hbm_to_vmem [thread:$0]  %s192, 32, %s194, [#allocation20]
    $region73: #{model_forward.9} parent=1 // pred_fallthru
      _
    // Predicated region
    $region74: #{model_forward.9} parent=1 // pred_check
      _
    $region75: #{model_forward.9} parent=1 // pred_check_branch
      %198 = sbr.rel (0) target = $region77
    $region76: #{model_forward.9} parent=1 // pred_region
      %200 = vsyncadd [#allocation23], 0
      %s201 = sshll.u32 %s18, 4
      %s202 = int_to_ptr.hbm [resolvable:$true] %s201
      %s203 = sshll.u32 [#allocation22], 4
      %s204 = int_to_ptr.vmem [resolvable:$true] %s203
      %209 = dma.hbm_to_vmem [thread:$0]  %s202, 2048, %s204, [#allocation23], 64, 64, 4
    $region77: #{model_forward.9} parent=1 // pred_fallthru
      _
    // Predicated region
    $region78: #{model_forward.9} parent=1 // pred_check
      _
    $region79: #{model_forward.9} parent=1 // pred_check_branch
      %211 = sbr.rel (0) target = $region81
    $region80: #{model_forward.9} parent=1 // pred_region
      %213 = vsyncadd [#allocation23], 0
      %s215 = sshll.u32 %s19, 4
      %s216 = int_to_ptr.hbm [resolvable:$true] %s215
      %s217 = sshll.u32 [#allocation24], 4
      %s218 = int_to_ptr.vmem [resolvable:$true] %s217
      %220 = dma.hbm_to_vmem [thread:$0]  %s216, 16, %s218, [#allocation23]
    $region81: #{model_forward.9} parent=1 // pred_fallthru
      _
    // Predicated region
    $region82: #{model_forward.9} parent=1 // pred_check
      _
    $region83: #{model_forward.9} parent=1 // pred_check_branch
      %222 = sbr.rel (0) target = $region85
    $region84: #{model_forward.9} parent=1 // pred_region
      %224 = vsyncadd [#allocation26], 0
      %s226 = sshll.u32 %s20, 4
      %s227 = int_to_ptr.hbm [resolvable:$true] %s226
      %s228 = sshll.u32 [#allocation25], 4
      %s229 = int_to_ptr.vmem [resolvable:$true] %s228
      %231 = dma.hbm_to_vmem [thread:$0]  %s227, 16, %s229, [#allocation26]
    $region85: #{model_forward.9} parent=1 // pred_fallthru
      _
    // Predicated region
    $region86: #{model_forward.9} parent=1 // pred_check
      _
    $region87: #{model_forward.9} parent=1 // pred_check_branch
      %233 = sbr.rel (0) target = $region89
    $region88: #{model_forward.9} parent=1 // pred_region
      %235 = vsyncadd [#allocation26], 0
      %s237 = sshll.u32 %s21, 4
      %s238 = int_to_ptr.hbm [resolvable:$true] %s237
      %s239 = sshll.u32 [#allocation27], 4
      %s240 = int_to_ptr.vmem [resolvable:$true] %s239
      %242 = dma.hbm_to_vmem [thread:$0]  %s238, 16, %s240, [#allocation26]
    $region89: #{model_forward.9} parent=1 // pred_fallthru
      _
    // Predicated region
    $region90: #{model_forward.9} parent=1 // pred_check
      _
    $region91: #{model_forward.9} parent=1 // pred_check_branch
      %244 = sbr.rel (0) target = $region93
    $region92: #{model_forward.9} parent=1 // pred_region
      %246 = dma.done [#allocation3], 1024
    $region93: #{model_forward.9} parent=1 // pred_fallthru
      _
    // Predicated region
    $region94: #{model_forward.9} parent=1 // pred_check
      _
    $region95: #{model_forward.9} parent=1 // pred_check_branch
      %248 = sbr.rel (0) target = $region97
    $region96: #{model_forward.9} parent=1 // pred_region
      %250 = dma.done [#allocation5], 16
    $region97: #{model_forward.9} parent=1 // pred_fallthru
      _
    // Predicated region
    $region98: #{model_forward.9} parent=1 // pred_check
      _
    $region99: #{model_forward.9} parent=1 // pred_check_branch
      %252 = sbr.rel (0) target = $region101
    $region100: #{model_forward.9} parent=1 // pred_region
      %254 = dma.done [#allocation5], 16
    $region101: #{model_forward.9} parent=1 // pred_fallthru
      _
    // Predicated region
    $region102: #{model_forward.9} parent=1 // pred_check
      _
    $region103: #{model_forward.9} parent=1 // pred_check_branch
      %256 = sbr.rel (0) target = $region105
    $region104: #{model_forward.9} parent=1 // pred_region
      %258 = dma.done [#allocation8], 16
    $region105: #{model_forward.9} parent=1 // pred_fallthru
      _
    // Predicated region
    $region106: #{model_forward.9} parent=1 // pred_check
      _
    $region107: #{model_forward.9} parent=1 // pred_check_branch
      %260 = sbr.rel (0) target = $region109
    $region108: #{model_forward.9} parent=1 // pred_region
      %262 = dma.done [#allocation8], 1024
    $region109: #{model_forward.9} parent=1 // pred_fallthru
      _
    // Predicated region
    $region110: #{model_forward.9} parent=1 // pred_check
      _
    $region111: #{model_forward.9} parent=1 // pred_check_branch
      %264 = sbr.rel (0) target = $region113
    $region112: #{model_forward.9} parent=1 // pred_region
      %266 = dma.done [#allocation11], 16
    $region113: #{model_forward.9} parent=1 // pred_fallthru
      _
    // Predicated region
    $region114: #{model_forward.9} parent=1 // pred_check
      _
    $region115: #{model_forward.9} parent=1 // pred_check_branch
      %268 = sbr.rel (0) target = $region117
    $region116: #{model_forward.9} parent=1 // pred_region
      %270 = dma.done [#allocation11], 32
    $region117: #{model_forward.9} parent=1 // pred_fallthru
      _
    // Predicated region
    $region118: #{model_forward.9} parent=1 // pred_check
      _
    $region119: #{model_forward.9} parent=1 // pred_check_branch
      %272 = sbr.rel (0) target = $region121
    $region120: #{model_forward.9} parent=1 // pred_region
      %274 = dma.done [#allocation14], 1024
    $region121: #{model_forward.9} parent=1 // pred_fallthru
      _
    // Predicated region
    $region122: #{model_forward.9} parent=1 // pred_check
      _
    $region123: #{model_forward.9} parent=1 // pred_check_branch
      %276 = sbr.rel (0) target = $region125
    $region124: #{model_forward.9} parent=1 // pred_region
      %278 = dma.done [#allocation14], 16
    $region125: #{model_forward.9} parent=1 // pred_fallthru
      _
    // Predicated region
    $region126: #{model_forward.9} parent=1 // pred_check
      _
    $region127: #{model_forward.9} parent=1 // pred_check_branch
      %280 = sbr.rel (0) target = $region129
    $region128: #{model_forward.9} parent=1 // pred_region
      %282 = dma.done [#allocation17], 16
    $region129: #{model_forward.9} parent=1 // pred_fallthru
      _
    // Predicated region
    $region130: #{model_forward.9} parent=1 // pred_check
      _
    $region131: #{model_forward.9} parent=1 // pred_check_branch
      %284 = sbr.rel (0) target = $region133
    $region132: #{model_forward.9} parent=1 // pred_region
      %286 = dma.done [#allocation17], 16
    $region133: #{model_forward.9} parent=1 // pred_fallthru
      _
    // Predicated region
    $region134: #{model_forward.9} parent=1 // pred_check
      _
    $region135: #{model_forward.9} parent=1 // pred_check_branch
      %288 = sbr.rel (0) target = $region137
    $region136: #{model_forward.9} parent=1 // pred_region
      %290 = dma.done [#allocation20], 2048
    $region137: #{model_forward.9} parent=1 // pred_fallthru
      _
    // Predicated region
    $region138: #{model_forward.9} parent=1 // pred_check
      _
    $region139: #{model_forward.9} parent=1 // pred_check_branch
      %292 = sbr.rel (0) target = $region141
    $region140: #{model_forward.9} parent=1 // pred_region
      %294 = dma.done [#allocation20], 32
    $region141: #{model_forward.9} parent=1 // pred_fallthru
      _
    // Predicated region
    $region142: #{model_forward.9} parent=1 // pred_check
      _
    $region143: #{model_forward.9} parent=1 // pred_check_branch
      %296 = sbr.rel (0) target = $region145
    $region144: #{model_forward.9} parent=1 // pred_region
      %298 = dma.done [#allocation23], 2048
    $region145: #{model_forward.9} parent=1 // pred_fallthru
      _
    // Predicated region
    $region146: #{model_forward.9} parent=1 // pred_check
      _
    $region147: #{model_forward.9} parent=1 // pred_check_branch
      %300 = sbr.rel (0) target = $region149
    $region148: #{model_forward.9} parent=1 // pred_region
      %302 = dma.done [#allocation23], 16
    $region149: #{model_forward.9} parent=1 // pred_fallthru
      _
    // Predicated region
    $region150: #{model_forward.9} parent=1 // pred_check
      _
    $region151: #{model_forward.9} parent=1 // pred_check_branch
      %304 = sbr.rel (0) target = $region153
    $region152: #{model_forward.9} parent=1 // pred_region
      %306 = dma.done [#allocation26], 16
    $region153: #{model_forward.9} parent=1 // pred_fallthru
      _
    // Predicated region
    $region154: #{model_forward.9} parent=1 // pred_check
      _
    $region155: #{model_forward.9} parent=1 // pred_check_branch
      %308 = sbr.rel (0) target = $region157
    $region156: #{model_forward.9} parent=1 // pred_region
      %310 = dma.done [#allocation26], 16
    $region157: #{model_forward.9} parent=1 // pred_fallthru
      _
    %v312 = vld [vmem:[%s0] sm:$0xff]
    %v313 = vld [vmem:[%s0 + $0x8] sm:$0xff]
    %v314 = vld [vmem:[%s1] sm:$0xff]
    %v315 = vld [vmem:[%s1 + $0x8] sm:$0xff]
    %v316 = vpack.c.bf16 %v313, %v312
    %v317 = vld [vmem:[%s2] sm:$0xff]
    %v318 = vld [vmem:[%s2 + $0x8] sm:$0xf]
    %v319 = vld [vmem:[%s2 + $0xc] sm:$0xff]
    %v320 = vld [vmem:[%s2 + $0x14] sm:$0xf]
    %v321 = vld [vmem:[%s2 + $0x18] sm:$0xff]
    %v322 = vld [vmem:[%s2 + $0x20] sm:$0xf]
    %v323 = vld [vmem:[%s2 + $0x24] sm:$0xff]
    %v324 = vld [vmem:[%s2 + $0x2c] sm:$0xf]
    %v325 = vld [vmem:[%s2 + $0x30] sm:$0xff]
    %v326 = vld [vmem:[%s2 + $0x38] sm:$0xf]
    %v327 = vld [vmem:[%s2 + $0x3c] sm:$0xff]
    %v328 = vld [vmem:[%s2 + $0x44] sm:$0xf]
    %v329 = vld [vmem:[%s2 + $0x48] sm:$0xff]
    %v330 = vld [vmem:[%s2 + $0x50] sm:$0xf]
    %v331 = vld [vmem:[%s2 + $0x54] sm:$0xff]
    %v332 = vld [vmem:[%s2 + $0x5c] sm:$0xf]
    %v333 = vld [vmem:[%s2 + $0x60] sm:$0xff]
    %v334 = vld [vmem:[%s2 + $0x68] sm:$0xf]
    %v335 = vld [vmem:[%s2 + $0x6c] sm:$0xff]
    %v336 = vld [vmem:[%s2 + $0x74] sm:$0xf]
    %v337 = vld [vmem:[%s2 + $0x78] sm:$0xff]
    %v338 = vld [vmem:[%s2 + $0x80] sm:$0xf]
    %v339 = vld [vmem:[%s2 + $0x84] sm:$0xff]
    %v340 = vld [vmem:[%s2 + $0x8c] sm:$0xf]
    %v341 = vld [vmem:[%s2 + $0x90] sm:$0xff]
    %v342 = vld [vmem:[%s2 + $0x98] sm:$0xf]
    %v343 = vld [vmem:[%s2 + $0x9c] sm:$0xff]
    %v344 = vld [vmem:[%s2 + $0xa4] sm:$0xf]
    %v345 = vld [vmem:[%s2 + $0xa8] sm:$0xff]
    %v346 = vld [vmem:[%s2 + $0xb0] sm:$0xf]
    %v347 = vld [vmem:[%s2 + $0xb4] sm:$0xff]
    %v348 = vld [vmem:[%s2 + $0xbc] sm:$0xf]
    %v349 = vld [vmem:[%s3] sm:$0x7]
    %v351 = vperm.slane %v349, 0
    %v352 = vperm.slane %v349, 1
    %v353 = vperm.slane %v349, 2
    %v389 = vunpack.c.l.b16 %v317
    %v390 = vunpack.c.h.b16 %v317
    %v391 = vunpack.c.l.b16 %v318
    %v392 = vunpack.c.l.b16 %v319
    %v393 = vunpack.c.h.b16 %v319
    %v394 = vunpack.c.l.b16 %v320
    %v395 = vunpack.c.l.b16 %v321
    %v396 = vunpack.c.h.b16 %v321
    %v397 = vunpack.c.l.b16 %v322
    %v398 = vunpack.c.l.b16 %v323
    %v399 = vunpack.c.h.b16 %v323
    %v400 = vunpack.c.l.b16 %v324
    %v401 = vunpack.c.l.b16 %v325
    %v402 = vunpack.c.h.b16 %v325
    %v403 = vunpack.c.l.b16 %v326
    %v404 = vunpack.c.l.b16 %v327
    %v405 = vunpack.c.h.b16 %v327
    %v406 = vunpack.c.l.b16 %v328
    %v407 = vunpack.c.l.b16 %v329
    %v408 = vunpack.c.h.b16 %v329
    %v409 = vunpack.c.l.b16 %v330
    %v410 = vunpack.c.l.b16 %v331
    %v411 = vunpack.c.h.b16 %v331
    %v412 = vunpack.c.l.b16 %v332
    %v413 = vunpack.c.l.b16 %v333
    %v414 = vunpack.c.h.b16 %v333
    %v415 = vunpack.c.l.b16 %v334
    %v416 = vunpack.c.l.b16 %v335
    %v417 = vunpack.c.h.b16 %v335
    %v418 = vunpack.c.l.b16 %v336
    %v419 = vunpack.c.l.b16 %v337
    %v420 = vunpack.c.h.b16 %v337
    %v421 = vunpack.c.l.b16 %v338
    %v422 = vunpack.c.l.b16 %v339
    %v423 = vunpack.c.h.b16 %v339
    %v424 = vunpack.c.l.b16 %v340
    %v425 = vunpack.c.l.b16 %v341
    %v426 = vunpack.c.h.b16 %v341
    %v427 = vunpack.c.l.b16 %v342
    %v428 = vunpack.c.l.b16 %v343
    %v429 = vunpack.c.h.b16 %v343
    %v430 = vunpack.c.l.b16 %v344
    %v431 = vunpack.c.l.b16 %v345
    %v432 = vunpack.c.h.b16 %v345
    %v433 = vunpack.c.l.b16 %v346
    %v434 = vunpack.c.l.b16 %v347
    %v435 = vunpack.c.h.b16 %v347
    %v436 = vunpack.c.l.b16 %v348
    %v437 = vpack.c.b16 %v392, %v389
    %v438 = vpack.c.b16 %v393, %v390
    %v439 = vpack.c.b16 %v394, %v391
    %v440 = vpack.c.b16 %v398, %v395
    %v441 = vpack.c.b16 %v399, %v396
    %v442 = vpack.c.b16 %v400, %v397
    %v443 = vpack.c.b16 %v404, %v401
    %v444 = vpack.c.b16 %v405, %v402
    %v445 = vpack.c.b16 %v406, %v403
    %v446 = vpack.c.b16 %v410, %v407
    %v447 = vpack.c.b16 %v411, %v408
    %v448 = vpack.c.b16 %v412, %v409
    %v449 = vpack.c.b16 %v416, %v413
    %v450 = vpack.c.b16 %v417, %v414
    %v451 = vpack.c.b16 %v418, %v415
    %v452 = vpack.c.b16 %v422, %v419
    %v453 = vpack.c.b16 %v423, %v420
    %v454 = vpack.c.b16 %v424, %v421
    %v455 = vpack.c.b16 %v428, %v425
    %v456 = vpack.c.b16 %v429, %v426
    %v457 = vpack.c.b16 %v430, %v427
    %v458 = vpack.c.b16 %v434, %v431
    %v459 = vpack.c.b16 %v435, %v432
    %v460 = vpack.c.b16 %v436, %v433
    %485 = vmatpush.bf16.msra.mxu0 %v458
    %486 = vmatpush.bf16.msra.mxu0 %v455
    %487 = vmatpush.bf16.msra.mxu0 %v452
    %488 = vmatpush.bf16.msra.mxu0 %v449
    %489 = vmatpush.bf16.msra.mxu0 %v446
    %490 = vmatpush.bf16.msra.mxu0 %v443
    %491 = vmatpush.bf16.msra.mxu0 %v440
    %492 = vmatpush.bf16.msra.mxu0 %v437
    %493 = vmatmul.bf16.gmra.mxu0 %v316
    %v494 = vpop.f32.mrf.mxu0
    %v495 = vadd.f32 %v351, %v494
    %v496 = vpop.f32.mrf.mxu0
    %v497 = vadd.f32 %v351, %v496
    %498 = vdwg.mxu0
    %499 = vmatpush.bf16.msra.mxu0 %v459
    %500 = vmatpush.bf16.msra.mxu0 %v456
    %501 = vmatpush.bf16.msra.mxu0 %v453
    %502 = vmatpush.bf16.msra.mxu0 %v450
    %503 = vmatpush.bf16.msra.mxu0 %v447
    %504 = vmatpush.bf16.msra.mxu0 %v444
    %505 = vmatpush.bf16.msra.mxu0 %v441
    %506 = vmatpush.bf16.msra.mxu0 %v438
    %507 = vmatmul.bf16.gmra.mxu0 %v316
    %v508 = vpop.f32.mrf.mxu0
    %v509 = vadd.f32 %v352, %v508
    %v510 = vpop.f32.mrf.mxu0
    %v511 = vadd.f32 %v352, %v510
    %512 = vdwg.mxu0
    %513 = vmatpush.bf16.msra.mxu0 %v460
    %514 = vmatpush.bf16.msra.mxu0 %v457
    %515 = vmatpush.bf16.msra.mxu0 %v454
    %516 = vmatpush.bf16.msra.mxu0 %v451
    %517 = vmatpush.bf16.msra.mxu0 %v448
    %518 = vmatpush.bf16.msra.mxu0 %v445
    %519 = vmatpush.bf16.msra.mxu0 %v442
    %520 = vmatpush.bf16.msra.mxu0 %v439
    %521 = vmatmul.bf16.gmra.mxu0 %v316
    %v522 = vpop.f32.mrf.mxu0
    %v523 = vadd.f32 %v353, %v522
    %v524 = vpop.f32.mrf.mxu0
    %v525 = vadd.f32 %v353, %v524
    %526 = vdwg.mxu0
    %v527 = vpack.c.bf16 %v495, %v495
    %v528 = vpack.c.bf16 %v497, %v497
    %v529 = vpack.c.bf16 %v509, %v509
    %v530 = vpack.c.bf16 %v511, %v511
    %v531 = vpack.c.bf16 %v523, %v523
    %v532 = vpack.c.bf16 %v525, %v525
    %vm533 = vcmask 261120
    %v535 = vsel %vm533, %v527, 0
    %v538 = vsel %vm533, %v529, 0
    %540 = vmatpush.bf16.xpose.msra.mxu0 0
    %541 = vmatpush.bf16.xpose.msra.mxu0 0
    %542 = vmatpush.bf16.xpose.msra.mxu0 0
    %543 = vmatpush.bf16.xpose.msra.mxu0 0
    %544 = vmatpush.bf16.xpose.msra.mxu0 0
    %545 = vmatpush.bf16.xpose.msra.mxu0 0
    %546 = vmatpush.bf16.xpose.msra.mxu0 0
    %547 = vmatpush.bf16.xpose.msra.mxu0 %v538
    %548 = vmatmul.bf16.gmra.mxu0 %v535
    %v549 = vpop.f32.mrf.mxu0
    %v550 = vadd.f32 0.0, %v549
    %v551 = vpop.f32.mrf.mxu0
    %552 = vdwg.mxu0
    %v554 = vsel %vm533, %v528, 0
    %v557 = vsel %vm533, %v530, 0
    %559 = vmatpush.bf16.xpose.msra.mxu0 0
    %560 = vmatpush.bf16.xpose.msra.mxu0 0
    %561 = vmatpush.bf16.xpose.msra.mxu0 0
    %562 = vmatpush.bf16.xpose.msra.mxu0 0
    %563 = vmatpush.bf16.xpose.msra.mxu0 0
    %564 = vmatpush.bf16.xpose.msra.mxu0 0
    %565 = vmatpush.bf16.xpose.msra.mxu0 0
    %566 = vmatpush.bf16.xpose.msra.mxu0 %v557
    %567 = vmatmul.bf16.gmra.mxu0 %v554
    %v568 = vpop.f32.mrf.mxu0
    %v569 = vadd.f32 0.0, %v568
    %v570 = vpop.f32.mrf.mxu0
    %571 = vdwg.mxu0
    %v572 = vmul.f32 %v550, 0.17677669
    %v573 = vmul.f32 %v569, 0.17677669
    %vm574 = vcmask 64512
    %v575 = vsel %vm574, %v572, -inf
    %576 = vmax.xlane.f32.xlu0 %v575
    %v577 = vpop.xlane.xlu0 %576
    %v578 = vsel %vm574, %v573, -inf
    %579 = vmax.xlane.f32.xlu0 %v578
    %v580 = vpop.xlane.xlu0 %579
    %v581 = vsub.f32 %v572, %v577
    %v582 = vsub.f32 %v573, %v580
    %v583 = vmul.f32 %v581, 1.442695
    %v584 = vpow.pop %v583
    %v585 = vmul.f32 %v582, 1.442695
    %v586 = vpow.pop %v585
    %v587 = vsel %vm574, %v584, 0.0
    %588 = vadd.xlane.f32.xlu0 %v587
    %v589 = vpop.xlane.xlu0 %588
    %v590 = vsel %vm574, %v586, 0.0
    %591 = vadd.xlane.f32.xlu0 %v590
    %v592 = vpop.xlane.xlu0 %591
    %v593 = vrcp.pop %v589
    %v594 = vrcp.pop %v592
    %v595 = vmul.f32 %v584, %v593
    %v596 = vmul.f32 %v586, %v594
    %v597 = vpack.c.bf16 %v595, %v595
    %v598 = vpack.c.bf16 %v596, %v596
    %v600 = vsel %vm574, %v597, 0
    %vm602 = vcmask 1043456
    %v604 = vsel %vm602, %v531, 0
    %606 = vmatpush.bf16.msra.mxu0 0
    %607 = vmatpush.bf16.msra.mxu0 0
    %608 = vmatpush.bf16.msra.mxu0 0
    %609 = vmatpush.bf16.msra.mxu0 0
    %610 = vmatpush.bf16.msra.mxu0 0
    %611 = vmatpush.bf16.msra.mxu0 0
    %612 = vmatpush.bf16.msra.mxu0 0
    %613 = vmatpush.bf16.msra.mxu0 %v604
    %614 = vmatmul.bf16.gmra.mxu0 %v600
    %v615 = vpop.f32.mrf.mxu0
    %v616 = vadd.f32 0.0, %v615
    %v617 = vpop.f32.mrf.mxu0
    %618 = vdwg.mxu0
    %v620 = vsel %vm574, %v598, 0
    %v623 = vsel %vm602, %v532, 0
    %625 = vmatpush.bf16.msra.mxu0 0
    %626 = vmatpush.bf16.msra.mxu0 0
    %627 = vmatpush.bf16.msra.mxu0 0
    %628 = vmatpush.bf16.msra.mxu0 0
    %629 = vmatpush.bf16.msra.mxu0 0
    %630 = vmatpush.bf16.msra.mxu0 0
    %631 = vmatpush.bf16.msra.mxu0 0
    %632 = vmatpush.bf16.msra.mxu0 %v623
    %633 = vmatmul.bf16.gmra.mxu0 %v620
    %v634 = vpop.f32.mrf.mxu0
    %v635 = vadd.f32 0.0, %v634
    %v636 = vpop.f32.mrf.mxu0
    %637 = vdwg.mxu0
    %v639 = vunpack.c.l.b16 %v527
    %v640 = vpack.c.b16 %v639, %v639
    %641 = vrot.lane.b32.xlu0 %v640, 96
    %v642 = vpop.permute.xlu0 %641
    %v644 = vunpack.c.l.b16 %v529
    %v645 = vpack.c.b16 %v644, %v644
    %646 = vrot.lane.b32.xlu0 %v645, 96
    %v647 = vpop.permute.xlu0 %646
    %v649 = vsel %vm533, %v642, 0
    %v652 = vsel %vm533, %v647, 0
    %654 = vmatpush.bf16.xpose.msra.mxu0 0
    %655 = vmatpush.bf16.xpose.msra.mxu0 0
    %656 = vmatpush.bf16.xpose.msra.mxu0 0
    %657 = vmatpush.bf16.xpose.msra.mxu0 0
    %658 = vmatpush.bf16.xpose.msra.mxu0 0
    %659 = vmatpush.bf16.xpose.msra.mxu0 0
    %660 = vmatpush.bf16.xpose.msra.mxu0 0
    %661 = vmatpush.bf16.xpose.msra.mxu0 %v652
    %662 = vmatmul.bf16.gmra.mxu0 %v649
    %v663 = vpop.f32.mrf.mxu0
    %v664 = vadd.f32 0.0, %v663
    %v665 = vpop.f32.mrf.mxu0
    %666 = vdwg.mxu0
    %v668 = vunpack.c.l.b16 %v528
    %v669 = vpack.c.b16 %v668, %v668
    %670 = vrot.lane.b32.xlu0 %v669, 96
    %v671 = vpop.permute.xlu0 %670
    %v673 = vunpack.c.l.b16 %v530
    %v674 = vpack.c.b16 %v673, %v673
    %675 = vrot.lane.b32.xlu0 %v674, 96
    %v676 = vpop.permute.xlu0 %675
    %v678 = vsel %vm533, %v671, 0
    %v681 = vsel %vm533, %v676, 0
    %683 = vmatpush.bf16.xpose.msra.mxu0 0
    %684 = vmatpush.bf16.xpose.msra.mxu0 0
    %685 = vmatpush.bf16.xpose.msra.mxu0 0
    %686 = vmatpush.bf16.xpose.msra.mxu0 0
    %687 = vmatpush.bf16.xpose.msra.mxu0 0
    %688 = vmatpush.bf16.xpose.msra.mxu0 0
    %689 = vmatpush.bf16.xpose.msra.mxu0 0
    %690 = vmatpush.bf16.xpose.msra.mxu0 %v681
    %691 = vmatmul.bf16.gmra.mxu0 %v678
    %v692 = vpop.f32.mrf.mxu0
    %v693 = vadd.f32 0.0, %v692
    %v694 = vpop.f32.mrf.mxu0
    %695 = vdwg.mxu0
    %v696 = vmul.f32 %v664, 0.17677669
    %v697 = vmul.f32 %v693, 0.17677669
    %v698 = vsel %vm574, %v696, -inf
    %699 = vmax.xlane.f32.xlu0 %v698
    %v700 = vpop.xlane.xlu0 %699
    %v701 = vsel %vm574, %v697, -inf
    %702 = vmax.xlane.f32.xlu0 %v701
    %v703 = vpop.xlane.xlu0 %702
    %v704 = vsub.f32 %v696, %v700
    %v705 = vsub.f32 %v697, %v703
    %v706 = vmul.f32 %v704, 1.442695
    %v707 = vpow.pop %v706
    %v708 = vmul.f32 %v705, 1.442695
    %v709 = vpow.pop %v708
    %v710 = vsel %vm574, %v707, 0.0
    %711 = vadd.xlane.f32.xlu0 %v710
    %v712 = vpop.xlane.xlu0 %711
    %v713 = vsel %vm574, %v709, 0.0
    %714 = vadd.xlane.f32.xlu0 %v713
    %v715 = vpop.xlane.xlu0 %714
    %v716 = vrcp.pop %v712
    %v717 = vrcp.pop %v715
    %v718 = vmul.f32 %v707, %v716
    %v719 = vmul.f32 %v709, %v717
    %v720 = vpack.c.bf16 %v718, %v718
    %v721 = vpack.c.bf16 %v719, %v719
    %v723 = vunpack.c.l.b16 %v531
    %v724 = vpack.c.b16 %v723, %v723
    %725 = vrot.lane.b32.xlu0 %v724, 96
    %v726 = vpop.permute.xlu0 %725
    %v728 = vsel %vm574, %v720, 0
    %v731 = vsel %vm602, %v726, 0
    %733 = vmatpush.bf16.msra.mxu0 0
    %734 = vmatpush.bf16.msra.mxu0 0
    %735 = vmatpush.bf16.msra.mxu0 0
    %736 = vmatpush.bf16.msra.mxu0 0
    %737 = vmatpush.bf16.msra.mxu0 0
    %738 = vmatpush.bf16.msra.mxu0 0
    %739 = vmatpush.bf16.msra.mxu0 0
    %740 = vmatpush.bf16.msra.mxu0 %v731
    %741 = vmatmul.bf16.gmra.mxu0 %v728
    %v742 = vpop.f32.mrf.mxu0
    %v743 = vadd.f32 0.0, %v742
    %v744 = vpop.f32.mrf.mxu0
    %745 = vdwg.mxu0
    %v747 = vunpack.c.l.b16 %v532
    %v748 = vpack.c.b16 %v747, %v747
    %749 = vrot.lane.b32.xlu0 %v748, 96
    %v750 = vpop.permute.xlu0 %749
    %v752 = vsel %vm574, %v721, 0
    %v755 = vsel %vm602, %v750, 0
    %757 = vmatpush.bf16.msra.mxu0 0
    %758 = vmatpush.bf16.msra.mxu0 0
    %759 = vmatpush.bf16.msra.mxu0 0
    %760 = vmatpush.bf16.msra.mxu0 0
    %761 = vmatpush.bf16.msra.mxu0 0
    %762 = vmatpush.bf16.msra.mxu0 0
    %763 = vmatpush.bf16.msra.mxu0 0
    %764 = vmatpush.bf16.msra.mxu0 %v755
    %765 = vmatmul.bf16.gmra.mxu0 %v752
    %v766 = vpop.f32.mrf.mxu0
    %v767 = vadd.f32 0.0, %v766
    %v768 = vpop.f32.mrf.mxu0
    %769 = vdwg.mxu0
    %770 = vrot.lane.b32.xlu0 %v640, 64
    %v771 = vpop.permute.xlu0 %770
    %772 = vrot.lane.b32.xlu0 %v645, 64
    %v773 = vpop.permute.xlu0 %772
    %v775 = vsel %vm533, %v771, 0
    %v778 = vsel %vm533, %v773, 0
    %780 = vmatpush.bf16.xpose.msra.mxu0 0
    %781 = vmatpush.bf16.xpose.msra.mxu0 0
    %782 = vmatpush.bf16.xpose.msra.mxu0 0
    %783 = vmatpush.bf16.xpose.msra.mxu0 0
    %784 = vmatpush.bf16.xpose.msra.mxu0 0
    %785 = vmatpush.bf16.xpose.msra.mxu0 0
    %786 = vmatpush.bf16.xpose.msra.mxu0 0
    %787 = vmatpush.bf16.xpose.msra.mxu0 %v778
    %788 = vmatmul.bf16.gmra.mxu0 %v775
    %v789 = vpop.f32.mrf.mxu0
    %v790 = vadd.f32 0.0, %v789
    %v791 = vpop.f32.mrf.mxu0
    %792 = vdwg.mxu0
    %793 = vrot.lane.b32.xlu0 %v669, 64
    %v794 = vpop.permute.xlu0 %793
    %795 = vrot.lane.b32.xlu0 %v674, 64
    %v796 = vpop.permute.xlu0 %795
    %v798 = vsel %vm533, %v794, 0
    %v801 = vsel %vm533, %v796, 0
    %803 = vmatpush.bf16.xpose.msra.mxu0 0
    %804 = vmatpush.bf16.xpose.msra.mxu0 0
    %805 = vmatpush.bf16.xpose.msra.mxu0 0
    %806 = vmatpush.bf16.xpose.msra.mxu0 0
    %807 = vmatpush.bf16.xpose.msra.mxu0 0
    %808 = vmatpush.bf16.xpose.msra.mxu0 0
    %809 = vmatpush.bf16.xpose.msra.mxu0 0
    %810 = vmatpush.bf16.xpose.msra.mxu0 %v801
    %811 = vmatmul.bf16.gmra.mxu0 %v798
    %v812 = vpop.f32.mrf.mxu0
    %v813 = vadd.f32 0.0, %v812
    %v814 = vpop.f32.mrf.mxu0
    %815 = vdwg.mxu0
    %v816 = vmul.f32 %v790, 0.17677669
    %v817 = vmul.f32 %v813, 0.17677669
    %v818 = vsel %vm574, %v816, -inf
    %819 = vmax.xlane.f32.xlu0 %v818
    %v820 = vpop.xlane.xlu0 %819
    %v821 = vsel %vm574, %v817, -inf
    %822 = vmax.xlane.f32.xlu0 %v821
    %v823 = vpop.xlane.xlu0 %822
    %v824 = vsub.f32 %v816, %v820
    %v825 = vsub.f32 %v817, %v823
    %v826 = vmul.f32 %v824, 1.442695
    %v827 = vpow.pop %v826
    %v828 = vmul.f32 %v825, 1.442695
    %v829 = vpow.pop %v828
    %v830 = vsel %vm574, %v827, 0.0
    %831 = vadd.xlane.f32.xlu0 %v830
    %v832 = vpop.xlane.xlu0 %831
    %v833 = vsel %vm574, %v829, 0.0
    %834 = vadd.xlane.f32.xlu0 %v833
    %v835 = vpop.xlane.xlu0 %834
    %v836 = vrcp.pop %v832
    %v837 = vrcp.pop %v835
    %v838 = vmul.f32 %v827, %v836
    %v839 = vmul.f32 %v829, %v837
    %v840 = vpack.c.bf16 %v838, %v838
    %v841 = vpack.c.bf16 %v839, %v839
    %842 = vrot.lane.b32.xlu0 %v724, 64
    %v843 = vpop.permute.xlu0 %842
    %v845 = vsel %vm574, %v840, 0
    %v848 = vsel %vm602, %v843, 0
    %850 = vmatpush.bf16.msra.mxu0 0
    %851 = vmatpush.bf16.msra.mxu0 0
    %852 = vmatpush.bf16.msra.mxu0 0
    %853 = vmatpush.bf16.msra.mxu0 0
    %854 = vmatpush.bf16.msra.mxu0 0
    %855 = vmatpush.bf16.msra.mxu0 0
    %856 = vmatpush.bf16.msra.mxu0 0
    %857 = vmatpush.bf16.msra.mxu0 %v848
    %858 = vmatmul.bf16.gmra.mxu0 %v845
    %v859 = vpop.f32.mrf.mxu0
    %v860 = vadd.f32 0.0, %v859
    %v861 = vpop.f32.mrf.mxu0
    %862 = vdwg.mxu0
    %863 = vrot.lane.b32.xlu0 %v748, 64
    %v864 = vpop.permute.xlu0 %863
    %v866 = vsel %vm574, %v841, 0
    %v869 = vsel %vm602, %v864, 0
    %871 = vmatpush.bf16.msra.mxu0 0
    %872 = vmatpush.bf16.msra.mxu0 0
    %873 = vmatpush.bf16.msra.mxu0 0
    %874 = vmatpush.bf16.msra.mxu0 0
    %875 = vmatpush.bf16.msra.mxu0 0
    %876 = vmatpush.bf16.msra.mxu0 0
    %877 = vmatpush.bf16.msra.mxu0 0
    %878 = vmatpush.bf16.msra.mxu0 %v869
    %879 = vmatmul.bf16.gmra.mxu0 %v866
    %v880 = vpop.f32.mrf.mxu0
    %v881 = vadd.f32 0.0, %v880
    %v882 = vpop.f32.mrf.mxu0
    %883 = vdwg.mxu0
    %884 = vrot.lane.b32.xlu0 %v640, 32
    %v885 = vpop.permute.xlu0 %884
    %886 = vrot.lane.b32.xlu0 %v645, 32
    %v887 = vpop.permute.xlu0 %886
    %v889 = vsel %vm533, %v885, 0
    %v892 = vsel %vm533, %v887, 0
    %894 = vmatpush.bf16.xpose.msra.mxu0 0
    %895 = vmatpush.bf16.xpose.msra.mxu0 0
    %896 = vmatpush.bf16.xpose.msra.mxu0 0
    %897 = vmatpush.bf16.xpose.msra.mxu0 0
    %898 = vmatpush.bf16.xpose.msra.mxu0 0
    %899 = vmatpush.bf16.xpose.msra.mxu0 0
    %900 = vmatpush.bf16.xpose.msra.mxu0 0
    %901 = vmatpush.bf16.xpose.msra.mxu0 %v892
    %902 = vmatmul.bf16.gmra.mxu0 %v889
    %v903 = vpop.f32.mrf.mxu0
    %v904 = vadd.f32 0.0, %v903
    %v905 = vpop.f32.mrf.mxu0
    %906 = vdwg.mxu0
    %907 = vrot.lane.b32.xlu0 %v669, 32
    %v908 = vpop.permute.xlu0 %907
    %909 = vrot.lane.b32.xlu0 %v674, 32
    %v910 = vpop.permute.xlu0 %909
    %v912 = vsel %vm533, %v908, 0
    %v915 = vsel %vm533, %v910, 0
    %917 = vmatpush.bf16.xpose.msra.mxu0 0
    %918 = vmatpush.bf16.xpose.msra.mxu0 0
    %919 = vmatpush.bf16.xpose.msra.mxu0 0
    %920 = vmatpush.bf16.xpose.msra.mxu0 0
    %921 = vmatpush.bf16.xpose.msra.mxu0 0
    %922 = vmatpush.bf16.xpose.msra.mxu0 0
    %923 = vmatpush.bf16.xpose.msra.mxu0 0
    %924 = vmatpush.bf16.xpose.msra.mxu0 %v915
    %925 = vmatmul.bf16.gmra.mxu0 %v912
    %v926 = vpop.f32.mrf.mxu0
    %v927 = vadd.f32 0.0, %v926
    %v928 = vpop.f32.mrf.mxu0
    %929 = vdwg.mxu0
    %v930 = vmul.f32 %v904, 0.17677669
    %v931 = vmul.f32 %v927, 0.17677669
    %v932 = vsel %vm574, %v930, -inf
    %933 = vmax.xlane.f32.xlu0 %v932
    %v934 = vpop.xlane.xlu0 %933
    %v935 = vsel %vm574, %v931, -inf
    %936 = vmax.xlane.f32.xlu0 %v935
    %v937 = vpop.xlane.xlu0 %936
    %v938 = vsub.f32 %v930, %v934
    %v939 = vsub.f32 %v931, %v937
    %v940 = vmul.f32 %v938, 1.442695
    %v941 = vpow.pop %v940
    %v942 = vmul.f32 %v939, 1.442695
    %v943 = vpow.pop %v942
    %v944 = vsel %vm574, %v941, 0.0
    %945 = vadd.xlane.f32.xlu0 %v944
    %v946 = vpop.xlane.xlu0 %945
    %v947 = vsel %vm574, %v943, 0.0
    %948 = vadd.xlane.f32.xlu0 %v947
    %v949 = vpop.xlane.xlu0 %948
    %v950 = vrcp.pop %v946
    %v951 = vrcp.pop %v949
    %v952 = vmul.f32 %v941, %v950
    %v953 = vmul.f32 %v943, %v951
    %v954 = vpack.c.bf16 %v952, %v952
    %v955 = vpack.c.bf16 %v953, %v953
    %956 = vrot.lane.b32.xlu0 %v724, 32
    %v957 = vpop.permute.xlu0 %956
    %v959 = vsel %vm574, %v954, 0
    %v962 = vsel %vm602, %v957, 0
    %964 = vmatpush.bf16.msra.mxu0 0
    %965 = vmatpush.bf16.msra.mxu0 0
    %966 = vmatpush.bf16.msra.mxu0 0
    %967 = vmatpush.bf16.msra.mxu0 0
    %968 = vmatpush.bf16.msra.mxu0 0
    %969 = vmatpush.bf16.msra.mxu0 0
    %970 = vmatpush.bf16.msra.mxu0 0
    %971 = vmatpush.bf16.msra.mxu0 %v962
    %972 = vmatmul.bf16.gmra.mxu0 %v959
    %v973 = vpop.f32.mrf.mxu0
    %v974 = vadd.f32 0.0, %v973
    %v975 = vpop.f32.mrf.mxu0
    %976 = vdwg.mxu0
    %977 = vrot.lane.b32.xlu0 %v748, 32
    %v978 = vpop.permute.xlu0 %977
    %v980 = vsel %vm574, %v955, 0
    %v983 = vsel %vm602, %v978, 0
    %985 = vmatpush.bf16.msra.mxu0 0
    %986 = vmatpush.bf16.msra.mxu0 0
    %987 = vmatpush.bf16.msra.mxu0 0
    %988 = vmatpush.bf16.msra.mxu0 0
    %989 = vmatpush.bf16.msra.mxu0 0
    %990 = vmatpush.bf16.msra.mxu0 0
    %991 = vmatpush.bf16.msra.mxu0 0
    %992 = vmatpush.bf16.msra.mxu0 %v983
    %993 = vmatmul.bf16.gmra.mxu0 %v980
    %v994 = vpop.f32.mrf.mxu0
    %v995 = vadd.f32 0.0, %v994
    %v996 = vpop.f32.mrf.mxu0
    %997 = vdwg.mxu0
    %1000 = vrot.lane.b32.xlu0 %v743, 32
    %v1001 = vpop.permute.xlu0 %1000
    %1002 = vrot.lane.b32.xlu0 %v767, 32
    %v1003 = vpop.permute.xlu0 %1002
    %1008 = vrot.lane.b32.xlu0 %v860, 64
    %v1009 = vpop.permute.xlu0 %1008
    %1010 = vrot.lane.b32.xlu0 %v881, 64
    %v1011 = vpop.permute.xlu0 %1010
    %1016 = vrot.lane.b32.xlu0 %v974, 96
    %v1017 = vpop.permute.xlu0 %1016
    %1018 = vrot.lane.b32.xlu0 %v995, 96
    %v1019 = vpop.permute.xlu0 %1018
    %v1022 = vsel %vm533, %v616, %v1001
    %v1023 = vsel %vm533, %v635, %v1003
    %vm1024 = vcmask 523264
    %v1025 = vsel %vm1024, %v1022, %v1009
    %v1026 = vsel %vm1024, %v1023, %v1011
    %vm1027 = vcmask 785408
    %v1028 = vsel %vm1027, %v1025, %v1017
    %v1029 = vsel %vm1027, %v1026, %v1019
    %v1030 = vpack.c.bf16 %v1029, %v1028
    %v1031 = vld [vmem:[#allocation2] sm:$0xf]
    %v1032 = vld [vmem:[#allocation2 + $0x4] sm:$0xf]
    %v1033 = vld [vmem:[#allocation2 + $0x8] sm:$0xf]
    %v1034 = vld [vmem:[#allocation2 + $0xc] sm:$0xf]
    %v1035 = vld [vmem:[#allocation2 + $0x10] sm:$0xf]
    %v1036 = vld [vmem:[#allocation2 + $0x14] sm:$0xf]
    %v1037 = vld [vmem:[#allocation2 + $0x18] sm:$0xf]
    %v1038 = vld [vmem:[#allocation2 + $0x1c] sm:$0xf]
    %v1039 = vld [vmem:[#allocation2 + $0x20] sm:$0xf]
    %v1040 = vld [vmem:[#allocation2 + $0x24] sm:$0xf]
    %v1041 = vld [vmem:[#allocation2 + $0x28] sm:$0xf]
    %v1042 = vld [vmem:[#allocation2 + $0x2c] sm:$0xf]
    %v1043 = vld [vmem:[#allocation2 + $0x30] sm:$0xf]
    %v1044 = vld [vmem:[#allocation2 + $0x34] sm:$0xf]
    %v1045 = vld [vmem:[#allocation2 + $0x38] sm:$0xf]
    %v1046 = vld [vmem:[#allocation2 + $0x3c] sm:$0xf]
    %v1047 = vld [vmem:[#allocation4] sm:$0x1]
    %v1049 = vperm.slane %v1047, 0
    %v1067 = vunpack.c.l.b16 %v1031
    %v1068 = vunpack.c.l.b16 %v1032
    %v1069 = vunpack.c.l.b16 %v1033
    %v1070 = vunpack.c.l.b16 %v1034
    %v1071 = vunpack.c.l.b16 %v1035
    %v1072 = vunpack.c.l.b16 %v1036
    %v1073 = vunpack.c.l.b16 %v1037
    %v1074 = vunpack.c.l.b16 %v1038
    %v1075 = vunpack.c.l.b16 %v1039
    %v1076 = vunpack.c.l.b16 %v1040
    %v1077 = vunpack.c.l.b16 %v1041
    %v1078 = vunpack.c.l.b16 %v1042
    %v1079 = vunpack.c.l.b16 %v1043
    %v1080 = vunpack.c.l.b16 %v1044
    %v1081 = vunpack.c.l.b16 %v1045
    %v1082 = vunpack.c.l.b16 %v1046
    %v1083 = vpack.c.b16 %v1068, %v1067
    %v1084 = vpack.c.b16 %v1070, %v1069
    %v1085 = vpack.c.b16 %v1072, %v1071
    %v1086 = vpack.c.b16 %v1074, %v1073
    %v1087 = vpack.c.b16 %v1076, %v1075
    %v1088 = vpack.c.b16 %v1078, %v1077
    %v1089 = vpack.c.b16 %v1080, %v1079
    %v1090 = vpack.c.b16 %v1082, %v1081
    %1099 = vmatpush.bf16.msra.mxu0 %v1090
    %1100 = vmatpush.bf16.msra.mxu0 %v1089
    %1101 = vmatpush.bf16.msra.mxu0 %v1088
    %1102 = vmatpush.bf16.msra.mxu0 %v1087
    %1103 = vmatpush.bf16.msra.mxu0 %v1086
    %1104 = vmatpush.bf16.msra.mxu0 %v1085
    %1105 = vmatpush.bf16.msra.mxu0 %v1084
    %1106 = vmatpush.bf16.msra.mxu0 %v1083
    %1107 = vmatmul.bf16.gmra.mxu0 %v1030
    %v1108 = vpop.f32.mrf.mxu0
    %v1109 = vadd.f32 %v1049, %v1108
    %v1110 = vpop.f32.mrf.mxu0
    %v1111 = vadd.f32 %v1049, %v1110
    %1112 = vdwg.mxu0
    %v1113 = vadd.f32 %v312, %v1109
    %v1114 = vadd.f32 %v313, %v1111
    %v1115 = vld [vmem:[#allocation6] sm:$0x1]
    %v1116 = vld [vmem:[#allocation7] sm:$0x1]
    %1117 = vadd.xlane.f32.xlu0 %v1113
    %v1118 = vpop.xlane.xlu0 %1117
    %1119 = vadd.xlane.f32.xlu0 %v1114
    %v1120 = vpop.xlane.xlu0 %1119
    %v1121 = vrcp.pop 128.0
    %v1122 = vmul.f32 128.0, %v1121
    %v1123 = vsub.f32 1.0, %v1122
    %v1124 = vmul.f32 %v1121, %v1123
    %v1125 = vadd.f32 %v1121, %v1124
    %vm1126 = vweird.f32 %v1121
    %v1127 = vsel %vm1126, %v1121, %v1125
    %v1128 = vmul.f32 %v1118, %v1127
    %v1129 = vmul.f32 %v1120, %v1127
    %v1130 = vsub.f32 %v1113, %v1128
    %v1131 = vsub.f32 %v1114, %v1129
    %v1132 = vmul.f32 %v1130, %v1130
    %v1133 = vmul.f32 %v1131, %v1131
    %1134 = vadd.xlane.f32.xlu0 %v1132
    %v1135 = vpop.xlane.xlu0 %1134
    %1136 = vadd.xlane.f32.xlu0 %v1133
    %v1137 = vpop.xlane.xlu0 %1136
    %v1138 = vmul.f32 %v1135, %v1127
    %v1139 = vmul.f32 %v1137, %v1127
    %v1140 = vadd.f32 %v1138, 1e-05
    %v1141 = vadd.f32 %v1139, 1e-05
    %v1142 = vrsqrt.pop %v1140
    %v1143 = vmul.f32 %v1142, %v1140
    %v1144 = vmul.f32 %v1143, %v1142
    %v1145 = vmul.f32 0.5, %v1144
    %v1146 = vsub.f32 1.5, %v1145
    %v1147 = vmul.f32 %v1142, %v1146
    %vm1148 = vweird.f32 %v1140
    %vm1149 = vweird.f32 %v1142
    %vm1150 = vmor %vm1148, %vm1149
    %v1151 = vsel %vm1150, %v1142, %v1147
    %v1152 = vrsqrt.pop %v1141
    %v1153 = vmul.f32 %v1152, %v1141
    %v1154 = vmul.f32 %v1153, %v1152
    %v1155 = vmul.f32 0.5, %v1154
    %v1156 = vsub.f32 1.5, %v1155
    %v1157 = vmul.f32 %v1152, %v1156
    %vm1158 = vweird.f32 %v1141
    %vm1159 = vweird.f32 %v1152
    %vm1160 = vmor %vm1158, %vm1159
    %v1161 = vsel %vm1160, %v1152, %v1157
    %v1162 = vmul.f32 %v1130, %v1151
    %v1163 = vmul.f32 %v1131, %v1161
    %v1165 = vperm.slane %v1115, 0
    %v1167 = vmul.f32 %v1162, %v1165
    %v1168 = vmul.f32 %v1163, %v1165
    %v1170 = vperm.slane %v1116, 0
    %v1172 = vadd.f32 %v1167, %v1170
    %v1173 = vadd.f32 %v1168, %v1170
    %v1174 = vpack.c.bf16 %v1173, %v1172
    %v1175 = vld [vmem:[#allocation9] sm:$0xf]
    %v1176 = vld [vmem:[#allocation9 + $0x4] sm:$0xf]
    %v1177 = vld [vmem:[#allocation9 + $0x8] sm:$0xf]
    %v1178 = vld [vmem:[#allocation9 + $0xc] sm:$0xf]
    %v1179 = vld [vmem:[#allocation9 + $0x10] sm:$0xf]
    %v1180 = vld [vmem:[#allocation9 + $0x14] sm:$0xf]
    %v1181 = vld [vmem:[#allocation9 + $0x18] sm:$0xf]
    %v1182 = vld [vmem:[#allocation9 + $0x1c] sm:$0xf]
    %v1183 = vld [vmem:[#allocation9 + $0x20] sm:$0xf]
    %v1184 = vld [vmem:[#allocation9 + $0x24] sm:$0xf]
    %v1185 = vld [vmem:[#allocation9 + $0x28] sm:$0xf]
    %v1186 = vld [vmem:[#allocation9 + $0x2c] sm:$0xf]
    %v1187 = vld [vmem:[#allocation9 + $0x30] sm:$0xf]
    %v1188 = vld [vmem:[#allocation9 + $0x34] sm:$0xf]
    %v1189 = vld [vmem:[#allocation9 + $0x38] sm:$0xf]
    %v1190 = vld [vmem:[#allocation9 + $0x3c] sm:$0xf]
    %v1191 = vld [vmem:[#allocation10] sm:$0x1]
    %v1193 = vperm.slane %v1191, 0
    %v1211 = vunpack.c.l.b16 %v1175
    %v1212 = vunpack.c.l.b16 %v1176
    %v1213 = vunpack.c.l.b16 %v1177
    %v1214 = vunpack.c.l.b16 %v1178
    %v1215 = vunpack.c.l.b16 %v1179
    %v1216 = vunpack.c.l.b16 %v1180
    %v1217 = vunpack.c.l.b16 %v1181
    %v1218 = vunpack.c.l.b16 %v1182
    %v1219 = vunpack.c.l.b16 %v1183
    %v1220 = vunpack.c.l.b16 %v1184
    %v1221 = vunpack.c.l.b16 %v1185
    %v1222 = vunpack.c.l.b16 %v1186
    %v1223 = vunpack.c.l.b16 %v1187
    %v1224 = vunpack.c.l.b16 %v1188
    %v1225 = vunpack.c.l.b16 %v1189
    %v1226 = vunpack.c.l.b16 %v1190
    %v1227 = vpack.c.b16 %v1212, %v1211
    %v1228 = vpack.c.b16 %v1214, %v1213
    %v1229 = vpack.c.b16 %v1216, %v1215
    %v1230 = vpack.c.b16 %v1218, %v1217
    %v1231 = vpack.c.b16 %v1220, %v1219
    %v1232 = vpack.c.b16 %v1222, %v1221
    %v1233 = vpack.c.b16 %v1224, %v1223
    %v1234 = vpack.c.b16 %v1226, %v1225
    %1243 = vmatpush.bf16.msra.mxu0 %v1234
    %1244 = vmatpush.bf16.msra.mxu0 %v1233
    %1245 = vmatpush.bf16.msra.mxu0 %v1232
    %1246 = vmatpush.bf16.msra.mxu0 %v1231
    %1247 = vmatpush.bf16.msra.mxu0 %v1230
    %1248 = vmatpush.bf16.msra.mxu0 %v1229
    %1249 = vmatpush.bf16.msra.mxu0 %v1228
    %1250 = vmatpush.bf16.msra.mxu0 %v1227
    %1251 = vmatmul.bf16.gmra.mxu0 %v1174
    %v1252 = vpop.f32.mrf.mxu0
    %v1253 = vadd.f32 %v1193, %v1252
    %v1254 = vpop.f32.mrf.mxu0
    %v1255 = vadd.f32 %v1193, %v1254
    %1256 = vdwg.mxu0
    %v1257 = vpack.c.bf16 %v315, %v314
    %v1258 = vld [vmem:[%s10] sm:$0xff]
    %v1259 = vld [vmem:[%s10 + $0x8] sm:$0xff]
    %v1260 = vld [vmem:[%s10 + $0x10] sm:$0xff]
    %v1261 = vld [vmem:[%s10 + $0x18] sm:$0xff]
    %v1262 = vld [vmem:[%s10 + $0x20] sm:$0xff]
    %v1263 = vld [vmem:[%s10 + $0x28] sm:$0xff]
    %v1264 = vld [vmem:[%s10 + $0x30] sm:$0xff]
    %v1265 = vld [vmem:[%s10 + $0x38] sm:$0xff]
    %v1266 = vld [vmem:[%s10 + $0x40] sm:$0xff]
    %v1267 = vld [vmem:[%s10 + $0x48] sm:$0xff]
    %v1268 = vld [vmem:[%s10 + $0x50] sm:$0xff]
    %v1269 = vld [vmem:[%s10 + $0x58] sm:$0xff]
    %v1270 = vld [vmem:[%s10 + $0x60] sm:$0xff]
    %v1271 = vld [vmem:[%s10 + $0x68] sm:$0xff]
    %v1272 = vld [vmem:[%s10 + $0x70] sm:$0xff]
    %v1273 = vld [vmem:[%s10 + $0x78] sm:$0xff]
    %v1274 = vld [vmem:[#allocation12] sm:$0x3]
    %v1276 = vperm.slane %v1274, 0
    %v1277 = vperm.slane %v1274, 1
    %v1296 = vunpack.c.l.b16 %v1258
    %v1297 = vunpack.c.h.b16 %v1258
    %v1298 = vunpack.c.l.b16 %v1259
    %v1299 = vunpack.c.h.b16 %v1259
    %v1300 = vunpack.c.l.b16 %v1260
    %v1301 = vunpack.c.h.b16 %v1260
    %v1302 = vunpack.c.l.b16 %v1261
    %v1303 = vunpack.c.h.b16 %v1261
    %v1304 = vunpack.c.l.b16 %v1262
    %v1305 = vunpack.c.h.b16 %v1262
    %v1306 = vunpack.c.l.b16 %v1263
    %v1307 = vunpack.c.h.b16 %v1263
    %v1308 = vunpack.c.l.b16 %v1264
    %v1309 = vunpack.c.h.b16 %v1264
    %v1310 = vunpack.c.l.b16 %v1265
    %v1311 = vunpack.c.h.b16 %v1265
    %v1312 = vunpack.c.l.b16 %v1266
    %v1313 = vunpack.c.h.b16 %v1266
    %v1314 = vunpack.c.l.b16 %v1267
    %v1315 = vunpack.c.h.b16 %v1267
    %v1316 = vunpack.c.l.b16 %v1268
    %v1317 = vunpack.c.h.b16 %v1268
    %v1318 = vunpack.c.l.b16 %v1269
    %v1319 = vunpack.c.h.b16 %v1269
    %v1320 = vunpack.c.l.b16 %v1270
    %v1321 = vunpack.c.h.b16 %v1270
    %v1322 = vunpack.c.l.b16 %v1271
    %v1323 = vunpack.c.h.b16 %v1271
    %v1324 = vunpack.c.l.b16 %v1272
    %v1325 = vunpack.c.h.b16 %v1272
    %v1326 = vunpack.c.l.b16 %v1273
    %v1327 = vunpack.c.h.b16 %v1273
    %v1328 = vpack.c.b16 %v1298, %v1296
    %v1329 = vpack.c.b16 %v1299, %v1297
    %v1330 = vpack.c.b16 %v1302, %v1300
    %v1331 = vpack.c.b16 %v1303, %v1301
    %v1332 = vpack.c.b16 %v1306, %v1304
    %v1333 = vpack.c.b16 %v1307, %v1305
    %v1334 = vpack.c.b16 %v1310, %v1308
    %v1335 = vpack.c.b16 %v1311, %v1309
    %v1336 = vpack.c.b16 %v1314, %v1312
    %v1337 = vpack.c.b16 %v1315, %v1313
    %v1338 = vpack.c.b16 %v1318, %v1316
    %v1339 = vpack.c.b16 %v1319, %v1317
    %v1340 = vpack.c.b16 %v1322, %v1320
    %v1341 = vpack.c.b16 %v1323, %v1321
    %v1342 = vpack.c.b16 %v1326, %v1324
    %v1343 = vpack.c.b16 %v1327, %v1325
    %1360 = vmatpush.bf16.msra.mxu0 %v1342
    %1361 = vmatpush.bf16.msra.mxu0 %v1340
    %1362 = vmatpush.bf16.msra.mxu0 %v1338
    %1363 = vmatpush.bf16.msra.mxu0 %v1336
    %1364 = vmatpush.bf16.msra.mxu0 %v1334
    %1365 = vmatpush.bf16.msra.mxu0 %v1332
    %1366 = vmatpush.bf16.msra.mxu0 %v1330
    %1367 = vmatpush.bf16.msra.mxu0 %v1328
    %1368 = vmatmul.bf16.gmra.mxu0 %v1257
    %v1369 = vpop.f32.mrf.mxu0
    %v1370 = vadd.f32 %v1276, %v1369
    %v1371 = vpop.f32.mrf.mxu0
    %v1372 = vadd.f32 %v1276, %v1371
    %1373 = vdwg.mxu0
    %1374 = vmatpush.bf16.msra.mxu0 %v1343
    %1375 = vmatpush.bf16.msra.mxu0 %v1341
    %1376 = vmatpush.bf16.msra.mxu0 %v1339
    %1377 = vmatpush.bf16.msra.mxu0 %v1337
    %1378 = vmatpush.bf16.msra.mxu0 %v1335
    %1379 = vmatpush.bf16.msra.mxu0 %v1333
    %1380 = vmatpush.bf16.msra.mxu0 %v1331
    %1381 = vmatpush.bf16.msra.mxu0 %v1329
    %1382 = vmatmul.bf16.gmra.mxu0 %v1257
    %v1383 = vpop.f32.mrf.mxu0
    %v1384 = vadd.f32 %v1277, %v1383
    %v1385 = vpop.f32.mrf.mxu0
    %v1386 = vadd.f32 %v1277, %v1385
    %1387 = vdwg.mxu0
    %v1388 = vpack.c.bf16 %v1253, %v1253
    %v1389 = vpack.c.bf16 %v1255, %v1255
    %v1390 = vpack.c.bf16 %v1370, %v1370
    %v1391 = vpack.c.bf16 %v1372, %v1372
    %v1392 = vpack.c.bf16 %v1384, %v1384
    %v1393 = vpack.c.bf16 %v1386, %v1386
    %v1395 = vsel %vm533, %v1388, 0
    %v1398 = vsel %vm533, %v1390, 0
    %1400 = vmatpush.bf16.xpose.msra.mxu0 0
    %1401 = vmatpush.bf16.xpose.msra.mxu0 0
    %1402 = vmatpush.bf16.xpose.msra.mxu0 0
    %1403 = vmatpush.bf16.xpose.msra.mxu0 0
    %1404 = vmatpush.bf16.xpose.msra.mxu0 0
    %1405 = vmatpush.bf16.xpose.msra.mxu0 0
    %1406 = vmatpush.bf16.xpose.msra.mxu0 0
    %1407 = vmatpush.bf16.xpose.msra.mxu0 %v1398
    %1408 = vmatmul.bf16.gmra.mxu0 %v1395
    %v1409 = vpop.f32.mrf.mxu0
    %v1410 = vadd.f32 0.0, %v1409
    %v1411 = vpop.f32.mrf.mxu0
    %1412 = vdwg.mxu0
    %v1414 = vsel %vm533, %v1389, 0
    %v1417 = vsel %vm533, %v1391, 0
    %1419 = vmatpush.bf16.xpose.msra.mxu0 0
    %1420 = vmatpush.bf16.xpose.msra.mxu0 0
    %1421 = vmatpush.bf16.xpose.msra.mxu0 0
    %1422 = vmatpush.bf16.xpose.msra.mxu0 0
    %1423 = vmatpush.bf16.xpose.msra.mxu0 0
    %1424 = vmatpush.bf16.xpose.msra.mxu0 0
    %1425 = vmatpush.bf16.xpose.msra.mxu0 0
    %1426 = vmatpush.bf16.xpose.msra.mxu0 %v1417
    %1427 = vmatmul.bf16.gmra.mxu0 %v1414
    %v1428 = vpop.f32.mrf.mxu0
    %v1429 = vadd.f32 0.0, %v1428
    %v1430 = vpop.f32.mrf.mxu0
    %1431 = vdwg.mxu0
    %v1432 = vmul.f32 %v1410, 0.17677669
    %v1433 = vmul.f32 %v1429, 0.17677669
    %v1434 = vsel %vm574, %v1432, -inf
    %1435 = vmax.xlane.f32.xlu0 %v1434
    %v1436 = vpop.xlane.xlu0 %1435
    %v1437 = vsel %vm574, %v1433, -inf
    %1438 = vmax.xlane.f32.xlu0 %v1437
    %v1439 = vpop.xlane.xlu0 %1438
    %v1440 = vsub.f32 %v1432, %v1436
    %v1441 = vsub.f32 %v1433, %v1439
    %v1442 = vmul.f32 %v1440, 1.442695
    %v1443 = vpow.pop %v1442
    %v1444 = vmul.f32 %v1441, 1.442695
    %v1445 = vpow.pop %v1444
    %v1446 = vsel %vm574, %v1443, 0.0
    %1447 = vadd.xlane.f32.xlu0 %v1446
    %v1448 = vpop.xlane.xlu0 %1447
    %v1449 = vsel %vm574, %v1445, 0.0
    %1450 = vadd.xlane.f32.xlu0 %v1449
    %v1451 = vpop.xlane.xlu0 %1450
    %v1452 = vrcp.pop %v1448
    %v1453 = vrcp.pop %v1451
    %v1454 = vmul.f32 %v1443, %v1452
    %v1455 = vmul.f32 %v1445, %v1453
    %v1456 = vpack.c.bf16 %v1454, %v1454
    %v1457 = vpack.c.bf16 %v1455, %v1455
    %v1459 = vsel %vm574, %v1456, 0
    %v1462 = vsel %vm602, %v1392, 0
    %1464 = vmatpush.bf16.msra.mxu0 0
    %1465 = vmatpush.bf16.msra.mxu0 0
    %1466 = vmatpush.bf16.msra.mxu0 0
    %1467 = vmatpush.bf16.msra.mxu0 0
    %1468 = vmatpush.bf16.msra.mxu0 0
    %1469 = vmatpush.bf16.msra.mxu0 0
    %1470 = vmatpush.bf16.msra.mxu0 0
    %1471 = vmatpush.bf16.msra.mxu0 %v1462
    %1472 = vmatmul.bf16.gmra.mxu0 %v1459
    %v1473 = vpop.f32.mrf.mxu0
    %v1474 = vadd.f32 0.0, %v1473
    %v1475 = vpop.f32.mrf.mxu0
    %1476 = vdwg.mxu0
    %v1478 = vsel %vm574, %v1457, 0
    %v1481 = vsel %vm602, %v1393, 0
    %1483 = vmatpush.bf16.msra.mxu0 0
    %1484 = vmatpush.bf16.msra.mxu0 0
    %1485 = vmatpush.bf16.msra.mxu0 0
    %1486 = vmatpush.bf16.msra.mxu0 0
    %1487 = vmatpush.bf16.msra.mxu0 0
    %1488 = vmatpush.bf16.msra.mxu0 0
    %1489 = vmatpush.bf16.msra.mxu0 0
    %1490 = vmatpush.bf16.msra.mxu0 %v1481
    %1491 = vmatmul.bf16.gmra.mxu0 %v1478
    %v1492 = vpop.f32.mrf.mxu0
    %v1493 = vadd.f32 0.0, %v1492
    %v1494 = vpop.f32.mrf.mxu0
    %1495 = vdwg.mxu0
    %v1497 = vunpack.c.l.b16 %v1388
    %v1498 = vpack.c.b16 %v1497, %v1497
    %1499 = vrot.lane.b32.xlu0 %v1498, 96
    %v1500 = vpop.permute.xlu0 %1499
    %v1502 = vunpack.c.l.b16 %v1390
    %v1503 = vpack.c.b16 %v1502, %v1502
    %1504 = vrot.lane.b32.xlu0 %v1503, 96
    %v1505 = vpop.permute.xlu0 %1504
    %v1507 = vsel %vm533, %v1500, 0
    %v1510 = vsel %vm533, %v1505, 0
    %1512 = vmatpush.bf16.xpose.msra.mxu0 0
    %1513 = vmatpush.bf16.xpose.msra.mxu0 0
    %1514 = vmatpush.bf16.xpose.msra.mxu0 0
    %1515 = vmatpush.bf16.xpose.msra.mxu0 0
    %1516 = vmatpush.bf16.xpose.msra.mxu0 0
    %1517 = vmatpush.bf16.xpose.msra.mxu0 0
    %1518 = vmatpush.bf16.xpose.msra.mxu0 0
    %1519 = vmatpush.bf16.xpose.msra.mxu0 %v1510
    %1520 = vmatmul.bf16.gmra.mxu0 %v1507
    %v1521 = vpop.f32.mrf.mxu0
    %v1522 = vadd.f32 0.0, %v1521
    %v1523 = vpop.f32.mrf.mxu0
    %1524 = vdwg.mxu0
    %v1526 = vunpack.c.l.b16 %v1389
    %v1527 = vpack.c.b16 %v1526, %v1526
    %1528 = vrot.lane.b32.xlu0 %v1527, 96
    %v1529 = vpop.permute.xlu0 %1528
    %v1531 = vunpack.c.l.b16 %v1391
    %v1532 = vpack.c.b16 %v1531, %v1531
    %1533 = vrot.lane.b32.xlu0 %v1532, 96
    %v1534 = vpop.permute.xlu0 %1533
    %v1536 = vsel %vm533, %v1529, 0
    %v1539 = vsel %vm533, %v1534, 0
    %1541 = vmatpush.bf16.xpose.msra.mxu0 0
    %1542 = vmatpush.bf16.xpose.msra.mxu0 0
    %1543 = vmatpush.bf16.xpose.msra.mxu0 0
    %1544 = vmatpush.bf16.xpose.msra.mxu0 0
    %1545 = vmatpush.bf16.xpose.msra.mxu0 0
    %1546 = vmatpush.bf16.xpose.msra.mxu0 0
    %1547 = vmatpush.bf16.xpose.msra.mxu0 0
    %1548 = vmatpush.bf16.xpose.msra.mxu0 %v1539
    %1549 = vmatmul.bf16.gmra.mxu0 %v1536
    %v1550 = vpop.f32.mrf.mxu0
    %v1551 = vadd.f32 0.0, %v1550
    %v1552 = vpop.f32.mrf.mxu0
    %1553 = vdwg.mxu0
    %v1554 = vmul.f32 %v1522, 0.17677669
    %v1555 = vmul.f32 %v1551, 0.17677669
    %v1556 = vsel %vm574, %v1554, -inf
    %1557 = vmax.xlane.f32.xlu0 %v1556
    %v1558 = vpop.xlane.xlu0 %1557
    %v1559 = vsel %vm574, %v1555, -inf
    %1560 = vmax.xlane.f32.xlu0 %v1559
    %v1561 = vpop.xlane.xlu0 %1560
    %v1562 = vsub.f32 %v1554, %v1558
    %v1563 = vsub.f32 %v1555, %v1561
    %v1564 = vmul.f32 %v1562, 1.442695
    %v1565 = vpow.pop %v1564
    %v1566 = vmul.f32 %v1563, 1.442695
    %v1567 = vpow.pop %v1566
    %v1568 = vsel %vm574, %v1565, 0.0
    %1569 = vadd.xlane.f32.xlu0 %v1568
    %v1570 = vpop.xlane.xlu0 %1569
    %v1571 = vsel %vm574, %v1567, 0.0
    %1572 = vadd.xlane.f32.xlu0 %v1571
    %v1573 = vpop.xlane.xlu0 %1572
    %v1574 = vrcp.pop %v1570
    %v1575 = vrcp.pop %v1573
    %v1576 = vmul.f32 %v1565, %v1574
    %v1577 = vmul.f32 %v1567, %v1575
    %v1578 = vpack.c.bf16 %v1576, %v1576
    %v1579 = vpack.c.bf16 %v1577, %v1577
    %v1581 = vunpack.c.l.b16 %v1392
    %v1582 = vpack.c.b16 %v1581, %v1581
    %1583 = vrot.lane.b32.xlu0 %v1582, 96
    %v1584 = vpop.permute.xlu0 %1583
    %v1586 = vsel %vm574, %v1578, 0
    %v1589 = vsel %vm602, %v1584, 0
    %1591 = vmatpush.bf16.msra.mxu0 0
    %1592 = vmatpush.bf16.msra.mxu0 0
    %1593 = vmatpush.bf16.msra.mxu0 0
    %1594 = vmatpush.bf16.msra.mxu0 0
    %1595 = vmatpush.bf16.msra.mxu0 0
    %1596 = vmatpush.bf16.msra.mxu0 0
    %1597 = vmatpush.bf16.msra.mxu0 0
    %1598 = vmatpush.bf16.msra.mxu0 %v1589
    %1599 = vmatmul.bf16.gmra.mxu0 %v1586
    %v1600 = vpop.f32.mrf.mxu0
    %v1601 = vadd.f32 0.0, %v1600
    %v1602 = vpop.f32.mrf.mxu0
    %1603 = vdwg.mxu0
    %v1605 = vunpack.c.l.b16 %v1393
    %v1606 = vpack.c.b16 %v1605, %v1605
    %1607 = vrot.lane.b32.xlu0 %v1606, 96
    %v1608 = vpop.permute.xlu0 %1607
    %v1610 = vsel %vm574, %v1579, 0
    %v1613 = vsel %vm602, %v1608, 0
    %1615 = vmatpush.bf16.msra.mxu0 0
    %1616 = vmatpush.bf16.msra.mxu0 0
    %1617 = vmatpush.bf16.msra.mxu0 0
    %1618 = vmatpush.bf16.msra.mxu0 0
    %1619 = vmatpush.bf16.msra.mxu0 0
    %1620 = vmatpush.bf16.msra.mxu0 0
    %1621 = vmatpush.bf16.msra.mxu0 0
    %1622 = vmatpush.bf16.msra.mxu0 %v1613
    %1623 = vmatmul.bf16.gmra.mxu0 %v1610
    %v1624 = vpop.f32.mrf.mxu0
    %v1625 = vadd.f32 0.0, %v1624
    %v1626 = vpop.f32.mrf.mxu0
    %1627 = vdwg.mxu0
    %1628 = vrot.lane.b32.xlu0 %v1498, 64
    %v1629 = vpop.permute.xlu0 %1628
    %1630 = vrot.lane.b32.xlu0 %v1503, 64
    %v1631 = vpop.permute.xlu0 %1630
    %v1633 = vsel %vm533, %v1629, 0
    %v1636 = vsel %vm533, %v1631, 0
    %1638 = vmatpush.bf16.xpose.msra.mxu0 0
    %1639 = vmatpush.bf16.xpose.msra.mxu0 0
    %1640 = vmatpush.bf16.xpose.msra.mxu0 0
    %1641 = vmatpush.bf16.xpose.msra.mxu0 0
    %1642 = vmatpush.bf16.xpose.msra.mxu0 0
    %1643 = vmatpush.bf16.xpose.msra.mxu0 0
    %1644 = vmatpush.bf16.xpose.msra.mxu0 0
    %1645 = vmatpush.bf16.xpose.msra.mxu0 %v1636
    %1646 = vmatmul.bf16.gmra.mxu0 %v1633
    %v1647 = vpop.f32.mrf.mxu0
    %v1648 = vadd.f32 0.0, %v1647
    %v1649 = vpop.f32.mrf.mxu0
    %1650 = vdwg.mxu0
    %1651 = vrot.lane.b32.xlu0 %v1527, 64
    %v1652 = vpop.permute.xlu0 %1651
    %1653 = vrot.lane.b32.xlu0 %v1532, 64
    %v1654 = vpop.permute.xlu0 %1653
    %v1656 = vsel %vm533, %v1652, 0
    %v1659 = vsel %vm533, %v1654, 0
    %1661 = vmatpush.bf16.xpose.msra.mxu0 0
    %1662 = vmatpush.bf16.xpose.msra.mxu0 0
    %1663 = vmatpush.bf16.xpose.msra.mxu0 0
    %1664 = vmatpush.bf16.xpose.msra.mxu0 0
    %1665 = vmatpush.bf16.xpose.msra.mxu0 0
    %1666 = vmatpush.bf16.xpose.msra.mxu0 0
    %1667 = vmatpush.bf16.xpose.msra.mxu0 0
    %1668 = vmatpush.bf16.xpose.msra.mxu0 %v1659
    %1669 = vmatmul.bf16.gmra.mxu0 %v1656
    %v1670 = vpop.f32.mrf.mxu0
    %v1671 = vadd.f32 0.0, %v1670
    %v1672 = vpop.f32.mrf.mxu0
    %1673 = vdwg.mxu0
    %v1674 = vmul.f32 %v1648, 0.17677669
    %v1675 = vmul.f32 %v1671, 0.17677669
    %v1676 = vsel %vm574, %v1674, -inf
    %1677 = vmax.xlane.f32.xlu0 %v1676
    %v1678 = vpop.xlane.xlu0 %1677
    %v1679 = vsel %vm574, %v1675, -inf
    %1680 = vmax.xlane.f32.xlu0 %v1679
    %v1681 = vpop.xlane.xlu0 %1680
    %v1682 = vsub.f32 %v1674, %v1678
    %v1683 = vsub.f32 %v1675, %v1681
    %v1684 = vmul.f32 %v1682, 1.442695
    %v1685 = vpow.pop %v1684
    %v1686 = vmul.f32 %v1683, 1.442695
    %v1687 = vpow.pop %v1686
    %v1688 = vsel %vm574, %v1685, 0.0
    %1689 = vadd.xlane.f32.xlu0 %v1688
    %v1690 = vpop.xlane.xlu0 %1689
    %v1691 = vsel %vm574, %v1687, 0.0
    %1692 = vadd.xlane.f32.xlu0 %v1691
    %v1693 = vpop.xlane.xlu0 %1692
    %v1694 = vrcp.pop %v1690
    %v1695 = vrcp.pop %v1693
    %v1696 = vmul.f32 %v1685, %v1694
    %v1697 = vmul.f32 %v1687, %v1695
    %v1698 = vpack.c.bf16 %v1696, %v1696
    %v1699 = vpack.c.bf16 %v1697, %v1697
    %1700 = vrot.lane.b32.xlu0 %v1582, 64
    %v1701 = vpop.permute.xlu0 %1700
    %v1703 = vsel %vm574, %v1698, 0
    %v1706 = vsel %vm602, %v1701, 0
    %1708 = vmatpush.bf16.msra.mxu0 0
    %1709 = vmatpush.bf16.msra.mxu0 0
    %1710 = vmatpush.bf16.msra.mxu0 0
    %1711 = vmatpush.bf16.msra.mxu0 0
    %1712 = vmatpush.bf16.msra.mxu0 0
    %1713 = vmatpush.bf16.msra.mxu0 0
    %1714 = vmatpush.bf16.msra.mxu0 0
    %1715 = vmatpush.bf16.msra.mxu0 %v1706
    %1716 = vmatmul.bf16.gmra.mxu0 %v1703
    %v1717 = vpop.f32.mrf.mxu0
    %v1718 = vadd.f32 0.0, %v1717
    %v1719 = vpop.f32.mrf.mxu0
    %1720 = vdwg.mxu0
    %1721 = vrot.lane.b32.xlu0 %v1606, 64
    %v1722 = vpop.permute.xlu0 %1721
    %v1724 = vsel %vm574, %v1699, 0
    %v1727 = vsel %vm602, %v1722, 0
    %1729 = vmatpush.bf16.msra.mxu0 0
    %1730 = vmatpush.bf16.msra.mxu0 0
    %1731 = vmatpush.bf16.msra.mxu0 0
    %1732 = vmatpush.bf16.msra.mxu0 0
    %1733 = vmatpush.bf16.msra.mxu0 0
    %1734 = vmatpush.bf16.msra.mxu0 0
    %1735 = vmatpush.bf16.msra.mxu0 0
    %1736 = vmatpush.bf16.msra.mxu0 %v1727
    %1737 = vmatmul.bf16.gmra.mxu0 %v1724
    %v1738 = vpop.f32.mrf.mxu0
    %v1739 = vadd.f32 0.0, %v1738
    %v1740 = vpop.f32.mrf.mxu0
    %1741 = vdwg.mxu0
    %1742 = vrot.lane.b32.xlu0 %v1498, 32
    %v1743 = vpop.permute.xlu0 %1742
    %1744 = vrot.lane.b32.xlu0 %v1503, 32
    %v1745 = vpop.permute.xlu0 %1744
    %v1747 = vsel %vm533, %v1743, 0
    %v1750 = vsel %vm533, %v1745, 0
    %1752 = vmatpush.bf16.xpose.msra.mxu0 0
    %1753 = vmatpush.bf16.xpose.msra.mxu0 0
    %1754 = vmatpush.bf16.xpose.msra.mxu0 0
    %1755 = vmatpush.bf16.xpose.msra.mxu0 0
    %1756 = vmatpush.bf16.xpose.msra.mxu0 0
    %1757 = vmatpush.bf16.xpose.msra.mxu0 0
    %1758 = vmatpush.bf16.xpose.msra.mxu0 0
    %1759 = vmatpush.bf16.xpose.msra.mxu0 %v1750
    %1760 = vmatmul.bf16.gmra.mxu0 %v1747
    %v1761 = vpop.f32.mrf.mxu0
    %v1762 = vadd.f32 0.0, %v1761
    %v1763 = vpop.f32.mrf.mxu0
    %1764 = vdwg.mxu0
    %1765 = vrot.lane.b32.xlu0 %v1527, 32
    %v1766 = vpop.permute.xlu0 %1765
    %1767 = vrot.lane.b32.xlu0 %v1532, 32
    %v1768 = vpop.permute.xlu0 %1767
    %v1770 = vsel %vm533, %v1766, 0
    %v1773 = vsel %vm533, %v1768, 0
    %1775 = vmatpush.bf16.xpose.msra.mxu0 0
    %1776 = vmatpush.bf16.xpose.msra.mxu0 0
    %1777 = vmatpush.bf16.xpose.msra.mxu0 0
    %1778 = vmatpush.bf16.xpose.msra.mxu0 0
    %1779 = vmatpush.bf16.xpose.msra.mxu0 0
    %1780 = vmatpush.bf16.xpose.msra.mxu0 0
    %1781 = vmatpush.bf16.xpose.msra.mxu0 0
    %1782 = vmatpush.bf16.xpose.msra.mxu0 %v1773
    %1783 = vmatmul.bf16.gmra.mxu0 %v1770
    %v1784 = vpop.f32.mrf.mxu0
    %v1785 = vadd.f32 0.0, %v1784
    %v1786 = vpop.f32.mrf.mxu0
    %1787 = vdwg.mxu0
    %v1788 = vmul.f32 %v1762, 0.17677669
    %v1789 = vmul.f32 %v1785, 0.17677669
    %v1790 = vsel %vm574, %v1788, -inf
    %1791 = vmax.xlane.f32.xlu0 %v1790
    %v1792 = vpop.xlane.xlu0 %1791
    %v1793 = vsel %vm574, %v1789, -inf
    %1794 = vmax.xlane.f32.xlu0 %v1793
    %v1795 = vpop.xlane.xlu0 %1794
    %v1796 = vsub.f32 %v1788, %v1792
    %v1797 = vsub.f32 %v1789, %v1795
    %v1798 = vmul.f32 %v1796, 1.442695
    %v1799 = vpow.pop %v1798
    %v1800 = vmul.f32 %v1797, 1.442695
    %v1801 = vpow.pop %v1800
    %v1802 = vsel %vm574, %v1799, 0.0
    %1803 = vadd.xlane.f32.xlu0 %v1802
    %v1804 = vpop.xlane.xlu0 %1803
    %v1805 = vsel %vm574, %v1801, 0.0
    %1806 = vadd.xlane.f32.xlu0 %v1805
    %v1807 = vpop.xlane.xlu0 %1806
    %v1808 = vrcp.pop %v1804
    %v1809 = vrcp.pop %v1807
    %v1810 = vmul.f32 %v1799, %v1808
    %v1811 = vmul.f32 %v1801, %v1809
    %v1812 = vpack.c.bf16 %v1810, %v1810
    %v1813 = vpack.c.bf16 %v1811, %v1811
    %1814 = vrot.lane.b32.xlu0 %v1582, 32
    %v1815 = vpop.permute.xlu0 %1814
    %v1817 = vsel %vm574, %v1812, 0
    %v1820 = vsel %vm602, %v1815, 0
    %1822 = vmatpush.bf16.msra.mxu0 0
    %1823 = vmatpush.bf16.msra.mxu0 0
    %1824 = vmatpush.bf16.msra.mxu0 0
    %1825 = vmatpush.bf16.msra.mxu0 0
    %1826 = vmatpush.bf16.msra.mxu0 0
    %1827 = vmatpush.bf16.msra.mxu0 0
    %1828 = vmatpush.bf16.msra.mxu0 0
    %1829 = vmatpush.bf16.msra.mxu0 %v1820
    %1830 = vmatmul.bf16.gmra.mxu0 %v1817
    %v1831 = vpop.f32.mrf.mxu0
    %v1832 = vadd.f32 0.0, %v1831
    %v1833 = vpop.f32.mrf.mxu0
    %1834 = vdwg.mxu0
    %1835 = vrot.lane.b32.xlu0 %v1606, 32
    %v1836 = vpop.permute.xlu0 %1835
    %v1838 = vsel %vm574, %v1813, 0
    %v1841 = vsel %vm602, %v1836, 0
    %1843 = vmatpush.bf16.msra.mxu0 0
    %1844 = vmatpush.bf16.msra.mxu0 0
    %1845 = vmatpush.bf16.msra.mxu0 0
    %1846 = vmatpush.bf16.msra.mxu0 0
    %1847 = vmatpush.bf16.msra.mxu0 0
    %1848 = vmatpush.bf16.msra.mxu0 0
    %1849 = vmatpush.bf16.msra.mxu0 0
    %1850 = vmatpush.bf16.msra.mxu0 %v1841
    %1851 = vmatmul.bf16.gmra.mxu0 %v1838
    %v1852 = vpop.f32.mrf.mxu0
    %v1853 = vadd.f32 0.0, %v1852
    %v1854 = vpop.f32.mrf.mxu0
    %1855 = vdwg.mxu0
    %1858 = vrot.lane.b32.xlu0 %v1601, 32
    %v1859 = vpop.permute.xlu0 %1858
    %1860 = vrot.lane.b32.xlu0 %v1625, 32
    %v1861 = vpop.permute.xlu0 %1860
    %1866 = vrot.lane.b32.xlu0 %v1718, 64
    %v1867 = vpop.permute.xlu0 %1866
    %1868 = vrot.lane.b32.xlu0 %v1739, 64
    %v1869 = vpop.permute.xlu0 %1868
    %1874 = vrot.lane.b32.xlu0 %v1832, 96
    %v1875 = vpop.permute.xlu0 %1874
    %1876 = vrot.lane.b32.xlu0 %v1853, 96
    %v1877 = vpop.permute.xlu0 %1876
    %v1880 = vsel %vm533, %v1474, %v1859
    %v1881 = vsel %vm533, %v1493, %v1861
    %v1882 = vsel %vm1024, %v1880, %v1867
    %v1883 = vsel %vm1024, %v1881, %v1869
    %v1884 = vsel %vm1027, %v1882, %v1875
    %v1885 = vsel %vm1027, %v1883, %v1877
    %v1886 = vpack.c.bf16 %v1885, %v1884
    %v1887 = vld [vmem:[#allocation13] sm:$0xf]
    %v1888 = vld [vmem:[#allocation13 + $0x4] sm:$0xf]
    %v1889 = vld [vmem:[#allocation13 + $0x8] sm:$0xf]
    %v1890 = vld [vmem:[#allocation13 + $0xc] sm:$0xf]
    %v1891 = vld [vmem:[#allocation13 + $0x10] sm:$0xf]
    %v1892 = vld [vmem:[#allocation13 + $0x14] sm:$0xf]
    %v1893 = vld [vmem:[#allocation13 + $0x18] sm:$0xf]
    %v1894 = vld [vmem:[#allocation13 + $0x1c] sm:$0xf]
    %v1895 = vld [vmem:[#allocation13 + $0x20] sm:$0xf]
    %v1896 = vld [vmem:[#allocation13 + $0x24] sm:$0xf]
    %v1897 = vld [vmem:[#allocation13 + $0x28] sm:$0xf]
    %v1898 = vld [vmem:[#allocation13 + $0x2c] sm:$0xf]
    %v1899 = vld [vmem:[#allocation13 + $0x30] sm:$0xf]
    %v1900 = vld [vmem:[#allocation13 + $0x34] sm:$0xf]
    %v1901 = vld [vmem:[#allocation13 + $0x38] sm:$0xf]
    %v1902 = vld [vmem:[#allocation13 + $0x3c] sm:$0xf]
    %v1903 = vld [vmem:[#allocation15] sm:$0x1]
    %v1905 = vperm.slane %v1903, 0
    %v1923 = vunpack.c.l.b16 %v1887
    %v1924 = vunpack.c.l.b16 %v1888
    %v1925 = vunpack.c.l.b16 %v1889
    %v1926 = vunpack.c.l.b16 %v1890
    %v1927 = vunpack.c.l.b16 %v1891
    %v1928 = vunpack.c.l.b16 %v1892
    %v1929 = vunpack.c.l.b16 %v1893
    %v1930 = vunpack.c.l.b16 %v1894
    %v1931 = vunpack.c.l.b16 %v1895
    %v1932 = vunpack.c.l.b16 %v1896
    %v1933 = vunpack.c.l.b16 %v1897
    %v1934 = vunpack.c.l.b16 %v1898
    %v1935 = vunpack.c.l.b16 %v1899
    %v1936 = vunpack.c.l.b16 %v1900
    %v1937 = vunpack.c.l.b16 %v1901
    %v1938 = vunpack.c.l.b16 %v1902
    %v1939 = vpack.c.b16 %v1924, %v1923
    %v1940 = vpack.c.b16 %v1926, %v1925
    %v1941 = vpack.c.b16 %v1928, %v1927
    %v1942 = vpack.c.b16 %v1930, %v1929
    %v1943 = vpack.c.b16 %v1932, %v1931
    %v1944 = vpack.c.b16 %v1934, %v1933
    %v1945 = vpack.c.b16 %v1936, %v1935
    %v1946 = vpack.c.b16 %v1938, %v1937
    %1955 = vmatpush.bf16.msra.mxu0 %v1946
    %1956 = vmatpush.bf16.msra.mxu0 %v1945
    %1957 = vmatpush.bf16.msra.mxu0 %v1944
    %1958 = vmatpush.bf16.msra.mxu0 %v1943
    %1959 = vmatpush.bf16.msra.mxu0 %v1942
    %1960 = vmatpush.bf16.msra.mxu0 %v1941
    %1961 = vmatpush.bf16.msra.mxu0 %v1940
    %1962 = vmatpush.bf16.msra.mxu0 %v1939
    %1963 = vmatmul.bf16.gmra.mxu0 %v1886
    %v1964 = vpop.f32.mrf.mxu0
    %v1965 = vadd.f32 %v1905, %v1964
    %v1966 = vpop.f32.mrf.mxu0
    %v1967 = vadd.f32 %v1905, %v1966
    %1968 = vdwg.mxu0
    %v1969 = vadd.f32 %v1172, %v1965
    %v1970 = vadd.f32 %v1173, %v1967
    %v1971 = vld [vmem:[#allocation16] sm:$0x1]
    %v1972 = vld [vmem:[#allocation18] sm:$0x1]
    %1973 = vadd.xlane.f32.xlu0 %v1969
    %v1974 = vpop.xlane.xlu0 %1973
    %1975 = vadd.xlane.f32.xlu0 %v1970
    %v1976 = vpop.xlane.xlu0 %1975
    %v1977 = vmul.f32 %v1974, %v1127
    %v1978 = vmul.f32 %v1976, %v1127
    %v1979 = vsub.f32 %v1969, %v1977
    %v1980 = vsub.f32 %v1970, %v1978
    %v1981 = vmul.f32 %v1979, %v1979
    %v1982 = vmul.f32 %v1980, %v1980
    %1983 = vadd.xlane.f32.xlu0 %v1981
    %v1984 = vpop.xlane.xlu0 %1983
    %1985 = vadd.xlane.f32.xlu0 %v1982
    %v1986 = vpop.xlane.xlu0 %1985
    %v1987 = vmul.f32 %v1984, %v1127
    %v1988 = vmul.f32 %v1986, %v1127
    %v1989 = vadd.f32 %v1987, 1e-05
    %v1990 = vadd.f32 %v1988, 1e-05
    %v1991 = vrsqrt.pop %v1989
    %v1992 = vmul.f32 %v1991, %v1989
    %v1993 = vmul.f32 %v1992, %v1991
    %v1994 = vmul.f32 0.5, %v1993
    %v1995 = vsub.f32 1.5, %v1994
    %v1996 = vmul.f32 %v1991, %v1995
    %vm1997 = vweird.f32 %v1989
    %vm1998 = vweird.f32 %v1991
    %vm1999 = vmor %vm1997, %vm1998
    %v2000 = vsel %vm1999, %v1991, %v1996
    %v2001 = vrsqrt.pop %v1990
    %v2002 = vmul.f32 %v2001, %v1990
    %v2003 = vmul.f32 %v2002, %v2001
    %v2004 = vmul.f32 0.5, %v2003
    %v2005 = vsub.f32 1.5, %v2004
    %v2006 = vmul.f32 %v2001, %v2005
    %vm2007 = vweird.f32 %v1990
    %vm2008 = vweird.f32 %v2001
    %vm2009 = vmor %vm2007, %vm2008
    %v2010 = vsel %vm2009, %v2001, %v2006
    %v2011 = vmul.f32 %v1979, %v2000
    %v2012 = vmul.f32 %v1980, %v2010
    %v2014 = vperm.slane %v1971, 0
    %v2016 = vmul.f32 %v2011, %v2014
    %v2017 = vmul.f32 %v2012, %v2014
    %v2019 = vperm.slane %v1972, 0
    %v2021 = vadd.f32 %v2016, %v2019
    %v2022 = vadd.f32 %v2017, %v2019
    %v2023 = vpack.c.bf16 %v2022, %v2021
    %v2024 = vld [vmem:[#allocation19] sm:$0xff]
    %v2025 = vld [vmem:[#allocation19 + $0x8] sm:$0xff]
    %v2026 = vld [vmem:[#allocation19 + $0x10] sm:$0xff]
    %v2027 = vld [vmem:[#allocation19 + $0x18] sm:$0xff]
    %v2028 = vld [vmem:[#allocation19 + $0x20] sm:$0xff]
    %v2029 = vld [vmem:[#allocation19 + $0x28] sm:$0xff]
    %v2030 = vld [vmem:[#allocation19 + $0x30] sm:$0xff]
    %v2031 = vld [vmem:[#allocation19 + $0x38] sm:$0xff]
    %v2032 = vld [vmem:[#allocation19 + $0x40] sm:$0xff]
    %v2033 = vld [vmem:[#allocation19 + $0x48] sm:$0xff]
    %v2034 = vld [vmem:[#allocation19 + $0x50] sm:$0xff]
    %v2035 = vld [vmem:[#allocation19 + $0x58] sm:$0xff]
    %v2036 = vld [vmem:[#allocation19 + $0x60] sm:$0xff]
    %v2037 = vld [vmem:[#allocation19 + $0x68] sm:$0xff]
    %v2038 = vld [vmem:[#allocation19 + $0x70] sm:$0xff]
    %v2039 = vld [vmem:[#allocation19 + $0x78] sm:$0xff]
    %v2040 = vld [vmem:[#allocation21] sm:$0x3]
    %v2042 = vperm.slane %v2040, 0
    %v2043 = vperm.slane %v2040, 1
    %v2062 = vunpack.c.l.b16 %v2024
    %v2063 = vunpack.c.h.b16 %v2024
    %v2064 = vunpack.c.l.b16 %v2025
    %v2065 = vunpack.c.h.b16 %v2025
    %v2066 = vunpack.c.l.b16 %v2026
    %v2067 = vunpack.c.h.b16 %v2026
    %v2068 = vunpack.c.l.b16 %v2027
    %v2069 = vunpack.c.h.b16 %v2027
    %v2070 = vunpack.c.l.b16 %v2028
    %v2071 = vunpack.c.h.b16 %v2028
    %v2072 = vunpack.c.l.b16 %v2029
    %v2073 = vunpack.c.h.b16 %v2029
    %v2074 = vunpack.c.l.b16 %v2030
    %v2075 = vunpack.c.h.b16 %v2030
    %v2076 = vunpack.c.l.b16 %v2031
    %v2077 = vunpack.c.h.b16 %v2031
    %v2078 = vunpack.c.l.b16 %v2032
    %v2079 = vunpack.c.h.b16 %v2032
    %v2080 = vunpack.c.l.b16 %v2033
    %v2081 = vunpack.c.h.b16 %v2033
    %v2082 = vunpack.c.l.b16 %v2034
    %v2083 = vunpack.c.h.b16 %v2034
    %v2084 = vunpack.c.l.b16 %v2035
    %v2085 = vunpack.c.h.b16 %v2035
    %v2086 = vunpack.c.l.b16 %v2036
    %v2087 = vunpack.c.h.b16 %v2036
    %v2088 = vunpack.c.l.b16 %v2037
    %v2089 = vunpack.c.h.b16 %v2037
    %v2090 = vunpack.c.l.b16 %v2038
    %v2091 = vunpack.c.h.b16 %v2038
    %v2092 = vunpack.c.l.b16 %v2039
    %v2093 = vunpack.c.h.b16 %v2039
    %v2094 = vpack.c.b16 %v2064, %v2062
    %v2095 = vpack.c.b16 %v2065, %v2063
    %v2096 = vpack.c.b16 %v2068, %v2066
    %v2097 = vpack.c.b16 %v2069, %v2067
    %v2098 = vpack.c.b16 %v2072, %v2070
    %v2099 = vpack.c.b16 %v2073, %v2071
    %v2100 = vpack.c.b16 %v2076, %v2074
    %v2101 = vpack.c.b16 %v2077, %v2075
    %v2102 = vpack.c.b16 %v2080, %v2078
    %v2103 = vpack.c.b16 %v2081, %v2079
    %v2104 = vpack.c.b16 %v2084, %v2082
    %v2105 = vpack.c.b16 %v2085, %v2083
    %v2106 = vpack.c.b16 %v2088, %v2086
    %v2107 = vpack.c.b16 %v2089, %v2087
    %v2108 = vpack.c.b16 %v2092, %v2090
    %v2109 = vpack.c.b16 %v2093, %v2091
    %2126 = vmatpush.bf16.msra.mxu0 %v2108
    %2127 = vmatpush.bf16.msra.mxu0 %v2106
    %2128 = vmatpush.bf16.msra.mxu0 %v2104
    %2129 = vmatpush.bf16.msra.mxu0 %v2102
    %2130 = vmatpush.bf16.msra.mxu0 %v2100
    %2131 = vmatpush.bf16.msra.mxu0 %v2098
    %2132 = vmatpush.bf16.msra.mxu0 %v2096
    %2133 = vmatpush.bf16.msra.mxu0 %v2094
    %2134 = vmatmul.bf16.gmra.mxu0 %v2023
    %v2135 = vpop.f32.mrf.mxu0
    %v2136 = vadd.f32 %v2042, %v2135
    %v2137 = vpop.f32.mrf.mxu0
    %v2138 = vadd.f32 %v2042, %v2137
    %2139 = vdwg.mxu0
    %2140 = vmatpush.bf16.msra.mxu0 %v2109
    %2141 = vmatpush.bf16.msra.mxu0 %v2107
    %2142 = vmatpush.bf16.msra.mxu0 %v2105
    %2143 = vmatpush.bf16.msra.mxu0 %v2103
    %2144 = vmatpush.bf16.msra.mxu0 %v2101
    %2145 = vmatpush.bf16.msra.mxu0 %v2099
    %2146 = vmatpush.bf16.msra.mxu0 %v2097
    %2147 = vmatpush.bf16.msra.mxu0 %v2095
    %2148 = vmatmul.bf16.gmra.mxu0 %v2023
    %v2149 = vpop.f32.mrf.mxu0
    %v2150 = vadd.f32 %v2043, %v2149
    %v2151 = vpop.f32.mrf.mxu0
    %v2152 = vadd.f32 %v2043, %v2151
    %2153 = vdwg.mxu0
    %v2154 = vmax.f32 %v2136, 0.0
    %v2155 = vmax.f32 %v2150, 0.0
    %v2156 = vmax.f32 %v2138, 0.0
    %v2157 = vmax.f32 %v2152, 0.0
    %v2158 = vpack.c.bf16 %v2156, %v2154
    %v2159 = vpack.c.bf16 %v2157, %v2155
    %v2160 = vld [vmem:[#allocation22] sm:$0xf]
    %v2161 = vld [vmem:[#allocation22 + $0x4] sm:$0xf]
    %v2162 = vld [vmem:[#allocation22 + $0x8] sm:$0xf]
    %v2163 = vld [vmem:[#allocation22 + $0xc] sm:$0xf]
    %v2164 = vld [vmem:[#allocation22 + $0x10] sm:$0xf]
    %v2165 = vld [vmem:[#allocation22 + $0x14] sm:$0xf]
    %v2166 = vld [vmem:[#allocation22 + $0x18] sm:$0xf]
    %v2167 = vld [vmem:[#allocation22 + $0x1c] sm:$0xf]
    %v2168 = vld [vmem:[#allocation22 + $0x20] sm:$0xf]
    %v2169 = vld [vmem:[#allocation22 + $0x24] sm:$0xf]
    %v2170 = vld [vmem:[#allocation22 + $0x28] sm:$0xf]
    %v2171 = vld [vmem:[#allocation22 + $0x2c] sm:$0xf]
    %v2172 = vld [vmem:[#allocation22 + $0x30] sm:$0xf]
    %v2173 = vld [vmem:[#allocation22 + $0x34] sm:$0xf]
    %v2174 = vld [vmem:[#allocation22 + $0x38] sm:$0xf]
    %v2175 = vld [vmem:[#allocation22 + $0x3c] sm:$0xf]
    %v2176 = vld [vmem:[#allocation22 + $0x40] sm:$0xf]
    %v2177 = vld [vmem:[#allocation22 + $0x44] sm:$0xf]
    %v2178 = vld [vmem:[#allocation22 + $0x48] sm:$0xf]
    %v2179 = vld [vmem:[#allocation22 + $0x4c] sm:$0xf]
    %v2180 = vld [vmem:[#allocation22 + $0x50] sm:$0xf]
    %v2181 = vld [vmem:[#allocation22 + $0x54] sm:$0xf]
    %v2182 = vld [vmem:[#allocation22 + $0x58] sm:$0xf]
    %v2183 = vld [vmem:[#allocation22 + $0x5c] sm:$0xf]
    %v2184 = vld [vmem:[#allocation22 + $0x60] sm:$0xf]
    %v2185 = vld [vmem:[#allocation22 + $0x64] sm:$0xf]
    %v2186 = vld [vmem:[#allocation22 + $0x68] sm:$0xf]
    %v2187 = vld [vmem:[#allocation22 + $0x6c] sm:$0xf]
    %v2188 = vld [vmem:[#allocation22 + $0x70] sm:$0xf]
    %v2189 = vld [vmem:[#allocation22 + $0x74] sm:$0xf]
    %v2190 = vld [vmem:[#allocation22 + $0x78] sm:$0xf]
    %v2191 = vld [vmem:[#allocation22 + $0x7c] sm:$0xf]
    %v2192 = vld [vmem:[#allocation24] sm:$0x1]
    %v2194 = vperm.slane %v2192, 0
    %v2228 = vunpack.c.l.b16 %v2160
    %v2229 = vunpack.c.l.b16 %v2161
    %v2230 = vunpack.c.l.b16 %v2162
    %v2231 = vunpack.c.l.b16 %v2163
    %v2232 = vunpack.c.l.b16 %v2164
    %v2233 = vunpack.c.l.b16 %v2165
    %v2234 = vunpack.c.l.b16 %v2166
    %v2235 = vunpack.c.l.b16 %v2167
    %v2236 = vunpack.c.l.b16 %v2168
    %v2237 = vunpack.c.l.b16 %v2169
    %v2238 = vunpack.c.l.b16 %v2170
    %v2239 = vunpack.c.l.b16 %v2171
    %v2240 = vunpack.c.l.b16 %v2172
    %v2241 = vunpack.c.l.b16 %v2173
    %v2242 = vunpack.c.l.b16 %v2174
    %v2243 = vunpack.c.l.b16 %v2175
    %v2244 = vunpack.c.l.b16 %v2176
    %v2245 = vunpack.c.l.b16 %v2177
    %v2246 = vunpack.c.l.b16 %v2178
    %v2247 = vunpack.c.l.b16 %v2179
    %v2248 = vunpack.c.l.b16 %v2180
    %v2249 = vunpack.c.l.b16 %v2181
    %v2250 = vunpack.c.l.b16 %v2182
    %v2251 = vunpack.c.l.b16 %v2183
    %v2252 = vunpack.c.l.b16 %v2184
    %v2253 = vunpack.c.l.b16 %v2185
    %v2254 = vunpack.c.l.b16 %v2186
    %v2255 = vunpack.c.l.b16 %v2187
    %v2256 = vunpack.c.l.b16 %v2188
    %v2257 = vunpack.c.l.b16 %v2189
    %v2258 = vunpack.c.l.b16 %v2190
    %v2259 = vunpack.c.l.b16 %v2191
    %v2260 = vpack.c.b16 %v2229, %v2228
    %v2261 = vpack.c.b16 %v2231, %v2230
    %v2262 = vpack.c.b16 %v2233, %v2232
    %v2263 = vpack.c.b16 %v2235, %v2234
    %v2264 = vpack.c.b16 %v2237, %v2236
    %v2265 = vpack.c.b16 %v2239, %v2238
    %v2266 = vpack.c.b16 %v2241, %v2240
    %v2267 = vpack.c.b16 %v2243, %v2242
    %v2268 = vpack.c.b16 %v2245, %v2244
    %v2269 = vpack.c.b16 %v2247, %v2246
    %v2270 = vpack.c.b16 %v2249, %v2248
    %v2271 = vpack.c.b16 %v2251, %v2250
    %v2272 = vpack.c.b16 %v2253, %v2252
    %v2273 = vpack.c.b16 %v2255, %v2254
    %v2274 = vpack.c.b16 %v2257, %v2256
    %v2275 = vpack.c.b16 %v2259, %v2258
    %2292 = vmatpush.bf16.msra.mxu0 %v2267
    %2293 = vmatpush.bf16.msra.mxu0 %v2266
    %2294 = vmatpush.bf16.msra.mxu0 %v2265
    %2295 = vmatpush.bf16.msra.mxu0 %v2264
    %2296 = vmatpush.bf16.msra.mxu0 %v2263
    %2297 = vmatpush.bf16.msra.mxu0 %v2262
    %2298 = vmatpush.bf16.msra.mxu0 %v2261
    %2299 = vmatpush.bf16.msra.mxu0 %v2260
    %2300 = vmatmul.bf16.gmra.mxu0 %v2158
    %v2301 = vpop.f32.mrf.mxu0
    %v2302 = vadd.f32 %v2194, %v2301
    %v2303 = vpop.f32.mrf.mxu0
    %v2304 = vadd.f32 %v2194, %v2303
    %2305 = vdwg.mxu0
    %2306 = vmatpush.bf16.msra.mxu0 %v2275
    %2307 = vmatpush.bf16.msra.mxu0 %v2274
    %2308 = vmatpush.bf16.msra.mxu0 %v2273
    %2309 = vmatpush.bf16.msra.mxu0 %v2272
    %2310 = vmatpush.bf16.msra.mxu0 %v2271
    %2311 = vmatpush.bf16.msra.mxu0 %v2270
    %2312 = vmatpush.bf16.msra.mxu0 %v2269
    %2313 = vmatpush.bf16.msra.mxu0 %v2268
    %2314 = vmatmul.bf16.gmra.mxu0 %v2159
    %v2315 = vpop.f32.mrf.mxu0
    %v2316 = vadd.f32 %v2302, %v2315
    %v2317 = vpop.f32.mrf.mxu0
    %v2318 = vadd.f32 %v2304, %v2317
    %2319 = vdwg.mxu0
    %v2320 = vadd.f32 %v2021, %v2316
    %v2321 = vadd.f32 %v2022, %v2318
    %v2322 = vld [vmem:[#allocation25] sm:$0x1]
    %v2323 = vld [vmem:[#allocation27] sm:$0x1]
    %2324 = vadd.xlane.f32.xlu0 %v2320
    %v2325 = vpop.xlane.xlu0 %2324
    %2326 = vadd.xlane.f32.xlu0 %v2321
    %v2327 = vpop.xlane.xlu0 %2326
    %v2328 = vmul.f32 %v2325, %v1127
    %v2329 = vmul.f32 %v2327, %v1127
    %v2330 = vsub.f32 %v2320, %v2328
    %v2331 = vsub.f32 %v2321, %v2329
    %v2332 = vmul.f32 %v2330, %v2330
    %v2333 = vmul.f32 %v2331, %v2331
    %2334 = vadd.xlane.f32.xlu0 %v2332
    %v2335 = vpop.xlane.xlu0 %2334
    %2336 = vadd.xlane.f32.xlu0 %v2333
    %v2337 = vpop.xlane.xlu0 %2336
    %v2338 = vmul.f32 %v2335, %v1127
    %v2339 = vmul.f32 %v2337, %v1127
    %v2340 = vadd.f32 %v2338, 1e-05
    %v2341 = vadd.f32 %v2339, 1e-05
    %v2342 = vrsqrt.pop %v2340
    %v2343 = vmul.f32 %v2342, %v2340
    %v2344 = vmul.f32 %v2343, %v2342
    %v2345 = vmul.f32 0.5, %v2344
    %v2346 = vsub.f32 1.5, %v2345
    %v2347 = vmul.f32 %v2342, %v2346
    %vm2348 = vweird.f32 %v2340
    %vm2349 = vweird.f32 %v2342
    %vm2350 = vmor %vm2348, %vm2349
    %v2351 = vsel %vm2350, %v2342, %v2347
    %v2352 = vrsqrt.pop %v2341
    %v2353 = vmul.f32 %v2352, %v2341
    %v2354 = vmul.f32 %v2353, %v2352
    %v2355 = vmul.f32 0.5, %v2354
    %v2356 = vsub.f32 1.5, %v2355
    %v2357 = vmul.f32 %v2352, %v2356
    %vm2358 = vweird.f32 %v2341
    %vm2359 = vweird.f32 %v2352
    %vm2360 = vmor %vm2358, %vm2359
    %v2361 = vsel %vm2360, %v2352, %v2357
    %v2362 = vmul.f32 %v2330, %v2351
    %v2363 = vmul.f32 %v2331, %v2361
    %v2365 = vperm.slane %v2322, 0
    %v2367 = vmul.f32 %v2362, %v2365
    %v2368 = vmul.f32 %v2363, %v2365
    %v2370 = vperm.slane %v2323, 0
    %v2372 = vadd.f32 %v2367, %v2370
    %v2373 = vadd.f32 %v2368, %v2370
    %2374 = vst [vmem:[%s22] sm:$0xff] %v2372
    %2375 = vst [vmem:[%s22 + $0x8] sm:$0xff] %v2373
    // Predicated region
    $region158: #{model_forward.9} parent=1 // pred_check
      _
    $region159: #{model_forward.9} parent=1 // pred_check_branch
      %2377 = sbr.rel (0) target = $region161
    $region160: #{model_forward.9} parent=1 // pred_region
      _
    $region161: #{model_forward.9} parent=1 // pred_fallthru
      _
    // Predicated region
    $region162: #{model_forward.9} parent=1 // pred_check
      _
    $region163: #{model_forward.9} parent=1 // pred_check_branch
      %2379 = sbr.rel (0) target = $region165
    $region164: #{model_forward.9} parent=1 // pred_region
      _
    $region165: #{model_forward.9} parent=1 // pred_fallthru
      _
    %2380 = vsyncpa [#allocation3], 1
    %2381 = vsyncpa [#allocation5], 1
    %2382 = vsyncpa [#allocation8], 1
    %2383 = vsyncpa [#allocation11], 1
    %2384 = vsyncpa [#allocation14], 1
    %2385 = vsyncpa [#allocation17], 1
    %2386 = vsyncpa [#allocation20], 1
    %2387 = vsyncpa [#allocation23], 1
    %2388 = vsyncpa [#allocation26], 1

// kernel: model_forward.10
$region0: #{model_forward.10}
  #allocation0 [shape = 'u32[]', space=smem, size = 0x4, offset = 0x4, fixed_abs, tag = 'smem constant byte address 0x4 - core index']
  #allocation1 [shape = 'u32[72,128]{1,0:T(1,128)}', space=vmem, size = 0x9000, scoped, tag = 'internal scratch']
  %s0 = inlined_call_operand.vmem [shape: f32[16,128], index: 0, kind: input, shape index: {}]
  %s1 = inlined_call_operand.vmem [shape: f32[16,128], index: 1, kind: input, shape index: {}]
  %s2 = inlined_call_operand.hbm [shape: bf16[128,384], index: 2, kind: input, shape index: {}]
  %s3 = inlined_call_operand.vmem [shape: f32[1,384], index: 3, kind: input, shape index: {}]
  %s4 = inlined_call_operand.hbm [shape: bf16[128,128], index: 4, kind: input, shape index: {}]
  %s5 = inlined_call_operand.vmem [shape: f32[1,128], index: 5, kind: input, shape index: {}]
  %s6 = inlined_call_operand.hbm [shape: f32[1,128], index: 6, kind: input, shape index: {}]
  %s7 = inlined_call_operand.hbm [shape: f32[1,128], index: 7, kind: input, shape index: {}]
  %s8 = inlined_call_operand.hbm [shape: bf16[128,128], index: 8, kind: input, shape index: {}]
  %s9 = inlined_call_operand.hbm [shape: f32[1,128], index: 9, kind: input, shape index: {}]
  %s10 = inlined_call_operand.hbm [shape: bf16[128,256], index: 10, kind: input, shape index: {}]
  %s11 = inlined_call_operand.vmem [shape: f32[1,256], index: 11, kind: input, shape index: {}]
  %s12 = inlined_call_operand.hbm [shape: bf16[128,128], index: 12, kind: input, shape index: {}]
  %s13 = inlined_call_operand.hbm [shape: f32[1,128], index: 13, kind: input, shape index: {}]
  %s14 = inlined_call_operand.hbm [shape: f32[1,128], index: 14, kind: input, shape index: {}]
  %s15 = inlined_call_operand.hbm [shape: f32[1,128], index: 15, kind: input, shape index: {}]
  %s16 = inlined_call_operand.hbm [shape: bf16[128,256], index: 16, kind: input, shape index: {}]
  %s17 = inlined_call_operand.vmem [shape: f32[1,256], index: 17, kind: input, shape index: {}]
  %s18 = inlined_call_operand.hbm [shape: bf16[256,128], index: 18, kind: input, shape index: {}]
  %s19 = inlined_call_operand.hbm [shape: f32[1,128], index: 19, kind: input, shape index: {}]
  %s20 = inlined_call_operand.hbm [shape: f32[1,128], index: 20, kind: input, shape index: {}]
  %s21 = inlined_call_operand.hbm [shape: f32[1,128], index: 21, kind: input, shape index: {}]
  %s22 = inlined_call_operand.vmem [shape: f32[16,128], index: 22, kind: output, shape index: {}]
  %s23 = sld [smem:[#allocation0]]
  $region162: #{model_forward.10} parent=0
    _
  %s25 = ssub.s32 1, %s23
  %s26 = scalar_select 0, %s25, %s23
  $region1: #{model_forward.10} parent=0
    #allocation2 [shape = 'u8[98304]{0}', space=vmem, size = 0x18000, scoped, tag = 'input window, operand 2, single buffered']
    #allocation3 [shape = 's32[1]{0}', space=sflag, size = 0x4, scoped, tag = 'scoped memory for model_forward.10']
    #allocation4 [shape = 'u8[32768]{0}', space=vmem, size = 0x8000, scoped, tag = 'input window, operand 4, single buffered']
    #allocation5 [shape = 's32[1]{0}', space=sflag, size = 0x4, scoped, tag = 'scoped memory for model_forward.10']
    #allocation6 [shape = 'u8[512]{0}', space=vmem, size = 0x400, scoped, tag = 'input window, operand 6, single buffered']
    #allocation7 [shape = 'u8[512]{0}', space=vmem, size = 0x400, scoped, tag = 'input window, operand 7, single buffered']
    #allocation8 [shape = 's32[1]{0}', space=sflag, size = 0x4, scoped, tag = 'scoped memory for model_forward.10']
    #allocation9 [shape = 'u8[32768]{0}', space=vmem, size = 0x8000, scoped, tag = 'input window, operand 8, single buffered']
    #allocation10 [shape = 'u8[512]{0}', space=vmem, size = 0x400, scoped, tag = 'input window, operand 9, single buffered']
    #allocation11 [shape = 's32[1]{0}', space=sflag, size = 0x4, scoped, tag = 'scoped memory for model_forward.10']
    #allocation12 [shape = 'u8[65536]{0}', space=vmem, size = 0x10000, scoped, tag = 'input window, operand 10, single buffered']
    #allocation13 [shape = 'u8[32768]{0}', space=vmem, size = 0x8000, scoped, tag = 'input window, operand 12, single buffered']
    #allocation14 [shape = 's32[1]{0}', space=sflag, size = 0x4, scoped, tag = 'scoped memory for model_forward.10']
    #allocation15 [shape = 'u8[512]{0}', space=vmem, size = 0x400, scoped, tag = 'input window, operand 13, single buffered']
    #allocation16 [shape = 'u8[512]{0}', space=vmem, size = 0x400, scoped, tag = 'input window, operand 14, single buffered']
    #allocation17 [shape = 's32[1]{0}', space=sflag, size = 0x4, scoped, tag = 'scoped memory for model_forward.10']
    #allocation18 [shape = 'u8[512]{0}', space=vmem, size = 0x400, scoped, tag = 'input window, operand 15, single buffered']
    #allocation19 [shape = 'u8[65536]{0}', space=vmem, size = 0x10000, scoped, tag = 'input window, operand 16, single buffered']
    #allocation20 [shape = 's32[1]{0}', space=sflag, size = 0x4, scoped, tag = 'scoped memory for model_forward.10']
    #allocation21 [shape = 'u8[65536]{0}', space=vmem, size = 0x10000, scoped, tag = 'input window, operand 18, single buffered']
    #allocation22 [shape = 'u8[512]{0}', space=vmem, size = 0x400, scoped, tag = 'input window, operand 19, single buffered']
    #allocation23 [shape = 's32[1]{0}', space=sflag, size = 0x4, scoped, tag = 'scoped memory for model_forward.10']
    #allocation24 [shape = 'u8[512]{0}', space=vmem, size = 0x400, scoped, tag = 'input window, operand 20, single buffered']
    #allocation25 [shape = 'u8[512]{0}', space=vmem, size = 0x400, scoped, tag = 'input window, operand 21, single buffered']
    #allocation26 [shape = 's32[1]{0}', space=sflag, size = 0x4, scoped, tag = 'scoped memory for model_forward.10']
    %27 = vsyncpa [#allocation3], 0
    %28 = vsyncpa [#allocation5], 0
    %29 = vsyncpa [#allocation8], 0
    %30 = vsyncpa [#allocation11], 0
    %31 = vsyncpa [#allocation14], 0
    %32 = vsyncpa [#allocation17], 0
    %33 = vsyncpa [#allocation20], 0
    %34 = vsyncpa [#allocation23], 0
    %35 = vsyncpa [#allocation26], 0
    // Predicated region
    $region2: #{model_forward.10} parent=1 // pred_check
      _
    $region3: #{model_forward.10} parent=1 // pred_check_branch
      %37 = sbr.rel (0) target = $region5
    $region4: #{model_forward.10} parent=1 // pred_region
      _
    $region5: #{model_forward.10} parent=1 // pred_fallthru
      _
    // Predicated region
    $region6: #{model_forward.10} parent=1 // pred_check
      _
    $region7: #{model_forward.10} parent=1 // pred_check_branch
      %39 = sbr.rel (0) target = $region9
    $region8: #{model_forward.10} parent=1 // pred_region
      _
    $region9: #{model_forward.10} parent=1 // pred_fallthru
      _
    // Predicated region
    $region10: #{model_forward.10} parent=1 // pred_check
      _
    $region11: #{model_forward.10} parent=1 // pred_check_branch
      %41 = sbr.rel (0) target = $region13
    $region12: #{model_forward.10} parent=1 // pred_region
      %43 = vsyncadd [#allocation3], 0
      %s44 = sshll.u32 %s2, 4
      %s45 = int_to_ptr.hbm [resolvable:$true] %s44
      %s46 = sshll.u32 [#allocation2], 4
      %s47 = int_to_ptr.vmem [resolvable:$true] %s46
      %52 = dma.hbm_to_vmem [thread:$0]  %s45, 3072, %s47, [#allocation3], 192, 192, 12
    $region13: #{model_forward.10} parent=1 // pred_fallthru
      _
    // Predicated region
    $region14: #{model_forward.10} parent=1 // pred_check
      _
    $region15: #{model_forward.10} parent=1 // pred_check_branch
      %54 = sbr.rel (0) target = $region17
    $region16: #{model_forward.10} parent=1 // pred_region
      _
    $region17: #{model_forward.10} parent=1 // pred_fallthru
      _
    // Predicated region
    $region18: #{model_forward.10} parent=1 // pred_check
      _
    $region19: #{model_forward.10} parent=1 // pred_check_branch
      %56 = sbr.rel (0) target = $region21
    $region20: #{model_forward.10} parent=1 // pred_region
      %58 = vsyncadd [#allocation5], 0
      %s59 = sshll.u32 %s4, 4
      %s60 = int_to_ptr.hbm [resolvable:$true] %s59
      %s61 = sshll.u32 [#allocation4], 4
      %s62 = int_to_ptr.vmem [resolvable:$true] %s61
      %67 = dma.hbm_to_vmem [thread:$0]  %s60, 1024, %s62, [#allocation5], 64, 64, 4
    $region21: #{model_forward.10} parent=1 // pred_fallthru
      _
    // Predicated region
    $region22: #{model_forward.10} parent=1 // pred_check
      _
    $region23: #{model_forward.10} parent=1 // pred_check_branch
      %69 = sbr.rel (0) target = $region25
    $region24: #{model_forward.10} parent=1 // pred_region
      _
    $region25: #{model_forward.10} parent=1 // pred_fallthru
      _
    // Predicated region
    $region26: #{model_forward.10} parent=1 // pred_check
      _
    $region27: #{model_forward.10} parent=1 // pred_check_branch
      %71 = sbr.rel (0) target = $region29
    $region28: #{model_forward.10} parent=1 // pred_region
      %73 = vsyncadd [#allocation5], 0
      %s75 = sshll.u32 %s6, 4
      %s76 = int_to_ptr.hbm [resolvable:$true] %s75
      %s77 = sshll.u32 [#allocation6], 4
      %s78 = int_to_ptr.vmem [resolvable:$true] %s77
      %80 = dma.hbm_to_vmem [thread:$0]  %s76, 16, %s78, [#allocation5]
    $region29: #{model_forward.10} parent=1 // pred_fallthru
      _
    // Predicated region
    $region30: #{model_forward.10} parent=1 // pred_check
      _
    $region31: #{model_forward.10} parent=1 // pred_check_branch
      %82 = sbr.rel (0) target = $region33
    $region32: #{model_forward.10} parent=1 // pred_region
      %84 = vsyncadd [#allocation8], 0
      %s86 = sshll.u32 %s7, 4
      %s87 = int_to_ptr.hbm [resolvable:$true] %s86
      %s88 = sshll.u32 [#allocation7], 4
      %s89 = int_to_ptr.vmem [resolvable:$true] %s88
      %91 = dma.hbm_to_vmem [thread:$0]  %s87, 16, %s89, [#allocation8]
    $region33: #{model_forward.10} parent=1 // pred_fallthru
      _
    // Predicated region
    $region34: #{model_forward.10} parent=1 // pred_check
      _
    $region35: #{model_forward.10} parent=1 // pred_check_branch
      %93 = sbr.rel (0) target = $region37
    $region36: #{model_forward.10} parent=1 // pred_region
      %95 = vsyncadd [#allocation8], 0
      %s96 = sshll.u32 %s8, 4
      %s97 = int_to_ptr.hbm [resolvable:$true] %s96
      %s98 = sshll.u32 [#allocation9], 4
      %s99 = int_to_ptr.vmem [resolvable:$true] %s98
      %104 = dma.hbm_to_vmem [thread:$0]  %s97, 1024, %s99, [#allocation8], 64, 64, 4
    $region37: #{model_forward.10} parent=1 // pred_fallthru
      _
    // Predicated region
    $region38: #{model_forward.10} parent=1 // pred_check
      _
    $region39: #{model_forward.10} parent=1 // pred_check_branch
      %106 = sbr.rel (0) target = $region41
    $region40: #{model_forward.10} parent=1 // pred_region
      %108 = vsyncadd [#allocation11], 0
      %s110 = sshll.u32 %s9, 4
      %s111 = int_to_ptr.hbm [resolvable:$true] %s110
      %s112 = sshll.u32 [#allocation10], 4
      %s113 = int_to_ptr.vmem [resolvable:$true] %s112
      %115 = dma.hbm_to_vmem [thread:$0]  %s111, 16, %s113, [#allocation11]
    $region41: #{model_forward.10} parent=1 // pred_fallthru
      _
    // Predicated region
    $region42: #{model_forward.10} parent=1 // pred_check
      _
    $region43: #{model_forward.10} parent=1 // pred_check_branch
      %117 = sbr.rel (0) target = $region45
    $region44: #{model_forward.10} parent=1 // pred_region
      %119 = vsyncadd [#allocation11], 0
      %s120 = sshll.u32 %s10, 4
      %s121 = int_to_ptr.hbm [resolvable:$true] %s120
      %s122 = sshll.u32 [#allocation12], 4
      %s123 = int_to_ptr.vmem [resolvable:$true] %s122
      %128 = dma.hbm_to_vmem [thread:$0]  %s121, 2048, %s123, [#allocation11], 128, 128, 8
    $region45: #{model_forward.10} parent=1 // pred_fallthru
      _
    // Predicated region
    $region46: #{model_forward.10} parent=1 // pred_check
      _
    $region47: #{model_forward.10} parent=1 // pred_check_branch
      %130 = sbr.rel (0) target = $region49
    $region48: #{model_forward.10} parent=1 // pred_region
      _
    $region49: #{model_forward.10} parent=1 // pred_fallthru
      _
    // Predicated region
    $region50: #{model_forward.10} parent=1 // pred_check
      _
    $region51: #{model_forward.10} parent=1 // pred_check_branch
      %132 = sbr.rel (0) target = $region53
    $region52: #{model_forward.10} parent=1 // pred_region
      %134 = vsyncadd [#allocation14], 0
      %s135 = sshll.u32 %s12, 4
      %s136 = int_to_ptr.hbm [resolvable:$true] %s135
      %s137 = sshll.u32 [#allocation13], 4
      %s138 = int_to_ptr.vmem [resolvable:$true] %s137
      %143 = dma.hbm_to_vmem [thread:$0]  %s136, 1024, %s138, [#allocation14], 64, 64, 4
    $region53: #{model_forward.10} parent=1 // pred_fallthru
      _
    // Predicated region
    $region54: #{model_forward.10} parent=1 // pred_check
      _
    $region55: #{model_forward.10} parent=1 // pred_check_branch
      %145 = sbr.rel (0) target = $region57
    $region56: #{model_forward.10} parent=1 // pred_region
      %147 = vsyncadd [#allocation14], 0
      %s149 = sshll.u32 %s13, 4
      %s150 = int_to_ptr.hbm [resolvable:$true] %s149
      %s151 = sshll.u32 [#allocation15], 4
      %s152 = int_to_ptr.vmem [resolvable:$true] %s151
      %154 = dma.hbm_to_vmem [thread:$0]  %s150, 16, %s152, [#allocation14]
    $region57: #{model_forward.10} parent=1 // pred_fallthru
      _
    // Predicated region
    $region58: #{model_forward.10} parent=1 // pred_check
      _
    $region59: #{model_forward.10} parent=1 // pred_check_branch
      %156 = sbr.rel (0) target = $region61
    $region60: #{model_forward.10} parent=1 // pred_region
      %158 = vsyncadd [#allocation17], 0
      %s160 = sshll.u32 %s14, 4
      %s161 = int_to_ptr.hbm [resolvable:$true] %s160
      %s162 = sshll.u32 [#allocation16], 4
      %s163 = int_to_ptr.vmem [resolvable:$true] %s162
      %165 = dma.hbm_to_vmem [thread:$0]  %s161, 16, %s163, [#allocation17]
    $region61: #{model_forward.10} parent=1 // pred_fallthru
      _
    // Predicated region
    $region62: #{model_forward.10} parent=1 // pred_check
      _
    $region63: #{model_forward.10} parent=1 // pred_check_branch
      %167 = sbr.rel (0) target = $region65
    $region64: #{model_forward.10} parent=1 // pred_region
      %169 = vsyncadd [#allocation17], 0
      %s171 = sshll.u32 %s15, 4
      %s172 = int_to_ptr.hbm [resolvable:$true] %s171
      %s173 = sshll.u32 [#allocation18], 4
      %s174 = int_to_ptr.vmem [resolvable:$true] %s173
      %176 = dma.hbm_to_vmem [thread:$0]  %s172, 16, %s174, [#allocation17]
    $region65: #{model_forward.10} parent=1 // pred_fallthru
      _
    // Predicated region
    $region66: #{model_forward.10} parent=1 // pred_check
      _
    $region67: #{model_forward.10} parent=1 // pred_check_branch
      %178 = sbr.rel (0) target = $region69
    $region68: #{model_forward.10} parent=1 // pred_region
      %180 = vsyncadd [#allocation20], 0
      %s181 = sshll.u32 %s16, 4
      %s182 = int_to_ptr.hbm [resolvable:$true] %s181
      %s183 = sshll.u32 [#allocation19], 4
      %s184 = int_to_ptr.vmem [resolvable:$true] %s183
      %189 = dma.hbm_to_vmem [thread:$0]  %s182, 2048, %s184, [#allocation20], 128, 128, 8
    $region69: #{model_forward.10} parent=1 // pred_fallthru
      _
    // Predicated region
    $region70: #{model_forward.10} parent=1 // pred_check
      _
    $region71: #{model_forward.10} parent=1 // pred_check_branch
      %191 = sbr.rel (0) target = $region73
    $region72: #{model_forward.10} parent=1 // pred_region
      _
    $region73: #{model_forward.10} parent=1 // pred_fallthru
      _
    // Predicated region
    $region74: #{model_forward.10} parent=1 // pred_check
      _
    $region75: #{model_forward.10} parent=1 // pred_check_branch
      %193 = sbr.rel (0) target = $region77
    $region76: #{model_forward.10} parent=1 // pred_region
      %195 = vsyncadd [#allocation20], 0
      %s196 = sshll.u32 %s18, 4
      %s197 = int_to_ptr.hbm [resolvable:$true] %s196
      %s198 = sshll.u32 [#allocation21], 4
      %s199 = int_to_ptr.vmem [resolvable:$true] %s198
      %204 = dma.hbm_to_vmem [thread:$0]  %s197, 2048, %s199, [#allocation20], 64, 64, 4
    $region77: #{model_forward.10} parent=1 // pred_fallthru
      _
    // Predicated region
    $region78: #{model_forward.10} parent=1 // pred_check
      _
    $region79: #{model_forward.10} parent=1 // pred_check_branch
      %206 = sbr.rel (0) target = $region81
    $region80: #{model_forward.10} parent=1 // pred_region
      %208 = vsyncadd [#allocation23], 0
      %s210 = sshll.u32 %s19, 4
      %s211 = int_to_ptr.hbm [resolvable:$true] %s210
      %s212 = sshll.u32 [#allocation22], 4
      %s213 = int_to_ptr.vmem [resolvable:$true] %s212
      %215 = dma.hbm_to_vmem [thread:$0]  %s211, 16, %s213, [#allocation23]
    $region81: #{model_forward.10} parent=1 // pred_fallthru
      _
    // Predicated region
    $region82: #{model_forward.10} parent=1 // pred_check
      _
    $region83: #{model_forward.10} parent=1 // pred_check_branch
      %217 = sbr.rel (0) target = $region85
    $region84: #{model_forward.10} parent=1 // pred_region
      %219 = vsyncadd [#allocation23], 0
      %s221 = sshll.u32 %s20, 4
      %s222 = int_to_ptr.hbm [resolvable:$true] %s221
      %s223 = sshll.u32 [#allocation24], 4
      %s224 = int_to_ptr.vmem [resolvable:$true] %s223
      %226 = dma.hbm_to_vmem [thread:$0]  %s222, 16, %s224, [#allocation23]
    $region85: #{model_forward.10} parent=1 // pred_fallthru
      _
    // Predicated region
    $region86: #{model_forward.10} parent=1 // pred_check
      _
    $region87: #{model_forward.10} parent=1 // pred_check_branch
      %228 = sbr.rel (0) target = $region89
    $region88: #{model_forward.10} parent=1 // pred_region
      %230 = vsyncadd [#allocation26], 0
      %s232 = sshll.u32 %s21, 4
      %s233 = int_to_ptr.hbm [resolvable:$true] %s232
      %s234 = sshll.u32 [#allocation25], 4
      %s235 = int_to_ptr.vmem [resolvable:$true] %s234
      %237 = dma.hbm_to_vmem [thread:$0]  %s233, 16, %s235, [#allocation26]
    $region89: #{model_forward.10} parent=1 // pred_fallthru
      _
    // Predicated region
    $region90: #{model_forward.10} parent=1 // pred_check
      _
    $region91: #{model_forward.10} parent=1 // pred_check_branch
      %239 = sbr.rel (0) target = $region93
    $region92: #{model_forward.10} parent=1 // pred_region
      %241 = dma.done [#allocation3], 3072
    $region93: #{model_forward.10} parent=1 // pred_fallthru
      _
    // Predicated region
    $region94: #{model_forward.10} parent=1 // pred_check
      _
    $region95: #{model_forward.10} parent=1 // pred_check_branch
      %243 = sbr.rel (0) target = $region97
    $region96: #{model_forward.10} parent=1 // pred_region
      %245 = dma.done [#allocation5], 1024
    $region97: #{model_forward.10} parent=1 // pred_fallthru
      _
    // Predicated region
    $region98: #{model_forward.10} parent=1 // pred_check
      _
    $region99: #{model_forward.10} parent=1 // pred_check_branch
      %247 = sbr.rel (0) target = $region101
    $region100: #{model_forward.10} parent=1 // pred_region
      %249 = dma.done [#allocation5], 16
    $region101: #{model_forward.10} parent=1 // pred_fallthru
      _
    // Predicated region
    $region102: #{model_forward.10} parent=1 // pred_check
      _
    $region103: #{model_forward.10} parent=1 // pred_check_branch
      %251 = sbr.rel (0) target = $region105
    $region104: #{model_forward.10} parent=1 // pred_region
      %253 = dma.done [#allocation8], 16
    $region105: #{model_forward.10} parent=1 // pred_fallthru
      _
    // Predicated region
    $region106: #{model_forward.10} parent=1 // pred_check
      _
    $region107: #{model_forward.10} parent=1 // pred_check_branch
      %255 = sbr.rel (0) target = $region109
    $region108: #{model_forward.10} parent=1 // pred_region
      %257 = dma.done [#allocation8], 1024
    $region109: #{model_forward.10} parent=1 // pred_fallthru
      _
    // Predicated region
    $region110: #{model_forward.10} parent=1 // pred_check
      _
    $region111: #{model_forward.10} parent=1 // pred_check_branch
      %259 = sbr.rel (0) target = $region113
    $region112: #{model_forward.10} parent=1 // pred_region
      %261 = dma.done [#allocation11], 16
    $region113: #{model_forward.10} parent=1 // pred_fallthru
      _
    // Predicated region
    $region114: #{model_forward.10} parent=1 // pred_check
      _
    $region115: #{model_forward.10} parent=1 // pred_check_branch
      %263 = sbr.rel (0) target = $region117
    $region116: #{model_forward.10} parent=1 // pred_region
      %265 = dma.done [#allocation11], 2048
    $region117: #{model_forward.10} parent=1 // pred_fallthru
      _
    // Predicated region
    $region118: #{model_forward.10} parent=1 // pred_check
      _
    $region119: #{model_forward.10} parent=1 // pred_check_branch
      %267 = sbr.rel (0) target = $region121
    $region120: #{model_forward.10} parent=1 // pred_region
      %269 = dma.done [#allocation14], 1024
    $region121: #{model_forward.10} parent=1 // pred_fallthru
      _
    // Predicated region
    $region122: #{model_forward.10} parent=1 // pred_check
      _
    $region123: #{model_forward.10} parent=1 // pred_check_branch
      %271 = sbr.rel (0) target = $region125
    $region124: #{model_forward.10} parent=1 // pred_region
      %273 = dma.done [#allocation14], 16
    $region125: #{model_forward.10} parent=1 // pred_fallthru
      _
    // Predicated region
    $region126: #{model_forward.10} parent=1 // pred_check
      _
    $region127: #{model_forward.10} parent=1 // pred_check_branch
      %275 = sbr.rel (0) target = $region129
    $region128: #{model_forward.10} parent=1 // pred_region
      %277 = dma.done [#allocation17], 16
    $region129: #{model_forward.10} parent=1 // pred_fallthru
      _
    // Predicated region
    $region130: #{model_forward.10} parent=1 // pred_check
      _
    $region131: #{model_forward.10} parent=1 // pred_check_branch
      %279 = sbr.rel (0) target = $region133
    $region132: #{model_forward.10} parent=1 // pred_region
      %281 = dma.done [#allocation17], 16
    $region133: #{model_forward.10} parent=1 // pred_fallthru
      _
    // Predicated region
    $region134: #{model_forward.10} parent=1 // pred_check
      _
    $region135: #{model_forward.10} parent=1 // pred_check_branch
      %283 = sbr.rel (0) target = $region137
    $region136: #{model_forward.10} parent=1 // pred_region
      %285 = dma.done [#allocation20], 2048
    $region137: #{model_forward.10} parent=1 // pred_fallthru
      _
    // Predicated region
    $region138: #{model_forward.10} parent=1 // pred_check
      _
    $region139: #{model_forward.10} parent=1 // pred_check_branch
      %287 = sbr.rel (0) target = $region141
    $region140: #{model_forward.10} parent=1 // pred_region
      %289 = dma.done [#allocation20], 2048
    $region141: #{model_forward.10} parent=1 // pred_fallthru
      _
    // Predicated region
    $region142: #{model_forward.10} parent=1 // pred_check
      _
    $region143: #{model_forward.10} parent=1 // pred_check_branch
      %291 = sbr.rel (0) target = $region145
    $region144: #{model_forward.10} parent=1 // pred_region
      %293 = dma.done [#allocation23], 16
    $region145: #{model_forward.10} parent=1 // pred_fallthru
      _
    // Predicated region
    $region146: #{model_forward.10} parent=1 // pred_check
      _
    $region147: #{model_forward.10} parent=1 // pred_check_branch
      %295 = sbr.rel (0) target = $region149
    $region148: #{model_forward.10} parent=1 // pred_region
      %297 = dma.done [#allocation23], 16
    $region149: #{model_forward.10} parent=1 // pred_fallthru
      _
    // Predicated region
    $region150: #{model_forward.10} parent=1 // pred_check
      _
    $region151: #{model_forward.10} parent=1 // pred_check_branch
      %299 = sbr.rel (0) target = $region153
    $region152: #{model_forward.10} parent=1 // pred_region
      %301 = dma.done [#allocation26], 16
    $region153: #{model_forward.10} parent=1 // pred_fallthru
      _
    %v303 = vld [vmem:[%s0] sm:$0xff]
    %v304 = vld [vmem:[%s0 + $0x8] sm:$0xff]
    %v305 = vld [vmem:[%s1] sm:$0xff]
    %v306 = vld [vmem:[%s1 + $0x8] sm:$0xff]
    %v307 = vpack.c.bf16 %v304, %v303
    %v308 = vld [vmem:[#allocation2] sm:$0xff]
    %v309 = vld [vmem:[#allocation2 + $0x8] sm:$0xf]
    %v310 = vld [vmem:[#allocation2 + $0xc] sm:$0xff]
    %v311 = vld [vmem:[#allocation2 + $0x14] sm:$0xf]
    %v312 = vld [vmem:[#allocation2 + $0x18] sm:$0xff]
    %v313 = vld [vmem:[#allocation2 + $0x20] sm:$0xf]
    %v314 = vld [vmem:[#allocation2 + $0x24] sm:$0xff]
    %v315 = vld [vmem:[#allocation2 + $0x2c] sm:$0xf]
    %v316 = vld [vmem:[#allocation2 + $0x30] sm:$0xff]
    %v317 = vld [vmem:[#allocation2 + $0x38] sm:$0xf]
    %v318 = vld [vmem:[#allocation2 + $0x3c] sm:$0xff]
    %v319 = vld [vmem:[#allocation2 + $0x44] sm:$0xf]
    %v320 = vld [vmem:[#allocation2 + $0x48] sm:$0xff]
    %v321 = vld [vmem:[#allocation2 + $0x50] sm:$0xf]
    %v322 = vld [vmem:[#allocation2 + $0x54] sm:$0xff]
    %v323 = vld [vmem:[#allocation2 + $0x5c] sm:$0xf]
    %v324 = vld [vmem:[#allocation2 + $0x60] sm:$0xff]
    %v325 = vld [vmem:[#allocation2 + $0x68] sm:$0xf]
    %v326 = vld [vmem:[#allocation2 + $0x6c] sm:$0xff]
    %v327 = vld [vmem:[#allocation2 + $0x74] sm:$0xf]
    %v328 = vld [vmem:[#allocation2 + $0x78] sm:$0xff]
    %v329 = vld [vmem:[#allocation2 + $0x80] sm:$0xf]
    %v330 = vld [vmem:[#allocation2 + $0x84] sm:$0xff]
    %v331 = vld [vmem:[#allocation2 + $0x8c] sm:$0xf]
    %v332 = vld [vmem:[#allocation2 + $0x90] sm:$0xff]
    %v333 = vld [vmem:[#allocation2 + $0x98] sm:$0xf]
    %v334 = vld [vmem:[#allocation2 + $0x9c] sm:$0xff]
    %v335 = vld [vmem:[#allocation2 + $0xa4] sm:$0xf]
    %v336 = vld [vmem:[#allocation2 + $0xa8] sm:$0xff]
    %v337 = vld [vmem:[#allocation2 + $0xb0] sm:$0xf]
    %v338 = vld [vmem:[#allocation2 + $0xb4] sm:$0xff]
    %v339 = vld [vmem:[#allocation2 + $0xbc] sm:$0xf]
    %v340 = vld [vmem:[%s3] sm:$0x7]
    %v342 = vperm.slane %v340, 0
    %v343 = vperm.slane %v340, 1
    %v344 = vperm.slane %v340, 2
    %v380 = vunpack.c.l.b16 %v308
    %v381 = vunpack.c.h.b16 %v308
    %v382 = vunpack.c.l.b16 %v309
    %v383 = vunpack.c.l.b16 %v310
    %v384 = vunpack.c.h.b16 %v310
    %v385 = vunpack.c.l.b16 %v311
    %v386 = vunpack.c.l.b16 %v312
    %v387 = vunpack.c.h.b16 %v312
    %v388 = vunpack.c.l.b16 %v313
    %v389 = vunpack.c.l.b16 %v314
    %v390 = vunpack.c.h.b16 %v314
    %v391 = vunpack.c.l.b16 %v315
    %v392 = vunpack.c.l.b16 %v316
    %v393 = vunpack.c.h.b16 %v316
    %v394 = vunpack.c.l.b16 %v317
    %v395 = vunpack.c.l.b16 %v318
    %v396 = vunpack.c.h.b16 %v318
    %v397 = vunpack.c.l.b16 %v319
    %v398 = vunpack.c.l.b16 %v320
    %v399 = vunpack.c.h.b16 %v320
    %v400 = vunpack.c.l.b16 %v321
    %v401 = vunpack.c.l.b16 %v322
    %v402 = vunpack.c.h.b16 %v322
    %v403 = vunpack.c.l.b16 %v323
    %v404 = vunpack.c.l.b16 %v324
    %v405 = vunpack.c.h.b16 %v324
    %v406 = vunpack.c.l.b16 %v325
    %v407 = vunpack.c.l.b16 %v326
    %v408 = vunpack.c.h.b16 %v326
    %v409 = vunpack.c.l.b16 %v327
    %v410 = vunpack.c.l.b16 %v328
    %v411 = vunpack.c.h.b16 %v328
    %v412 = vunpack.c.l.b16 %v329
    %v413 = vunpack.c.l.b16 %v330
    %v414 = vunpack.c.h.b16 %v330
    %v415 = vunpack.c.l.b16 %v331
    %v416 = vunpack.c.l.b16 %v332
    %v417 = vunpack.c.h.b16 %v332
    %v418 = vunpack.c.l.b16 %v333
    %v419 = vunpack.c.l.b16 %v334
    %v420 = vunpack.c.h.b16 %v334
    %v421 = vunpack.c.l.b16 %v335
    %v422 = vunpack.c.l.b16 %v336
    %v423 = vunpack.c.h.b16 %v336
    %v424 = vunpack.c.l.b16 %v337
    %v425 = vunpack.c.l.b16 %v338
    %v426 = vunpack.c.h.b16 %v338
    %v427 = vunpack.c.l.b16 %v339
    %v428 = vpack.c.b16 %v383, %v380
    %v429 = vpack.c.b16 %v384, %v381
    %v430 = vpack.c.b16 %v385, %v382
    %v431 = vpack.c.b16 %v389, %v386
    %v432 = vpack.c.b16 %v390, %v387
    %v433 = vpack.c.b16 %v391, %v388
    %v434 = vpack.c.b16 %v395, %v392
    %v435 = vpack.c.b16 %v396, %v393
    %v436 = vpack.c.b16 %v397, %v394
    %v437 = vpack.c.b16 %v401, %v398
    %v438 = vpack.c.b16 %v402, %v399
    %v439 = vpack.c.b16 %v403, %v400
    %v440 = vpack.c.b16 %v407, %v404
    %v441 = vpack.c.b16 %v408, %v405
    %v442 = vpack.c.b16 %v409, %v406
    %v443 = vpack.c.b16 %v413, %v410
    %v444 = vpack.c.b16 %v414, %v411
    %v445 = vpack.c.b16 %v415, %v412
    %v446 = vpack.c.b16 %v419, %v416
    %v447 = vpack.c.b16 %v420, %v417
    %v448 = vpack.c.b16 %v421, %v418
    %v449 = vpack.c.b16 %v425, %v422
    %v450 = vpack.c.b16 %v426, %v423
    %v451 = vpack.c.b16 %v427, %v424
    %476 = vmatpush.bf16.msra.mxu0 %v449
    %477 = vmatpush.bf16.msra.mxu0 %v446
    %478 = vmatpush.bf16.msra.mxu0 %v443
    %479 = vmatpush.bf16.msra.mxu0 %v440
    %480 = vmatpush.bf16.msra.mxu0 %v437
    %481 = vmatpush.bf16.msra.mxu0 %v434
    %482 = vmatpush.bf16.msra.mxu0 %v431
    %483 = vmatpush.bf16.msra.mxu0 %v428
    %484 = vmatmul.bf16.gmra.mxu0 %v307
    %v485 = vpop.f32.mrf.mxu0
    %v486 = vadd.f32 %v342, %v485
    %v487 = vpop.f32.mrf.mxu0
    %v488 = vadd.f32 %v342, %v487
    %489 = vdwg.mxu0
    %490 = vmatpush.bf16.msra.mxu0 %v450
    %491 = vmatpush.bf16.msra.mxu0 %v447
    %492 = vmatpush.bf16.msra.mxu0 %v444
    %493 = vmatpush.bf16.msra.mxu0 %v441
    %494 = vmatpush.bf16.msra.mxu0 %v438
    %495 = vmatpush.bf16.msra.mxu0 %v435
    %496 = vmatpush.bf16.msra.mxu0 %v432
    %497 = vmatpush.bf16.msra.mxu0 %v429
    %498 = vmatmul.bf16.gmra.mxu0 %v307
    %v499 = vpop.f32.mrf.mxu0
    %v500 = vadd.f32 %v343, %v499
    %v501 = vpop.f32.mrf.mxu0
    %v502 = vadd.f32 %v343, %v501
    %503 = vdwg.mxu0
    %504 = vmatpush.bf16.msra.mxu0 %v451
    %505 = vmatpush.bf16.msra.mxu0 %v448
    %506 = vmatpush.bf16.msra.mxu0 %v445
    %507 = vmatpush.bf16.msra.mxu0 %v442
    %508 = vmatpush.bf16.msra.mxu0 %v439
    %509 = vmatpush.bf16.msra.mxu0 %v436
    %510 = vmatpush.bf16.msra.mxu0 %v433
    %511 = vmatpush.bf16.msra.mxu0 %v430
    %512 = vmatmul.bf16.gmra.mxu0 %v307
    %v513 = vpop.f32.mrf.mxu0
    %v514 = vadd.f32 %v344, %v513
    %v515 = vpop.f32.mrf.mxu0
    %v516 = vadd.f32 %v344, %v515
    %517 = vdwg.mxu0
    %v518 = vpack.c.bf16 %v486, %v486
    %v519 = vpack.c.bf16 %v488, %v488
    %v520 = vpack.c.bf16 %v500, %v500
    %v521 = vpack.c.bf16 %v502, %v502
    %v522 = vpack.c.bf16 %v514, %v514
    %v523 = vpack.c.bf16 %v516, %v516
    %vm524 = vcmask 261120
    %v526 = vsel %vm524, %v518, 0
    %v529 = vsel %vm524, %v520, 0
    %531 = vmatpush.bf16.xpose.msra.mxu0 0
    %532 = vmatpush.bf16.xpose.msra.mxu0 0
    %533 = vmatpush.bf16.xpose.msra.mxu0 0
    %534 = vmatpush.bf16.xpose.msra.mxu0 0
    %535 = vmatpush.bf16.xpose.msra.mxu0 0
    %536 = vmatpush.bf16.xpose.msra.mxu0 0
    %537 = vmatpush.bf16.xpose.msra.mxu0 0
    %538 = vmatpush.bf16.xpose.msra.mxu0 %v529
    %539 = vmatmul.bf16.gmra.mxu0 %v526
    %v540 = vpop.f32.mrf.mxu0
    %v541 = vadd.f32 0.0, %v540
    %v542 = vpop.f32.mrf.mxu0
    %543 = vdwg.mxu0
    %v545 = vsel %vm524, %v519, 0
    %v548 = vsel %vm524, %v521, 0
    %550 = vmatpush.bf16.xpose.msra.mxu0 0
    %551 = vmatpush.bf16.xpose.msra.mxu0 0
    %552 = vmatpush.bf16.xpose.msra.mxu0 0
    %553 = vmatpush.bf16.xpose.msra.mxu0 0
    %554 = vmatpush.bf16.xpose.msra.mxu0 0
    %555 = vmatpush.bf16.xpose.msra.mxu0 0
    %556 = vmatpush.bf16.xpose.msra.mxu0 0
    %557 = vmatpush.bf16.xpose.msra.mxu0 %v548
    %558 = vmatmul.bf16.gmra.mxu0 %v545
    %v559 = vpop.f32.mrf.mxu0
    %v560 = vadd.f32 0.0, %v559
    %v561 = vpop.f32.mrf.mxu0
    %562 = vdwg.mxu0
    %v563 = vmul.f32 %v541, 0.17677669
    %v564 = vmul.f32 %v560, 0.17677669
    %vm565 = vcmask 64512
    %v566 = vsel %vm565, %v563, -inf
    %567 = vmax.xlane.f32.xlu0 %v566
    %v568 = vpop.xlane.xlu0 %567
    %v569 = vsel %vm565, %v564, -inf
    %570 = vmax.xlane.f32.xlu0 %v569
    %v571 = vpop.xlane.xlu0 %570
    %v572 = vsub.f32 %v563, %v568
    %v573 = vsub.f32 %v564, %v571
    %v574 = vmul.f32 %v572, 1.442695
    %v575 = vpow.pop %v574
    %v576 = vmul.f32 %v573, 1.442695
    %v577 = vpow.pop %v576
    %v578 = vsel %vm565, %v575, 0.0
    %579 = vadd.xlane.f32.xlu0 %v578
    %v580 = vpop.xlane.xlu0 %579
    %v581 = vsel %vm565, %v577, 0.0
    %582 = vadd.xlane.f32.xlu0 %v581
    %v583 = vpop.xlane.xlu0 %582
    %v584 = vrcp.pop %v580
    %v585 = vrcp.pop %v583
    %v586 = vmul.f32 %v575, %v584
    %v587 = vmul.f32 %v577, %v585
    %v588 = vpack.c.bf16 %v586, %v586
    %v589 = vpack.c.bf16 %v587, %v587
    %v591 = vsel %vm565, %v588, 0
    %vm593 = vcmask 1043456
    %v595 = vsel %vm593, %v522, 0
    %597 = vmatpush.bf16.msra.mxu0 0
    %598 = vmatpush.bf16.msra.mxu0 0
    %599 = vmatpush.bf16.msra.mxu0 0
    %600 = vmatpush.bf16.msra.mxu0 0
    %601 = vmatpush.bf16.msra.mxu0 0
    %602 = vmatpush.bf16.msra.mxu0 0
    %603 = vmatpush.bf16.msra.mxu0 0
    %604 = vmatpush.bf16.msra.mxu0 %v595
    %605 = vmatmul.bf16.gmra.mxu0 %v591
    %v606 = vpop.f32.mrf.mxu0
    %v607 = vadd.f32 0.0, %v606
    %v608 = vpop.f32.mrf.mxu0
    %609 = vdwg.mxu0
    %v611 = vsel %vm565, %v589, 0
    %v614 = vsel %vm593, %v523, 0
    %616 = vmatpush.bf16.msra.mxu0 0
    %617 = vmatpush.bf16.msra.mxu0 0
    %618 = vmatpush.bf16.msra.mxu0 0
    %619 = vmatpush.bf16.msra.mxu0 0
    %620 = vmatpush.bf16.msra.mxu0 0
    %621 = vmatpush.bf16.msra.mxu0 0
    %622 = vmatpush.bf16.msra.mxu0 0
    %623 = vmatpush.bf16.msra.mxu0 %v614
    %624 = vmatmul.bf16.gmra.mxu0 %v611
    %v625 = vpop.f32.mrf.mxu0
    %v626 = vadd.f32 0.0, %v625
    %v627 = vpop.f32.mrf.mxu0
    %628 = vdwg.mxu0
    %v630 = vunpack.c.l.b16 %v518
    %v631 = vpack.c.b16 %v630, %v630
    %632 = vrot.lane.b32.xlu0 %v631, 96
    %v633 = vpop.permute.xlu0 %632
    %v635 = vunpack.c.l.b16 %v520
    %v636 = vpack.c.b16 %v635, %v635
    %637 = vrot.lane.b32.xlu0 %v636, 96
    %v638 = vpop.permute.xlu0 %637
    %v640 = vsel %vm524, %v633, 0
    %v643 = vsel %vm524, %v638, 0
    %645 = vmatpush.bf16.xpose.msra.mxu0 0
    %646 = vmatpush.bf16.xpose.msra.mxu0 0
    %647 = vmatpush.bf16.xpose.msra.mxu0 0
    %648 = vmatpush.bf16.xpose.msra.mxu0 0
    %649 = vmatpush.bf16.xpose.msra.mxu0 0
    %650 = vmatpush.bf16.xpose.msra.mxu0 0
    %651 = vmatpush.bf16.xpose.msra.mxu0 0
    %652 = vmatpush.bf16.xpose.msra.mxu0 %v643
    %653 = vmatmul.bf16.gmra.mxu0 %v640
    %v654 = vpop.f32.mrf.mxu0
    %v655 = vadd.f32 0.0, %v654
    %v656 = vpop.f32.mrf.mxu0
    %657 = vdwg.mxu0
    %v659 = vunpack.c.l.b16 %v519
    %v660 = vpack.c.b16 %v659, %v659
    %661 = vrot.lane.b32.xlu0 %v660, 96
    %v662 = vpop.permute.xlu0 %661
    %v664 = vunpack.c.l.b16 %v521
    %v665 = vpack.c.b16 %v664, %v664
    %666 = vrot.lane.b32.xlu0 %v665, 96
    %v667 = vpop.permute.xlu0 %666
    %v669 = vsel %vm524, %v662, 0
    %v672 = vsel %vm524, %v667, 0
    %674 = vmatpush.bf16.xpose.msra.mxu0 0
    %675 = vmatpush.bf16.xpose.msra.mxu0 0
    %676 = vmatpush.bf16.xpose.msra.mxu0 0
    %677 = vmatpush.bf16.xpose.msra.mxu0 0
    %678 = vmatpush.bf16.xpose.msra.mxu0 0
    %679 = vmatpush.bf16.xpose.msra.mxu0 0
    %680 = vmatpush.bf16.xpose.msra.mxu0 0
    %681 = vmatpush.bf16.xpose.msra.mxu0 %v672
    %682 = vmatmul.bf16.gmra.mxu0 %v669
    %v683 = vpop.f32.mrf.mxu0
    %v684 = vadd.f32 0.0, %v683
    %v685 = vpop.f32.mrf.mxu0
    %686 = vdwg.mxu0
    %v687 = vmul.f32 %v655, 0.17677669
    %v688 = vmul.f32 %v684, 0.17677669
    %v689 = vsel %vm565, %v687, -inf
    %690 = vmax.xlane.f32.xlu0 %v689
    %v691 = vpop.xlane.xlu0 %690
    %v692 = vsel %vm565, %v688, -inf
    %693 = vmax.xlane.f32.xlu0 %v692
    %v694 = vpop.xlane.xlu0 %693
    %v695 = vsub.f32 %v687, %v691
    %v696 = vsub.f32 %v688, %v694
    %v697 = vmul.f32 %v695, 1.442695
    %v698 = vpow.pop %v697
    %v699 = vmul.f32 %v696, 1.442695
    %v700 = vpow.pop %v699
    %v701 = vsel %vm565, %v698, 0.0
    %702 = vadd.xlane.f32.xlu0 %v701
    %v703 = vpop.xlane.xlu0 %702
    %v704 = vsel %vm565, %v700, 0.0
    %705 = vadd.xlane.f32.xlu0 %v704
    %v706 = vpop.xlane.xlu0 %705
    %v707 = vrcp.pop %v703
    %v708 = vrcp.pop %v706
    %v709 = vmul.f32 %v698, %v707
    %v710 = vmul.f32 %v700, %v708
    %v711 = vpack.c.bf16 %v709, %v709
    %v712 = vpack.c.bf16 %v710, %v710
    %v714 = vunpack.c.l.b16 %v522
    %v715 = vpack.c.b16 %v714, %v714
    %716 = vrot.lane.b32.xlu0 %v715, 96
    %v717 = vpop.permute.xlu0 %716
    %v719 = vsel %vm565, %v711, 0
    %v722 = vsel %vm593, %v717, 0
    %724 = vmatpush.bf16.msra.mxu0 0
    %725 = vmatpush.bf16.msra.mxu0 0
    %726 = vmatpush.bf16.msra.mxu0 0
    %727 = vmatpush.bf16.msra.mxu0 0
    %728 = vmatpush.bf16.msra.mxu0 0
    %729 = vmatpush.bf16.msra.mxu0 0
    %730 = vmatpush.bf16.msra.mxu0 0
    %731 = vmatpush.bf16.msra.mxu0 %v722
    %732 = vmatmul.bf16.gmra.mxu0 %v719
    %v733 = vpop.f32.mrf.mxu0
    %v734 = vadd.f32 0.0, %v733
    %v735 = vpop.f32.mrf.mxu0
    %736 = vdwg.mxu0
    %v738 = vunpack.c.l.b16 %v523
    %v739 = vpack.c.b16 %v738, %v738
    %740 = vrot.lane.b32.xlu0 %v739, 96
    %v741 = vpop.permute.xlu0 %740
    %v743 = vsel %vm565, %v712, 0
    %v746 = vsel %vm593, %v741, 0
    %748 = vmatpush.bf16.msra.mxu0 0
    %749 = vmatpush.bf16.msra.mxu0 0
    %750 = vmatpush.bf16.msra.mxu0 0
    %751 = vmatpush.bf16.msra.mxu0 0
    %752 = vmatpush.bf16.msra.mxu0 0
    %753 = vmatpush.bf16.msra.mxu0 0
    %754 = vmatpush.bf16.msra.mxu0 0
    %755 = vmatpush.bf16.msra.mxu0 %v746
    %756 = vmatmul.bf16.gmra.mxu0 %v743
    %v757 = vpop.f32.mrf.mxu0
    %v758 = vadd.f32 0.0, %v757
    %v759 = vpop.f32.mrf.mxu0
    %760 = vdwg.mxu0
    %761 = vrot.lane.b32.xlu0 %v631, 64
    %v762 = vpop.permute.xlu0 %761
    %763 = vrot.lane.b32.xlu0 %v636, 64
    %v764 = vpop.permute.xlu0 %763
    %v766 = vsel %vm524, %v762, 0
    %v769 = vsel %vm524, %v764, 0
    %771 = vmatpush.bf16.xpose.msra.mxu0 0
    %772 = vmatpush.bf16.xpose.msra.mxu0 0
    %773 = vmatpush.bf16.xpose.msra.mxu0 0
    %774 = vmatpush.bf16.xpose.msra.mxu0 0
    %775 = vmatpush.bf16.xpose.msra.mxu0 0
    %776 = vmatpush.bf16.xpose.msra.mxu0 0
    %777 = vmatpush.bf16.xpose.msra.mxu0 0
    %778 = vmatpush.bf16.xpose.msra.mxu0 %v769
    %779 = vmatmul.bf16.gmra.mxu0 %v766
    %v780 = vpop.f32.mrf.mxu0
    %v781 = vadd.f32 0.0, %v780
    %v782 = vpop.f32.mrf.mxu0
    %783 = vdwg.mxu0
    %784 = vrot.lane.b32.xlu0 %v660, 64
    %v785 = vpop.permute.xlu0 %784
    %786 = vrot.lane.b32.xlu0 %v665, 64
    %v787 = vpop.permute.xlu0 %786
    %v789 = vsel %vm524, %v785, 0
    %v792 = vsel %vm524, %v787, 0
    %794 = vmatpush.bf16.xpose.msra.mxu0 0
    %795 = vmatpush.bf16.xpose.msra.mxu0 0
    %796 = vmatpush.bf16.xpose.msra.mxu0 0
    %797 = vmatpush.bf16.xpose.msra.mxu0 0
    %798 = vmatpush.bf16.xpose.msra.mxu0 0
    %799 = vmatpush.bf16.xpose.msra.mxu0 0
    %800 = vmatpush.bf16.xpose.msra.mxu0 0
    %801 = vmatpush.bf16.xpose.msra.mxu0 %v792
    %802 = vmatmul.bf16.gmra.mxu0 %v789
    %v803 = vpop.f32.mrf.mxu0
    %v804 = vadd.f32 0.0, %v803
    %v805 = vpop.f32.mrf.mxu0
    %806 = vdwg.mxu0
    %v807 = vmul.f32 %v781, 0.17677669
    %v808 = vmul.f32 %v804, 0.17677669
    %v809 = vsel %vm565, %v807, -inf
    %810 = vmax.xlane.f32.xlu0 %v809
    %v811 = vpop.xlane.xlu0 %810
    %v812 = vsel %vm565, %v808, -inf
    %813 = vmax.xlane.f32.xlu0 %v812
    %v814 = vpop.xlane.xlu0 %813
    %v815 = vsub.f32 %v807, %v811
    %v816 = vsub.f32 %v808, %v814
    %v817 = vmul.f32 %v815, 1.442695
    %v818 = vpow.pop %v817
    %v819 = vmul.f32 %v816, 1.442695
    %v820 = vpow.pop %v819
    %v821 = vsel %vm565, %v818, 0.0
    %822 = vadd.xlane.f32.xlu0 %v821
    %v823 = vpop.xlane.xlu0 %822
    %v824 = vsel %vm565, %v820, 0.0
    %825 = vadd.xlane.f32.xlu0 %v824
    %v826 = vpop.xlane.xlu0 %825
    %v827 = vrcp.pop %v823
    %v828 = vrcp.pop %v826
    %v829 = vmul.f32 %v818, %v827
    %v830 = vmul.f32 %v820, %v828
    %v831 = vpack.c.bf16 %v829, %v829
    %v832 = vpack.c.bf16 %v830, %v830
    %833 = vrot.lane.b32.xlu0 %v715, 64
    %v834 = vpop.permute.xlu0 %833
    %v836 = vsel %vm565, %v831, 0
    %v839 = vsel %vm593, %v834, 0
    %841 = vmatpush.bf16.msra.mxu0 0
    %842 = vmatpush.bf16.msra.mxu0 0
    %843 = vmatpush.bf16.msra.mxu0 0
    %844 = vmatpush.bf16.msra.mxu0 0
    %845 = vmatpush.bf16.msra.mxu0 0
    %846 = vmatpush.bf16.msra.mxu0 0
    %847 = vmatpush.bf16.msra.mxu0 0
    %848 = vmatpush.bf16.msra.mxu0 %v839
    %849 = vmatmul.bf16.gmra.mxu0 %v836
    %v850 = vpop.f32.mrf.mxu0
    %v851 = vadd.f32 0.0, %v850
    %v852 = vpop.f32.mrf.mxu0
    %853 = vdwg.mxu0
    %854 = vrot.lane.b32.xlu0 %v739, 64
    %v855 = vpop.permute.xlu0 %854
    %v857 = vsel %vm565, %v832, 0
    %v860 = vsel %vm593, %v855, 0
    %862 = vmatpush.bf16.msra.mxu0 0
    %863 = vmatpush.bf16.msra.mxu0 0
    %864 = vmatpush.bf16.msra.mxu0 0
    %865 = vmatpush.bf16.msra.mxu0 0
    %866 = vmatpush.bf16.msra.mxu0 0
    %867 = vmatpush.bf16.msra.mxu0 0
    %868 = vmatpush.bf16.msra.mxu0 0
    %869 = vmatpush.bf16.msra.mxu0 %v860
    %870 = vmatmul.bf16.gmra.mxu0 %v857
    %v871 = vpop.f32.mrf.mxu0
    %v872 = vadd.f32 0.0, %v871
    %v873 = vpop.f32.mrf.mxu0
    %874 = vdwg.mxu0
    %875 = vrot.lane.b32.xlu0 %v631, 32
    %v876 = vpop.permute.xlu0 %875
    %877 = vrot.lane.b32.xlu0 %v636, 32
    %v878 = vpop.permute.xlu0 %877
    %v880 = vsel %vm524, %v876, 0
    %v883 = vsel %vm524, %v878, 0
    %885 = vmatpush.bf16.xpose.msra.mxu0 0
    %886 = vmatpush.bf16.xpose.msra.mxu0 0
    %887 = vmatpush.bf16.xpose.msra.mxu0 0
    %888 = vmatpush.bf16.xpose.msra.mxu0 0
    %889 = vmatpush.bf16.xpose.msra.mxu0 0
    %890 = vmatpush.bf16.xpose.msra.mxu0 0
    %891 = vmatpush.bf16.xpose.msra.mxu0 0
    %892 = vmatpush.bf16.xpose.msra.mxu0 %v883
    %893 = vmatmul.bf16.gmra.mxu0 %v880
    %v894 = vpop.f32.mrf.mxu0
    %v895 = vadd.f32 0.0, %v894
    %v896 = vpop.f32.mrf.mxu0
    %897 = vdwg.mxu0
    %898 = vrot.lane.b32.xlu0 %v660, 32
    %v899 = vpop.permute.xlu0 %898
    %900 = vrot.lane.b32.xlu0 %v665, 32
    %v901 = vpop.permute.xlu0 %900
    %v903 = vsel %vm524, %v899, 0
    %v906 = vsel %vm524, %v901, 0
    %908 = vmatpush.bf16.xpose.msra.mxu0 0
    %909 = vmatpush.bf16.xpose.msra.mxu0 0
    %910 = vmatpush.bf16.xpose.msra.mxu0 0
    %911 = vmatpush.bf16.xpose.msra.mxu0 0
    %912 = vmatpush.bf16.xpose.msra.mxu0 0
    %913 = vmatpush.bf16.xpose.msra.mxu0 0
    %914 = vmatpush.bf16.xpose.msra.mxu0 0
    %915 = vmatpush.bf16.xpose.msra.mxu0 %v906
    %916 = vmatmul.bf16.gmra.mxu0 %v903
    %v917 = vpop.f32.mrf.mxu0
    %v918 = vadd.f32 0.0, %v917
    %v919 = vpop.f32.mrf.mxu0
    %920 = vdwg.mxu0
    %v921 = vmul.f32 %v895, 0.17677669
    %v922 = vmul.f32 %v918, 0.17677669
    %v923 = vsel %vm565, %v921, -inf
    %924 = vmax.xlane.f32.xlu0 %v923
    %v925 = vpop.xlane.xlu0 %924
    %v926 = vsel %vm565, %v922, -inf
    %927 = vmax.xlane.f32.xlu0 %v926
    %v928 = vpop.xlane.xlu0 %927
    %v929 = vsub.f32 %v921, %v925
    %v930 = vsub.f32 %v922, %v928
    %v931 = vmul.f32 %v929, 1.442695
    %v932 = vpow.pop %v931
    %v933 = vmul.f32 %v930, 1.442695
    %v934 = vpow.pop %v933
    %v935 = vsel %vm565, %v932, 0.0
    %936 = vadd.xlane.f32.xlu0 %v935
    %v937 = vpop.xlane.xlu0 %936
    %v938 = vsel %vm565, %v934, 0.0
    %939 = vadd.xlane.f32.xlu0 %v938
    %v940 = vpop.xlane.xlu0 %939
    %v941 = vrcp.pop %v937
    %v942 = vrcp.pop %v940
    %v943 = vmul.f32 %v932, %v941
    %v944 = vmul.f32 %v934, %v942
    %v945 = vpack.c.bf16 %v943, %v943
    %v946 = vpack.c.bf16 %v944, %v944
    %947 = vrot.lane.b32.xlu0 %v715, 32
    %v948 = vpop.permute.xlu0 %947
    %v950 = vsel %vm565, %v945, 0
    %v953 = vsel %vm593, %v948, 0
    %955 = vmatpush.bf16.msra.mxu0 0
    %956 = vmatpush.bf16.msra.mxu0 0
    %957 = vmatpush.bf16.msra.mxu0 0
    %958 = vmatpush.bf16.msra.mxu0 0
    %959 = vmatpush.bf16.msra.mxu0 0
    %960 = vmatpush.bf16.msra.mxu0 0
    %961 = vmatpush.bf16.msra.mxu0 0
    %962 = vmatpush.bf16.msra.mxu0 %v953
    %963 = vmatmul.bf16.gmra.mxu0 %v950
    %v964 = vpop.f32.mrf.mxu0
    %v965 = vadd.f32 0.0, %v964
    %v966 = vpop.f32.mrf.mxu0
    %967 = vdwg.mxu0
    %968 = vrot.lane.b32.xlu0 %v739, 32
    %v969 = vpop.permute.xlu0 %968
    %v971 = vsel %vm565, %v946, 0
    %v974 = vsel %vm593, %v969, 0
    %976 = vmatpush.bf16.msra.mxu0 0
    %977 = vmatpush.bf16.msra.mxu0 0
    %978 = vmatpush.bf16.msra.mxu0 0
    %979 = vmatpush.bf16.msra.mxu0 0
    %980 = vmatpush.bf16.msra.mxu0 0
    %981 = vmatpush.bf16.msra.mxu0 0
    %982 = vmatpush.bf16.msra.mxu0 0
    %983 = vmatpush.bf16.msra.mxu0 %v974
    %984 = vmatmul.bf16.gmra.mxu0 %v971
    %v985 = vpop.f32.mrf.mxu0
    %v986 = vadd.f32 0.0, %v985
    %v987 = vpop.f32.mrf.mxu0
    %988 = vdwg.mxu0
    %991 = vrot.lane.b32.xlu0 %v734, 32
    %v992 = vpop.permute.xlu0 %991
    %993 = vrot.lane.b32.xlu0 %v758, 32
    %v994 = vpop.permute.xlu0 %993
    %999 = vrot.lane.b32.xlu0 %v851, 64
    %v1000 = vpop.permute.xlu0 %999
    %1001 = vrot.lane.b32.xlu0 %v872, 64
    %v1002 = vpop.permute.xlu0 %1001
    %1007 = vrot.lane.b32.xlu0 %v965, 96
    %v1008 = vpop.permute.xlu0 %1007
    %1009 = vrot.lane.b32.xlu0 %v986, 96
    %v1010 = vpop.permute.xlu0 %1009
    %v1013 = vsel %vm524, %v607, %v992
    %v1014 = vsel %vm524, %v626, %v994
    %vm1015 = vcmask 523264
    %v1016 = vsel %vm1015, %v1013, %v1000
    %v1017 = vsel %vm1015, %v1014, %v1002
    %vm1018 = vcmask 785408
    %v1019 = vsel %vm1018, %v1016, %v1008
    %v1020 = vsel %vm1018, %v1017, %v1010
    %v1021 = vpack.c.bf16 %v1020, %v1019
    %v1022 = vld [vmem:[#allocation4] sm:$0xf]
    %v1023 = vld [vmem:[#allocation4 + $0x4] sm:$0xf]
    %v1024 = vld [vmem:[#allocation4 + $0x8] sm:$0xf]
    %v1025 = vld [vmem:[#allocation4 + $0xc] sm:$0xf]
    %v1026 = vld [vmem:[#allocation4 + $0x10] sm:$0xf]
    %v1027 = vld [vmem:[#allocation4 + $0x14] sm:$0xf]
    %v1028 = vld [vmem:[#allocation4 + $0x18] sm:$0xf]
    %v1029 = vld [vmem:[#allocation4 + $0x1c] sm:$0xf]
    %v1030 = vld [vmem:[#allocation4 + $0x20] sm:$0xf]
    %v1031 = vld [vmem:[#allocation4 + $0x24] sm:$0xf]
    %v1032 = vld [vmem:[#allocation4 + $0x28] sm:$0xf]
    %v1033 = vld [vmem:[#allocation4 + $0x2c] sm:$0xf]
    %v1034 = vld [vmem:[#allocation4 + $0x30] sm:$0xf]
    %v1035 = vld [vmem:[#allocation4 + $0x34] sm:$0xf]
    %v1036 = vld [vmem:[#allocation4 + $0x38] sm:$0xf]
    %v1037 = vld [vmem:[#allocation4 + $0x3c] sm:$0xf]
    %v1038 = vld [vmem:[%s5] sm:$0x1]
    %v1040 = vperm.slane %v1038, 0
    %v1058 = vunpack.c.l.b16 %v1022
    %v1059 = vunpack.c.l.b16 %v1023
    %v1060 = vunpack.c.l.b16 %v1024
    %v1061 = vunpack.c.l.b16 %v1025
    %v1062 = vunpack.c.l.b16 %v1026
    %v1063 = vunpack.c.l.b16 %v1027
    %v1064 = vunpack.c.l.b16 %v1028
    %v1065 = vunpack.c.l.b16 %v1029
    %v1066 = vunpack.c.l.b16 %v1030
    %v1067 = vunpack.c.l.b16 %v1031
    %v1068 = vunpack.c.l.b16 %v1032
    %v1069 = vunpack.c.l.b16 %v1033
    %v1070 = vunpack.c.l.b16 %v1034
    %v1071 = vunpack.c.l.b16 %v1035
    %v1072 = vunpack.c.l.b16 %v1036
    %v1073 = vunpack.c.l.b16 %v1037
    %v1074 = vpack.c.b16 %v1059, %v1058
    %v1075 = vpack.c.b16 %v1061, %v1060
    %v1076 = vpack.c.b16 %v1063, %v1062
    %v1077 = vpack.c.b16 %v1065, %v1064
    %v1078 = vpack.c.b16 %v1067, %v1066
    %v1079 = vpack.c.b16 %v1069, %v1068
    %v1080 = vpack.c.b16 %v1071, %v1070
    %v1081 = vpack.c.b16 %v1073, %v1072
    %1090 = vmatpush.bf16.msra.mxu0 %v1081
    %1091 = vmatpush.bf16.msra.mxu0 %v1080
    %1092 = vmatpush.bf16.msra.mxu0 %v1079
    %1093 = vmatpush.bf16.msra.mxu0 %v1078
    %1094 = vmatpush.bf16.msra.mxu0 %v1077
    %1095 = vmatpush.bf16.msra.mxu0 %v1076
    %1096 = vmatpush.bf16.msra.mxu0 %v1075
    %1097 = vmatpush.bf16.msra.mxu0 %v1074
    %1098 = vmatmul.bf16.gmra.mxu0 %v1021
    %v1099 = vpop.f32.mrf.mxu0
    %v1100 = vadd.f32 %v1040, %v1099
    %v1101 = vpop.f32.mrf.mxu0
    %v1102 = vadd.f32 %v1040, %v1101
    %1103 = vdwg.mxu0
    %v1104 = vadd.f32 %v303, %v1100
    %v1105 = vadd.f32 %v304, %v1102
    %v1106 = vld [vmem:[#allocation6] sm:$0x1]
    %v1107 = vld [vmem:[#allocation7] sm:$0x1]
    %1108 = vadd.xlane.f32.xlu0 %v1104
    %v1109 = vpop.xlane.xlu0 %1108
    %1110 = vadd.xlane.f32.xlu0 %v1105
    %v1111 = vpop.xlane.xlu0 %1110
    %v1112 = vrcp.pop 128.0
    %v1113 = vmul.f32 128.0, %v1112
    %v1114 = vsub.f32 1.0, %v1113
    %v1115 = vmul.f32 %v1112, %v1114
    %v1116 = vadd.f32 %v1112, %v1115
    %vm1117 = vweird.f32 %v1112
    %v1118 = vsel %vm1117, %v1112, %v1116
    %v1119 = vmul.f32 %v1109, %v1118
    %v1120 = vmul.f32 %v1111, %v1118
    %v1121 = vsub.f32 %v1104, %v1119
    %v1122 = vsub.f32 %v1105, %v1120
    %v1123 = vmul.f32 %v1121, %v1121
    %v1124 = vmul.f32 %v1122, %v1122
    %1125 = vadd.xlane.f32.xlu0 %v1123
    %v1126 = vpop.xlane.xlu0 %1125
    %1127 = vadd.xlane.f32.xlu0 %v1124
    %v1128 = vpop.xlane.xlu0 %1127
    %v1129 = vmul.f32 %v1126, %v1118
    %v1130 = vmul.f32 %v1128, %v1118
    %v1131 = vadd.f32 %v1129, 1e-05
    %v1132 = vadd.f32 %v1130, 1e-05
    %v1133 = vrsqrt.pop %v1131
    %v1134 = vmul.f32 %v1133, %v1131
    %v1135 = vmul.f32 %v1134, %v1133
    %v1136 = vmul.f32 0.5, %v1135
    %v1137 = vsub.f32 1.5, %v1136
    %v1138 = vmul.f32 %v1133, %v1137
    %vm1139 = vweird.f32 %v1131
    %vm1140 = vweird.f32 %v1133
    %vm1141 = vmor %vm1139, %vm1140
    %v1142 = vsel %vm1141, %v1133, %v1138
    %v1143 = vrsqrt.pop %v1132
    %v1144 = vmul.f32 %v1143, %v1132
    %v1145 = vmul.f32 %v1144, %v1143
    %v1146 = vmul.f32 0.5, %v1145
    %v1147 = vsub.f32 1.5, %v1146
    %v1148 = vmul.f32 %v1143, %v1147
    %vm1149 = vweird.f32 %v1132
    %vm1150 = vweird.f32 %v1143
    %vm1151 = vmor %vm1149, %vm1150
    %v1152 = vsel %vm1151, %v1143, %v1148
    %v1153 = vmul.f32 %v1121, %v1142
    %v1154 = vmul.f32 %v1122, %v1152
    %v1156 = vperm.slane %v1106, 0
    %v1158 = vmul.f32 %v1153, %v1156
    %v1159 = vmul.f32 %v1154, %v1156
    %v1161 = vperm.slane %v1107, 0
    %v1163 = vadd.f32 %v1158, %v1161
    %v1164 = vadd.f32 %v1159, %v1161
    %v1165 = vpack.c.bf16 %v1164, %v1163
    %v1166 = vld [vmem:[#allocation9] sm:$0xf]
    %v1167 = vld [vmem:[#allocation9 + $0x4] sm:$0xf]
    %v1168 = vld [vmem:[#allocation9 + $0x8] sm:$0xf]
    %v1169 = vld [vmem:[#allocation9 + $0xc] sm:$0xf]
    %v1170 = vld [vmem:[#allocation9 + $0x10] sm:$0xf]
    %v1171 = vld [vmem:[#allocation9 + $0x14] sm:$0xf]
    %v1172 = vld [vmem:[#allocation9 + $0x18] sm:$0xf]
    %v1173 = vld [vmem:[#allocation9 + $0x1c] sm:$0xf]
    %v1174 = vld [vmem:[#allocation9 + $0x20] sm:$0xf]
    %v1175 = vld [vmem:[#allocation9 + $0x24] sm:$0xf]
    %v1176 = vld [vmem:[#allocation9 + $0x28] sm:$0xf]
    %v1177 = vld [vmem:[#allocation9 + $0x2c] sm:$0xf]
    %v1178 = vld [vmem:[#allocation9 + $0x30] sm:$0xf]
    %v1179 = vld [vmem:[#allocation9 + $0x34] sm:$0xf]
    %v1180 = vld [vmem:[#allocation9 + $0x38] sm:$0xf]
    %v1181 = vld [vmem:[#allocation9 + $0x3c] sm:$0xf]
    %v1182 = vld [vmem:[#allocation10] sm:$0x1]
    %v1184 = vperm.slane %v1182, 0
    %v1202 = vunpack.c.l.b16 %v1166
    %v1203 = vunpack.c.l.b16 %v1167
    %v1204 = vunpack.c.l.b16 %v1168
    %v1205 = vunpack.c.l.b16 %v1169
    %v1206 = vunpack.c.l.b16 %v1170
    %v1207 = vunpack.c.l.b16 %v1171
    %v1208 = vunpack.c.l.b16 %v1172
    %v1209 = vunpack.c.l.b16 %v1173
    %v1210 = vunpack.c.l.b16 %v1174
    %v1211 = vunpack.c.l.b16 %v1175
    %v1212 = vunpack.c.l.b16 %v1176
    %v1213 = vunpack.c.l.b16 %v1177
    %v1214 = vunpack.c.l.b16 %v1178
    %v1215 = vunpack.c.l.b16 %v1179
    %v1216 = vunpack.c.l.b16 %v1180
    %v1217 = vunpack.c.l.b16 %v1181
    %v1218 = vpack.c.b16 %v1203, %v1202
    %v1219 = vpack.c.b16 %v1205, %v1204
    %v1220 = vpack.c.b16 %v1207, %v1206
    %v1221 = vpack.c.b16 %v1209, %v1208
    %v1222 = vpack.c.b16 %v1211, %v1210
    %v1223 = vpack.c.b16 %v1213, %v1212
    %v1224 = vpack.c.b16 %v1215, %v1214
    %v1225 = vpack.c.b16 %v1217, %v1216
    %1234 = vmatpush.bf16.msra.mxu0 %v1225
    %1235 = vmatpush.bf16.msra.mxu0 %v1224
    %1236 = vmatpush.bf16.msra.mxu0 %v1223
    %1237 = vmatpush.bf16.msra.mxu0 %v1222
    %1238 = vmatpush.bf16.msra.mxu0 %v1221
    %1239 = vmatpush.bf16.msra.mxu0 %v1220
    %1240 = vmatpush.bf16.msra.mxu0 %v1219
    %1241 = vmatpush.bf16.msra.mxu0 %v1218
    %1242 = vmatmul.bf16.gmra.mxu0 %v1165
    %v1243 = vpop.f32.mrf.mxu0
    %v1244 = vadd.f32 %v1184, %v1243
    %v1245 = vpop.f32.mrf.mxu0
    %v1246 = vadd.f32 %v1184, %v1245
    %1247 = vdwg.mxu0
    %v1248 = vpack.c.bf16 %v306, %v305
    %v1249 = vld [vmem:[#allocation12] sm:$0xff]
    %v1250 = vld [vmem:[#allocation12 + $0x8] sm:$0xff]
    %v1251 = vld [vmem:[#allocation12 + $0x10] sm:$0xff]
    %v1252 = vld [vmem:[#allocation12 + $0x18] sm:$0xff]
    %v1253 = vld [vmem:[#allocation12 + $0x20] sm:$0xff]
    %v1254 = vld [vmem:[#allocation12 + $0x28] sm:$0xff]
    %v1255 = vld [vmem:[#allocation12 + $0x30] sm:$0xff]
    %v1256 = vld [vmem:[#allocation12 + $0x38] sm:$0xff]
    %v1257 = vld [vmem:[#allocation12 + $0x40] sm:$0xff]
    %v1258 = vld [vmem:[#allocation12 + $0x48] sm:$0xff]
    %v1259 = vld [vmem:[#allocation12 + $0x50] sm:$0xff]
    %v1260 = vld [vmem:[#allocation12 + $0x58] sm:$0xff]
    %v1261 = vld [vmem:[#allocation12 + $0x60] sm:$0xff]
    %v1262 = vld [vmem:[#allocation12 + $0x68] sm:$0xff]
    %v1263 = vld [vmem:[#allocation12 + $0x70] sm:$0xff]
    %v1264 = vld [vmem:[#allocation12 + $0x78] sm:$0xff]
    %v1265 = vld [vmem:[%s11] sm:$0x3]
    %v1267 = vperm.slane %v1265, 0
    %v1268 = vperm.slane %v1265, 1
    %v1287 = vunpack.c.l.b16 %v1249
    %v1288 = vunpack.c.h.b16 %v1249
    %v1289 = vunpack.c.l.b16 %v1250
    %v1290 = vunpack.c.h.b16 %v1250
    %v1291 = vunpack.c.l.b16 %v1251
    %v1292 = vunpack.c.h.b16 %v1251
    %v1293 = vunpack.c.l.b16 %v1252
    %v1294 = vunpack.c.h.b16 %v1252
    %v1295 = vunpack.c.l.b16 %v1253
    %v1296 = vunpack.c.h.b16 %v1253
    %v1297 = vunpack.c.l.b16 %v1254
    %v1298 = vunpack.c.h.b16 %v1254
    %v1299 = vunpack.c.l.b16 %v1255
    %v1300 = vunpack.c.h.b16 %v1255
    %v1301 = vunpack.c.l.b16 %v1256
    %v1302 = vunpack.c.h.b16 %v1256
    %v1303 = vunpack.c.l.b16 %v1257
    %v1304 = vunpack.c.h.b16 %v1257
    %v1305 = vunpack.c.l.b16 %v1258
    %v1306 = vunpack.c.h.b16 %v1258
    %v1307 = vunpack.c.l.b16 %v1259
    %v1308 = vunpack.c.h.b16 %v1259
    %v1309 = vunpack.c.l.b16 %v1260
    %v1310 = vunpack.c.h.b16 %v1260
    %v1311 = vunpack.c.l.b16 %v1261
    %v1312 = vunpack.c.h.b16 %v1261
    %v1313 = vunpack.c.l.b16 %v1262
    %v1314 = vunpack.c.h.b16 %v1262
    %v1315 = vunpack.c.l.b16 %v1263
    %v1316 = vunpack.c.h.b16 %v1263
    %v1317 = vunpack.c.l.b16 %v1264
    %v1318 = vunpack.c.h.b16 %v1264
    %v1319 = vpack.c.b16 %v1289, %v1287
    %v1320 = vpack.c.b16 %v1290, %v1288
    %v1321 = vpack.c.b16 %v1293, %v1291
    %v1322 = vpack.c.b16 %v1294, %v1292
    %v1323 = vpack.c.b16 %v1297, %v1295
    %v1324 = vpack.c.b16 %v1298, %v1296
    %v1325 = vpack.c.b16 %v1301, %v1299
    %v1326 = vpack.c.b16 %v1302, %v1300
    %v1327 = vpack.c.b16 %v1305, %v1303
    %v1328 = vpack.c.b16 %v1306, %v1304
    %v1329 = vpack.c.b16 %v1309, %v1307
    %v1330 = vpack.c.b16 %v1310, %v1308
    %v1331 = vpack.c.b16 %v1313, %v1311
    %v1332 = vpack.c.b16 %v1314, %v1312
    %v1333 = vpack.c.b16 %v1317, %v1315
    %v1334 = vpack.c.b16 %v1318, %v1316
    %1351 = vmatpush.bf16.msra.mxu0 %v1333
    %1352 = vmatpush.bf16.msra.mxu0 %v1331
    %1353 = vmatpush.bf16.msra.mxu0 %v1329
    %1354 = vmatpush.bf16.msra.mxu0 %v1327
    %1355 = vmatpush.bf16.msra.mxu0 %v1325
    %1356 = vmatpush.bf16.msra.mxu0 %v1323
    %1357 = vmatpush.bf16.msra.mxu0 %v1321
    %1358 = vmatpush.bf16.msra.mxu0 %v1319
    %1359 = vmatmul.bf16.gmra.mxu0 %v1248
    %v1360 = vpop.f32.mrf.mxu0
    %v1361 = vadd.f32 %v1267, %v1360
    %v1362 = vpop.f32.mrf.mxu0
    %v1363 = vadd.f32 %v1267, %v1362
    %1364 = vdwg.mxu0
    %1365 = vmatpush.bf16.msra.mxu0 %v1334
    %1366 = vmatpush.bf16.msra.mxu0 %v1332
    %1367 = vmatpush.bf16.msra.mxu0 %v1330
    %1368 = vmatpush.bf16.msra.mxu0 %v1328
    %1369 = vmatpush.bf16.msra.mxu0 %v1326
    %1370 = vmatpush.bf16.msra.mxu0 %v1324
    %1371 = vmatpush.bf16.msra.mxu0 %v1322
    %1372 = vmatpush.bf16.msra.mxu0 %v1320
    %1373 = vmatmul.bf16.gmra.mxu0 %v1248
    %v1374 = vpop.f32.mrf.mxu0
    %v1375 = vadd.f32 %v1268, %v1374
    %v1376 = vpop.f32.mrf.mxu0
    %v1377 = vadd.f32 %v1268, %v1376
    %1378 = vdwg.mxu0
    %v1379 = vpack.c.bf16 %v1244, %v1244
    %v1380 = vpack.c.bf16 %v1246, %v1246
    %v1381 = vpack.c.bf16 %v1361, %v1361
    %v1382 = vpack.c.bf16 %v1363, %v1363
    %v1383 = vpack.c.bf16 %v1375, %v1375
    %v1384 = vpack.c.bf16 %v1377, %v1377
    %v1386 = vsel %vm524, %v1379, 0
    %v1389 = vsel %vm524, %v1381, 0
    %1391 = vmatpush.bf16.xpose.msra.mxu0 0
    %1392 = vmatpush.bf16.xpose.msra.mxu0 0
    %1393 = vmatpush.bf16.xpose.msra.mxu0 0
    %1394 = vmatpush.bf16.xpose.msra.mxu0 0
    %1395 = vmatpush.bf16.xpose.msra.mxu0 0
    %1396 = vmatpush.bf16.xpose.msra.mxu0 0
    %1397 = vmatpush.bf16.xpose.msra.mxu0 0
    %1398 = vmatpush.bf16.xpose.msra.mxu0 %v1389
    %1399 = vmatmul.bf16.gmra.mxu0 %v1386
    %v1400 = vpop.f32.mrf.mxu0
    %v1401 = vadd.f32 0.0, %v1400
    %v1402 = vpop.f32.mrf.mxu0
    %1403 = vdwg.mxu0
    %v1405 = vsel %vm524, %v1380, 0
    %v1408 = vsel %vm524, %v1382, 0
    %1410 = vmatpush.bf16.xpose.msra.mxu0 0
    %1411 = vmatpush.bf16.xpose.msra.mxu0 0
    %1412 = vmatpush.bf16.xpose.msra.mxu0 0
    %1413 = vmatpush.bf16.xpose.msra.mxu0 0
    %1414 = vmatpush.bf16.xpose.msra.mxu0 0
    %1415 = vmatpush.bf16.xpose.msra.mxu0 0
    %1416 = vmatpush.bf16.xpose.msra.mxu0 0
    %1417 = vmatpush.bf16.xpose.msra.mxu0 %v1408
    %1418 = vmatmul.bf16.gmra.mxu0 %v1405
    %v1419 = vpop.f32.mrf.mxu0
    %v1420 = vadd.f32 0.0, %v1419
    %v1421 = vpop.f32.mrf.mxu0
    %1422 = vdwg.mxu0
    %v1423 = vmul.f32 %v1401, 0.17677669
    %v1424 = vmul.f32 %v1420, 0.17677669
    %v1425 = vsel %vm565, %v1423, -inf
    %1426 = vmax.xlane.f32.xlu0 %v1425
    %v1427 = vpop.xlane.xlu0 %1426
    %v1428 = vsel %vm565, %v1424, -inf
    %1429 = vmax.xlane.f32.xlu0 %v1428
    %v1430 = vpop.xlane.xlu0 %1429
    %v1431 = vsub.f32 %v1423, %v1427
    %v1432 = vsub.f32 %v1424, %v1430
    %v1433 = vmul.f32 %v1431, 1.442695
    %v1434 = vpow.pop %v1433
    %v1435 = vmul.f32 %v1432, 1.442695
    %v1436 = vpow.pop %v1435
    %v1437 = vsel %vm565, %v1434, 0.0
    %1438 = vadd.xlane.f32.xlu0 %v1437
    %v1439 = vpop.xlane.xlu0 %1438
    %v1440 = vsel %vm565, %v1436, 0.0
    %1441 = vadd.xlane.f32.xlu0 %v1440
    %v1442 = vpop.xlane.xlu0 %1441
    %v1443 = vrcp.pop %v1439
    %v1444 = vrcp.pop %v1442
    %v1445 = vmul.f32 %v1434, %v1443
    %v1446 = vmul.f32 %v1436, %v1444
    %v1447 = vpack.c.bf16 %v1445, %v1445
    %v1448 = vpack.c.bf16 %v1446, %v1446
    %v1450 = vsel %vm565, %v1447, 0
    %v1453 = vsel %vm593, %v1383, 0
    %1455 = vmatpush.bf16.msra.mxu0 0
    %1456 = vmatpush.bf16.msra.mxu0 0
    %1457 = vmatpush.bf16.msra.mxu0 0
    %1458 = vmatpush.bf16.msra.mxu0 0
    %1459 = vmatpush.bf16.msra.mxu0 0
    %1460 = vmatpush.bf16.msra.mxu0 0
    %1461 = vmatpush.bf16.msra.mxu0 0
    %1462 = vmatpush.bf16.msra.mxu0 %v1453
    %1463 = vmatmul.bf16.gmra.mxu0 %v1450
    %v1464 = vpop.f32.mrf.mxu0
    %v1465 = vadd.f32 0.0, %v1464
    %v1466 = vpop.f32.mrf.mxu0
    %1467 = vdwg.mxu0
    %v1469 = vsel %vm565, %v1448, 0
    %v1472 = vsel %vm593, %v1384, 0
    %1474 = vmatpush.bf16.msra.mxu0 0
    %1475 = vmatpush.bf16.msra.mxu0 0
    %1476 = vmatpush.bf16.msra.mxu0 0
    %1477 = vmatpush.bf16.msra.mxu0 0
    %1478 = vmatpush.bf16.msra.mxu0 0
    %1479 = vmatpush.bf16.msra.mxu0 0
    %1480 = vmatpush.bf16.msra.mxu0 0
    %1481 = vmatpush.bf16.msra.mxu0 %v1472
    %1482 = vmatmul.bf16.gmra.mxu0 %v1469
    %v1483 = vpop.f32.mrf.mxu0
    %v1484 = vadd.f32 0.0, %v1483
    %v1485 = vpop.f32.mrf.mxu0
    %1486 = vdwg.mxu0
    %v1488 = vunpack.c.l.b16 %v1379
    %v1489 = vpack.c.b16 %v1488, %v1488
    %1490 = vrot.lane.b32.xlu0 %v1489, 96
    %v1491 = vpop.permute.xlu0 %1490
    %v1493 = vunpack.c.l.b16 %v1381
    %v1494 = vpack.c.b16 %v1493, %v1493
    %1495 = vrot.lane.b32.xlu0 %v1494, 96
    %v1496 = vpop.permute.xlu0 %1495
    %v1498 = vsel %vm524, %v1491, 0
    %v1501 = vsel %vm524, %v1496, 0
    %1503 = vmatpush.bf16.xpose.msra.mxu0 0
    %1504 = vmatpush.bf16.xpose.msra.mxu0 0
    %1505 = vmatpush.bf16.xpose.msra.mxu0 0
    %1506 = vmatpush.bf16.xpose.msra.mxu0 0
    %1507 = vmatpush.bf16.xpose.msra.mxu0 0
    %1508 = vmatpush.bf16.xpose.msra.mxu0 0
    %1509 = vmatpush.bf16.xpose.msra.mxu0 0
    %1510 = vmatpush.bf16.xpose.msra.mxu0 %v1501
    %1511 = vmatmul.bf16.gmra.mxu0 %v1498
    %v1512 = vpop.f32.mrf.mxu0
    %v1513 = vadd.f32 0.0, %v1512
    %v1514 = vpop.f32.mrf.mxu0
    %1515 = vdwg.mxu0
    %v1517 = vunpack.c.l.b16 %v1380
    %v1518 = vpack.c.b16 %v1517, %v1517
    %1519 = vrot.lane.b32.xlu0 %v1518, 96
    %v1520 = vpop.permute.xlu0 %1519
    %v1522 = vunpack.c.l.b16 %v1382
    %v1523 = vpack.c.b16 %v1522, %v1522
    %1524 = vrot.lane.b32.xlu0 %v1523, 96
    %v1525 = vpop.permute.xlu0 %1524
    %v1527 = vsel %vm524, %v1520, 0
    %v1530 = vsel %vm524, %v1525, 0
    %1532 = vmatpush.bf16.xpose.msra.mxu0 0
    %1533 = vmatpush.bf16.xpose.msra.mxu0 0
    %1534 = vmatpush.bf16.xpose.msra.mxu0 0
    %1535 = vmatpush.bf16.xpose.msra.mxu0 0
    %1536 = vmatpush.bf16.xpose.msra.mxu0 0
    %1537 = vmatpush.bf16.xpose.msra.mxu0 0
    %1538 = vmatpush.bf16.xpose.msra.mxu0 0
    %1539 = vmatpush.bf16.xpose.msra.mxu0 %v1530
    %1540 = vmatmul.bf16.gmra.mxu0 %v1527
    %v1541 = vpop.f32.mrf.mxu0
    %v1542 = vadd.f32 0.0, %v1541
    %v1543 = vpop.f32.mrf.mxu0
    %1544 = vdwg.mxu0
    %v1545 = vmul.f32 %v1513, 0.17677669
    %v1546 = vmul.f32 %v1542, 0.17677669
    %v1547 = vsel %vm565, %v1545, -inf
    %1548 = vmax.xlane.f32.xlu0 %v1547
    %v1549 = vpop.xlane.xlu0 %1548
    %v1550 = vsel %vm565, %v1546, -inf
    %1551 = vmax.xlane.f32.xlu0 %v1550
    %v1552 = vpop.xlane.xlu0 %1551
    %v1553 = vsub.f32 %v1545, %v1549
    %v1554 = vsub.f32 %v1546, %v1552
    %v1555 = vmul.f32 %v1553, 1.442695
    %v1556 = vpow.pop %v1555
    %v1557 = vmul.f32 %v1554, 1.442695
    %v1558 = vpow.pop %v1557
    %v1559 = vsel %vm565, %v1556, 0.0
    %1560 = vadd.xlane.f32.xlu0 %v1559
    %v1561 = vpop.xlane.xlu0 %1560
    %v1562 = vsel %vm565, %v1558, 0.0
    %1563 = vadd.xlane.f32.xlu0 %v1562
    %v1564 = vpop.xlane.xlu0 %1563
    %v1565 = vrcp.pop %v1561
    %v1566 = vrcp.pop %v1564
    %v1567 = vmul.f32 %v1556, %v1565
    %v1568 = vmul.f32 %v1558, %v1566
    %v1569 = vpack.c.bf16 %v1567, %v1567
    %v1570 = vpack.c.bf16 %v1568, %v1568
    %v1572 = vunpack.c.l.b16 %v1383
    %v1573 = vpack.c.b16 %v1572, %v1572
    %1574 = vrot.lane.b32.xlu0 %v1573, 96
    %v1575 = vpop.permute.xlu0 %1574
    %v1577 = vsel %vm565, %v1569, 0
    %v1580 = vsel %vm593, %v1575, 0
    %1582 = vmatpush.bf16.msra.mxu0 0
    %1583 = vmatpush.bf16.msra.mxu0 0
    %1584 = vmatpush.bf16.msra.mxu0 0
    %1585 = vmatpush.bf16.msra.mxu0 0
    %1586 = vmatpush.bf16.msra.mxu0 0
    %1587 = vmatpush.bf16.msra.mxu0 0
    %1588 = vmatpush.bf16.msra.mxu0 0
    %1589 = vmatpush.bf16.msra.mxu0 %v1580
    %1590 = vmatmul.bf16.gmra.mxu0 %v1577
    %v1591 = vpop.f32.mrf.mxu0
    %v1592 = vadd.f32 0.0, %v1591
    %v1593 = vpop.f32.mrf.mxu0
    %1594 = vdwg.mxu0
    %v1596 = vunpack.c.l.b16 %v1384
    %v1597 = vpack.c.b16 %v1596, %v1596
    %1598 = vrot.lane.b32.xlu0 %v1597, 96
    %v1599 = vpop.permute.xlu0 %1598
    %v1601 = vsel %vm565, %v1570, 0
    %v1604 = vsel %vm593, %v1599, 0
    %1606 = vmatpush.bf16.msra.mxu0 0
    %1607 = vmatpush.bf16.msra.mxu0 0
    %1608 = vmatpush.bf16.msra.mxu0 0
    %1609 = vmatpush.bf16.msra.mxu0 0
    %1610 = vmatpush.bf16.msra.mxu0 0
    %1611 = vmatpush.bf16.msra.mxu0 0
    %1612 = vmatpush.bf16.msra.mxu0 0
    %1613 = vmatpush.bf16.msra.mxu0 %v1604
    %1614 = vmatmul.bf16.gmra.mxu0 %v1601
    %v1615 = vpop.f32.mrf.mxu0
    %v1616 = vadd.f32 0.0, %v1615
    %v1617 = vpop.f32.mrf.mxu0
    %1618 = vdwg.mxu0
    %1619 = vrot.lane.b32.xlu0 %v1489, 64
    %v1620 = vpop.permute.xlu0 %1619
    %1621 = vrot.lane.b32.xlu0 %v1494, 64
    %v1622 = vpop.permute.xlu0 %1621
    %v1624 = vsel %vm524, %v1620, 0
    %v1627 = vsel %vm524, %v1622, 0
    %1629 = vmatpush.bf16.xpose.msra.mxu0 0
    %1630 = vmatpush.bf16.xpose.msra.mxu0 0
    %1631 = vmatpush.bf16.xpose.msra.mxu0 0
    %1632 = vmatpush.bf16.xpose.msra.mxu0 0
    %1633 = vmatpush.bf16.xpose.msra.mxu0 0
    %1634 = vmatpush.bf16.xpose.msra.mxu0 0
    %1635 = vmatpush.bf16.xpose.msra.mxu0 0
    %1636 = vmatpush.bf16.xpose.msra.mxu0 %v1627
    %1637 = vmatmul.bf16.gmra.mxu0 %v1624
    %v1638 = vpop.f32.mrf.mxu0
    %v1639 = vadd.f32 0.0, %v1638
    %v1640 = vpop.f32.mrf.mxu0
    %1641 = vdwg.mxu0
    %1642 = vrot.lane.b32.xlu0 %v1518, 64
    %v1643 = vpop.permute.xlu0 %1642
    %1644 = vrot.lane.b32.xlu0 %v1523, 64
    %v1645 = vpop.permute.xlu0 %1644
    %v1647 = vsel %vm524, %v1643, 0
    %v1650 = vsel %vm524, %v1645, 0
    %1652 = vmatpush.bf16.xpose.msra.mxu0 0
    %1653 = vmatpush.bf16.xpose.msra.mxu0 0
    %1654 = vmatpush.bf16.xpose.msra.mxu0 0
    %1655 = vmatpush.bf16.xpose.msra.mxu0 0
    %1656 = vmatpush.bf16.xpose.msra.mxu0 0
    %1657 = vmatpush.bf16.xpose.msra.mxu0 0
    %1658 = vmatpush.bf16.xpose.msra.mxu0 0
    %1659 = vmatpush.bf16.xpose.msra.mxu0 %v1650
    %1660 = vmatmul.bf16.gmra.mxu0 %v1647
    %v1661 = vpop.f32.mrf.mxu0
    %v1662 = vadd.f32 0.0, %v1661
    %v1663 = vpop.f32.mrf.mxu0
    %1664 = vdwg.mxu0
    %v1665 = vmul.f32 %v1639, 0.17677669
    %v1666 = vmul.f32 %v1662, 0.17677669
    %v1667 = vsel %vm565, %v1665, -inf
    %1668 = vmax.xlane.f32.xlu0 %v1667
    %v1669 = vpop.xlane.xlu0 %1668
    %v1670 = vsel %vm565, %v1666, -inf
    %1671 = vmax.xlane.f32.xlu0 %v1670
    %v1672 = vpop.xlane.xlu0 %1671
    %v1673 = vsub.f32 %v1665, %v1669
    %v1674 = vsub.f32 %v1666, %v1672
    %v1675 = vmul.f32 %v1673, 1.442695
    %v1676 = vpow.pop %v1675
    %v1677 = vmul.f32 %v1674, 1.442695
    %v1678 = vpow.pop %v1677
    %v1679 = vsel %vm565, %v1676, 0.0
    %1680 = vadd.xlane.f32.xlu0 %v1679
    %v1681 = vpop.xlane.xlu0 %1680
    %v1682 = vsel %vm565, %v1678, 0.0
    %1683 = vadd.xlane.f32.xlu0 %v1682
    %v1684 = vpop.xlane.xlu0 %1683
    %v1685 = vrcp.pop %v1681
    %v1686 = vrcp.pop %v1684
    %v1687 = vmul.f32 %v1676, %v1685
    %v1688 = vmul.f32 %v1678, %v1686
    %v1689 = vpack.c.bf16 %v1687, %v1687
    %v1690 = vpack.c.bf16 %v1688, %v1688
    %1691 = vrot.lane.b32.xlu0 %v1573, 64
    %v1692 = vpop.permute.xlu0 %1691
    %v1694 = vsel %vm565, %v1689, 0
    %v1697 = vsel %vm593, %v1692, 0
    %1699 = vmatpush.bf16.msra.mxu0 0
    %1700 = vmatpush.bf16.msra.mxu0 0
    %1701 = vmatpush.bf16.msra.mxu0 0
    %1702 = vmatpush.bf16.msra.mxu0 0
    %1703 = vmatpush.bf16.msra.mxu0 0
    %1704 = vmatpush.bf16.msra.mxu0 0
    %1705 = vmatpush.bf16.msra.mxu0 0
    %1706 = vmatpush.bf16.msra.mxu0 %v1697
    %1707 = vmatmul.bf16.gmra.mxu0 %v1694
    %v1708 = vpop.f32.mrf.mxu0
    %v1709 = vadd.f32 0.0, %v1708
    %v1710 = vpop.f32.mrf.mxu0
    %1711 = vdwg.mxu0
    %1712 = vrot.lane.b32.xlu0 %v1597, 64
    %v1713 = vpop.permute.xlu0 %1712
    %v1715 = vsel %vm565, %v1690, 0
    %v1718 = vsel %vm593, %v1713, 0
    %1720 = vmatpush.bf16.msra.mxu0 0
    %1721 = vmatpush.bf16.msra.mxu0 0
    %1722 = vmatpush.bf16.msra.mxu0 0
    %1723 = vmatpush.bf16.msra.mxu0 0
    %1724 = vmatpush.bf16.msra.mxu0 0
    %1725 = vmatpush.bf16.msra.mxu0 0
    %1726 = vmatpush.bf16.msra.mxu0 0
    %1727 = vmatpush.bf16.msra.mxu0 %v1718
    %1728 = vmatmul.bf16.gmra.mxu0 %v1715
    %v1729 = vpop.f32.mrf.mxu0
    %v1730 = vadd.f32 0.0, %v1729
    %v1731 = vpop.f32.mrf.mxu0
    %1732 = vdwg.mxu0
    %1733 = vrot.lane.b32.xlu0 %v1489, 32
    %v1734 = vpop.permute.xlu0 %1733
    %1735 = vrot.lane.b32.xlu0 %v1494, 32
    %v1736 = vpop.permute.xlu0 %1735
    %v1738 = vsel %vm524, %v1734, 0
    %v1741 = vsel %vm524, %v1736, 0
    %1743 = vmatpush.bf16.xpose.msra.mxu0 0
    %1744 = vmatpush.bf16.xpose.msra.mxu0 0
    %1745 = vmatpush.bf16.xpose.msra.mxu0 0
    %1746 = vmatpush.bf16.xpose.msra.mxu0 0
    %1747 = vmatpush.bf16.xpose.msra.mxu0 0
    %1748 = vmatpush.bf16.xpose.msra.mxu0 0
    %1749 = vmatpush.bf16.xpose.msra.mxu0 0
    %1750 = vmatpush.bf16.xpose.msra.mxu0 %v1741
    %1751 = vmatmul.bf16.gmra.mxu0 %v1738
    %v1752 = vpop.f32.mrf.mxu0
    %v1753 = vadd.f32 0.0, %v1752
    %v1754 = vpop.f32.mrf.mxu0
    %1755 = vdwg.mxu0
    %1756 = vrot.lane.b32.xlu0 %v1518, 32
    %v1757 = vpop.permute.xlu0 %1756
    %1758 = vrot.lane.b32.xlu0 %v1523, 32
    %v1759 = vpop.permute.xlu0 %1758
    %v1761 = vsel %vm524, %v1757, 0
    %v1764 = vsel %vm524, %v1759, 0
    %1766 = vmatpush.bf16.xpose.msra.mxu0 0
    %1767 = vmatpush.bf16.xpose.msra.mxu0 0
    %1768 = vmatpush.bf16.xpose.msra.mxu0 0
    %1769 = vmatpush.bf16.xpose.msra.mxu0 0
    %1770 = vmatpush.bf16.xpose.msra.mxu0 0
    %1771 = vmatpush.bf16.xpose.msra.mxu0 0
    %1772 = vmatpush.bf16.xpose.msra.mxu0 0
    %1773 = vmatpush.bf16.xpose.msra.mxu0 %v1764
    %1774 = vmatmul.bf16.gmra.mxu0 %v1761
    %v1775 = vpop.f32.mrf.mxu0
    %v1776 = vadd.f32 0.0, %v1775
    %v1777 = vpop.f32.mrf.mxu0
    %1778 = vdwg.mxu0
    %v1779 = vmul.f32 %v1753, 0.17677669
    %v1780 = vmul.f32 %v1776, 0.17677669
    %v1781 = vsel %vm565, %v1779, -inf
    %1782 = vmax.xlane.f32.xlu0 %v1781
    %v1783 = vpop.xlane.xlu0 %1782
    %v1784 = vsel %vm565, %v1780, -inf
    %1785 = vmax.xlane.f32.xlu0 %v1784
    %v1786 = vpop.xlane.xlu0 %1785
    %v1787 = vsub.f32 %v1779, %v1783
    %v1788 = vsub.f32 %v1780, %v1786
    %v1789 = vmul.f32 %v1787, 1.442695
    %v1790 = vpow.pop %v1789
    %v1791 = vmul.f32 %v1788, 1.442695
    %v1792 = vpow.pop %v1791
    %v1793 = vsel %vm565, %v1790, 0.0
    %1794 = vadd.xlane.f32.xlu0 %v1793
    %v1795 = vpop.xlane.xlu0 %1794
    %v1796 = vsel %vm565, %v1792, 0.0
    %1797 = vadd.xlane.f32.xlu0 %v1796
    %v1798 = vpop.xlane.xlu0 %1797
    %v1799 = vrcp.pop %v1795
    %v1800 = vrcp.pop %v1798
    %v1801 = vmul.f32 %v1790, %v1799
    %v1802 = vmul.f32 %v1792, %v1800
    %v1803 = vpack.c.bf16 %v1801, %v1801
    %v1804 = vpack.c.bf16 %v1802, %v1802
    %1805 = vrot.lane.b32.xlu0 %v1573, 32
    %v1806 = vpop.permute.xlu0 %1805
    %v1808 = vsel %vm565, %v1803, 0
    %v1811 = vsel %vm593, %v1806, 0
    %1813 = vmatpush.bf16.msra.mxu0 0
    %1814 = vmatpush.bf16.msra.mxu0 0
    %1815 = vmatpush.bf16.msra.mxu0 0
    %1816 = vmatpush.bf16.msra.mxu0 0
    %1817 = vmatpush.bf16.msra.mxu0 0
    %1818 = vmatpush.bf16.msra.mxu0 0
    %1819 = vmatpush.bf16.msra.mxu0 0
    %1820 = vmatpush.bf16.msra.mxu0 %v1811
    %1821 = vmatmul.bf16.gmra.mxu0 %v1808
    %v1822 = vpop.f32.mrf.mxu0
    %v1823 = vadd.f32 0.0, %v1822
    %v1824 = vpop.f32.mrf.mxu0
    %1825 = vdwg.mxu0
    %1826 = vrot.lane.b32.xlu0 %v1597, 32
    %v1827 = vpop.permute.xlu0 %1826
    %v1829 = vsel %vm565, %v1804, 0
    %v1832 = vsel %vm593, %v1827, 0
    %1834 = vmatpush.bf16.msra.mxu0 0
    %1835 = vmatpush.bf16.msra.mxu0 0
    %1836 = vmatpush.bf16.msra.mxu0 0
    %1837 = vmatpush.bf16.msra.mxu0 0
    %1838 = vmatpush.bf16.msra.mxu0 0
    %1839 = vmatpush.bf16.msra.mxu0 0
    %1840 = vmatpush.bf16.msra.mxu0 0
    %1841 = vmatpush.bf16.msra.mxu0 %v1832
    %1842 = vmatmul.bf16.gmra.mxu0 %v1829
    %v1843 = vpop.f32.mrf.mxu0
    %v1844 = vadd.f32 0.0, %v1843
    %v1845 = vpop.f32.mrf.mxu0
    %1846 = vdwg.mxu0
    %1849 = vrot.lane.b32.xlu0 %v1592, 32
    %v1850 = vpop.permute.xlu0 %1849
    %1851 = vrot.lane.b32.xlu0 %v1616, 32
    %v1852 = vpop.permute.xlu0 %1851
    %1857 = vrot.lane.b32.xlu0 %v1709, 64
    %v1858 = vpop.permute.xlu0 %1857
    %1859 = vrot.lane.b32.xlu0 %v1730, 64
    %v1860 = vpop.permute.xlu0 %1859
    %1865 = vrot.lane.b32.xlu0 %v1823, 96
    %v1866 = vpop.permute.xlu0 %1865
    %1867 = vrot.lane.b32.xlu0 %v1844, 96
    %v1868 = vpop.permute.xlu0 %1867
    %v1871 = vsel %vm524, %v1465, %v1850
    %v1872 = vsel %vm524, %v1484, %v1852
    %v1873 = vsel %vm1015, %v1871, %v1858
    %v1874 = vsel %vm1015, %v1872, %v1860
    %v1875 = vsel %vm1018, %v1873, %v1866
    %v1876 = vsel %vm1018, %v1874, %v1868
    %v1877 = vpack.c.bf16 %v1876, %v1875
    %v1878 = vld [vmem:[#allocation13] sm:$0xf]
    %v1879 = vld [vmem:[#allocation13 + $0x4] sm:$0xf]
    %v1880 = vld [vmem:[#allocation13 + $0x8] sm:$0xf]
    %v1881 = vld [vmem:[#allocation13 + $0xc] sm:$0xf]
    %v1882 = vld [vmem:[#allocation13 + $0x10] sm:$0xf]
    %v1883 = vld [vmem:[#allocation13 + $0x14] sm:$0xf]
    %v1884 = vld [vmem:[#allocation13 + $0x18] sm:$0xf]
    %v1885 = vld [vmem:[#allocation13 + $0x1c] sm:$0xf]
    %v1886 = vld [vmem:[#allocation13 + $0x20] sm:$0xf]
    %v1887 = vld [vmem:[#allocation13 + $0x24] sm:$0xf]
    %v1888 = vld [vmem:[#allocation13 + $0x28] sm:$0xf]
    %v1889 = vld [vmem:[#allocation13 + $0x2c] sm:$0xf]
    %v1890 = vld [vmem:[#allocation13 + $0x30] sm:$0xf]
    %v1891 = vld [vmem:[#allocation13 + $0x34] sm:$0xf]
    %v1892 = vld [vmem:[#allocation13 + $0x38] sm:$0xf]
    %v1893 = vld [vmem:[#allocation13 + $0x3c] sm:$0xf]
    %v1894 = vld [vmem:[#allocation15] sm:$0x1]
    %v1896 = vperm.slane %v1894, 0
    %v1914 = vunpack.c.l.b16 %v1878
    %v1915 = vunpack.c.l.b16 %v1879
    %v1916 = vunpack.c.l.b16 %v1880
    %v1917 = vunpack.c.l.b16 %v1881
    %v1918 = vunpack.c.l.b16 %v1882
    %v1919 = vunpack.c.l.b16 %v1883
    %v1920 = vunpack.c.l.b16 %v1884
    %v1921 = vunpack.c.l.b16 %v1885
    %v1922 = vunpack.c.l.b16 %v1886
    %v1923 = vunpack.c.l.b16 %v1887
    %v1924 = vunpack.c.l.b16 %v1888
    %v1925 = vunpack.c.l.b16 %v1889
    %v1926 = vunpack.c.l.b16 %v1890
    %v1927 = vunpack.c.l.b16 %v1891
    %v1928 = vunpack.c.l.b16 %v1892
    %v1929 = vunpack.c.l.b16 %v1893
    %v1930 = vpack.c.b16 %v1915, %v1914
    %v1931 = vpack.c.b16 %v1917, %v1916
    %v1932 = vpack.c.b16 %v1919, %v1918
    %v1933 = vpack.c.b16 %v1921, %v1920
    %v1934 = vpack.c.b16 %v1923, %v1922
    %v1935 = vpack.c.b16 %v1925, %v1924
    %v1936 = vpack.c.b16 %v1927, %v1926
    %v1937 = vpack.c.b16 %v1929, %v1928
    %1946 = vmatpush.bf16.msra.mxu0 %v1937
    %1947 = vmatpush.bf16.msra.mxu0 %v1936
    %1948 = vmatpush.bf16.msra.mxu0 %v1935
    %1949 = vmatpush.bf16.msra.mxu0 %v1934
    %1950 = vmatpush.bf16.msra.mxu0 %v1933
    %1951 = vmatpush.bf16.msra.mxu0 %v1932
    %1952 = vmatpush.bf16.msra.mxu0 %v1931
    %1953 = vmatpush.bf16.msra.mxu0 %v1930
    %1954 = vmatmul.bf16.gmra.mxu0 %v1877
    %v1955 = vpop.f32.mrf.mxu0
    %v1956 = vadd.f32 %v1896, %v1955
    %v1957 = vpop.f32.mrf.mxu0
    %v1958 = vadd.f32 %v1896, %v1957
    %1959 = vdwg.mxu0
    %v1960 = vadd.f32 %v1163, %v1956
    %v1961 = vadd.f32 %v1164, %v1958
    %v1962 = vld [vmem:[#allocation16] sm:$0x1]
    %v1963 = vld [vmem:[#allocation18] sm:$0x1]
    %1964 = vadd.xlane.f32.xlu0 %v1960
    %v1965 = vpop.xlane.xlu0 %1964
    %1966 = vadd.xlane.f32.xlu0 %v1961
    %v1967 = vpop.xlane.xlu0 %1966
    %v1968 = vmul.f32 %v1965, %v1118
    %v1969 = vmul.f32 %v1967, %v1118
    %v1970 = vsub.f32 %v1960, %v1968
    %v1971 = vsub.f32 %v1961, %v1969
    %v1972 = vmul.f32 %v1970, %v1970
    %v1973 = vmul.f32 %v1971, %v1971
    %1974 = vadd.xlane.f32.xlu0 %v1972
    %v1975 = vpop.xlane.xlu0 %1974
    %1976 = vadd.xlane.f32.xlu0 %v1973
    %v1977 = vpop.xlane.xlu0 %1976
    %v1978 = vmul.f32 %v1975, %v1118
    %v1979 = vmul.f32 %v1977, %v1118
    %v1980 = vadd.f32 %v1978, 1e-05
    %v1981 = vadd.f32 %v1979, 1e-05
    %v1982 = vrsqrt.pop %v1980
    %v1983 = vmul.f32 %v1982, %v1980
    %v1984 = vmul.f32 %v1983, %v1982
    %v1985 = vmul.f32 0.5, %v1984
    %v1986 = vsub.f32 1.5, %v1985
    %v1987 = vmul.f32 %v1982, %v1986
    %vm1988 = vweird.f32 %v1980
    %vm1989 = vweird.f32 %v1982
    %vm1990 = vmor %vm1988, %vm1989
    %v1991 = vsel %vm1990, %v1982, %v1987
    %v1992 = vrsqrt.pop %v1981
    %v1993 = vmul.f32 %v1992, %v1981
    %v1994 = vmul.f32 %v1993, %v1992
    %v1995 = vmul.f32 0.5, %v1994
    %v1996 = vsub.f32 1.5, %v1995
    %v1997 = vmul.f32 %v1992, %v1996
    %vm1998 = vweird.f32 %v1981
    %vm1999 = vweird.f32 %v1992
    %vm2000 = vmor %vm1998, %vm1999
    %v2001 = vsel %vm2000, %v1992, %v1997
    %v2002 = vmul.f32 %v1970, %v1991
    %v2003 = vmul.f32 %v1971, %v2001
    %v2005 = vperm.slane %v1962, 0
    %v2007 = vmul.f32 %v2002, %v2005
    %v2008 = vmul.f32 %v2003, %v2005
    %v2010 = vperm.slane %v1963, 0
    %v2012 = vadd.f32 %v2007, %v2010
    %v2013 = vadd.f32 %v2008, %v2010
    %v2014 = vpack.c.bf16 %v2013, %v2012
    %v2015 = vld [vmem:[#allocation19] sm:$0xff]
    %v2016 = vld [vmem:[#allocation19 + $0x8] sm:$0xff]
    %v2017 = vld [vmem:[#allocation19 + $0x10] sm:$0xff]
    %v2018 = vld [vmem:[#allocation19 + $0x18] sm:$0xff]
    %v2019 = vld [vmem:[#allocation19 + $0x20] sm:$0xff]
    %v2020 = vld [vmem:[#allocation19 + $0x28] sm:$0xff]
    %v2021 = vld [vmem:[#allocation19 + $0x30] sm:$0xff]
    %v2022 = vld [vmem:[#allocation19 + $0x38] sm:$0xff]
    %v2023 = vld [vmem:[#allocation19 + $0x40] sm:$0xff]
    %v2024 = vld [vmem:[#allocation19 + $0x48] sm:$0xff]
    %v2025 = vld [vmem:[#allocation19 + $0x50] sm:$0xff]
    %v2026 = vld [vmem:[#allocation19 + $0x58] sm:$0xff]
    %v2027 = vld [vmem:[#allocation19 + $0x60] sm:$0xff]
    %v2028 = vld [vmem:[#allocation19 + $0x68] sm:$0xff]
    %v2029 = vld [vmem:[#allocation19 + $0x70] sm:$0xff]
    %v2030 = vld [vmem:[#allocation19 + $0x78] sm:$0xff]
    %v2031 = vld [vmem:[%s17] sm:$0x3]
    %v2033 = vperm.slane %v2031, 0
    %v2034 = vperm.slane %v2031, 1
    %v2053 = vunpack.c.l.b16 %v2015
    %v2054 = vunpack.c.h.b16 %v2015
    %v2055 = vunpack.c.l.b16 %v2016
    %v2056 = vunpack.c.h.b16 %v2016
    %v2057 = vunpack.c.l.b16 %v2017
    %v2058 = vunpack.c.h.b16 %v2017
    %v2059 = vunpack.c.l.b16 %v2018
    %v2060 = vunpack.c.h.b16 %v2018
    %v2061 = vunpack.c.l.b16 %v2019
    %v2062 = vunpack.c.h.b16 %v2019
    %v2063 = vunpack.c.l.b16 %v2020
    %v2064 = vunpack.c.h.b16 %v2020
    %v2065 = vunpack.c.l.b16 %v2021
    %v2066 = vunpack.c.h.b16 %v2021
    %v2067 = vunpack.c.l.b16 %v2022
    %v2068 = vunpack.c.h.b16 %v2022
    %v2069 = vunpack.c.l.b16 %v2023
    %v2070 = vunpack.c.h.b16 %v2023
    %v2071 = vunpack.c.l.b16 %v2024
    %v2072 = vunpack.c.h.b16 %v2024
    %v2073 = vunpack.c.l.b16 %v2025
    %v2074 = vunpack.c.h.b16 %v2025
    %v2075 = vunpack.c.l.b16 %v2026
    %v2076 = vunpack.c.h.b16 %v2026
    %v2077 = vunpack.c.l.b16 %v2027
    %v2078 = vunpack.c.h.b16 %v2027
    %v2079 = vunpack.c.l.b16 %v2028
    %v2080 = vunpack.c.h.b16 %v2028
    %v2081 = vunpack.c.l.b16 %v2029
    %v2082 = vunpack.c.h.b16 %v2029
    %v2083 = vunpack.c.l.b16 %v2030
    %v2084 = vunpack.c.h.b16 %v2030
    %v2085 = vpack.c.b16 %v2055, %v2053
    %v2086 = vpack.c.b16 %v2056, %v2054
    %v2087 = vpack.c.b16 %v2059, %v2057
    %v2088 = vpack.c.b16 %v2060, %v2058
    %v2089 = vpack.c.b16 %v2063, %v2061
    %v2090 = vpack.c.b16 %v2064, %v2062
    %v2091 = vpack.c.b16 %v2067, %v2065
    %v2092 = vpack.c.b16 %v2068, %v2066
    %v2093 = vpack.c.b16 %v2071, %v2069
    %v2094 = vpack.c.b16 %v2072, %v2070
    %v2095 = vpack.c.b16 %v2075, %v2073
    %v2096 = vpack.c.b16 %v2076, %v2074
    %v2097 = vpack.c.b16 %v2079, %v2077
    %v2098 = vpack.c.b16 %v2080, %v2078
    %v2099 = vpack.c.b16 %v2083, %v2081
    %v2100 = vpack.c.b16 %v2084, %v2082
    %2117 = vmatpush.bf16.msra.mxu0 %v2099
    %2118 = vmatpush.bf16.msra.mxu0 %v2097
    %2119 = vmatpush.bf16.msra.mxu0 %v2095
    %2120 = vmatpush.bf16.msra.mxu0 %v2093
    %2121 = vmatpush.bf16.msra.mxu0 %v2091
    %2122 = vmatpush.bf16.msra.mxu0 %v2089
    %2123 = vmatpush.bf16.msra.mxu0 %v2087
    %2124 = vmatpush.bf16.msra.mxu0 %v2085
    %2125 = vmatmul.bf16.gmra.mxu0 %v2014
    %v2126 = vpop.f32.mrf.mxu0
    %v2127 = vadd.f32 %v2033, %v2126
    %v2128 = vpop.f32.mrf.mxu0
    %v2129 = vadd.f32 %v2033, %v2128
    %2130 = vdwg.mxu0
    %2131 = vmatpush.bf16.msra.mxu0 %v2100
    %2132 = vmatpush.bf16.msra.mxu0 %v2098
    %2133 = vmatpush.bf16.msra.mxu0 %v2096
    %2134 = vmatpush.bf16.msra.mxu0 %v2094
    %2135 = vmatpush.bf16.msra.mxu0 %v2092
    %2136 = vmatpush.bf16.msra.mxu0 %v2090
    %2137 = vmatpush.bf16.msra.mxu0 %v2088
    %2138 = vmatpush.bf16.msra.mxu0 %v2086
    %2139 = vmatmul.bf16.gmra.mxu0 %v2014
    %v2140 = vpop.f32.mrf.mxu0
    %v2141 = vadd.f32 %v2034, %v2140
    %v2142 = vpop.f32.mrf.mxu0
    %v2143 = vadd.f32 %v2034, %v2142
    %2144 = vdwg.mxu0
    %v2145 = vmax.f32 %v2127, 0.0
    %v2146 = vmax.f32 %v2141, 0.0
    %v2147 = vmax.f32 %v2129, 0.0
    %v2148 = vmax.f32 %v2143, 0.0
    %v2149 = vpack.c.bf16 %v2147, %v2145
    %v2150 = vpack.c.bf16 %v2148, %v2146
    %v2151 = vld [vmem:[#allocation21] sm:$0xf]
    %v2152 = vld [vmem:[#allocation21 + $0x4] sm:$0xf]
    %v2153 = vld [vmem:[#allocation21 + $0x8] sm:$0xf]
    %v2154 = vld [vmem:[#allocation21 + $0xc] sm:$0xf]
    %v2155 = vld [vmem:[#allocation21 + $0x10] sm:$0xf]
    %v2156 = vld [vmem:[#allocation21 + $0x14] sm:$0xf]
    %v2157 = vld [vmem:[#allocation21 + $0x18] sm:$0xf]
    %v2158 = vld [vmem:[#allocation21 + $0x1c] sm:$0xf]
    %v2159 = vld [vmem:[#allocation21 + $0x20] sm:$0xf]
    %v2160 = vld [vmem:[#allocation21 + $0x24] sm:$0xf]
    %v2161 = vld [vmem:[#allocation21 + $0x28] sm:$0xf]
    %v2162 = vld [vmem:[#allocation21 + $0x2c] sm:$0xf]
    %v2163 = vld [vmem:[#allocation21 + $0x30] sm:$0xf]
    %v2164 = vld [vmem:[#allocation21 + $0x34] sm:$0xf]
    %v2165 = vld [vmem:[#allocation21 + $0x38] sm:$0xf]
    %v2166 = vld [vmem:[#allocation21 + $0x3c] sm:$0xf]
    %v2167 = vld [vmem:[#allocation21 + $0x40] sm:$0xf]
    %v2168 = vld [vmem:[#allocation21 + $0x44] sm:$0xf]
    %v2169 = vld [vmem:[#allocation21 + $0x48] sm:$0xf]
    %v2170 = vld [vmem:[#allocation21 + $0x4c] sm:$0xf]
    %v2171 = vld [vmem:[#allocation21 + $0x50] sm:$0xf]
    %v2172 = vld [vmem:[#allocation21 + $0x54] sm:$0xf]
    %v2173 = vld [vmem:[#allocation21 + $0x58] sm:$0xf]
    %v2174 = vld [vmem:[#allocation21 + $0x5c] sm:$0xf]
    %v2175 = vld [vmem:[#allocation21 + $0x60] sm:$0xf]
    %v2176 = vld [vmem:[#allocation21 + $0x64] sm:$0xf]
    %v2177 = vld [vmem:[#allocation21 + $0x68] sm:$0xf]
    %v2178 = vld [vmem:[#allocation21 + $0x6c] sm:$0xf]
    %v2179 = vld [vmem:[#allocation21 + $0x70] sm:$0xf]
    %v2180 = vld [vmem:[#allocation21 + $0x74] sm:$0xf]
    %v2181 = vld [vmem:[#allocation21 + $0x78] sm:$0xf]
    %v2182 = vld [vmem:[#allocation21 + $0x7c] sm:$0xf]
    %v2183 = vld [vmem:[#allocation22] sm:$0x1]
    %v2185 = vperm.slane %v2183, 0
    %v2219 = vunpack.c.l.b16 %v2151
    %v2220 = vunpack.c.l.b16 %v2152
    %v2221 = vunpack.c.l.b16 %v2153
    %v2222 = vunpack.c.l.b16 %v2154
    %v2223 = vunpack.c.l.b16 %v2155
    %v2224 = vunpack.c.l.b16 %v2156
    %v2225 = vunpack.c.l.b16 %v2157
    %v2226 = vunpack.c.l.b16 %v2158
    %v2227 = vunpack.c.l.b16 %v2159
    %v2228 = vunpack.c.l.b16 %v2160
    %v2229 = vunpack.c.l.b16 %v2161
    %v2230 = vunpack.c.l.b16 %v2162
    %v2231 = vunpack.c.l.b16 %v2163
    %v2232 = vunpack.c.l.b16 %v2164
    %v2233 = vunpack.c.l.b16 %v2165
    %v2234 = vunpack.c.l.b16 %v2166
    %v2235 = vunpack.c.l.b16 %v2167
    %v2236 = vunpack.c.l.b16 %v2168
    %v2237 = vunpack.c.l.b16 %v2169
    %v2238 = vunpack.c.l.b16 %v2170
    %v2239 = vunpack.c.l.b16 %v2171
    %v2240 = vunpack.c.l.b16 %v2172
    %v2241 = vunpack.c.l.b16 %v2173
    %v2242 = vunpack.c.l.b16 %v2174
    %v2243 = vunpack.c.l.b16 %v2175
    %v2244 = vunpack.c.l.b16 %v2176
    %v2245 = vunpack.c.l.b16 %v2177
    %v2246 = vunpack.c.l.b16 %v2178
    %v2247 = vunpack.c.l.b16 %v2179
    %v2248 = vunpack.c.l.b16 %v2180
    %v2249 = vunpack.c.l.b16 %v2181
    %v2250 = vunpack.c.l.b16 %v2182
    %v2251 = vpack.c.b16 %v2220, %v2219
    %v2252 = vpack.c.b16 %v2222, %v2221
    %v2253 = vpack.c.b16 %v2224, %v2223
    %v2254 = vpack.c.b16 %v2226, %v2225
    %v2255 = vpack.c.b16 %v2228, %v2227
    %v2256 = vpack.c.b16 %v2230, %v2229
    %v2257 = vpack.c.b16 %v2232, %v2231
    %v2258 = vpack.c.b16 %v2234, %v2233
    %v2259 = vpack.c.b16 %v2236, %v2235
    %v2260 = vpack.c.b16 %v2238, %v2237
    %v2261 = vpack.c.b16 %v2240, %v2239
    %v2262 = vpack.c.b16 %v2242, %v2241
    %v2263 = vpack.c.b16 %v2244, %v2243
    %v2264 = vpack.c.b16 %v2246, %v2245
    %v2265 = vpack.c.b16 %v2248, %v2247
    %v2266 = vpack.c.b16 %v2250, %v2249
    %2283 = vmatpush.bf16.msra.mxu0 %v2258
    %2284 = vmatpush.bf16.msra.mxu0 %v2257
    %2285 = vmatpush.bf16.msra.mxu0 %v2256
    %2286 = vmatpush.bf16.msra.mxu0 %v2255
    %2287 = vmatpush.bf16.msra.mxu0 %v2254
    %2288 = vmatpush.bf16.msra.mxu0 %v2253
    %2289 = vmatpush.bf16.msra.mxu0 %v2252
    %2290 = vmatpush.bf16.msra.mxu0 %v2251
    %2291 = vmatmul.bf16.gmra.mxu0 %v2149
    %v2292 = vpop.f32.mrf.mxu0
    %v2293 = vadd.f32 %v2185, %v2292
    %v2294 = vpop.f32.mrf.mxu0
    %v2295 = vadd.f32 %v2185, %v2294
    %2296 = vdwg.mxu0
    %2297 = vmatpush.bf16.msra.mxu0 %v2266
    %2298 = vmatpush.bf16.msra.mxu0 %v2265
    %2299 = vmatpush.bf16.msra.mxu0 %v2264
    %2300 = vmatpush.bf16.msra.mxu0 %v2263
    %2301 = vmatpush.bf16.msra.mxu0 %v2262
    %2302 = vmatpush.bf16.msra.mxu0 %v2261
    %2303 = vmatpush.bf16.msra.mxu0 %v2260
    %2304 = vmatpush.bf16.msra.mxu0 %v2259
    %2305 = vmatmul.bf16.gmra.mxu0 %v2150
    %v2306 = vpop.f32.mrf.mxu0
    %v2307 = vadd.f32 %v2293, %v2306
    %v2308 = vpop.f32.mrf.mxu0
    %v2309 = vadd.f32 %v2295, %v2308
    %2310 = vdwg.mxu0
    %v2311 = vadd.f32 %v2012, %v2307
    %v2312 = vadd.f32 %v2013, %v2309
    %v2313 = vld [vmem:[#allocation24] sm:$0x1]
    %v2314 = vld [vmem:[#allocation25] sm:$0x1]
    %2315 = vadd.xlane.f32.xlu0 %v2311
    %v2316 = vpop.xlane.xlu0 %2315
    %2317 = vadd.xlane.f32.xlu0 %v2312
    %v2318 = vpop.xlane.xlu0 %2317
    %v2319 = vmul.f32 %v2316, %v1118
    %v2320 = vmul.f32 %v2318, %v1118
    %v2321 = vsub.f32 %v2311, %v2319
    %v2322 = vsub.f32 %v2312, %v2320
    %v2323 = vmul.f32 %v2321, %v2321
    %v2324 = vmul.f32 %v2322, %v2322
    %2325 = vadd.xlane.f32.xlu0 %v2323
    %v2326 = vpop.xlane.xlu0 %2325
    %2327 = vadd.xlane.f32.xlu0 %v2324
    %v2328 = vpop.xlane.xlu0 %2327
    %v2329 = vmul.f32 %v2326, %v1118
    %v2330 = vmul.f32 %v2328, %v1118
    %v2331 = vadd.f32 %v2329, 1e-05
    %v2332 = vadd.f32 %v2330, 1e-05
    %v2333 = vrsqrt.pop %v2331
    %v2334 = vmul.f32 %v2333, %v2331
    %v2335 = vmul.f32 %v2334, %v2333
    %v2336 = vmul.f32 0.5, %v2335
    %v2337 = vsub.f32 1.5, %v2336
    %v2338 = vmul.f32 %v2333, %v2337
    %vm2339 = vweird.f32 %v2331
    %vm2340 = vweird.f32 %v2333
    %vm2341 = vmor %vm2339, %vm2340
    %v2342 = vsel %vm2341, %v2333, %v2338
    %v2343 = vrsqrt.pop %v2332
    %v2344 = vmul.f32 %v2343, %v2332
    %v2345 = vmul.f32 %v2344, %v2343
    %v2346 = vmul.f32 0.5, %v2345
    %v2347 = vsub.f32 1.5, %v2346
    %v2348 = vmul.f32 %v2343, %v2347
    %vm2349 = vweird.f32 %v2332
    %vm2350 = vweird.f32 %v2343
    %vm2351 = vmor %vm2349, %vm2350
    %v2352 = vsel %vm2351, %v2343, %v2348
    %v2353 = vmul.f32 %v2321, %v2342
    %v2354 = vmul.f32 %v2322, %v2352
    %v2356 = vperm.slane %v2313, 0
    %v2358 = vmul.f32 %v2353, %v2356
    %v2359 = vmul.f32 %v2354, %v2356
    %v2361 = vperm.slane %v2314, 0
    %v2363 = vadd.f32 %v2358, %v2361
    %v2364 = vadd.f32 %v2359, %v2361
    %2365 = vst [vmem:[%s22] sm:$0xff] %v2363
    %2366 = vst [vmem:[%s22 + $0x8] sm:$0xff] %v2364
    // Predicated region
    $region154: #{model_forward.10} parent=1 // pred_check
      _
    $region155: #{model_forward.10} parent=1 // pred_check_branch
      %2368 = sbr.rel (0) target = $region157
    $region156: #{model_forward.10} parent=1 // pred_region
      _
    $region157: #{model_forward.10} parent=1 // pred_fallthru
      _
    // Predicated region
    $region158: #{model_forward.10} parent=1 // pred_check
      _
    $region159: #{model_forward.10} parent=1 // pred_check_branch
      %2370 = sbr.rel (0) target = $region161
    $region160: #{model_forward.10} parent=1 // pred_region
      _
    $region161: #{model_forward.10} parent=1 // pred_fallthru
      _
    %2371 = vsyncpa [#allocation3], 1
    %2372 = vsyncpa [#allocation5], 1
    %2373 = vsyncpa [#allocation8], 1
    %2374 = vsyncpa [#allocation11], 1
    %2375 = vsyncpa [#allocation14], 1
    %2376 = vsyncpa [#allocation17], 1
    %2377 = vsyncpa [#allocation20], 1
    %2378 = vsyncpa [#allocation23], 1
    %2379 = vsyncpa [#allocation26], 1

</llo_original>
